<compile_context>
chip_gen: v7x
topology: tpu7x:2x2x1
jax: 0.10.0
libtpu: 0.0.40
codegen_flags: <defaults>
</compile_context>

<pallas_src>
import math
from functools import partial

import numpy as np
import jax
import jax.numpy as jnp
from jax.experimental import pallas as pl
from jax.experimental.pallas import tpu as pltpu

# ----------------------------- small OmniGen2-like config -----------------------------
B = 2                       # batch
C_IN = 4                    # latent channels
IMG_HW = 16                 # latent spatial size
PATCH = 2                   # patch size
HID = 32                    # hidden_size
NUM_HEADS = 4
HEAD_DIM = HID // NUM_HEADS # 8
TEXT_LEN = 8
TEXT_DIM = 16               # text feature dim
FREQ_DIM = 32               # sinusoidal timestep embedding dim
FFN_DIM = 64                # SwiGLU inner dim
AXES_DIM_ROPE = (4, 2, 2)   # sums to HEAD_DIM
AXES_LENS = (128, 32, 32)
ROPE_THETA = 10000.0
EPS = 1e-6
PATCH_DIM = C_IN * PATCH * PATCH          # 16
QKV_PAD = ((3 * HID + 127) // 128) * 128  # q|k|v lanes padded to a 128-lane slab


# ----------------------------- packed constant matrices (built once) -----------------------------
def _build_h_pack():
    """(x*x) @ H_PACK == per-head mean of x^2 on q and k lane blocks, 0 on v/pad lanes."""
    h = np.zeros((QKV_PAD, QKV_PAD), np.float32)
    for blk in (0, HID):                       # q block, k block
        for i in range(HID):
            for j in range(HID):
                if i // HEAD_DIM == j // HEAD_DIM:
                    h[blk + i, blk + j] = 1.0 / HEAD_DIM
    return jnp.asarray(h, jnp.bfloat16)        # 0 and 1/8 are exact in bf16


def _build_p_pack():
    """(x @ P_PACK)[:, j] == x[:, j ^ 1] within the q and k blocks (RoPE pair swap)."""
    p = np.zeros((QKV_PAD, QKV_PAD), np.float32)
    for blk in (0, HID):
        for j in range(HID):
            p[blk + (j ^ 1), blk + j] = 1.0
    return jnp.asarray(p, jnp.bfloat16)


H_PACK = _build_h_pack()
P_PACK = _build_p_pack()
# mean-offset: eps on q/k lanes, 1.0 on v/pad lanes so rsqrt(0+1)=1 passes v through.
OFFSET_PACK = jnp.asarray(
    np.concatenate([np.full((2 * HID,), EPS, np.float32),
                    np.ones((QKV_PAD - 2 * HID,), np.float32)]).reshape(1, QKV_PAD))

_BLK_MASK_CACHE = {}


def _blk_mask(s):
    """[NH*S, HID] block mask: row h*S+s keeps only head-h output lanes (f32, cast in kernel)."""
    if s not in _BLK_MASK_CACHE:
        m = np.zeros((NUM_HEADS * s, HID), np.float32)
        for h in range(NUM_HEADS):
            m[h * s:(h + 1) * s, h * HEAD_DIM:(h + 1) * HEAD_DIM] = 1.0
        _BLK_MASK_CACHE[s] = jnp.asarray(m)
    return _BLK_MASK_CACHE[s]


def _batch_block(bsz):
    """Fold batch into one grid step on 1-TC chips; keep grid=(B,) on 2-TC v7x."""
    try:
        kind = jax.devices()[0].device_kind.lower()
    except Exception:
        kind = ""
    multi_tc = ("v7" in kind) or ("7x" in kind)
    return 1 if (multi_tc and bsz > 1) else bsz


# ----------------------------- fused transformer-block kernel -----------------------------
def _block_kernel(*refs, modulated, in_proj, bb, hid, nh, ffn, scale):
    it = iter(refs)
    x_ref = next(it)
    win_ref = bin_ref = None
    scm_ref = gm_ref = scp_ref = gp_ref = None
    if in_proj:
        win_ref = next(it)
        bin_ref = next(it)
    if modulated:
        scm_ref = next(it)
        gm_ref = next(it)
        scp_ref = next(it)
        gp_ref = next(it)
    bias_ref = next(it)
    cos_ref = next(it)
    sin_ref = next(it)
    mask_ref = next(it)
    n1_ref = next(it)
    wqkv_ref = next(it)
    off_ref = next(it)
    gam_ref = next(it)
    hpk_ref = next(it)
    ppk_ref = next(it)
    wo_ref = next(it)
    n2_ref = next(it)
    n3_ref = next(it)
    wgu_ref = next(it)
    wdn_ref = next(it)
    n4_ref = next(it)
    o_ref = next(it)

    f32, bf16 = jnp.float32, jnp.bfloat16

    def mm(a, b):
        # bf16 MXU inputs, f32 accumulation (autocast-style).
        return jnp.dot(a.astype(bf16), b.astype(bf16), preferred_element_type=f32)

    def rms(v, w_ref):
        ms = jnp.mean(v * v, axis=-1, keepdims=True)
        return v * jax.lax.rsqrt(ms + EPS) * w_ref[...]

    # constants / weights loaded once per grid step, shared by all batch rows
    maskf = mask_ref[...]                 # [nh*s, hid] f32
    maskb = maskf.astype(bf16)
    hpk = hpk_ref[...]
    ppk = ppk_ref[...]
    off = off_ref[...]
    gam = gam_ref[...]

    for b in range(bb):                   # statically unrolled (bb in {1, B})
        xin = x_ref[b].astype(f32)        # [S, Din]
        if in_proj:
            x = mm(xin, win_ref[...]) + bin_ref[...]   # x_embedder folded in
        else:
            x = xin                                    # [S, H]

        if modulated:
            sc_msa = scm_ref[b].astype(f32)            # each [1, H]
            g_msa = gm_ref[b].astype(f32)
            sc_mlp = scp_ref[b].astype(f32)
            g_mlp = gp_ref[b].astype(f32)
            norm_x = rms(x, n1_ref) * (1.0 + sc_msa)
        else:
            norm_x = rms(x, n1_ref)

        # fused, lane-padded QKV projection: one [S, 128] MXU matmul
        qkv = mm(norm_x, wqkv_ref[...])

        # packed per-head QK RMSNorm (v / pad lanes pass through: mean 0 + offset 1)
        ms = mm(qkv * qkv, hpk) + off
        qkv = qkv * jax.lax.rsqrt(ms) * gam

        # packed interleaved RoPE: x*cos + pair_swap(x)*signed_sin (v/pad: cos=1, sin=0)
        qkv = qkv * cos_ref[b] + mm(qkv, ppk) * sin_ref[b]

        q = qkv[:, 0 * hid:1 * hid]
        k = qkv[:, 1 * hid:2 * hid]
        v = qkv[:, 2 * hid:3 * hid]

        # ---- attention: one lane-packed score slab [S, NH*S] for all heads ----
        kblk = (jnp.concatenate([k] * nh, axis=0) * maskf).astype(bf16)  # [nh*s, hid]
        sc = jax.lax.dot_general(q.astype(bf16), kblk,
                                 (((1,), (1,)), ((), ())),
                                 preferred_element_type=f32) * scale + bias_ref[b]
        # one global row max (softmax is shift-invariant per head; score range is O(1) here)
        m_row = jnp.max(sc, axis=-1, keepdims=True)
        p = jnp.exp(sc - m_row)                      # one f32 EUP pass over the whole slab
        pb = p.astype(bf16)
        vblk = (jnp.concatenate([v] * nh, axis=0) * maskf).astype(bf16)
        num = jnp.dot(pb, vblk, preferred_element_type=f32)    # [S, H] per-head PV
        den = jnp.dot(pb, maskb, preferred_element_type=f32)   # per-head sums, lane-bcast
        attn = num * pl.reciprocal(den, approx=True)
        attn = mm(attn, wo_ref[...])

        if modulated:
            x = x + jnp.tanh(g_msa) * rms(attn, n2_ref)
            hmid = rms(x, n3_ref) * (1.0 + sc_mlp)
        else:
            x = x + rms(attn, n2_ref)
            hmid = rms(x, n3_ref)

        # fused SwiGLU: one [H, 2F]=128-lane matmul, silu(gate)*up epilogue, down-proj
        gu = mm(hmid, wgu_ref[...])
        gate = gu[:, :ffn]
        up = gu[:, ffn:]
        swish = gate * pl.reciprocal(1.0 + jnp.exp(-gate), approx=True)
        ff = mm(swish * up, wdn_ref[...])

        if modulated:
            x = x + jnp.tanh(g_mlp) * rms(ff, n4_ref)
        else:
            x = x + rms(ff, n4_ref)

        o_ref[b] = x.astype(o_ref.dtype)


def fused_block(blk, x, bias_tiled, cos_pack, sin_pack, *, mod=None,
                in_weight=None, in_bias=None):
    """One pallas_call for a whole transformer block."""
    bsz, s, din = x.shape
    modulated = mod is not None
    in_proj = in_weight is not None
    bb = _batch_block(bsz)                 # batch rows per grid step
    grid = (bsz // bb,)

    inputs, specs = [], []

    def add(arr, spec):
        inputs.append(arr)
        specs.append(spec)

    add(x, pl.BlockSpec((bb, s, din), lambda g: (g, 0, 0)))
    if in_proj:
        add(in_weight, pl.BlockSpec(in_weight.shape, lambda g: (0, 0)))
        add(in_bias, pl.BlockSpec((1, HID), lambda g: (0, 0)))
    if modulated:
        for m in mod:                                   # sc_msa, g_msa, sc_mlp, g_mlp
            add(m, pl.BlockSpec((bb, 1, HID), lambda g: (g, 0, 0)))
    add(bias_tiled, pl.BlockSpec((bb, 1, NUM_HEADS * s), lambda g: (g, 0, 0)))
    add(cos_pack, pl.BlockSpec((bb, s, QKV_PAD), lambda g: (g, 0, 0)))
    add(sin_pack, pl.BlockSpec((bb, s, QKV_PAD), lambda g: (g, 0, 0)))
    add(_blk_mask(s), pl.BlockSpec((NUM_HEADS * s, HID), lambda g: (0, 0)))

    add(blk["norm1_w"], pl.BlockSpec((1, HID), lambda g: (0, 0)))
    add(blk["wqkv"], pl.BlockSpec((HID, QKV_PAD), lambda g: (0, 0)))
    add(OFFSET_PACK, pl.BlockSpec((1, QKV_PAD), lambda g: (0, 0)))
    add(blk["gamma_pack"], pl.BlockSpec((1, QKV_PAD), lambda g: (0, 0)))
    add(H_PACK, pl.BlockSpec((QKV_PAD, QKV_PAD), lambda g: (0, 0)))
    add(P_PACK, pl.BlockSpec((QKV_PAD, QKV_PAD), lambda g: (0, 0)))
    add(blk["wo"], pl.BlockSpec((HID, HID), lambda g: (0, 0)))
    add(blk["norm2_w"], pl.BlockSpec((1, HID), lambda g: (0, 0)))
    add(blk["norm3_w"], pl.BlockSpec((1, HID), lambda g: (0, 0)))
    add(blk["w_gateup"], pl.BlockSpec((HID, 2 * FFN_DIM), lambda g: (0, 0)))
    add(blk["w_down"], pl.BlockSpec((FFN_DIM, HID), lambda g: (0, 0)))
    add(blk["norm4_w"], pl.BlockSpec((1, HID), lambda g: (0, 0)))

    kern = partial(_block_kernel, modulated=modulated, in_proj=in_proj, bb=bb,
                   hid=HID, nh=NUM_HEADS, ffn=FFN_DIM,
                   scale=1.0 / math.sqrt(HEAD_DIM))
    return pl.pallas_call(
        kern,
        out_shape=jax.ShapeDtypeStruct((bsz, s, HID), jnp.float32),
        grid=grid,
        in_specs=specs,
        out_specs=pl.BlockSpec((bb, s, HID), lambda g: (g, 0, 0)),
        compiler_params=pltpu.CompilerParams(dimension_semantics=("parallel",)),
    )(*inputs)


# ----------------------------- RoPE tables (numpy glue, trace-time) -----------------------------
def get_freqs_cis_np(axes_dim, axes_lens, theta):
    out = []
    for d, l in zip(axes_dim, axes_lens):
        inv = 1.0 / (theta ** (np.arange(0, d, 2, dtype=np.float64) / d))
        ang = np.outer(np.arange(l, dtype=np.float64), inv)
        out.append((np.cos(ang).astype(np.float32), np.sin(ang).astype(np.float32)))
    return out


def rope_lookup_np(freqs_cis, pos_ids):
    cos_parts, sin_parts = [], []
    for ax, (c, s) in enumerate(freqs_cis):
        idx = pos_ids[:, ax].astype(np.int64)
        cos_parts.append(c[idx])
        sin_parts.append(s[idx])
    return np.concatenate(cos_parts, -1), np.concatenate(sin_parts, -1)


def _packed_rope_tables(cos_np, sin_np):
    """[B,S,Dh/2] -> interleaved, head-tiled, qkv-lane-packed [B,S,QKV_PAD] tables so
    rope(x) == x*cos + (x @ P_PACK)*sin on the packed q|k|v|pad layout."""
    cos_i = np.repeat(np.asarray(cos_np, np.float32), 2, axis=-1)
    sin_i = np.repeat(np.asarray(sin_np, np.float32), 2, axis=-1)
    sin_i[..., 0::2] *= -1.0
    cos_h = np.tile(cos_i, (1, 1, NUM_HEADS))           # [B,S,HID]
    sin_h = np.tile(sin_i, (1, 1, NUM_HEADS))
    b, s, _ = cos_h.shape
    rest = QKV_PAD - 2 * HID                             # v lanes + padding
    cosp = np.concatenate([cos_h, cos_h, np.ones((b, s, rest), np.float32)], -1)
    sinp = np.concatenate([sin_h, sin_h, np.zeros((b, s, rest), np.float32)], -1)
    return jnp.asarray(cosp), jnp.asarray(sinp)


def sinusoidal_timestep_embedding(t, dim):
    half = dim // 2
    freqs = jnp.exp(-math.log(10000.0) * jnp.arange(half, dtype=jnp.float32) / half)
    args = t.astype(jnp.float32)[:, None] * freqs[None, :]
    return jnp.concatenate([jnp.cos(args), jnp.sin(args)], axis=-1)  # flip_sin_to_cos


# ----------------------------- parameter init (deterministic, synthetic, pre-cast) -----------------------------
def _w(key, shape, scale=0.02):
    return scale * jax.random.normal(key, shape, jnp.float32)


def init_block_params(key, modulated):
    ks = jax.random.split(key, 6)
    q_norm_w = jnp.ones((HEAD_DIM,), jnp.float32)
    k_norm_w = jnp.ones((HEAD_DIM,), jnp.float32)
    wqkv = _w(ks[0], (HID, 3 * HID))                     # fused Wq|Wk|Wv
    gamma = jnp.concatenate([jnp.tile(q_norm_w, NUM_HEADS),
                             jnp.tile(k_norm_w, NUM_HEADS),
                             jnp.ones((QKV_PAD - 2 * HID,), jnp.float32)])
    p = {
        # all weights pre-cast / pre-padded / pre-reshaped ONCE here (no per-forward converts)
        "norm1_w": jnp.ones((1, HID), jnp.float32),
        "wqkv": jnp.pad(wqkv, ((0, 0), (0, QKV_PAD - 3 * HID))).astype(jnp.bfloat16),
        "gamma_pack": gamma.reshape(1, QKV_PAD),
        "wo": _w(ks[1], (HID, HID)).astype(jnp.bfloat16),
        "norm2_w": jnp.ones((1, HID), jnp.float32),
        "norm3_w": jnp.ones((1, HID), jnp.float32),
        "norm4_w": jnp.ones((1, HID), jnp.float32),
        "w_gateup": _w(ks[2], (HID, 2 * FFN_DIM)).astype(jnp.bfloat16),   # fused gate|up
        "w_down": _w(ks[3], (FFN_DIM, HID)).astype(jnp.bfloat16),
    }
    if modulated:
        p["mod_w"] = _w(ks[4], (HID, 4 * HID))
        p["mod_b"] = jnp.zeros((4 * HID,), jnp.float32)
    return p


def init_params(key):
    ks = jax.random.split(key, 6)
    return {
        "t_w1": _w(ks[0], (FREQ_DIM, HID)), "t_b1": jnp.zeros((HID,), jnp.float32),
        "t_w2": _w(ks[1], (HID, HID)),      "t_b2": jnp.zeros((HID,), jnp.float32),
        "cap_norm_w": jnp.ones((TEXT_DIM,), jnp.float32),
        "cap_w": _w(ks[2], (TEXT_DIM, HID)), "cap_b": jnp.zeros((HID,), jnp.float32),
        "x_w": _w(ks[3], (PATCH_DIM, HID)).astype(jnp.bfloat16),
        "x_b": jnp.zeros((1, HID), jnp.float32),
        "context_refiner": [init_block_params(ks[4], modulated=False)],
        "noise_refiner": [init_block_params(ks[5], modulated=True)],
    }


# ----------------------------- InitialLayer forward (device part, jitted) -----------------------------
@partial(jax.jit, static_argnames=("enc_lens",))
def _forward_device(params, hidden_states, timestep, text_hidden_states,
                    text_attention_mask, *, enc_lens):
    bsz = hidden_states.shape[0]
    ph = pw = IMG_HW // PATCH
    L = ph * pw
    enc_lens = list(enc_lens)
    seq_lengths = [e + L for e in enc_lens]
    max_seq = max(seq_lengths)

    # ---- time_caption_embed (tiny GEMMs -> plain XLA) ----
    t_freq = sinusoidal_timestep_embedding(timestep, FREQ_DIM)
    temb = jnp.dot(jax.nn.silu(jnp.dot(t_freq, params["t_w1"]) + params["t_b1"]),
                   params["t_w2"]) + params["t_b2"]                       # [B, HID]
    cap = text_hidden_states.astype(jnp.float32)
    cap = cap * jax.lax.rsqrt(jnp.mean(cap * cap, -1, keepdims=True) + EPS) * params["cap_norm_w"]
    text_h = jnp.dot(cap, params["cap_w"]) + params["cap_b"]              # [B, T, HID]

    # ---- flat_and_pad_to_seq (no ref images): patchify NCHW latents ----
    xs = hidden_states.reshape(bsz, C_IN, ph, PATCH, pw, PATCH)
    patches = xs.transpose(0, 2, 4, 1, 3, 5).reshape(bsz, L, PATCH_DIM)

    # ---- rope_embedder (trace-time numpy: positions depend only on static enc_lens) ----
    freqs = get_freqs_cis_np(AXES_DIM_ROPE, AXES_LENS, ROPE_THETA)
    txt_pos = np.stack([np.arange(TEXT_LEN),
                        np.zeros(TEXT_LEN, np.int64),
                        np.zeros(TEXT_LEN, np.int64)], -1)
    c, s = rope_lookup_np(freqs, txt_pos)                                 # [T, Dh/2]
    ctx_cos = np.broadcast_to(c, (bsz, TEXT_LEN, HEAD_DIM // 2))
    ctx_sin = np.broadcast_to(s, (bsz, TEXT_LEN, HEAD_DIM // 2))

    rows = np.repeat(np.arange(ph), pw)
    cols = np.tile(np.arange(pw), ph)
    noise_cos = np.zeros((bsz, L, HEAD_DIM // 2), np.float32)
    noise_sin = np.zeros((bsz, L, HEAD_DIM // 2), np.float32)
    for i in range(bsz):
        pos = np.stack([np.full(L, enc_lens[i], np.int64), rows, cols], -1)
        ci, si = rope_lookup_np(freqs, pos)
        noise_cos[i], noise_sin[i] = ci, si

    ctx_cos_p, ctx_sin_p = _packed_rope_tables(ctx_cos, ctx_sin)
    noi_cos_p, noi_sin_p = _packed_rope_tables(noise_cos, noise_sin)

    # ---- context_refiner: one fused pallas_call per block ----
    txt_bias = jnp.where(text_attention_mask.astype(bool), 0.0, -1e9).astype(jnp.float32)
    txt_bias_t = jnp.tile(txt_bias[:, None, :], (1, 1, NUM_HEADS))        # [B,1,NH*T]
    for blk in params["context_refiner"]:
        text_h = fused_block(blk, text_h, txt_bias_t, ctx_cos_p, ctx_sin_p)

    # ---- noise_refiner: x_embedder folded into the first fused block ----
    img_bias_t = jnp.zeros((bsz, 1, NUM_HEADS * L), jnp.float32)
    img_h = patches
    for li, blk in enumerate(params["noise_refiner"]):
        mod_vec = jnp.dot(jax.nn.silu(temb), blk["mod_w"]) + blk["mod_b"] # tiny [B,4H] GEMM
        mods = tuple(mod_vec[:, i * HID:(i + 1) * HID].reshape(bsz, 1, HID) for i in range(4))
        if li == 0:
            img_h = fused_block(blk, img_h, img_bias_t, noi_cos_p, noi_sin_p,
                                mod=mods, in_weight=params["x_w"], in_bias=params["x_b"])
        else:
            img_h = fused_block(blk, img_h, img_bias_t, noi_cos_p, noi_sin_p, mod=mods)
    combined_img_hidden_states = img_h

    # ---- joint packing: vectorized gather (no per-sample scatter, no mid-forward sync) ----
    sel = np.full((bsz, max_seq), 2, np.int32)
    t_idx = np.zeros((bsz, max_seq), np.int32)
    i_idx = np.zeros((bsz, max_seq), np.int32)
    attn_mask = np.zeros((bsz, max_seq), bool)
    rot_cos = np.zeros((bsz, max_seq, HEAD_DIM // 2), np.float32)
    rot_sin = np.zeros((bsz, max_seq, HEAD_DIM // 2), np.float32)
    for i in range(bsz):
        e, st = enc_lens[i], seq_lengths[i]
        sel[i, :e] = 0
        sel[i, e:st] = 1
        t_idx[i, :e] = np.arange(e)
        i_idx[i, e:st] = np.arange(st - e)
        attn_mask[i, :st] = True
        rot_cos[i, :e], rot_cos[i, e:st] = ctx_cos[i, :e], noise_cos[i, :st - e]
        rot_sin[i, :e], rot_sin[i, e:st] = ctx_sin[i, :e], noise_sin[i, :st - e]

    sel_j = jnp.asarray(sel)
    text_g = jnp.take_along_axis(text_h, jnp.asarray(t_idx)[..., None], axis=1)
    img_g = jnp.take_along_axis(combined_img_hidden_states,
                                jnp.asarray(i_idx)[..., None], axis=1)
    joint = jnp.where((sel_j == 0)[..., None], text_g,
                      jnp.where((sel_j == 1)[..., None], img_g, 0.0))

    return (joint,
            jnp.asarray(attn_mask),
            (jnp.asarray(rot_cos), jnp.asarray(rot_sin)),
            temb,
            jnp.asarray([(ph, pw)] * bsz, jnp.int32),
            jnp.asarray([L] * bsz, jnp.int32),
            jnp.asarray(seq_lengths, jnp.int32))


def initial_layer_forward(params, hidden_states, timestep, text_hidden_states,
                          text_attention_mask):
    assert hidden_states.ndim == 4
    # Single tiny host read of the text mask BEFORE any device work is enqueued
    # (lengths drive static shapes / RoPE positions, mirroring the python-side
    # lengths in the PyTorch code).  The rest of the forward is one jitted graph.
    mask_np = np.asarray(jax.device_get(text_attention_mask))
    enc_lens = tuple(int(v) for v in mask_np.sum(-1))
    return _forward_device(params, hidden_states, timestep, text_hidden_states,
                           text_attention_mask, enc_lens=enc_lens)


# ----------------------------- main -----------------------------
if __name__ == "__main__":
    key = jax.random.PRNGKey(0)
    k_hs, k_txt, k_par = jax.random.split(key, 3)

    hidden_states = jax.random.normal(k_hs, (B, C_IN, IMG_HW, IMG_HW), jnp.float32)
    timestep = jnp.array([250.0, 750.0], jnp.float32)
    text_hidden_states = jax.random.normal(k_txt, (B, TEXT_LEN, TEXT_DIM), jnp.float32)
    text_attention_mask = jnp.array([[1] * TEXT_LEN,
                                     [1] * (TEXT_LEN - 2) + [0] * 2], jnp.int32)

    params = init_params(k_par)
    outs = initial_layer_forward(params, hidden_states, timestep,
                                 text_hidden_states, text_attention_mask)
    jax.block_until_ready(outs)
    print("KERNEL_OK")
</pallas_src>

<mosaic_0001>
module attributes {stable_mosaic.version = 11 : i64} {
  func.func @_block_kernel(%arg0: i32, %arg1: memref<2x64x16xf32, #tpu.memory_space<vmem>>, %arg2: memref<16x32xbf16, #tpu.memory_space<vmem>>, %arg3: memref<1x32xf32, #tpu.memory_space<vmem>>, %arg4: memref<2x1x32xf32, #tpu.memory_space<vmem>>, %arg5: memref<2x1x32xf32, #tpu.memory_space<vmem>>, %arg6: memref<2x1x32xf32, #tpu.memory_space<vmem>>, %arg7: memref<2x1x32xf32, #tpu.memory_space<vmem>>, %arg8: memref<2x1x256xf32, #tpu.memory_space<vmem>>, %arg9: memref<2x64x128xf32, #tpu.memory_space<vmem>>, %arg10: memref<2x64x128xf32, #tpu.memory_space<vmem>>, %arg11: memref<256x32xf32, #tpu.memory_space<vmem>>, %arg12: memref<1x32xf32, #tpu.memory_space<vmem>>, %arg13: memref<32x128xbf16, #tpu.memory_space<vmem>>, %arg14: memref<1x128xf32, #tpu.memory_space<vmem>>, %arg15: memref<1x128xf32, #tpu.memory_space<vmem>>, %arg16: memref<128x128xbf16, #tpu.memory_space<vmem>>, %arg17: memref<128x128xbf16, #tpu.memory_space<vmem>>, %arg18: memref<32x32xbf16, #tpu.memory_space<vmem>>, %arg19: memref<1x32xf32, #tpu.memory_space<vmem>>, %arg20: memref<1x32xf32, #tpu.memory_space<vmem>>, %arg21: memref<32x128xbf16, #tpu.memory_space<vmem>>, %arg22: memref<64x32xbf16, #tpu.memory_space<vmem>>, %arg23: memref<1x32xf32, #tpu.memory_space<vmem>>, %arg24: memref<2x64x32xf32, #tpu.memory_space<vmem>>) attributes {dimension_semantics = [#tpu.dimension_semantics<parallel>], iteration_bounds = array<i64: 1>, scalar_prefetch = 0 : i64, scratch_operands = 0 : i64, tpu.core_type = #tpu.core_type<tc>, window_params = [{transform_indices = @transform_0, window_bounds = array<i64: 2, 64, 16>}, {pipeline_mode = #tpu.pipeline_mode<synchronous>, transform_indices = @transform_1, window_bounds = array<i64: 16, 32>}, {pipeline_mode = #tpu.pipeline_mode<synchronous>, transform_indices = @transform_2, window_bounds = array<i64: 1, 32>}, {transform_indices = @transform_3, window_bounds = array<i64: 2, 1, 32>}, {transform_indices = @transform_4, window_bounds = array<i64: 2, 1, 32>}, {transform_indices = @transform_5, window_bounds = array<i64: 2, 1, 32>}, {transform_indices = @transform_6, window_bounds = array<i64: 2, 1, 32>}, {transform_indices = @transform_7, window_bounds = array<i64: 2, 1, 256>}, {transform_indices = @transform_8, window_bounds = array<i64: 2, 64, 128>}, {transform_indices = @transform_9, window_bounds = array<i64: 2, 64, 128>}, {pipeline_mode = #tpu.pipeline_mode<synchronous>, transform_indices = @transform_10, window_bounds = array<i64: 256, 32>}, {pipeline_mode = #tpu.pipeline_mode<synchronous>, transform_indices = @transform_11, window_bounds = array<i64: 1, 32>}, {pipeline_mode = #tpu.pipeline_mode<synchronous>, transform_indices = @transform_12, window_bounds = array<i64: 32, 128>}, {pipeline_mode = #tpu.pipeline_mode<synchronous>, transform_indices = @transform_13, window_bounds = array<i64: 1, 128>}, {pipeline_mode = #tpu.pipeline_mode<synchronous>, transform_indices = @transform_14, window_bounds = array<i64: 1, 128>}, {pipeline_mode = #tpu.pipeline_mode<synchronous>, transform_indices = @transform_15, window_bounds = array<i64: 128, 128>}, {pipeline_mode = #tpu.pipeline_mode<synchronous>, transform_indices = @transform_16, window_bounds = array<i64: 128, 128>}, {pipeline_mode = #tpu.pipeline_mode<synchronous>, transform_indices = @transform_17, window_bounds = array<i64: 32, 32>}, {pipeline_mode = #tpu.pipeline_mode<synchronous>, transform_indices = @transform_18, window_bounds = array<i64: 1, 32>}, {pipeline_mode = #tpu.pipeline_mode<synchronous>, transform_indices = @transform_19, window_bounds = array<i64: 1, 32>}, {pipeline_mode = #tpu.pipeline_mode<synchronous>, transform_indices = @transform_20, window_bounds = array<i64: 32, 128>}, {pipeline_mode = #tpu.pipeline_mode<synchronous>, transform_indices = @transform_21, window_bounds = array<i64: 64, 32>}, {pipeline_mode = #tpu.pipeline_mode<synchronous>, transform_indices = @transform_22, window_bounds = array<i64: 1, 32>}, {transform_indices = @transform_23, window_bounds = array<i64: 2, 64, 32>}]} {
    %c0 = arith.constant 0 : index
    %c0_0 = arith.constant 0 : index
    %0 = vector.load %arg11[%c0, %c0_0] : memref<256x32xf32, #tpu.memory_space<vmem>>, vector<256x32xf32>
    %1 = arith.truncf %0 : vector<256x32xf32> to vector<256x32xbf16>
    %c0_1 = arith.constant 0 : index
    %c0_2 = arith.constant 0 : index
    %2 = vector.load %arg16[%c0_1, %c0_2] : memref<128x128xbf16, #tpu.memory_space<vmem>>, vector<128x128xbf16>
    %c0_3 = arith.constant 0 : index
    %c0_4 = arith.constant 0 : index
    %3 = vector.load %arg17[%c0_3, %c0_4] : memref<128x128xbf16, #tpu.memory_space<vmem>>, vector<128x128xbf16>
    %c0_5 = arith.constant 0 : index
    %c0_6 = arith.constant 0 : index
    %4 = vector.load %arg14[%c0_5, %c0_6] : memref<1x128xf32, #tpu.memory_space<vmem>>, vector<1x128xf32>
    %c0_7 = arith.constant 0 : index
    %c0_8 = arith.constant 0 : index
    %5 = vector.load %arg15[%c0_7, %c0_8] : memref<1x128xf32, #tpu.memory_space<vmem>>, vector<1x128xf32>
    %c0_9 = arith.constant 0 : index
    %c0_10 = arith.constant 0 : index
    %c0_11 = arith.constant 0 : index
    %6 = vector.load %arg1[%c0_9, %c0_10, %c0_11] : memref<2x64x16xf32, #tpu.memory_space<vmem>>, vector<1x64x16xf32>
    %7 = vector.shape_cast %6 : vector<1x64x16xf32> to vector<64x16xf32>
    %c0_12 = arith.constant 0 : index
    %c0_13 = arith.constant 0 : index
    %8 = vector.load %arg2[%c0_12, %c0_13] : memref<16x32xbf16, #tpu.memory_space<vmem>>, vector<16x32xbf16>
    %9 = arith.truncf %7 : vector<64x16xf32> to vector<64x16xbf16>
    %cst = arith.constant dense<0.000000e+00> : vector<64x32xf32>
    %10 = tpu.matmul %9, %8, %cst {dimension_numbers = #tpu.dot_dimension_numbers<[1], [0], [0], [1], [0, 0, 1, 1], [], []>} : vector<64x16xbf16>, vector<16x32xbf16>, vector<64x32xf32> -> vector<64x32xf32>
    %c0_14 = arith.constant 0 : index
    %c0_15 = arith.constant 0 : index
    %11 = vector.load %arg3[%c0_14, %c0_15] : memref<1x32xf32, #tpu.memory_space<vmem>>, vector<1x32xf32>
    %12 = vector.broadcast %11 : vector<1x32xf32> to vector<64x32xf32>
    %13 = arith.addf %10, %12 : vector<64x32xf32>
    %c0_16 = arith.constant 0 : index
    %c0_17 = arith.constant 0 : index
    %c0_18 = arith.constant 0 : index
    %14 = vector.load %arg4[%c0_16, %c0_17, %c0_18] : memref<2x1x32xf32, #tpu.memory_space<vmem>>, vector<1x1x32xf32>
    %15 = vector.shape_cast %14 : vector<1x1x32xf32> to vector<1x32xf32>
    %c0_19 = arith.constant 0 : index
    %c0_20 = arith.constant 0 : index
    %c0_21 = arith.constant 0 : index
    %16 = vector.load %arg5[%c0_19, %c0_20, %c0_21] : memref<2x1x32xf32, #tpu.memory_space<vmem>>, vector<1x1x32xf32>
    %17 = vector.shape_cast %16 : vector<1x1x32xf32> to vector<1x32xf32>
    %c0_22 = arith.constant 0 : index
    %c0_23 = arith.constant 0 : index
    %c0_24 = arith.constant 0 : index
    %18 = vector.load %arg6[%c0_22, %c0_23, %c0_24] : memref<2x1x32xf32, #tpu.memory_space<vmem>>, vector<1x1x32xf32>
    %19 = vector.shape_cast %18 : vector<1x1x32xf32> to vector<1x32xf32>
    %c0_25 = arith.constant 0 : index
    %c0_26 = arith.constant 0 : index
    %c0_27 = arith.constant 0 : index
    %20 = vector.load %arg7[%c0_25, %c0_26, %c0_27] : memref<2x1x32xf32, #tpu.memory_space<vmem>>, vector<1x1x32xf32>
    %21 = vector.shape_cast %20 : vector<1x1x32xf32> to vector<1x32xf32>
    %22 = arith.mulf %13, %13 : vector<64x32xf32>
    %cst_28 = arith.constant dense<0.000000e+00> : vector<64xf32>
    %23 = vector.multi_reduction <add>, %22, %cst_28 [1] : vector<64x32xf32> to vector<64xf32>
    %24 = vector.shape_cast %23 : vector<64xf32> to vector<64x1xf32>
    %cst_29 = arith.constant 3.200000e+01 : f32
    %25 = vector.broadcast %cst_29 : f32 to vector<64x1xf32>
    %26 = arith.divf %24, %25 : vector<64x1xf32>
    %cst_30 = arith.constant 9.99999997E-7 : f32
    %27 = vector.broadcast %cst_30 : f32 to vector<64x1xf32>
    %28 = arith.addf %26, %27 : vector<64x1xf32>
    %29 = math.rsqrt %28 : vector<64x1xf32>
    %30 = vector.broadcast %29 : vector<64x1xf32> to vector<64x32xf32>
    %31 = arith.mulf %13, %30 : vector<64x32xf32>
    %c0_31 = arith.constant 0 : index
    %c0_32 = arith.constant 0 : index
    %32 = vector.load %arg12[%c0_31, %c0_32] : memref<1x32xf32, #tpu.memory_space<vmem>>, vector<1x32xf32>
    %33 = vector.broadcast %32 : vector<1x32xf32> to vector<64x32xf32>
    %34 = arith.mulf %31, %33 : vector<64x32xf32>
    %cst_33 = arith.constant 1.000000e+00 : f32
    %35 = vector.broadcast %cst_33 : f32 to vector<1x32xf32>
    %36 = arith.addf %35, %15 : vector<1x32xf32>
    %37 = vector.broadcast %36 : vector<1x32xf32> to vector<64x32xf32>
    %38 = arith.mulf %34, %37 : vector<64x32xf32>
    %c0_34 = arith.constant 0 : index
    %c0_35 = arith.constant 0 : index
    %39 = vector.load %arg13[%c0_34, %c0_35] : memref<32x128xbf16, #tpu.memory_space<vmem>>, vector<32x128xbf16>
    %40 = arith.truncf %38 : vector<64x32xf32> to vector<64x32xbf16>
    %cst_36 = arith.constant dense<0.000000e+00> : vector<64x128xf32>
    %41 = tpu.matmul %40, %39, %cst_36 {dimension_numbers = #tpu.dot_dimension_numbers<[1], [0], [0], [1], [0, 0, 1, 1], [], []>} : vector<64x32xbf16>, vector<32x128xbf16>, vector<64x128xf32> -> vector<64x128xf32>
    %42 = arith.mulf %41, %41 : vector<64x128xf32>
    %43 = arith.truncf %42 : vector<64x128xf32> to vector<64x128xbf16>
    %cst_37 = arith.constant dense<0.000000e+00> : vector<64x128xf32>
    %44 = tpu.matmul %43, %2, %cst_37 {dimension_numbers = #tpu.dot_dimension_numbers<[1], [0], [0], [1], [0, 0, 1, 1], [], []>} : vector<64x128xbf16>, vector<128x128xbf16>, vector<64x128xf32> -> vector<64x128xf32>
    %45 = vector.broadcast %4 : vector<1x128xf32> to vector<64x128xf32>
    %46 = arith.addf %44, %45 : vector<64x128xf32>
    %47 = math.rsqrt %46 : vector<64x128xf32>
    %48 = arith.mulf %41, %47 : vector<64x128xf32>
    %49 = vector.broadcast %5 : vector<1x128xf32> to vector<64x128xf32>
    %50 = arith.mulf %48, %49 : vector<64x128xf32>
    %c0_38 = arith.constant 0 : index
    %c0_39 = arith.constant 0 : index
    %c0_40 = arith.constant 0 : index
    %51 = vector.load %arg9[%c0_38, %c0_39, %c0_40] : memref<2x64x128xf32, #tpu.memory_space<vmem>>, vector<1x64x128xf32>
    %52 = vector.shape_cast %51 : vector<1x64x128xf32> to vector<64x128xf32>
    %53 = arith.mulf %50, %52 : vector<64x128xf32>
    %54 = arith.truncf %50 : vector<64x128xf32> to vector<64x128xbf16>
    %cst_41 = arith.constant dense<0.000000e+00> : vector<64x128xf32>
    %55 = tpu.matmul %54, %3, %cst_41 {dimension_numbers = #tpu.dot_dimension_numbers<[1], [0], [0], [1], [0, 0, 1, 1], [], []>} : vector<64x128xbf16>, vector<128x128xbf16>, vector<64x128xf32> -> vector<64x128xf32>
    %c0_42 = arith.constant 0 : index
    %c0_43 = arith.constant 0 : index
    %c0_44 = arith.constant 0 : index
    %56 = vector.load %arg10[%c0_42, %c0_43, %c0_44] : memref<2x64x128xf32, #tpu.memory_space<vmem>>, vector<1x64x128xf32>
    %57 = vector.shape_cast %56 : vector<1x64x128xf32> to vector<64x128xf32>
    %58 = arith.mulf %55, %57 : vector<64x128xf32>
    %59 = arith.addf %53, %58 : vector<64x128xf32>
    %60 = vector.extract_strided_slice %59 {offsets = [0, 0], sizes = [64, 32], strides = [1, 1]} : vector<64x128xf32> to vector<64x32xf32>
    %61 = vector.extract_strided_slice %59 {offsets = [0, 32], sizes = [64, 32], strides = [1, 1]} : vector<64x128xf32> to vector<64x32xf32>
    %62 = vector.extract_strided_slice %59 {offsets = [0, 64], sizes = [64, 32], strides = [1, 1]} : vector<64x128xf32> to vector<64x32xf32>
    %63 = tpu.concatenate %61, %61, %61, %61 in 0 : vector<64x32xf32>, vector<64x32xf32>, vector<64x32xf32>, vector<64x32xf32> -> vector<256x32xf32>
    %64 = arith.mulf %63, %0 : vector<256x32xf32>
    %65 = arith.truncf %64 : vector<256x32xf32> to vector<256x32xbf16>
    %66 = arith.truncf %60 : vector<64x32xf32> to vector<64x32xbf16>
    %cst_45 = arith.constant dense<0.000000e+00> : vector<64x256xf32>
    %67 = tpu.matmul %66, %65, %cst_45 {dimension_numbers = #tpu.dot_dimension_numbers<[1], [1], [0], [0], [0, 0, 1, 0], [], []>} : vector<64x32xbf16>, vector<256x32xbf16>, vector<64x256xf32> -> vector<64x256xf32>
    %cst_46 = arith.constant 0.353553385 : f32
    %68 = vector.broadcast %cst_46 : f32 to vector<64x256xf32>
    %69 = arith.mulf %67, %68 : vector<64x256xf32>
    %c0_47 = arith.constant 0 : index
    %c0_48 = arith.constant 0 : index
    %c0_49 = arith.constant 0 : index
    %70 = vector.load %arg8[%c0_47, %c0_48, %c0_49] : memref<2x1x256xf32, #tpu.memory_space<vmem>>, vector<1x1x256xf32>
    %71 = vector.shape_cast %70 : vector<1x1x256xf32> to vector<1x256xf32>
    %72 = vector.broadcast %71 : vector<1x256xf32> to vector<64x256xf32>
    %73 = arith.addf %69, %72 : vector<64x256xf32>
    %cst_50 = arith.constant dense<0xFF800000> : vector<64xf32>
    %74 = vector.multi_reduction <maximumf>, %73, %cst_50 [1] : vector<64x256xf32> to vector<64xf32>
    %75 = vector.shape_cast %74 : vector<64xf32> to vector<64x1xf32>
    %76 = vector.broadcast %75 : vector<64x1xf32> to vector<64x256xf32>
    %77 = arith.subf %73, %76 : vector<64x256xf32>
    %78 = math.exp %77 : vector<64x256xf32>
    %79 = arith.truncf %78 : vector<64x256xf32> to vector<64x256xbf16>
    %80 = tpu.concatenate %62, %62, %62, %62 in 0 : vector<64x32xf32>, vector<64x32xf32>, vector<64x32xf32>, vector<64x32xf32> -> vector<256x32xf32>
    %81 = arith.mulf %80, %0 : vector<256x32xf32>
    %82 = arith.truncf %81 : vector<256x32xf32> to vector<256x32xbf16>
    %cst_51 = arith.constant dense<0.000000e+00> : vector<64x32xf32>
    %83 = tpu.matmul %79, %82, %cst_51 {dimension_numbers = #tpu.dot_dimension_numbers<[1], [0], [0], [1], [0, 0, 1, 1], [], []>} : vector<64x256xbf16>, vector<256x32xbf16>, vector<64x32xf32> -> vector<64x32xf32>
    %cst_52 = arith.constant dense<0.000000e+00> : vector<64x32xf32>
    %84 = tpu.matmul %79, %1, %cst_52 {dimension_numbers = #tpu.dot_dimension_numbers<[1], [0], [0], [1], [0, 0, 1, 1], [], []>} : vector<64x256xbf16>, vector<256x32xbf16>, vector<64x32xf32> -> vector<64x32xf32>
    %85 = tpu.reciprocal %84 {approx = true} : vector<64x32xf32> -> vector<64x32xf32>
    %86 = arith.mulf %83, %85 : vector<64x32xf32>
    %c0_53 = arith.constant 0 : index
    %c0_54 = arith.constant 0 : index
    %87 = vector.load %arg18[%c0_53, %c0_54] : memref<32x32xbf16, #tpu.memory_space<vmem>>, vector<32x32xbf16>
    %88 = arith.truncf %86 : vector<64x32xf32> to vector<64x32xbf16>
    %cst_55 = arith.constant dense<0.000000e+00> : vector<64x32xf32>
    %89 = tpu.matmul %88, %87, %cst_55 {dimension_numbers = #tpu.dot_dimension_numbers<[1], [0], [0], [1], [0, 0, 1, 1], [], []>} : vector<64x32xbf16>, vector<32x32xbf16>, vector<64x32xf32> -> vector<64x32xf32>
    %90 = math.tanh %17 : vector<1x32xf32>
    %91 = arith.mulf %89, %89 : vector<64x32xf32>
    %cst_56 = arith.constant dense<0.000000e+00> : vector<64xf32>
    %92 = vector.multi_reduction <add>, %91, %cst_56 [1] : vector<64x32xf32> to vector<64xf32>
    %93 = vector.shape_cast %92 : vector<64xf32> to vector<64x1xf32>
    %cst_57 = arith.constant 3.200000e+01 : f32
    %94 = vector.broadcast %cst_57 : f32 to vector<64x1xf32>
    %95 = arith.divf %93, %94 : vector<64x1xf32>
    %cst_58 = arith.constant 9.99999997E-7 : f32
    %96 = vector.broadcast %cst_58 : f32 to vector<64x1xf32>
    %97 = arith.addf %95, %96 : vector<64x1xf32>
    %98 = math.rsqrt %97 : vector<64x1xf32>
    %99 = vector.broadcast %98 : vector<64x1xf32> to vector<64x32xf32>
    %100 = arith.mulf %89, %99 : vector<64x32xf32>
    %c0_59 = arith.constant 0 : index
    %c0_60 = arith.constant 0 : index
    %101 = vector.load %arg19[%c0_59, %c0_60] : memref<1x32xf32, #tpu.memory_space<vmem>>, vector<1x32xf32>
    %102 = vector.broadcast %101 : vector<1x32xf32> to vector<64x32xf32>
    %103 = arith.mulf %100, %102 : vector<64x32xf32>
    %104 = vector.broadcast %90 : vector<1x32xf32> to vector<64x32xf32>
    %105 = arith.mulf %104, %103 : vector<64x32xf32>
    %106 = arith.addf %13, %105 : vector<64x32xf32>
    %107 = arith.mulf %106, %106 : vector<64x32xf32>
    %cst_61 = arith.constant dense<0.000000e+00> : vector<64xf32>
    %108 = vector.multi_reduction <add>, %107, %cst_61 [1] : vector<64x32xf32> to vector<64xf32>
    %109 = vector.shape_cast %108 : vector<64xf32> to vector<64x1xf32>
    %cst_62 = arith.constant 3.200000e+01 : f32
    %110 = vector.broadcast %cst_62 : f32 to vector<64x1xf32>
    %111 = arith.divf %109, %110 : vector<64x1xf32>
    %cst_63 = arith.constant 9.99999997E-7 : f32
    %112 = vector.broadcast %cst_63 : f32 to vector<64x1xf32>
    %113 = arith.addf %111, %112 : vector<64x1xf32>
    %114 = math.rsqrt %113 : vector<64x1xf32>
    %115 = vector.broadcast %114 : vector<64x1xf32> to vector<64x32xf32>
    %116 = arith.mulf %106, %115 : vector<64x32xf32>
    %c0_64 = arith.constant 0 : index
    %c0_65 = arith.constant 0 : index
    %117 = vector.load %arg20[%c0_64, %c0_65] : memref<1x32xf32, #tpu.memory_space<vmem>>, vector<1x32xf32>
    %118 = vector.broadcast %117 : vector<1x32xf32> to vector<64x32xf32>
    %119 = arith.mulf %116, %118 : vector<64x32xf32>
    %cst_66 = arith.constant 1.000000e+00 : f32
    %120 = vector.broadcast %cst_66 : f32 to vector<1x32xf32>
    %121 = arith.addf %120, %19 : vector<1x32xf32>
    %122 = vector.broadcast %121 : vector<1x32xf32> to vector<64x32xf32>
    %123 = arith.mulf %119, %122 : vector<64x32xf32>
    %c0_67 = arith.constant 0 : index
    %c0_68 = arith.constant 0 : index
    %124 = vector.load %arg21[%c0_67, %c0_68] : memref<32x128xbf16, #tpu.memory_space<vmem>>, vector<32x128xbf16>
    %125 = arith.truncf %123 : vector<64x32xf32> to vector<64x32xbf16>
    %cst_69 = arith.constant dense<0.000000e+00> : vector<64x128xf32>
    %126 = tpu.matmul %125, %124, %cst_69 {dimension_numbers = #tpu.dot_dimension_numbers<[1], [0], [0], [1], [0, 0, 1, 1], [], []>} : vector<64x32xbf16>, vector<32x128xbf16>, vector<64x128xf32> -> vector<64x128xf32>
    %127 = vector.extract_strided_slice %126 {offsets = [0, 0], sizes = [64, 64], strides = [1, 1]} : vector<64x128xf32> to vector<64x64xf32>
    %128 = vector.extract_strided_slice %126 {offsets = [0, 64], sizes = [64, 64], strides = [1, 1]} : vector<64x128xf32> to vector<64x64xf32>
    %cst_70 = arith.constant 0.000000e+00 : f32
    %129 = vector.broadcast %cst_70 : f32 to vector<64x64xf32>
    %130 = arith.subf %129, %127 : vector<64x64xf32>
    %131 = math.exp %130 : vector<64x64xf32>
    %cst_71 = arith.constant 1.000000e+00 : f32
    %132 = vector.broadcast %cst_71 : f32 to vector<64x64xf32>
    %133 = arith.addf %132, %131 : vector<64x64xf32>
    %134 = tpu.reciprocal %133 {approx = true} : vector<64x64xf32> -> vector<64x64xf32>
    %135 = arith.mulf %127, %134 : vector<64x64xf32>
    %136 = arith.mulf %135, %128 : vector<64x64xf32>
    %c0_72 = arith.constant 0 : index
    %c0_73 = arith.constant 0 : index
    %137 = vector.load %arg22[%c0_72, %c0_73] : memref<64x32xbf16, #tpu.memory_space<vmem>>, vector<64x32xbf16>
    %138 = arith.truncf %136 : vector<64x64xf32> to vector<64x64xbf16>
    %cst_74 = arith.constant dense<0.000000e+00> : vector<64x32xf32>
    %139 = tpu.matmul %138, %137, %cst_74 {dimension_numbers = #tpu.dot_dimension_numbers<[1], [0], [0], [1], [0, 0, 1, 1], [], []>} : vector<64x64xbf16>, vector<64x32xbf16>, vector<64x32xf32> -> vector<64x32xf32>
    %140 = math.tanh %21 : vector<1x32xf32>
    %141 = arith.mulf %139, %139 : vector<64x32xf32>
    %cst_75 = arith.constant dense<0.000000e+00> : vector<64xf32>
    %142 = vector.multi_reduction <add>, %141, %cst_75 [1] : vector<64x32xf32> to vector<64xf32>
    %143 = vector.shape_cast %142 : vector<64xf32> to vector<64x1xf32>
    %cst_76 = arith.constant 3.200000e+01 : f32
    %144 = vector.broadcast %cst_76 : f32 to vector<64x1xf32>
    %145 = arith.divf %143, %144 : vector<64x1xf32>
    %cst_77 = arith.constant 9.99999997E-7 : f32
    %146 = vector.broadcast %cst_77 : f32 to vector<64x1xf32>
    %147 = arith.addf %145, %146 : vector<64x1xf32>
    %148 = math.rsqrt %147 : vector<64x1xf32>
    %149 = vector.broadcast %148 : vector<64x1xf32> to vector<64x32xf32>
    %150 = arith.mulf %139, %149 : vector<64x32xf32>
    %c0_78 = arith.constant 0 : index
    %c0_79 = arith.constant 0 : index
    %151 = vector.load %arg23[%c0_78, %c0_79] : memref<1x32xf32, #tpu.memory_space<vmem>>, vector<1x32xf32>
    %152 = vector.broadcast %151 : vector<1x32xf32> to vector<64x32xf32>
    %153 = arith.mulf %150, %152 : vector<64x32xf32>
    %154 = vector.broadcast %140 : vector<1x32xf32> to vector<64x32xf32>
    %155 = arith.mulf %154, %153 : vector<64x32xf32>
    %156 = arith.addf %106, %155 : vector<64x32xf32>
    %c0_80 = arith.constant 0 : index
    %c0_81 = arith.constant 0 : index
    %c0_82 = arith.constant 0 : index
    %157 = vector.load %arg24[%c0_80, %c0_81, %c0_82] : memref<2x64x32xf32, #tpu.memory_space<vmem>>, vector<1x64x32xf32>
    %158 = vector.shape_cast %157 : vector<1x64x32xf32> to vector<64x32xf32>
    %159 = vector.shape_cast %156 : vector<64x32xf32> to vector<1x64x32xf32>
    tpu.vector_store %arg24[%c0_80, %c0_81, %c0_82], %159 {strides = array<i32>} : memref<2x64x32xf32, #tpu.memory_space<vmem>>, vector<1x64x32xf32>,
    %c1 = arith.constant 1 : index
    %c0_83 = arith.constant 0 : index
    %c0_84 = arith.constant 0 : index
    %160 = vector.load %arg1[%c1, %c0_83, %c0_84] : memref<2x64x16xf32, #tpu.memory_space<vmem>>, vector<1x64x16xf32>
    %161 = vector.shape_cast %160 : vector<1x64x16xf32> to vector<64x16xf32>
    %c0_85 = arith.constant 0 : index
    %c0_86 = arith.constant 0 : index
    %162 = vector.load %arg2[%c0_85, %c0_86] : memref<16x32xbf16, #tpu.memory_space<vmem>>, vector<16x32xbf16>
    %163 = arith.truncf %161 : vector<64x16xf32> to vector<64x16xbf16>
    %cst_87 = arith.constant dense<0.000000e+00> : vector<64x32xf32>
    %164 = tpu.matmul %163, %162, %cst_87 {dimension_numbers = #tpu.dot_dimension_numbers<[1], [0], [0], [1], [0, 0, 1, 1], [], []>} : vector<64x16xbf16>, vector<16x32xbf16>, vector<64x32xf32> -> vector<64x32xf32>
    %c0_88 = arith.constant 0 : index
    %c0_89 = arith.constant 0 : index
    %165 = vector.load %arg3[%c0_88, %c0_89] : memref<1x32xf32, #tpu.memory_space<vmem>>, vector<1x32xf32>
    %166 = vector.broadcast %165 : vector<1x32xf32> to vector<64x32xf32>
    %167 = arith.addf %164, %166 : vector<64x32xf32>
    %c1_90 = arith.constant 1 : index
    %c0_91 = arith.constant 0 : index
    %c0_92 = arith.constant 0 : index
    %168 = vector.load %arg4[%c1_90, %c0_91, %c0_92] : memref<2x1x32xf32, #tpu.memory_space<vmem>>, vector<1x1x32xf32>
    %169 = vector.shape_cast %168 : vector<1x1x32xf32> to vector<1x32xf32>
    %c1_93 = arith.constant 1 : index
    %c0_94 = arith.constant 0 : index
    %c0_95 = arith.constant 0 : index
    %170 = vector.load %arg5[%c1_93, %c0_94, %c0_95] : memref<2x1x32xf32, #tpu.memory_space<vmem>>, vector<1x1x32xf32>
    %171 = vector.shape_cast %170 : vector<1x1x32xf32> to vector<1x32xf32>
    %c1_96 = arith.constant 1 : index
    %c0_97 = arith.constant 0 : index
    %c0_98 = arith.constant 0 : index
    %172 = vector.load %arg6[%c1_96, %c0_97, %c0_98] : memref<2x1x32xf32, #tpu.memory_space<vmem>>, vector<1x1x32xf32>
    %173 = vector.shape_cast %172 : vector<1x1x32xf32> to vector<1x32xf32>
    %c1_99 = arith.constant 1 : index
    %c0_100 = arith.constant 0 : index
    %c0_101 = arith.constant 0 : index
    %174 = vector.load %arg7[%c1_99, %c0_100, %c0_101] : memref<2x1x32xf32, #tpu.memory_space<vmem>>, vector<1x1x32xf32>
    %175 = vector.shape_cast %174 : vector<1x1x32xf32> to vector<1x32xf32>
    %176 = arith.mulf %167, %167 : vector<64x32xf32>
    %cst_102 = arith.constant dense<0.000000e+00> : vector<64xf32>
    %177 = vector.multi_reduction <add>, %176, %cst_102 [1] : vector<64x32xf32> to vector<64xf32>
    %178 = vector.shape_cast %177 : vector<64xf32> to vector<64x1xf32>
    %cst_103 = arith.constant 3.200000e+01 : f32
    %179 = vector.broadcast %cst_103 : f32 to vector<64x1xf32>
    %180 = arith.divf %178, %179 : vector<64x1xf32>
    %cst_104 = arith.constant 9.99999997E-7 : f32
    %181 = vector.broadcast %cst_104 : f32 to vector<64x1xf32>
    %182 = arith.addf %180, %181 : vector<64x1xf32>
    %183 = math.rsqrt %182 : vector<64x1xf32>
    %184 = vector.broadcast %183 : vector<64x1xf32> to vector<64x32xf32>
    %185 = arith.mulf %167, %184 : vector<64x32xf32>
    %c0_105 = arith.constant 0 : index
    %c0_106 = arith.constant 0 : index
    %186 = vector.load %arg12[%c0_105, %c0_106] : memref<1x32xf32, #tpu.memory_space<vmem>>, vector<1x32xf32>
    %187 = vector.broadcast %186 : vector<1x32xf32> to vector<64x32xf32>
    %188 = arith.mulf %185, %187 : vector<64x32xf32>
    %cst_107 = arith.constant 1.000000e+00 : f32
    %189 = vector.broadcast %cst_107 : f32 to vector<1x32xf32>
    %190 = arith.addf %189, %169 : vector<1x32xf32>
    %191 = vector.broadcast %190 : vector<1x32xf32> to vector<64x32xf32>
    %192 = arith.mulf %188, %191 : vector<64x32xf32>
    %c0_108 = arith.constant 0 : index
    %c0_109 = arith.constant 0 : index
    %193 = vector.load %arg13[%c0_108, %c0_109] : memref<32x128xbf16, #tpu.memory_space<vmem>>, vector<32x128xbf16>
    %194 = arith.truncf %192 : vector<64x32xf32> to vector<64x32xbf16>
    %cst_110 = arith.constant dense<0.000000e+00> : vector<64x128xf32>
    %195 = tpu.matmul %194, %193, %cst_110 {dimension_numbers = #tpu.dot_dimension_numbers<[1], [0], [0], [1], [0, 0, 1, 1], [], []>} : vector<64x32xbf16>, vector<32x128xbf16>, vector<64x128xf32> -> vector<64x128xf32>
    %196 = arith.mulf %195, %195 : vector<64x128xf32>
    %197 = arith.truncf %196 : vector<64x128xf32> to vector<64x128xbf16>
    %cst_111 = arith.constant dense<0.000000e+00> : vector<64x128xf32>
    %198 = tpu.matmul %197, %2, %cst_111 {dimension_numbers = #tpu.dot_dimension_numbers<[1], [0], [0], [1], [0, 0, 1, 1], [], []>} : vector<64x128xbf16>, vector<128x128xbf16>, vector<64x128xf32> -> vector<64x128xf32>
    %199 = vector.broadcast %4 : vector<1x128xf32> to vector<64x128xf32>
    %200 = arith.addf %198, %199 : vector<64x128xf32>
    %201 = math.rsqrt %200 : vector<64x128xf32>
    %202 = arith.mulf %195, %201 : vector<64x128xf32>
    %203 = vector.broadcast %5 : vector<1x128xf32> to vector<64x128xf32>
    %204 = arith.mulf %202, %203 : vector<64x128xf32>
    %c1_112 = arith.constant 1 : index
    %c0_113 = arith.constant 0 : index
    %c0_114 = arith.constant 0 : index
    %205 = vector.load %arg9[%c1_112, %c0_113, %c0_114] : memref<2x64x128xf32, #tpu.memory_space<vmem>>, vector<1x64x128xf32>
    %206 = vector.shape_cast %205 : vector<1x64x128xf32> to vector<64x128xf32>
    %207 = arith.mulf %204, %206 : vector<64x128xf32>
    %208 = arith.truncf %204 : vector<64x128xf32> to vector<64x128xbf16>
    %cst_115 = arith.constant dense<0.000000e+00> : vector<64x128xf32>
    %209 = tpu.matmul %208, %3, %cst_115 {dimension_numbers = #tpu.dot_dimension_numbers<[1], [0], [0], [1], [0, 0, 1, 1], [], []>} : vector<64x128xbf16>, vector<128x128xbf16>, vector<64x128xf32> -> vector<64x128xf32>
    %c1_116 = arith.constant 1 : index
    %c0_117 = arith.constant 0 : index
    %c0_118 = arith.constant 0 : index
    %210 = vector.load %arg10[%c1_116, %c0_117, %c0_118] : memref<2x64x128xf32, #tpu.memory_space<vmem>>, vector<1x64x128xf32>
    %211 = vector.shape_cast %210 : vector<1x64x128xf32> to vector<64x128xf32>
    %212 = arith.mulf %209, %211 : vector<64x128xf32>
    %213 = arith.addf %207, %212 : vector<64x128xf32>
    %214 = vector.extract_strided_slice %213 {offsets = [0, 0], sizes = [64, 32], strides = [1, 1]} : vector<64x128xf32> to vector<64x32xf32>
    %215 = vector.extract_strided_slice %213 {offsets = [0, 32], sizes = [64, 32], strides = [1, 1]} : vector<64x128xf32> to vector<64x32xf32>
    %216 = vector.extract_strided_slice %213 {offsets = [0, 64], sizes = [64, 32], strides = [1, 1]} : vector<64x128xf32> to vector<64x32xf32>
    %217 = tpu.concatenate %215, %215, %215, %215 in 0 : vector<64x32xf32>, vector<64x32xf32>, vector<64x32xf32>, vector<64x32xf32> -> vector<256x32xf32>
    %218 = arith.mulf %217, %0 : vector<256x32xf32>
    %219 = arith.truncf %218 : vector<256x32xf32> to vector<256x32xbf16>
    %220 = arith.truncf %214 : vector<64x32xf32> to vector<64x32xbf16>
    %cst_119 = arith.constant dense<0.000000e+00> : vector<64x256xf32>
    %221 = tpu.matmul %220, %219, %cst_119 {dimension_numbers = #tpu.dot_dimension_numbers<[1], [1], [0], [0], [0, 0, 1, 0], [], []>} : vector<64x32xbf16>, vector<256x32xbf16>, vector<64x256xf32> -> vector<64x256xf32>
    %cst_120 = arith.constant 0.353553385 : f32
    %222 = vector.broadcast %cst_120 : f32 to vector<64x256xf32>
    %223 = arith.mulf %221, %222 : vector<64x256xf32>
    %c1_121 = arith.constant 1 : index
    %c0_122 = arith.constant 0 : index
    %c0_123 = arith.constant 0 : index
    %224 = vector.load %arg8[%c1_121, %c0_122, %c0_123] : memref<2x1x256xf32, #tpu.memory_space<vmem>>, vector<1x1x256xf32>
    %225 = vector.shape_cast %224 : vector<1x1x256xf32> to vector<1x256xf32>
    %226 = vector.broadcast %225 : vector<1x256xf32> to vector<64x256xf32>
    %227 = arith.addf %223, %226 : vector<64x256xf32>
    %cst_124 = arith.constant dense<0xFF800000> : vector<64xf32>
    %228 = vector.multi_reduction <maximumf>, %227, %cst_124 [1] : vector<64x256xf32> to vector<64xf32>
    %229 = vector.shape_cast %228 : vector<64xf32> to vector<64x1xf32>
    %230 = vector.broadcast %229 : vector<64x1xf32> to vector<64x256xf32>
    %231 = arith.subf %227, %230 : vector<64x256xf32>
    %232 = math.exp %231 : vector<64x256xf32>
    %233 = arith.truncf %232 : vector<64x256xf32> to vector<64x256xbf16>
    %234 = tpu.concatenate %216, %216, %216, %216 in 0 : vector<64x32xf32>, vector<64x32xf32>, vector<64x32xf32>, vector<64x32xf32> -> vector<256x32xf32>
    %235 = arith.mulf %234, %0 : vector<256x32xf32>
    %236 = arith.truncf %235 : vector<256x32xf32> to vector<256x32xbf16>
    %cst_125 = arith.constant dense<0.000000e+00> : vector<64x32xf32>
    %237 = tpu.matmul %233, %236, %cst_125 {dimension_numbers = #tpu.dot_dimension_numbers<[1], [0], [0], [1], [0, 0, 1, 1], [], []>} : vector<64x256xbf16>, vector<256x32xbf16>, vector<64x32xf32> -> vector<64x32xf32>
    %cst_126 = arith.constant dense<0.000000e+00> : vector<64x32xf32>
    %238 = tpu.matmul %233, %1, %cst_126 {dimension_numbers = #tpu.dot_dimension_numbers<[1], [0], [0], [1], [0, 0, 1, 1], [], []>} : vector<64x256xbf16>, vector<256x32xbf16>, vector<64x32xf32> -> vector<64x32xf32>
    %239 = tpu.reciprocal %238 {approx = true} : vector<64x32xf32> -> vector<64x32xf32>
    %240 = arith.mulf %237, %239 : vector<64x32xf32>
    %c0_127 = arith.constant 0 : index
    %c0_128 = arith.constant 0 : index
    %241 = vector.load %arg18[%c0_127, %c0_128] : memref<32x32xbf16, #tpu.memory_space<vmem>>, vector<32x32xbf16>
    %242 = arith.truncf %240 : vector<64x32xf32> to vector<64x32xbf16>
    %cst_129 = arith.constant dense<0.000000e+00> : vector<64x32xf32>
    %243 = tpu.matmul %242, %241, %cst_129 {dimension_numbers = #tpu.dot_dimension_numbers<[1], [0], [0], [1], [0, 0, 1, 1], [], []>} : vector<64x32xbf16>, vector<32x32xbf16>, vector<64x32xf32> -> vector<64x32xf32>
    %244 = math.tanh %171 : vector<1x32xf32>
    %245 = arith.mulf %243, %243 : vector<64x32xf32>
    %cst_130 = arith.constant dense<0.000000e+00> : vector<64xf32>
    %246 = vector.multi_reduction <add>, %245, %cst_130 [1] : vector<64x32xf32> to vector<64xf32>
    %247 = vector.shape_cast %246 : vector<64xf32> to vector<64x1xf32>
    %cst_131 = arith.constant 3.200000e+01 : f32
    %248 = vector.broadcast %cst_131 : f32 to vector<64x1xf32>
    %249 = arith.divf %247, %248 : vector<64x1xf32>
    %cst_132 = arith.constant 9.99999997E-7 : f32
    %250 = vector.broadcast %cst_132 : f32 to vector<64x1xf32>
    %251 = arith.addf %249, %250 : vector<64x1xf32>
    %252 = math.rsqrt %251 : vector<64x1xf32>
    %253 = vector.broadcast %252 : vector<64x1xf32> to vector<64x32xf32>
    %254 = arith.mulf %243, %253 : vector<64x32xf32>
    %c0_133 = arith.constant 0 : index
    %c0_134 = arith.constant 0 : index
    %255 = vector.load %arg19[%c0_133, %c0_134] : memref<1x32xf32, #tpu.memory_space<vmem>>, vector<1x32xf32>
    %256 = vector.broadcast %255 : vector<1x32xf32> to vector<64x32xf32>
    %257 = arith.mulf %254, %256 : vector<64x32xf32>
    %258 = vector.broadcast %244 : vector<1x32xf32> to vector<64x32xf32>
    %259 = arith.mulf %258, %257 : vector<64x32xf32>
    %260 = arith.addf %167, %259 : vector<64x32xf32>
    %261 = arith.mulf %260, %260 : vector<64x32xf32>
    %cst_135 = arith.constant dense<0.000000e+00> : vector<64xf32>
    %262 = vector.multi_reduction <add>, %261, %cst_135 [1] : vector<64x32xf32> to vector<64xf32>
    %263 = vector.shape_cast %262 : vector<64xf32> to vector<64x1xf32>
    %cst_136 = arith.constant 3.200000e+01 : f32
    %264 = vector.broadcast %cst_136 : f32 to vector<64x1xf32>
    %265 = arith.divf %263, %264 : vector<64x1xf32>
    %cst_137 = arith.constant 9.99999997E-7 : f32
    %266 = vector.broadcast %cst_137 : f32 to vector<64x1xf32>
    %267 = arith.addf %265, %266 : vector<64x1xf32>
    %268 = math.rsqrt %267 : vector<64x1xf32>
    %269 = vector.broadcast %268 : vector<64x1xf32> to vector<64x32xf32>
    %270 = arith.mulf %260, %269 : vector<64x32xf32>
    %c0_138 = arith.constant 0 : index
    %c0_139 = arith.constant 0 : index
    %271 = vector.load %arg20[%c0_138, %c0_139] : memref<1x32xf32, #tpu.memory_space<vmem>>, vector<1x32xf32>
    %272 = vector.broadcast %271 : vector<1x32xf32> to vector<64x32xf32>
    %273 = arith.mulf %270, %272 : vector<64x32xf32>
    %cst_140 = arith.constant 1.000000e+00 : f32
    %274 = vector.broadcast %cst_140 : f32 to vector<1x32xf32>
    %275 = arith.addf %274, %173 : vector<1x32xf32>
    %276 = vector.broadcast %275 : vector<1x32xf32> to vector<64x32xf32>
    %277 = arith.mulf %273, %276 : vector<64x32xf32>
    %c0_141 = arith.constant 0 : index
    %c0_142 = arith.constant 0 : index
    %278 = vector.load %arg21[%c0_141, %c0_142] : memref<32x128xbf16, #tpu.memory_space<vmem>>, vector<32x128xbf16>
    %279 = arith.truncf %277 : vector<64x32xf32> to vector<64x32xbf16>
    %cst_143 = arith.constant dense<0.000000e+00> : vector<64x128xf32>
    %280 = tpu.matmul %279, %278, %cst_143 {dimension_numbers = #tpu.dot_dimension_numbers<[1], [0], [0], [1], [0, 0, 1, 1], [], []>} : vector<64x32xbf16>, vector<32x128xbf16>, vector<64x128xf32> -> vector<64x128xf32>
    %281 = vector.extract_strided_slice %280 {offsets = [0, 0], sizes = [64, 64], strides = [1, 1]} : vector<64x128xf32> to vector<64x64xf32>
    %282 = vector.extract_strided_slice %280 {offsets = [0, 64], sizes = [64, 64], strides = [1, 1]} : vector<64x128xf32> to vector<64x64xf32>
    %cst_144 = arith.constant 0.000000e+00 : f32
    %283 = vector.broadcast %cst_144 : f32 to vector<64x64xf32>
    %284 = arith.subf %283, %281 : vector<64x64xf32>
    %285 = math.exp %284 : vector<64x64xf32>
    %cst_145 = arith.constant 1.000000e+00 : f32
    %286 = vector.broadcast %cst_145 : f32 to vector<64x64xf32>
    %287 = arith.addf %286, %285 : vector<64x64xf32>
    %288 = tpu.reciprocal %287 {approx = true} : vector<64x64xf32> -> vector<64x64xf32>
    %289 = arith.mulf %281, %288 : vector<64x64xf32>
    %290 = arith.mulf %289, %282 : vector<64x64xf32>
    %c0_146 = arith.constant 0 : index
    %c0_147 = arith.constant 0 : index
    %291 = vector.load %arg22[%c0_146, %c0_147] : memref<64x32xbf16, #tpu.memory_space<vmem>>, vector<64x32xbf16>
    %292 = arith.truncf %290 : vector<64x64xf32> to vector<64x64xbf16>
    %cst_148 = arith.constant dense<0.000000e+00> : vector<64x32xf32>
    %293 = tpu.matmul %292, %291, %cst_148 {dimension_numbers = #tpu.dot_dimension_numbers<[1], [0], [0], [1], [0, 0, 1, 1], [], []>} : vector<64x64xbf16>, vector<64x32xbf16>, vector<64x32xf32> -> vector<64x32xf32>
    %294 = math.tanh %175 : vector<1x32xf32>
    %295 = arith.mulf %293, %293 : vector<64x32xf32>
    %cst_149 = arith.constant dense<0.000000e+00> : vector<64xf32>
    %296 = vector.multi_reduction <add>, %295, %cst_149 [1] : vector<64x32xf32> to vector<64xf32>
    %297 = vector.shape_cast %296 : vector<64xf32> to vector<64x1xf32>
    %cst_150 = arith.constant 3.200000e+01 : f32
    %298 = vector.broadcast %cst_150 : f32 to vector<64x1xf32>
    %299 = arith.divf %297, %298 : vector<64x1xf32>
    %cst_151 = arith.constant 9.99999997E-7 : f32
    %300 = vector.broadcast %cst_151 : f32 to vector<64x1xf32>
    %301 = arith.addf %299, %300 : vector<64x1xf32>
    %302 = math.rsqrt %301 : vector<64x1xf32>
    %303 = vector.broadcast %302 : vector<64x1xf32> to vector<64x32xf32>
    %304 = arith.mulf %293, %303 : vector<64x32xf32>
    %c0_152 = arith.constant 0 : index
    %c0_153 = arith.constant 0 : index
    %305 = vector.load %arg23[%c0_152, %c0_153] : memref<1x32xf32, #tpu.memory_space<vmem>>, vector<1x32xf32>
    %306 = vector.broadcast %305 : vector<1x32xf32> to vector<64x32xf32>
    %307 = arith.mulf %304, %306 : vector<64x32xf32>
    %308 = vector.broadcast %294 : vector<1x32xf32> to vector<64x32xf32>
    %309 = arith.mulf %308, %307 : vector<64x32xf32>
    %310 = arith.addf %260, %309 : vector<64x32xf32>
    %c1_154 = arith.constant 1 : index
    %c0_155 = arith.constant 0 : index
    %c0_156 = arith.constant 0 : index
    %311 = vector.load %arg24[%c1_154, %c0_155, %c0_156] : memref<2x64x32xf32, #tpu.memory_space<vmem>>, vector<1x64x32xf32>
    %312 = vector.shape_cast %311 : vector<1x64x32xf32> to vector<64x32xf32>
    %313 = vector.shape_cast %310 : vector<64x32xf32> to vector<1x64x32xf32>
    tpu.vector_store %arg24[%c1_154, %c0_155, %c0_156], %313 {strides = array<i32>} : memref<2x64x32xf32, #tpu.memory_space<vmem>>, vector<1x64x32xf32>,
    return
  }
  func.func @transform_0(%arg0: i32) -> (i32, i32, i32) {
    %c0_i32 = arith.constant 0 : i32
    %c0_i32_0 = arith.constant 0 : i32
    %c0_i32_1 = arith.constant 0 : i32
    return %arg0, %c0_i32, %c0_i32_0 : i32, i32, i32
  }
  func.func @transform_1(%arg0: i32) -> (i32, i32) {
    %c0_i32 = arith.constant 0 : i32
    %c0_i32_0 = arith.constant 0 : i32
    %c0_i32_1 = arith.constant 0 : i32
    return %c0_i32, %c0_i32_0 : i32, i32
  }
  func.func @transform_2(%arg0: i32) -> (i32, i32) {
    %c0_i32 = arith.constant 0 : i32
    %c0_i32_0 = arith.constant 0 : i32
    %c0_i32_1 = arith.constant 0 : i32
    return %c0_i32, %c0_i32_0 : i32, i32
  }
  func.func @transform_3(%arg0: i32) -> (i32, i32, i32) {
    %c0_i32 = arith.constant 0 : i32
    %c0_i32_0 = arith.constant 0 : i32
    %c0_i32_1 = arith.constant 0 : i32
    return %arg0, %c0_i32, %c0_i32_0 : i32, i32, i32
  }
  func.func @transform_4(%arg0: i32) -> (i32, i32, i32) {
    %c0_i32 = arith.constant 0 : i32
    %c0_i32_0 = arith.constant 0 : i32
    %c0_i32_1 = arith.constant 0 : i32
    return %arg0, %c0_i32, %c0_i32_0 : i32, i32, i32
  }
  func.func @transform_5(%arg0: i32) -> (i32, i32, i32) {
    %c0_i32 = arith.constant 0 : i32
    %c0_i32_0 = arith.constant 0 : i32
    %c0_i32_1 = arith.constant 0 : i32
    return %arg0, %c0_i32, %c0_i32_0 : i32, i32, i32
  }
  func.func @transform_6(%arg0: i32) -> (i32, i32, i32) {
    %c0_i32 = arith.constant 0 : i32
    %c0_i32_0 = arith.constant 0 : i32
    %c0_i32_1 = arith.constant 0 : i32
    return %arg0, %c0_i32, %c0_i32_0 : i32, i32, i32
  }
  func.func @transform_7(%arg0: i32) -> (i32, i32, i32) {
    %c0_i32 = arith.constant 0 : i32
    %c0_i32_0 = arith.constant 0 : i32
    %c0_i32_1 = arith.constant 0 : i32
    return %arg0, %c0_i32, %c0_i32_0 : i32, i32, i32
  }
  func.func @transform_8(%arg0: i32) -> (i32, i32, i32) {
    %c0_i32 = arith.constant 0 : i32
    %c0_i32_0 = arith.constant 0 : i32
    %c0_i32_1 = arith.constant 0 : i32
    return %arg0, %c0_i32, %c0_i32_0 : i32, i32, i32
  }
  func.func @transform_9(%arg0: i32) -> (i32, i32, i32) {
    %c0_i32 = arith.constant 0 : i32
    %c0_i32_0 = arith.constant 0 : i32
    %c0_i32_1 = arith.constant 0 : i32
    return %arg0, %c0_i32, %c0_i32_0 : i32, i32, i32
  }
  func.func @transform_10(%arg0: i32) -> (i32, i32) {
    %c0_i32 = arith.constant 0 : i32
    %c0_i32_0 = arith.constant 0 : i32
    %c0_i32_1 = arith.constant 0 : i32
    return %c0_i32, %c0_i32_0 : i32, i32
  }
  func.func @transform_11(%arg0: i32) -> (i32, i32) {
    %c0_i32 = arith.constant 0 : i32
    %c0_i32_0 = arith.constant 0 : i32
    %c0_i32_1 = arith.constant 0 : i32
    return %c0_i32, %c0_i32_0 : i32, i32
  }
  func.func @transform_12(%arg0: i32) -> (i32, i32) {
    %c0_i32 = arith.constant 0 : i32
    %c0_i32_0 = arith.constant 0 : i32
    %c0_i32_1 = arith.constant 0 : i32
    return %c0_i32, %c0_i32_0 : i32, i32
  }
  func.func @transform_13(%arg0: i32) -> (i32, i32) {
    %c0_i32 = arith.constant 0 : i32
    %c0_i32_0 = arith.constant 0 : i32
    %c0_i32_1 = arith.constant 0 : i32
    return %c0_i32, %c0_i32_0 : i32, i32
  }
  func.func @transform_14(%arg0: i32) -> (i32, i32) {
    %c0_i32 = arith.constant 0 : i32
    %c0_i32_0 = arith.constant 0 : i32
    %c0_i32_1 = arith.constant 0 : i32
    return %c0_i32, %c0_i32_0 : i32, i32
  }
  func.func @transform_15(%arg0: i32) -> (i32, i32) {
    %c0_i32 = arith.constant 0 : i32
    %c0_i32_0 = arith.constant 0 : i32
    %c0_i32_1 = arith.constant 0 : i32
    return %c0_i32, %c0_i32_0 : i32, i32
  }
  func.func @transform_16(%arg0: i32) -> (i32, i32) {
    %c0_i32 = arith.constant 0 : i32
    %c0_i32_0 = arith.constant 0 : i32
    %c0_i32_1 = arith.constant 0 : i32
    return %c0_i32, %c0_i32_0 : i32, i32
  }
  func.func @transform_17(%arg0: i32) -> (i32, i32) {
    %c0_i32 = arith.constant 0 : i32
    %c0_i32_0 = arith.constant 0 : i32
    %c0_i32_1 = arith.constant 0 : i32
    return %c0_i32, %c0_i32_0 : i32, i32
  }
  func.func @transform_18(%arg0: i32) -> (i32, i32) {
    %c0_i32 = arith.constant 0 : i32
    %c0_i32_0 = arith.constant 0 : i32
    %c0_i32_1 = arith.constant 0 : i32
    return %c0_i32, %c0_i32_0 : i32, i32
  }
  func.func @transform_19(%arg0: i32) -> (i32, i32) {
    %c0_i32 = arith.constant 0 : i32
    %c0_i32_0 = arith.constant 0 : i32
    %c0_i32_1 = arith.constant 0 : i32
    return %c0_i32, %c0_i32_0 : i32, i32
  }
  func.func @transform_20(%arg0: i32) -> (i32, i32) {
    %c0_i32 = arith.constant 0 : i32
    %c0_i32_0 = arith.constant 0 : i32
    %c0_i32_1 = arith.constant 0 : i32
    return %c0_i32, %c0_i32_0 : i32, i32
  }
  func.func @transform_21(%arg0: i32) -> (i32, i32) {
    %c0_i32 = arith.constant 0 : i32
    %c0_i32_0 = arith.constant 0 : i32
    %c0_i32_1 = arith.constant 0 : i32
    return %c0_i32, %c0_i32_0 : i32, i32
  }
  func.func @transform_22(%arg0: i32) -> (i32, i32) {
    %c0_i32 = arith.constant 0 : i32
    %c0_i32_0 = arith.constant 0 : i32
    %c0_i32_1 = arith.constant 0 : i32
    return %c0_i32, %c0_i32_0 : i32, i32
  }
  func.func @transform_23(%arg0: i32) -> (i32, i32, i32) {
    %c0_i32 = arith.constant 0 : i32
    %c0_i32_0 = arith.constant 0 : i32
    %c0_i32_1 = arith.constant 0 : i32
    return %arg0, %c0_i32, %c0_i32_0 : i32, i32, i32
  }
}

module attributes {stable_mosaic.version = 11 : i64} {
  func.func @_block_kernel(%arg0: i32, %arg1: memref<2x8x32xf32, #tpu.memory_space<vmem>>, %arg2: memref<2x1x32xf32, #tpu.memory_space<vmem>>, %arg3: memref<2x8x128xf32, #tpu.memory_space<vmem>>, %arg4: memref<2x8x128xf32, #tpu.memory_space<vmem>>, %arg5: memref<32x32xf32, #tpu.memory_space<vmem>>, %arg6: memref<1x32xf32, #tpu.memory_space<vmem>>, %arg7: memref<32x128xbf16, #tpu.memory_space<vmem>>, %arg8: memref<1x128xf32, #tpu.memory_space<vmem>>, %arg9: memref<1x128xf32, #tpu.memory_space<vmem>>, %arg10: memref<128x128xbf16, #tpu.memory_space<vmem>>, %arg11: memref<128x128xbf16, #tpu.memory_space<vmem>>, %arg12: memref<32x32xbf16, #tpu.memory_space<vmem>>, %arg13: memref<1x32xf32, #tpu.memory_space<vmem>>, %arg14: memref<1x32xf32, #tpu.memory_space<vmem>>, %arg15: memref<32x128xbf16, #tpu.memory_space<vmem>>, %arg16: memref<64x32xbf16, #tpu.memory_space<vmem>>, %arg17: memref<1x32xf32, #tpu.memory_space<vmem>>, %arg18: memref<2x8x32xf32, #tpu.memory_space<vmem>>) attributes {dimension_semantics = [#tpu.dimension_semantics<parallel>], iteration_bounds = array<i64: 1>, scalar_prefetch = 0 : i64, scratch_operands = 0 : i64, tpu.core_type = #tpu.core_type<tc>, window_params = [{transform_indices = @transform_0, window_bounds = array<i64: 2, 8, 32>}, {transform_indices = @transform_1, window_bounds = array<i64: 2, 1, 32>}, {transform_indices = @transform_2, window_bounds = array<i64: 2, 8, 128>}, {transform_indices = @transform_3, window_bounds = array<i64: 2, 8, 128>}, {pipeline_mode = #tpu.pipeline_mode<synchronous>, transform_indices = @transform_4, window_bounds = array<i64: 32, 32>}, {pipeline_mode = #tpu.pipeline_mode<synchronous>, transform_indices = @transform_5, window_bounds = array<i64: 1, 32>}, {pipeline_mode = #tpu.pipeline_mode<synchronous>, transform_indices = @transform_6, window_bounds = array<i64: 32, 128>}, {pipeline_mode = #tpu.pipeline_mode<synchronous>, transform_indices = @transform_7, window_bounds = array<i64: 1, 128>}, {pipeline_mode = #tpu.pipeline_mode<synchronous>, transform_indices = @transform_8, window_bounds = array<i64: 1, 128>}, {pipeline_mode = #tpu.pipeline_mode<synchronous>, transform_indices = @transform_9, window_bounds = array<i64: 128, 128>}, {pipeline_mode = #tpu.pipeline_mode<synchronous>, transform_indices = @transform_10, window_bounds = array<i64: 128, 128>}, {pipeline_mode = #tpu.pipeline_mode<synchronous>, transform_indices = @transform_11, window_bounds = array<i64: 32, 32>}, {pipeline_mode = #tpu.pipeline_mode<synchronous>, transform_indices = @transform_12, window_bounds = array<i64: 1, 32>}, {pipeline_mode = #tpu.pipeline_mode<synchronous>, transform_indices = @transform_13, window_bounds = array<i64: 1, 32>}, {pipeline_mode = #tpu.pipeline_mode<synchronous>, transform_indices = @transform_14, window_bounds = array<i64: 32, 128>}, {pipeline_mode = #tpu.pipeline_mode<synchronous>, transform_indices = @transform_15, window_bounds = array<i64: 64, 32>}, {pipeline_mode = #tpu.pipeline_mode<synchronous>, transform_indices = @transform_16, window_bounds = array<i64: 1, 32>}, {transform_indices = @transform_17, window_bounds = array<i64: 2, 8, 32>}]} {
    %c0 = arith.constant 0 : index
    %c0_0 = arith.constant 0 : index
    %0 = vector.load %arg5[%c0, %c0_0] : memref<32x32xf32, #tpu.memory_space<vmem>>, vector<32x32xf32>
    %1 = arith.truncf %0 : vector<32x32xf32> to vector<32x32xbf16>
    %c0_1 = arith.constant 0 : index
    %c0_2 = arith.constant 0 : index
    %2 = vector.load %arg10[%c0_1, %c0_2] : memref<128x128xbf16, #tpu.memory_space<vmem>>, vector<128x128xbf16>
    %c0_3 = arith.constant 0 : index
    %c0_4 = arith.constant 0 : index
    %3 = vector.load %arg11[%c0_3, %c0_4] : memref<128x128xbf16, #tpu.memory_space<vmem>>, vector<128x128xbf16>
    %c0_5 = arith.constant 0 : index
    %c0_6 = arith.constant 0 : index
    %4 = vector.load %arg8[%c0_5, %c0_6] : memref<1x128xf32, #tpu.memory_space<vmem>>, vector<1x128xf32>
    %c0_7 = arith.constant 0 : index
    %c0_8 = arith.constant 0 : index
    %5 = vector.load %arg9[%c0_7, %c0_8] : memref<1x128xf32, #tpu.memory_space<vmem>>, vector<1x128xf32>
    %c0_9 = arith.constant 0 : index
    %c0_10 = arith.constant 0 : index
    %c0_11 = arith.constant 0 : index
    %6 = vector.load %arg1[%c0_9, %c0_10, %c0_11] : memref<2x8x32xf32, #tpu.memory_space<vmem>>, vector<1x8x32xf32>
    %7 = vector.shape_cast %6 : vector<1x8x32xf32> to vector<8x32xf32>
    %8 = arith.mulf %7, %7 : vector<8x32xf32>
    %cst = arith.constant dense<0.000000e+00> : vector<8xf32>
    %9 = vector.multi_reduction <add>, %8, %cst [1] : vector<8x32xf32> to vector<8xf32>
    %10 = vector.shape_cast %9 : vector<8xf32> to vector<8x1xf32>
    %cst_12 = arith.constant 3.200000e+01 : f32
    %11 = vector.broadcast %cst_12 : f32 to vector<8x1xf32>
    %12 = arith.divf %10, %11 : vector<8x1xf32>
    %cst_13 = arith.constant 9.99999997E-7 : f32
    %13 = vector.broadcast %cst_13 : f32 to vector<8x1xf32>
    %14 = arith.addf %12, %13 : vector<8x1xf32>
    %15 = math.rsqrt %14 : vector<8x1xf32>
    %16 = vector.broadcast %15 : vector<8x1xf32> to vector<8x32xf32>
    %17 = arith.mulf %7, %16 : vector<8x32xf32>
    %c0_14 = arith.constant 0 : index
    %c0_15 = arith.constant 0 : index
    %18 = vector.load %arg6[%c0_14, %c0_15] : memref<1x32xf32, #tpu.memory_space<vmem>>, vector<1x32xf32>
    %19 = vector.broadcast %18 : vector<1x32xf32> to vector<8x32xf32>
    %20 = arith.mulf %17, %19 : vector<8x32xf32>
    %c0_16 = arith.constant 0 : index
    %c0_17 = arith.constant 0 : index
    %21 = vector.load %arg7[%c0_16, %c0_17] : memref<32x128xbf16, #tpu.memory_space<vmem>>, vector<32x128xbf16>
    %22 = arith.truncf %20 : vector<8x32xf32> to vector<8x32xbf16>
    %cst_18 = arith.constant dense<0.000000e+00> : vector<8x128xf32>
    %23 = tpu.matmul %22, %21, %cst_18 {dimension_numbers = #tpu.dot_dimension_numbers<[1], [0], [0], [1], [0, 0, 1, 1], [], []>} : vector<8x32xbf16>, vector<32x128xbf16>, vector<8x128xf32> -> vector<8x128xf32>
    %24 = arith.mulf %23, %23 : vector<8x128xf32>
    %25 = arith.truncf %24 : vector<8x128xf32> to vector<8x128xbf16>
    %cst_19 = arith.constant dense<0.000000e+00> : vector<8x128xf32>
    %26 = tpu.matmul %25, %2, %cst_19 {dimension_numbers = #tpu.dot_dimension_numbers<[1], [0], [0], [1], [0, 0, 1, 1], [], []>} : vector<8x128xbf16>, vector<128x128xbf16>, vector<8x128xf32> -> vector<8x128xf32>
    %27 = vector.broadcast %4 : vector<1x128xf32> to vector<8x128xf32>
    %28 = arith.addf %26, %27 : vector<8x128xf32>
    %29 = math.rsqrt %28 : vector<8x128xf32>
    %30 = arith.mulf %23, %29 : vector<8x128xf32>
    %31 = vector.broadcast %5 : vector<1x128xf32> to vector<8x128xf32>
    %32 = arith.mulf %30, %31 : vector<8x128xf32>
    %c0_20 = arith.constant 0 : index
    %c0_21 = arith.constant 0 : index
    %c0_22 = arith.constant 0 : index
    %33 = vector.load %arg3[%c0_20, %c0_21, %c0_22] : memref<2x8x128xf32, #tpu.memory_space<vmem>>, vector<1x8x128xf32>
    %34 = vector.shape_cast %33 : vector<1x8x128xf32> to vector<8x128xf32>
    %35 = arith.mulf %32, %34 : vector<8x128xf32>
    %36 = arith.truncf %32 : vector<8x128xf32> to vector<8x128xbf16>
    %cst_23 = arith.constant dense<0.000000e+00> : vector<8x128xf32>
    %37 = tpu.matmul %36, %3, %cst_23 {dimension_numbers = #tpu.dot_dimension_numbers<[1], [0], [0], [1], [0, 0, 1, 1], [], []>} : vector<8x128xbf16>, vector<128x128xbf16>, vector<8x128xf32> -> vector<8x128xf32>
    %c0_24 = arith.constant 0 : index
    %c0_25 = arith.constant 0 : index
    %c0_26 = arith.constant 0 : index
    %38 = vector.load %arg4[%c0_24, %c0_25, %c0_26] : memref<2x8x128xf32, #tpu.memory_space<vmem>>, vector<1x8x128xf32>
    %39 = vector.shape_cast %38 : vector<1x8x128xf32> to vector<8x128xf32>
    %40 = arith.mulf %37, %39 : vector<8x128xf32>
    %41 = arith.addf %35, %40 : vector<8x128xf32>
    %42 = vector.extract_strided_slice %41 {offsets = [0, 0], sizes = [8, 32], strides = [1, 1]} : vector<8x128xf32> to vector<8x32xf32>
    %43 = vector.extract_strided_slice %41 {offsets = [0, 32], sizes = [8, 32], strides = [1, 1]} : vector<8x128xf32> to vector<8x32xf32>
    %44 = vector.extract_strided_slice %41 {offsets = [0, 64], sizes = [8, 32], strides = [1, 1]} : vector<8x128xf32> to vector<8x32xf32>
    %45 = tpu.concatenate %43, %43, %43, %43 in 0 : vector<8x32xf32>, vector<8x32xf32>, vector<8x32xf32>, vector<8x32xf32> -> vector<32x32xf32>
    %46 = arith.mulf %45, %0 : vector<32x32xf32>
    %47 = arith.truncf %46 : vector<32x32xf32> to vector<32x32xbf16>
    %48 = arith.truncf %42 : vector<8x32xf32> to vector<8x32xbf16>
    %cst_27 = arith.constant dense<0.000000e+00> : vector<8x32xf32>
    %49 = tpu.matmul %48, %47, %cst_27 {dimension_numbers = #tpu.dot_dimension_numbers<[1], [1], [0], [0], [0, 0, 1, 0], [], []>} : vector<8x32xbf16>, vector<32x32xbf16>, vector<8x32xf32> -> vector<8x32xf32>
    %cst_28 = arith.constant 0.353553385 : f32
    %50 = vector.broadcast %cst_28 : f32 to vector<8x32xf32>
    %51 = arith.mulf %49, %50 : vector<8x32xf32>
    %c0_29 = arith.constant 0 : index
    %c0_30 = arith.constant 0 : index
    %c0_31 = arith.constant 0 : index
    %52 = vector.load %arg2[%c0_29, %c0_30, %c0_31] : memref<2x1x32xf32, #tpu.memory_space<vmem>>, vector<1x1x32xf32>
    %53 = vector.shape_cast %52 : vector<1x1x32xf32> to vector<1x32xf32>
    %54 = vector.broadcast %53 : vector<1x32xf32> to vector<8x32xf32>
    %55 = arith.addf %51, %54 : vector<8x32xf32>
    %cst_32 = arith.constant dense<0xFF800000> : vector<8xf32>
    %56 = vector.multi_reduction <maximumf>, %55, %cst_32 [1] : vector<8x32xf32> to vector<8xf32>
    %57 = vector.shape_cast %56 : vector<8xf32> to vector<8x1xf32>
    %58 = vector.broadcast %57 : vector<8x1xf32> to vector<8x32xf32>
    %59 = arith.subf %55, %58 : vector<8x32xf32>
    %60 = math.exp %59 : vector<8x32xf32>
    %61 = arith.truncf %60 : vector<8x32xf32> to vector<8x32xbf16>
    %62 = tpu.concatenate %44, %44, %44, %44 in 0 : vector<8x32xf32>, vector<8x32xf32>, vector<8x32xf32>, vector<8x32xf32> -> vector<32x32xf32>
    %63 = arith.mulf %62, %0 : vector<32x32xf32>
    %64 = arith.truncf %63 : vector<32x32xf32> to vector<32x32xbf16>
    %cst_33 = arith.constant dense<0.000000e+00> : vector<8x32xf32>
    %65 = tpu.matmul %61, %64, %cst_33 {dimension_numbers = #tpu.dot_dimension_numbers<[1], [0], [0], [1], [0, 0, 1, 1], [], []>} : vector<8x32xbf16>, vector<32x32xbf16>, vector<8x32xf32> -> vector<8x32xf32>
    %cst_34 = arith.constant dense<0.000000e+00> : vector<8x32xf32>
    %66 = tpu.matmul %61, %1, %cst_34 {dimension_numbers = #tpu.dot_dimension_numbers<[1], [0], [0], [1], [0, 0, 1, 1], [], []>} : vector<8x32xbf16>, vector<32x32xbf16>, vector<8x32xf32> -> vector<8x32xf32>
    %67 = tpu.reciprocal %66 {approx = true} : vector<8x32xf32> -> vector<8x32xf32>
    %68 = arith.mulf %65, %67 : vector<8x32xf32>
    %c0_35 = arith.constant 0 : index
    %c0_36 = arith.constant 0 : index
    %69 = vector.load %arg12[%c0_35, %c0_36] : memref<32x32xbf16, #tpu.memory_space<vmem>>, vector<32x32xbf16>
    %70 = arith.truncf %68 : vector<8x32xf32> to vector<8x32xbf16>
    %cst_37 = arith.constant dense<0.000000e+00> : vector<8x32xf32>
    %71 = tpu.matmul %70, %69, %cst_37 {dimension_numbers = #tpu.dot_dimension_numbers<[1], [0], [0], [1], [0, 0, 1, 1], [], []>} : vector<8x32xbf16>, vector<32x32xbf16>, vector<8x32xf32> -> vector<8x32xf32>
    %72 = arith.mulf %71, %71 : vector<8x32xf32>
    %cst_38 = arith.constant dense<0.000000e+00> : vector<8xf32>
    %73 = vector.multi_reduction <add>, %72, %cst_38 [1] : vector<8x32xf32> to vector<8xf32>
    %74 = vector.shape_cast %73 : vector<8xf32> to vector<8x1xf32>
    %cst_39 = arith.constant 3.200000e+01 : f32
    %75 = vector.broadcast %cst_39 : f32 to vector<8x1xf32>
    %76 = arith.divf %74, %75 : vector<8x1xf32>
    %cst_40 = arith.constant 9.99999997E-7 : f32
    %77 = vector.broadcast %cst_40 : f32 to vector<8x1xf32>
    %78 = arith.addf %76, %77 : vector<8x1xf32>
    %79 = math.rsqrt %78 : vector<8x1xf32>
    %80 = vector.broadcast %79 : vector<8x1xf32> to vector<8x32xf32>
    %81 = arith.mulf %71, %80 : vector<8x32xf32>
    %c0_41 = arith.constant 0 : index
    %c0_42 = arith.constant 0 : index
    %82 = vector.load %arg13[%c0_41, %c0_42] : memref<1x32xf32, #tpu.memory_space<vmem>>, vector<1x32xf32>
    %83 = vector.broadcast %82 : vector<1x32xf32> to vector<8x32xf32>
    %84 = arith.mulf %81, %83 : vector<8x32xf32>
    %85 = arith.addf %7, %84 : vector<8x32xf32>
    %86 = arith.mulf %85, %85 : vector<8x32xf32>
    %cst_43 = arith.constant dense<0.000000e+00> : vector<8xf32>
    %87 = vector.multi_reduction <add>, %86, %cst_43 [1] : vector<8x32xf32> to vector<8xf32>
    %88 = vector.shape_cast %87 : vector<8xf32> to vector<8x1xf32>
    %cst_44 = arith.constant 3.200000e+01 : f32
    %89 = vector.broadcast %cst_44 : f32 to vector<8x1xf32>
    %90 = arith.divf %88, %89 : vector<8x1xf32>
    %cst_45 = arith.constant 9.99999997E-7 : f32
    %91 = vector.broadcast %cst_45 : f32 to vector<8x1xf32>
    %92 = arith.addf %90, %91 : vector<8x1xf32>
    %93 = math.rsqrt %92 : vector<8x1xf32>
    %94 = vector.broadcast %93 : vector<8x1xf32> to vector<8x32xf32>
    %95 = arith.mulf %85, %94 : vector<8x32xf32>
    %c0_46 = arith.constant 0 : index
    %c0_47 = arith.constant 0 : index
    %96 = vector.load %arg14[%c0_46, %c0_47] : memref<1x32xf32, #tpu.memory_space<vmem>>, vector<1x32xf32>
    %97 = vector.broadcast %96 : vector<1x32xf32> to vector<8x32xf32>
    %98 = arith.mulf %95, %97 : vector<8x32xf32>
    %c0_48 = arith.constant 0 : index
    %c0_49 = arith.constant 0 : index
    %99 = vector.load %arg15[%c0_48, %c0_49] : memref<32x128xbf16, #tpu.memory_space<vmem>>, vector<32x128xbf16>
    %100 = arith.truncf %98 : vector<8x32xf32> to vector<8x32xbf16>
    %cst_50 = arith.constant dense<0.000000e+00> : vector<8x128xf32>
    %101 = tpu.matmul %100, %99, %cst_50 {dimension_numbers = #tpu.dot_dimension_numbers<[1], [0], [0], [1], [0, 0, 1, 1], [], []>} : vector<8x32xbf16>, vector<32x128xbf16>, vector<8x128xf32> -> vector<8x128xf32>
    %102 = vector.extract_strided_slice %101 {offsets = [0, 0], sizes = [8, 64], strides = [1, 1]} : vector<8x128xf32> to vector<8x64xf32>
    %103 = vector.extract_strided_slice %101 {offsets = [0, 64], sizes = [8, 64], strides = [1, 1]} : vector<8x128xf32> to vector<8x64xf32>
    %cst_51 = arith.constant 0.000000e+00 : f32
    %104 = vector.broadcast %cst_51 : f32 to vector<8x64xf32>
    %105 = arith.subf %104, %102 : vector<8x64xf32>
    %106 = math.exp %105 : vector<8x64xf32>
    %cst_52 = arith.constant 1.000000e+00 : f32
    %107 = vector.broadcast %cst_52 : f32 to vector<8x64xf32>
    %108 = arith.addf %107, %106 : vector<8x64xf32>
    %109 = tpu.reciprocal %108 {approx = true} : vector<8x64xf32> -> vector<8x64xf32>
    %110 = arith.mulf %102, %109 : vector<8x64xf32>
    %111 = arith.mulf %110, %103 : vector<8x64xf32>
    %c0_53 = arith.constant 0 : index
    %c0_54 = arith.constant 0 : index
    %112 = vector.load %arg16[%c0_53, %c0_54] : memref<64x32xbf16, #tpu.memory_space<vmem>>, vector<64x32xbf16>
    %113 = arith.truncf %111 : vector<8x64xf32> to vector<8x64xbf16>
    %cst_55 = arith.constant dense<0.000000e+00> : vector<8x32xf32>
    %114 = tpu.matmul %113, %112, %cst_55 {dimension_numbers = #tpu.dot_dimension_numbers<[1], [0], [0], [1], [0, 0, 1, 1], [], []>} : vector<8x64xbf16>, vector<64x32xbf16>, vector<8x32xf32> -> vector<8x32xf32>
    %115 = arith.mulf %114, %114 : vector<8x32xf32>
    %cst_56 = arith.constant dense<0.000000e+00> : vector<8xf32>
    %116 = vector.multi_reduction <add>, %115, %cst_56 [1] : vector<8x32xf32> to vector<8xf32>
    %117 = vector.shape_cast %116 : vector<8xf32> to vector<8x1xf32>
    %cst_57 = arith.constant 3.200000e+01 : f32
    %118 = vector.broadcast %cst_57 : f32 to vector<8x1xf32>
    %119 = arith.divf %117, %118 : vector<8x1xf32>
    %cst_58 = arith.constant 9.99999997E-7 : f32
    %120 = vector.broadcast %cst_58 : f32 to vector<8x1xf32>
    %121 = arith.addf %119, %120 : vector<8x1xf32>
    %122 = math.rsqrt %121 : vector<8x1xf32>
    %123 = vector.broadcast %122 : vector<8x1xf32> to vector<8x32xf32>
    %124 = arith.mulf %114, %123 : vector<8x32xf32>
    %c0_59 = arith.constant 0 : index
    %c0_60 = arith.constant 0 : index
    %125 = vector.load %arg17[%c0_59, %c0_60] : memref<1x32xf32, #tpu.memory_space<vmem>>, vector<1x32xf32>
    %126 = vector.broadcast %125 : vector<1x32xf32> to vector<8x32xf32>
    %127 = arith.mulf %124, %126 : vector<8x32xf32>
    %128 = arith.addf %85, %127 : vector<8x32xf32>
    %c0_61 = arith.constant 0 : index
    %c0_62 = arith.constant 0 : index
    %c0_63 = arith.constant 0 : index
    %129 = vector.load %arg18[%c0_61, %c0_62, %c0_63] : memref<2x8x32xf32, #tpu.memory_space<vmem>>, vector<1x8x32xf32>
    %130 = vector.shape_cast %129 : vector<1x8x32xf32> to vector<8x32xf32>
    %131 = vector.shape_cast %128 : vector<8x32xf32> to vector<1x8x32xf32>
    tpu.vector_store %arg18[%c0_61, %c0_62, %c0_63], %131 {strides = array<i32>} : memref<2x8x32xf32, #tpu.memory_space<vmem>>, vector<1x8x32xf32>,
    %c1 = arith.constant 1 : index
    %c0_64 = arith.constant 0 : index
    %c0_65 = arith.constant 0 : index
    %132 = vector.load %arg1[%c1, %c0_64, %c0_65] : memref<2x8x32xf32, #tpu.memory_space<vmem>>, vector<1x8x32xf32>
    %133 = vector.shape_cast %132 : vector<1x8x32xf32> to vector<8x32xf32>
    %134 = arith.mulf %133, %133 : vector<8x32xf32>
    %cst_66 = arith.constant dense<0.000000e+00> : vector<8xf32>
    %135 = vector.multi_reduction <add>, %134, %cst_66 [1] : vector<8x32xf32> to vector<8xf32>
    %136 = vector.shape_cast %135 : vector<8xf32> to vector<8x1xf32>
    %cst_67 = arith.constant 3.200000e+01 : f32
    %137 = vector.broadcast %cst_67 : f32 to vector<8x1xf32>
    %138 = arith.divf %136, %137 : vector<8x1xf32>
    %cst_68 = arith.constant 9.99999997E-7 : f32
    %139 = vector.broadcast %cst_68 : f32 to vector<8x1xf32>
    %140 = arith.addf %138, %139 : vector<8x1xf32>
    %141 = math.rsqrt %140 : vector<8x1xf32>
    %142 = vector.broadcast %141 : vector<8x1xf32> to vector<8x32xf32>
    %143 = arith.mulf %133, %142 : vector<8x32xf32>
    %c0_69 = arith.constant 0 : index
    %c0_70 = arith.constant 0 : index
    %144 = vector.load %arg6[%c0_69, %c0_70] : memref<1x32xf32, #tpu.memory_space<vmem>>, vector<1x32xf32>
    %145 = vector.broadcast %144 : vector<1x32xf32> to vector<8x32xf32>
    %146 = arith.mulf %143, %145 : vector<8x32xf32>
    %c0_71 = arith.constant 0 : index
    %c0_72 = arith.constant 0 : index
    %147 = vector.load %arg7[%c0_71, %c0_72] : memref<32x128xbf16, #tpu.memory_space<vmem>>, vector<32x128xbf16>
    %148 = arith.truncf %146 : vector<8x32xf32> to vector<8x32xbf16>
    %cst_73 = arith.constant dense<0.000000e+00> : vector<8x128xf32>
    %149 = tpu.matmul %148, %147, %cst_73 {dimension_numbers = #tpu.dot_dimension_numbers<[1], [0], [0], [1], [0, 0, 1, 1], [], []>} : vector<8x32xbf16>, vector<32x128xbf16>, vector<8x128xf32> -> vector<8x128xf32>
    %150 = arith.mulf %149, %149 : vector<8x128xf32>
    %151 = arith.truncf %150 : vector<8x128xf32> to vector<8x128xbf16>
    %cst_74 = arith.constant dense<0.000000e+00> : vector<8x128xf32>
    %152 = tpu.matmul %151, %2, %cst_74 {dimension_numbers = #tpu.dot_dimension_numbers<[1], [0], [0], [1], [0, 0, 1, 1], [], []>} : vector<8x128xbf16>, vector<128x128xbf16>, vector<8x128xf32> -> vector<8x128xf32>
    %153 = vector.broadcast %4 : vector<1x128xf32> to vector<8x128xf32>
    %154 = arith.addf %152, %153 : vector<8x128xf32>
    %155 = math.rsqrt %154 : vector<8x128xf32>
    %156 = arith.mulf %149, %155 : vector<8x128xf32>
    %157 = vector.broadcast %5 : vector<1x128xf32> to vector<8x128xf32>
    %158 = arith.mulf %156, %157 : vector<8x128xf32>
    %c1_75 = arith.constant 1 : index
    %c0_76 = arith.constant 0 : index
    %c0_77 = arith.constant 0 : index
    %159 = vector.load %arg3[%c1_75, %c0_76, %c0_77] : memref<2x8x128xf32, #tpu.memory_space<vmem>>, vector<1x8x128xf32>
    %160 = vector.shape_cast %159 : vector<1x8x128xf32> to vector<8x128xf32>
    %161 = arith.mulf %158, %160 : vector<8x128xf32>
    %162 = arith.truncf %158 : vector<8x128xf32> to vector<8x128xbf16>
    %cst_78 = arith.constant dense<0.000000e+00> : vector<8x128xf32>
    %163 = tpu.matmul %162, %3, %cst_78 {dimension_numbers = #tpu.dot_dimension_numbers<[1], [0], [0], [1], [0, 0, 1, 1], [], []>} : vector<8x128xbf16>, vector<128x128xbf16>, vector<8x128xf32> -> vector<8x128xf32>
    %c1_79 = arith.constant 1 : index
    %c0_80 = arith.constant 0 : index
    %c0_81 = arith.constant 0 : index
    %164 = vector.load %arg4[%c1_79, %c0_80, %c0_81] : memref<2x8x128xf32, #tpu.memory_space<vmem>>, vector<1x8x128xf32>
    %165 = vector.shape_cast %164 : vector<1x8x128xf32> to vector<8x128xf32>
    %166 = arith.mulf %163, %165 : vector<8x128xf32>
    %167 = arith.addf %161, %166 : vector<8x128xf32>
    %168 = vector.extract_strided_slice %167 {offsets = [0, 0], sizes = [8, 32], strides = [1, 1]} : vector<8x128xf32> to vector<8x32xf32>
    %169 = vector.extract_strided_slice %167 {offsets = [0, 32], sizes = [8, 32], strides = [1, 1]} : vector<8x128xf32> to vector<8x32xf32>
    %170 = vector.extract_strided_slice %167 {offsets = [0, 64], sizes = [8, 32], strides = [1, 1]} : vector<8x128xf32> to vector<8x32xf32>
    %171 = tpu.concatenate %169, %169, %169, %169 in 0 : vector<8x32xf32>, vector<8x32xf32>, vector<8x32xf32>, vector<8x32xf32> -> vector<32x32xf32>
    %172 = arith.mulf %171, %0 : vector<32x32xf32>
    %173 = arith.truncf %172 : vector<32x32xf32> to vector<32x32xbf16>
    %174 = arith.truncf %168 : vector<8x32xf32> to vector<8x32xbf16>
    %cst_82 = arith.constant dense<0.000000e+00> : vector<8x32xf32>
    %175 = tpu.matmul %174, %173, %cst_82 {dimension_numbers = #tpu.dot_dimension_numbers<[1], [1], [0], [0], [0, 0, 1, 0], [], []>} : vector<8x32xbf16>, vector<32x32xbf16>, vector<8x32xf32> -> vector<8x32xf32>
    %cst_83 = arith.constant 0.353553385 : f32
    %176 = vector.broadcast %cst_83 : f32 to vector<8x32xf32>
    %177 = arith.mulf %175, %176 : vector<8x32xf32>
    %c1_84 = arith.constant 1 : index
    %c0_85 = arith.constant 0 : index
    %c0_86 = arith.constant 0 : index
    %178 = vector.load %arg2[%c1_84, %c0_85, %c0_86] : memref<2x1x32xf32, #tpu.memory_space<vmem>>, vector<1x1x32xf32>
    %179 = vector.shape_cast %178 : vector<1x1x32xf32> to vector<1x32xf32>
    %180 = vector.broadcast %179 : vector<1x32xf32> to vector<8x32xf32>
    %181 = arith.addf %177, %180 : vector<8x32xf32>
    %cst_87 = arith.constant dense<0xFF800000> : vector<8xf32>
    %182 = vector.multi_reduction <maximumf>, %181, %cst_87 [1] : vector<8x32xf32> to vector<8xf32>
    %183 = vector.shape_cast %182 : vector<8xf32> to vector<8x1xf32>
    %184 = vector.broadcast %183 : vector<8x1xf32> to vector<8x32xf32>
    %185 = arith.subf %181, %184 : vector<8x32xf32>
    %186 = math.exp %185 : vector<8x32xf32>
    %187 = arith.truncf %186 : vector<8x32xf32> to vector<8x32xbf16>
    %188 = tpu.concatenate %170, %170, %170, %170 in 0 : vector<8x32xf32>, vector<8x32xf32>, vector<8x32xf32>, vector<8x32xf32> -> vector<32x32xf32>
    %189 = arith.mulf %188, %0 : vector<32x32xf32>
    %190 = arith.truncf %189 : vector<32x32xf32> to vector<32x32xbf16>
    %cst_88 = arith.constant dense<0.000000e+00> : vector<8x32xf32>
    %191 = tpu.matmul %187, %190, %cst_88 {dimension_numbers = #tpu.dot_dimension_numbers<[1], [0], [0], [1], [0, 0, 1, 1], [], []>} : vector<8x32xbf16>, vector<32x32xbf16>, vector<8x32xf32> -> vector<8x32xf32>
    %cst_89 = arith.constant dense<0.000000e+00> : vector<8x32xf32>
    %192 = tpu.matmul %187, %1, %cst_89 {dimension_numbers = #tpu.dot_dimension_numbers<[1], [0], [0], [1], [0, 0, 1, 1], [], []>} : vector<8x32xbf16>, vector<32x32xbf16>, vector<8x32xf32> -> vector<8x32xf32>
    %193 = tpu.reciprocal %192 {approx = true} : vector<8x32xf32> -> vector<8x32xf32>
    %194 = arith.mulf %191, %193 : vector<8x32xf32>
    %c0_90 = arith.constant 0 : index
    %c0_91 = arith.constant 0 : index
    %195 = vector.load %arg12[%c0_90, %c0_91] : memref<32x32xbf16, #tpu.memory_space<vmem>>, vector<32x32xbf16>
    %196 = arith.truncf %194 : vector<8x32xf32> to vector<8x32xbf16>
    %cst_92 = arith.constant dense<0.000000e+00> : vector<8x32xf32>
    %197 = tpu.matmul %196, %195, %cst_92 {dimension_numbers = #tpu.dot_dimension_numbers<[1], [0], [0], [1], [0, 0, 1, 1], [], []>} : vector<8x32xbf16>, vector<32x32xbf16>, vector<8x32xf32> -> vector<8x32xf32>
    %198 = arith.mulf %197, %197 : vector<8x32xf32>
    %cst_93 = arith.constant dense<0.000000e+00> : vector<8xf32>
    %199 = vector.multi_reduction <add>, %198, %cst_93 [1] : vector<8x32xf32> to vector<8xf32>
    %200 = vector.shape_cast %199 : vector<8xf32> to vector<8x1xf32>
    %cst_94 = arith.constant 3.200000e+01 : f32
    %201 = vector.broadcast %cst_94 : f32 to vector<8x1xf32>
    %202 = arith.divf %200, %201 : vector<8x1xf32>
    %cst_95 = arith.constant 9.99999997E-7 : f32
    %203 = vector.broadcast %cst_95 : f32 to vector<8x1xf32>
    %204 = arith.addf %202, %203 : vector<8x1xf32>
    %205 = math.rsqrt %204 : vector<8x1xf32>
    %206 = vector.broadcast %205 : vector<8x1xf32> to vector<8x32xf32>
    %207 = arith.mulf %197, %206 : vector<8x32xf32>
    %c0_96 = arith.constant 0 : index
    %c0_97 = arith.constant 0 : index
    %208 = vector.load %arg13[%c0_96, %c0_97] : memref<1x32xf32, #tpu.memory_space<vmem>>, vector<1x32xf32>
    %209 = vector.broadcast %208 : vector<1x32xf32> to vector<8x32xf32>
    %210 = arith.mulf %207, %209 : vector<8x32xf32>
    %211 = arith.addf %133, %210 : vector<8x32xf32>
    %212 = arith.mulf %211, %211 : vector<8x32xf32>
    %cst_98 = arith.constant dense<0.000000e+00> : vector<8xf32>
    %213 = vector.multi_reduction <add>, %212, %cst_98 [1] : vector<8x32xf32> to vector<8xf32>
    %214 = vector.shape_cast %213 : vector<8xf32> to vector<8x1xf32>
    %cst_99 = arith.constant 3.200000e+01 : f32
    %215 = vector.broadcast %cst_99 : f32 to vector<8x1xf32>
    %216 = arith.divf %214, %215 : vector<8x1xf32>
    %cst_100 = arith.constant 9.99999997E-7 : f32
    %217 = vector.broadcast %cst_100 : f32 to vector<8x1xf32>
    %218 = arith.addf %216, %217 : vector<8x1xf32>
    %219 = math.rsqrt %218 : vector<8x1xf32>
    %220 = vector.broadcast %219 : vector<8x1xf32> to vector<8x32xf32>
    %221 = arith.mulf %211, %220 : vector<8x32xf32>
    %c0_101 = arith.constant 0 : index
    %c0_102 = arith.constant 0 : index
    %222 = vector.load %arg14[%c0_101, %c0_102] : memref<1x32xf32, #tpu.memory_space<vmem>>, vector<1x32xf32>
    %223 = vector.broadcast %222 : vector<1x32xf32> to vector<8x32xf32>
    %224 = arith.mulf %221, %223 : vector<8x32xf32>
    %c0_103 = arith.constant 0 : index
    %c0_104 = arith.constant 0 : index
    %225 = vector.load %arg15[%c0_103, %c0_104] : memref<32x128xbf16, #tpu.memory_space<vmem>>, vector<32x128xbf16>
    %226 = arith.truncf %224 : vector<8x32xf32> to vector<8x32xbf16>
    %cst_105 = arith.constant dense<0.000000e+00> : vector<8x128xf32>
    %227 = tpu.matmul %226, %225, %cst_105 {dimension_numbers = #tpu.dot_dimension_numbers<[1], [0], [0], [1], [0, 0, 1, 1], [], []>} : vector<8x32xbf16>, vector<32x128xbf16>, vector<8x128xf32> -> vector<8x128xf32>
    %228 = vector.extract_strided_slice %227 {offsets = [0, 0], sizes = [8, 64], strides = [1, 1]} : vector<8x128xf32> to vector<8x64xf32>
    %229 = vector.extract_strided_slice %227 {offsets = [0, 64], sizes = [8, 64], strides = [1, 1]} : vector<8x128xf32> to vector<8x64xf32>
    %cst_106 = arith.constant 0.000000e+00 : f32
    %230 = vector.broadcast %cst_106 : f32 to vector<8x64xf32>
    %231 = arith.subf %230, %228 : vector<8x64xf32>
    %232 = math.exp %231 : vector<8x64xf32>
    %cst_107 = arith.constant 1.000000e+00 : f32
    %233 = vector.broadcast %cst_107 : f32 to vector<8x64xf32>
    %234 = arith.addf %233, %232 : vector<8x64xf32>
    %235 = tpu.reciprocal %234 {approx = true} : vector<8x64xf32> -> vector<8x64xf32>
    %236 = arith.mulf %228, %235 : vector<8x64xf32>
    %237 = arith.mulf %236, %229 : vector<8x64xf32>
    %c0_108 = arith.constant 0 : index
    %c0_109 = arith.constant 0 : index
    %238 = vector.load %arg16[%c0_108, %c0_109] : memref<64x32xbf16, #tpu.memory_space<vmem>>, vector<64x32xbf16>
    %239 = arith.truncf %237 : vector<8x64xf32> to vector<8x64xbf16>
    %cst_110 = arith.constant dense<0.000000e+00> : vector<8x32xf32>
    %240 = tpu.matmul %239, %238, %cst_110 {dimension_numbers = #tpu.dot_dimension_numbers<[1], [0], [0], [1], [0, 0, 1, 1], [], []>} : vector<8x64xbf16>, vector<64x32xbf16>, vector<8x32xf32> -> vector<8x32xf32>
    %241 = arith.mulf %240, %240 : vector<8x32xf32>
    %cst_111 = arith.constant dense<0.000000e+00> : vector<8xf32>
    %242 = vector.multi_reduction <add>, %241, %cst_111 [1] : vector<8x32xf32> to vector<8xf32>
    %243 = vector.shape_cast %242 : vector<8xf32> to vector<8x1xf32>
    %cst_112 = arith.constant 3.200000e+01 : f32
    %244 = vector.broadcast %cst_112 : f32 to vector<8x1xf32>
    %245 = arith.divf %243, %244 : vector<8x1xf32>
    %cst_113 = arith.constant 9.99999997E-7 : f32
    %246 = vector.broadcast %cst_113 : f32 to vector<8x1xf32>
    %247 = arith.addf %245, %246 : vector<8x1xf32>
    %248 = math.rsqrt %247 : vector<8x1xf32>
    %249 = vector.broadcast %248 : vector<8x1xf32> to vector<8x32xf32>
    %250 = arith.mulf %240, %249 : vector<8x32xf32>
    %c0_114 = arith.constant 0 : index
    %c0_115 = arith.constant 0 : index
    %251 = vector.load %arg17[%c0_114, %c0_115] : memref<1x32xf32, #tpu.memory_space<vmem>>, vector<1x32xf32>
    %252 = vector.broadcast %251 : vector<1x32xf32> to vector<8x32xf32>
    %253 = arith.mulf %250, %252 : vector<8x32xf32>
    %254 = arith.addf %211, %253 : vector<8x32xf32>
    %c1_116 = arith.constant 1 : index
    %c0_117 = arith.constant 0 : index
    %c0_118 = arith.constant 0 : index
    %255 = vector.load %arg18[%c1_116, %c0_117, %c0_118] : memref<2x8x32xf32, #tpu.memory_space<vmem>>, vector<1x8x32xf32>
    %256 = vector.shape_cast %255 : vector<1x8x32xf32> to vector<8x32xf32>
    %257 = vector.shape_cast %254 : vector<8x32xf32> to vector<1x8x32xf32>
    tpu.vector_store %arg18[%c1_116, %c0_117, %c0_118], %257 {strides = array<i32>} : memref<2x8x32xf32, #tpu.memory_space<vmem>>, vector<1x8x32xf32>,
    return
  }
  func.func @transform_0(%arg0: i32) -> (i32, i32, i32) {
    %c0_i32 = arith.constant 0 : i32
    %c0_i32_0 = arith.constant 0 : i32
    %c0_i32_1 = arith.constant 0 : i32
    return %arg0, %c0_i32, %c0_i32_0 : i32, i32, i32
  }
  func.func @transform_1(%arg0: i32) -> (i32, i32, i32) {
    %c0_i32 = arith.constant 0 : i32
    %c0_i32_0 = arith.constant 0 : i32
    %c0_i32_1 = arith.constant 0 : i32
    return %arg0, %c0_i32, %c0_i32_0 : i32, i32, i32
  }
  func.func @transform_2(%arg0: i32) -> (i32, i32, i32) {
    %c0_i32 = arith.constant 0 : i32
    %c0_i32_0 = arith.constant 0 : i32
    %c0_i32_1 = arith.constant 0 : i32
    return %arg0, %c0_i32, %c0_i32_0 : i32, i32, i32
  }
  func.func @transform_3(%arg0: i32) -> (i32, i32, i32) {
    %c0_i32 = arith.constant 0 : i32
    %c0_i32_0 = arith.constant 0 : i32
    %c0_i32_1 = arith.constant 0 : i32
    return %arg0, %c0_i32, %c0_i32_0 : i32, i32, i32
  }
  func.func @transform_4(%arg0: i32) -> (i32, i32) {
    %c0_i32 = arith.constant 0 : i32
    %c0_i32_0 = arith.constant 0 : i32
    %c0_i32_1 = arith.constant 0 : i32
    return %c0_i32, %c0_i32_0 : i32, i32
  }
  func.func @transform_5(%arg0: i32) -> (i32, i32) {
    %c0_i32 = arith.constant 0 : i32
    %c0_i32_0 = arith.constant 0 : i32
    %c0_i32_1 = arith.constant 0 : i32
    return %c0_i32, %c0_i32_0 : i32, i32
  }
  func.func @transform_6(%arg0: i32) -> (i32, i32) {
    %c0_i32 = arith.constant 0 : i32
    %c0_i32_0 = arith.constant 0 : i32
    %c0_i32_1 = arith.constant 0 : i32
    return %c0_i32, %c0_i32_0 : i32, i32
  }
  func.func @transform_7(%arg0: i32) -> (i32, i32) {
    %c0_i32 = arith.constant 0 : i32
    %c0_i32_0 = arith.constant 0 : i32
    %c0_i32_1 = arith.constant 0 : i32
    return %c0_i32, %c0_i32_0 : i32, i32
  }
  func.func @transform_8(%arg0: i32) -> (i32, i32) {
    %c0_i32 = arith.constant 0 : i32
    %c0_i32_0 = arith.constant 0 : i32
    %c0_i32_1 = arith.constant 0 : i32
    return %c0_i32, %c0_i32_0 : i32, i32
  }
  func.func @transform_9(%arg0: i32) -> (i32, i32) {
    %c0_i32 = arith.constant 0 : i32
    %c0_i32_0 = arith.constant 0 : i32
    %c0_i32_1 = arith.constant 0 : i32
    return %c0_i32, %c0_i32_0 : i32, i32
  }
  func.func @transform_10(%arg0: i32) -> (i32, i32) {
    %c0_i32 = arith.constant 0 : i32
    %c0_i32_0 = arith.constant 0 : i32
    %c0_i32_1 = arith.constant 0 : i32
    return %c0_i32, %c0_i32_0 : i32, i32
  }
  func.func @transform_11(%arg0: i32) -> (i32, i32) {
    %c0_i32 = arith.constant 0 : i32
    %c0_i32_0 = arith.constant 0 : i32
    %c0_i32_1 = arith.constant 0 : i32
    return %c0_i32, %c0_i32_0 : i32, i32
  }
  func.func @transform_12(%arg0: i32) -> (i32, i32) {
    %c0_i32 = arith.constant 0 : i32
    %c0_i32_0 = arith.constant 0 : i32
    %c0_i32_1 = arith.constant 0 : i32
    return %c0_i32, %c0_i32_0 : i32, i32
  }
  func.func @transform_13(%arg0: i32) -> (i32, i32) {
    %c0_i32 = arith.constant 0 : i32
    %c0_i32_0 = arith.constant 0 : i32
    %c0_i32_1 = arith.constant 0 : i32
    return %c0_i32, %c0_i32_0 : i32, i32
  }
  func.func @transform_14(%arg0: i32) -> (i32, i32) {
    %c0_i32 = arith.constant 0 : i32
    %c0_i32_0 = arith.constant 0 : i32
    %c0_i32_1 = arith.constant 0 : i32
    return %c0_i32, %c0_i32_0 : i32, i32
  }
  func.func @transform_15(%arg0: i32) -> (i32, i32) {
    %c0_i32 = arith.constant 0 : i32
    %c0_i32_0 = arith.constant 0 : i32
    %c0_i32_1 = arith.constant 0 : i32
    return %c0_i32, %c0_i32_0 : i32, i32
  }
  func.func @transform_16(%arg0: i32) -> (i32, i32) {
    %c0_i32 = arith.constant 0 : i32
    %c0_i32_0 = arith.constant 0 : i32
    %c0_i32_1 = arith.constant 0 : i32
    return %c0_i32, %c0_i32_0 : i32, i32
  }
  func.func @transform_17(%arg0: i32) -> (i32, i32, i32) {
    %c0_i32 = arith.constant 0 : i32
    %c0_i32_0 = arith.constant 0 : i32
    %c0_i32_1 = arith.constant 0 : i32
    return %arg0, %c0_i32, %c0_i32_0 : i32, i32, i32
  }
}

</mosaic_0001>

<llo_original>
// kernel: _forward_device.2
$region0: #{_forward_device.2}
  #allocation0 [shape = 'u32[]', space=smem, size = 0x4, offset = 0x4, fixed_abs, tag = 'smem constant byte address 0x4 - core index']
  #allocation1 [shape = 'u32[144,128]{1,0:T(1,128)}', space=vmem, size = 0x12000, scoped, tag = 'internal scratch']
  %s0 = inlined_call_operand.vmem [shape: f32[2,8,32], index: 0, kind: input, shape index: {}]
  %s1 = inlined_call_operand.vmem [shape: f32[2,1,32], index: 1, kind: input, shape index: {}]
  %s2 = inlined_call_operand.vmem [shape: f32[2,8,128], index: 2, kind: input, shape index: {}]
  %s3 = inlined_call_operand.vmem [shape: f32[2,8,128], index: 3, kind: input, shape index: {}]
  %s4 = inlined_call_operand.vmem [shape: f32[32,32], index: 4, kind: input, shape index: {}]
  %s5 = inlined_call_operand.vmem [shape: f32[1,32], index: 5, kind: input, shape index: {}]
  %s6 = inlined_call_operand.vmem [shape: bf16[32,128], index: 6, kind: input, shape index: {}]
  %s7 = inlined_call_operand.vmem [shape: f32[1,128], index: 7, kind: input, shape index: {}]
  %s8 = inlined_call_operand.vmem [shape: f32[1,128], index: 8, kind: input, shape index: {}]
  %s9 = inlined_call_operand.vmem [shape: bf16[128,128], index: 9, kind: input, shape index: {}]
  %s10 = inlined_call_operand.vmem [shape: bf16[128,128], index: 10, kind: input, shape index: {}]
  %s11 = inlined_call_operand.vmem [shape: bf16[32,32], index: 11, kind: input, shape index: {}]
  %s12 = inlined_call_operand.vmem [shape: f32[1,32], index: 12, kind: input, shape index: {}]
  %s13 = inlined_call_operand.vmem [shape: f32[1,32], index: 13, kind: input, shape index: {}]
  %s14 = inlined_call_operand.vmem [shape: bf16[32,128], index: 14, kind: input, shape index: {}]
  %s15 = inlined_call_operand.vmem [shape: bf16[64,32], index: 15, kind: input, shape index: {}]
  %s16 = inlined_call_operand.vmem [shape: f32[1,32], index: 16, kind: input, shape index: {}]
  %s17 = inlined_call_operand.vmem [shape: f32[2,8,32], index: 17, kind: output, shape index: {}]
  %s18 = sld [smem:[#allocation0]]
  $region78: #{_forward_device.2} parent=0
    _
  %s20 = ssub.s32 1, %s18
  %s21 = scalar_select 0, %s20, %s18
  // Predicated region
  $region2: #{_forward_device.2} parent=0 // pred_check
    _
  $region3: #{_forward_device.2} parent=0 // pred_check_branch
    %23 = sbr.rel (0) target = $region5
  $region4: #{_forward_device.2} parent=0 // pred_region
    _
  $region5: #{_forward_device.2} parent=0 // pred_fallthru
    _
  // Predicated region
  $region6: #{_forward_device.2} parent=0 // pred_check
    _
  $region7: #{_forward_device.2} parent=0 // pred_check_branch
    %25 = sbr.rel (0) target = $region9
  $region8: #{_forward_device.2} parent=0 // pred_region
    _
  $region9: #{_forward_device.2} parent=0 // pred_fallthru
    _
  // Predicated region
  $region10: #{_forward_device.2} parent=0 // pred_check
    _
  $region11: #{_forward_device.2} parent=0 // pred_check_branch
    %27 = sbr.rel (0) target = $region13
  $region12: #{_forward_device.2} parent=0 // pred_region
    _
  $region13: #{_forward_device.2} parent=0 // pred_fallthru
    _
  // Predicated region
  $region14: #{_forward_device.2} parent=0 // pred_check
    _
  $region15: #{_forward_device.2} parent=0 // pred_check_branch
    %29 = sbr.rel (0) target = $region17
  $region16: #{_forward_device.2} parent=0 // pred_region
    _
  $region17: #{_forward_device.2} parent=0 // pred_fallthru
    _
  // Predicated region
  $region18: #{_forward_device.2} parent=0 // pred_check
    _
  $region19: #{_forward_device.2} parent=0 // pred_check_branch
    %31 = sbr.rel (0) target = $region21
  $region20: #{_forward_device.2} parent=0 // pred_region
    _
  $region21: #{_forward_device.2} parent=0 // pred_fallthru
    _
  // Predicated region
  $region22: #{_forward_device.2} parent=0 // pred_check
    _
  $region23: #{_forward_device.2} parent=0 // pred_check_branch
    %33 = sbr.rel (0) target = $region25
  $region24: #{_forward_device.2} parent=0 // pred_region
    _
  $region25: #{_forward_device.2} parent=0 // pred_fallthru
    _
  // Predicated region
  $region26: #{_forward_device.2} parent=0 // pred_check
    _
  $region27: #{_forward_device.2} parent=0 // pred_check_branch
    %35 = sbr.rel (0) target = $region29
  $region28: #{_forward_device.2} parent=0 // pred_region
    _
  $region29: #{_forward_device.2} parent=0 // pred_fallthru
    _
  // Predicated region
  $region30: #{_forward_device.2} parent=0 // pred_check
    _
  $region31: #{_forward_device.2} parent=0 // pred_check_branch
    %37 = sbr.rel (0) target = $region33
  $region32: #{_forward_device.2} parent=0 // pred_region
    _
  $region33: #{_forward_device.2} parent=0 // pred_fallthru
    _
  // Predicated region
  $region34: #{_forward_device.2} parent=0 // pred_check
    _
  $region35: #{_forward_device.2} parent=0 // pred_check_branch
    %39 = sbr.rel (0) target = $region37
  $region36: #{_forward_device.2} parent=0 // pred_region
    _
  $region37: #{_forward_device.2} parent=0 // pred_fallthru
    _
  // Predicated region
  $region38: #{_forward_device.2} parent=0 // pred_check
    _
  $region39: #{_forward_device.2} parent=0 // pred_check_branch
    %41 = sbr.rel (0) target = $region41
  $region40: #{_forward_device.2} parent=0 // pred_region
    _
  $region41: #{_forward_device.2} parent=0 // pred_fallthru
    _
  // Predicated region
  $region42: #{_forward_device.2} parent=0 // pred_check
    _
  $region43: #{_forward_device.2} parent=0 // pred_check_branch
    %43 = sbr.rel (0) target = $region45
  $region44: #{_forward_device.2} parent=0 // pred_region
    _
  $region45: #{_forward_device.2} parent=0 // pred_fallthru
    _
  // Predicated region
  $region46: #{_forward_device.2} parent=0 // pred_check
    _
  $region47: #{_forward_device.2} parent=0 // pred_check_branch
    %45 = sbr.rel (0) target = $region49
  $region48: #{_forward_device.2} parent=0 // pred_region
    _
  $region49: #{_forward_device.2} parent=0 // pred_fallthru
    _
  // Predicated region
  $region50: #{_forward_device.2} parent=0 // pred_check
    _
  $region51: #{_forward_device.2} parent=0 // pred_check_branch
    %47 = sbr.rel (0) target = $region53
  $region52: #{_forward_device.2} parent=0 // pred_region
    _
  $region53: #{_forward_device.2} parent=0 // pred_fallthru
    _
  // Predicated region
  $region54: #{_forward_device.2} parent=0 // pred_check
    _
  $region55: #{_forward_device.2} parent=0 // pred_check_branch
    %49 = sbr.rel (0) target = $region57
  $region56: #{_forward_device.2} parent=0 // pred_region
    _
  $region57: #{_forward_device.2} parent=0 // pred_fallthru
    _
  // Predicated region
  $region58: #{_forward_device.2} parent=0 // pred_check
    _
  $region59: #{_forward_device.2} parent=0 // pred_check_branch
    %51 = sbr.rel (0) target = $region61
  $region60: #{_forward_device.2} parent=0 // pred_region
    _
  $region61: #{_forward_device.2} parent=0 // pred_fallthru
    _
  // Predicated region
  $region62: #{_forward_device.2} parent=0 // pred_check
    _
  $region63: #{_forward_device.2} parent=0 // pred_check_branch
    %53 = sbr.rel (0) target = $region65
  $region64: #{_forward_device.2} parent=0 // pred_region
    _
  $region65: #{_forward_device.2} parent=0 // pred_fallthru
    _
  // Predicated region
  $region66: #{_forward_device.2} parent=0 // pred_check
    _
  $region67: #{_forward_device.2} parent=0 // pred_check_branch
    %55 = sbr.rel (0) target = $region69
  $region68: #{_forward_device.2} parent=0 // pred_region
    _
  $region69: #{_forward_device.2} parent=0 // pred_fallthru
    _
  %v57 = vld [vmem:[%s4] sm:$0xff]
  %v58 = vld [vmem:[%s4 + $0x8] sm:$0xff]
  %v59 = vld [vmem:[%s4 + $0x10] sm:$0xff]
  %v60 = vld [vmem:[%s4 + $0x18] sm:$0xff]
  %v61 = vpack.c.bf16 %v58, %v57
  %v62 = vpack.c.bf16 %v60, %v59
  %v63 = vld [vmem:[%s9] sm:$0xf]
  %v64 = vld [vmem:[%s9 + $0x4] sm:$0xf]
  %v65 = vld [vmem:[%s9 + $0x8] sm:$0xf]
  %v66 = vld [vmem:[%s9 + $0xc] sm:$0xf]
  %v67 = vld [vmem:[%s9 + $0x10] sm:$0xf]
  %v68 = vld [vmem:[%s9 + $0x14] sm:$0xf]
  %v69 = vld [vmem:[%s9 + $0x18] sm:$0xf]
  %v70 = vld [vmem:[%s9 + $0x1c] sm:$0xf]
  %v71 = vld [vmem:[%s9 + $0x20] sm:$0xf]
  %v72 = vld [vmem:[%s9 + $0x24] sm:$0xf]
  %v73 = vld [vmem:[%s9 + $0x28] sm:$0xf]
  %v74 = vld [vmem:[%s9 + $0x2c] sm:$0xf]
  %v75 = vld [vmem:[%s9 + $0x30] sm:$0xf]
  %v76 = vld [vmem:[%s9 + $0x34] sm:$0xf]
  %v77 = vld [vmem:[%s9 + $0x38] sm:$0xf]
  %v78 = vld [vmem:[%s9 + $0x3c] sm:$0xf]
  %v79 = vld [vmem:[%s10] sm:$0xf]
  %v80 = vld [vmem:[%s10 + $0x4] sm:$0xf]
  %v81 = vld [vmem:[%s10 + $0x8] sm:$0xf]
  %v82 = vld [vmem:[%s10 + $0xc] sm:$0xf]
  %v83 = vld [vmem:[%s10 + $0x10] sm:$0xf]
  %v84 = vld [vmem:[%s10 + $0x14] sm:$0xf]
  %v85 = vld [vmem:[%s10 + $0x18] sm:$0xf]
  %v86 = vld [vmem:[%s10 + $0x1c] sm:$0xf]
  %v87 = vld [vmem:[%s10 + $0x20] sm:$0xf]
  %v88 = vld [vmem:[%s10 + $0x24] sm:$0xf]
  %v89 = vld [vmem:[%s10 + $0x28] sm:$0xf]
  %v90 = vld [vmem:[%s10 + $0x2c] sm:$0xf]
  %v91 = vld [vmem:[%s10 + $0x30] sm:$0xf]
  %v92 = vld [vmem:[%s10 + $0x34] sm:$0xf]
  %v93 = vld [vmem:[%s10 + $0x38] sm:$0xf]
  %v94 = vld [vmem:[%s10 + $0x3c] sm:$0xf]
  %v95 = vld [vmem:[%s7] sm:$0x1]
  %v96 = vld [vmem:[%s8] sm:$0x1]
  %v97 = vld [vmem:[%s0] sm:$0xff]
  %v98 = vmul.f32 %v97, %v97
  %vm99 = vcmask 261120
  %v100 = vsel %vm99, %v98, 0.0
  %101 = vadd.xlane.f32.xlu0 %v100
  %v102 = vpop.xlane.xlu0 %101
  %v103 = vrcp.pop 32.0
  %v104 = vmul.f32 %v102, %v103
  %v105 = vadd.f32 %v104, 1e-06
  %v106 = vrsqrt.pop %v105
  %v107 = vmul.f32 %v97, %v106
  %v108 = vld [vmem:[%s5] sm:$0x1]
  %v110 = vlaneseq
  %v111 = vshrl.u32 %v110, 7
  %v112 = vsub.s32 0, %v111
  %v113 = vrot.slane %v108, %v112
  %v115 = vmul.f32 %v107, %v113
  %v116 = vld [vmem:[%s6] sm:$0xf]
  %v117 = vld [vmem:[%s6 + $0x4] sm:$0xf]
  %v118 = vld [vmem:[%s6 + $0x8] sm:$0xf]
  %v119 = vld [vmem:[%s6 + $0xc] sm:$0xf]
  %v120 = vpack.c.bf16 %v115, %v115
  %v125 = vunpack.c.l.b16 %v116
  %v126 = vunpack.c.l.b16 %v117
  %v127 = vunpack.c.l.b16 %v118
  %v128 = vunpack.c.l.b16 %v119
  %v129 = vpack.c.b16 %v126, %v125
  %v130 = vpack.c.b16 %v128, %v127
  %v134 = vsel %vm99, %v120, 0
  %136 = vmatprep.subr.bf16.mxu0 0
  %137 = vmatpush1.bf16.msra.mxu0 %v129
  %138 = vmatprep.subr.bf16.mxu0 0
  %139 = vmatpush1.bf16.msra.mxu0 %v130
  %140 = vmatprep.subr.bf16.mxu0 0
  %141 = vmatpush1.bf16.msra.mxu0 0
  %142 = vmatprep.subr.bf16.mxu0 0
  %143 = vmatpush1.bf16.msra.mxu0 0
  %144 = vmatprep.subr.bf16.mxu0 0
  %145 = vmatpush1.bf16.msra.mxu0 0
  %146 = vmatprep.subr.bf16.mxu0 0
  %147 = vmatpush1.bf16.msra.mxu0 0
  %148 = vmatprep.subr.bf16.mxu0 0
  %149 = vmatpush1.bf16.msra.mxu0 0
  %150 = vmatprep.subr.bf16.mxu0 0
  %151 = vmatpush1.bf16.msra.mxu0 0
  %152 = vmatprep.subr.bf16.mxu0 0
  %153 = vmatpush1.bf16.msra.mxu0 0
  %154 = vmatprep.subr.bf16.mxu0 0
  %155 = vmatpush1.bf16.msra.mxu0 0
  %156 = vmatprep.subr.bf16.mxu0 0
  %157 = vmatpush1.bf16.msra.mxu0 0
  %158 = vmatprep.subr.bf16.mxu0 0
  %159 = vmatpush1.bf16.msra.mxu0 0
  %160 = vmatprep.subr.bf16.mxu0 0
  %161 = vmatpush1.bf16.msra.mxu0 0
  %162 = vmatprep.subr.bf16.mxu0 0
  %163 = vmatpush1.bf16.msra.mxu0 0
  %164 = vmatprep.subr.bf16.mxu0 0
  %165 = vmatpush1.bf16.msra.mxu0 0
  %166 = vmatprep.subr.bf16.mxu0 0
  %167 = vmatpush1.bf16.msra.mxu0 0
  %168 = vmatprep.mubr.bf16.mxu0 0
  %169 = vmatmul.mubr.bf16.gmra.mrb[0].mxu0 %v134
  %v170 = vpop.f32.mrb[0].mxu0
  %v171 = vadd.f32 0.0, %v170
  %v172 = vpop.f32.mrb[0].mxu0
  %v173 = vpop.f32.mrb[0].mxu0
  %v174 = vpop.f32.mrb[0].mxu0
  %175 = vdwg.mxu0
  %v176 = vmul.f32 %v171, %v171
  %v177 = vpack.c.bf16 %v176, %v176
  %v179 = vlaneseq
  %v180 = vshrl.u32 %v179, 7
  %v181 = vsub.s32 0, %v180
  %v182 = vrot.slane %v95, %v181
  %v200 = vunpack.c.l.b16 %v63
  %v201 = vunpack.c.l.b16 %v64
  %v202 = vunpack.c.l.b16 %v65
  %v203 = vunpack.c.l.b16 %v66
  %v204 = vunpack.c.l.b16 %v67
  %v205 = vunpack.c.l.b16 %v68
  %v206 = vunpack.c.l.b16 %v69
  %v207 = vunpack.c.l.b16 %v70
  %v208 = vunpack.c.l.b16 %v71
  %v209 = vunpack.c.l.b16 %v72
  %v210 = vunpack.c.l.b16 %v73
  %v211 = vunpack.c.l.b16 %v74
  %v212 = vunpack.c.l.b16 %v75
  %v213 = vunpack.c.l.b16 %v76
  %v214 = vunpack.c.l.b16 %v77
  %v215 = vunpack.c.l.b16 %v78
  %v216 = vpack.c.b16 %v201, %v200
  %v217 = vpack.c.b16 %v203, %v202
  %v218 = vpack.c.b16 %v205, %v204
  %v219 = vpack.c.b16 %v207, %v206
  %v220 = vpack.c.b16 %v209, %v208
  %v221 = vpack.c.b16 %v211, %v210
  %v222 = vpack.c.b16 %v213, %v212
  %v223 = vpack.c.b16 %v215, %v214
  %232 = vmatprep.subr.bf16.mxu0 0
  %233 = vmatpush1.bf16.msra.mxu0 %v216
  %234 = vmatprep.subr.bf16.mxu0 0
  %235 = vmatpush1.bf16.msra.mxu0 %v217
  %236 = vmatprep.subr.bf16.mxu0 0
  %237 = vmatpush1.bf16.msra.mxu0 %v218
  %238 = vmatprep.subr.bf16.mxu0 0
  %239 = vmatpush1.bf16.msra.mxu0 %v219
  %240 = vmatprep.subr.bf16.mxu0 0
  %241 = vmatpush1.bf16.msra.mxu0 %v220
  %242 = vmatprep.subr.bf16.mxu0 0
  %243 = vmatpush1.bf16.msra.mxu0 %v221
  %244 = vmatprep.subr.bf16.mxu0 0
  %245 = vmatpush1.bf16.msra.mxu0 %v222
  %246 = vmatprep.subr.bf16.mxu0 0
  %247 = vmatpush1.bf16.msra.mxu0 %v223
  %248 = vmatprep.subr.bf16.mxu0 0
  %249 = vmatpush1.bf16.msra.mxu0 0
  %250 = vmatprep.subr.bf16.mxu0 0
  %251 = vmatpush1.bf16.msra.mxu0 0
  %252 = vmatprep.subr.bf16.mxu0 0
  %253 = vmatpush1.bf16.msra.mxu0 0
  %254 = vmatprep.subr.bf16.mxu0 0
  %255 = vmatpush1.bf16.msra.mxu0 0
  %256 = vmatprep.subr.bf16.mxu0 0
  %257 = vmatpush1.bf16.msra.mxu0 0
  %258 = vmatprep.subr.bf16.mxu0 0
  %259 = vmatpush1.bf16.msra.mxu0 0
  %260 = vmatprep.subr.bf16.mxu0 0
  %261 = vmatpush1.bf16.msra.mxu0 0
  %262 = vmatprep.subr.bf16.mxu0 0
  %263 = vmatpush1.bf16.msra.mxu0 0
  %264 = vmatprep.mubr.bf16.mxu0 0
  %265 = vmatmul.mubr.bf16.gmra.mrb[0].mxu0 %v177
  %v266 = vpop.f32.mrb[0].mxu0
  %v267 = vadd.f32 %v182, %v266
  %v268 = vpop.f32.mrb[0].mxu0
  %v269 = vpop.f32.mrb[0].mxu0
  %v270 = vpop.f32.mrb[0].mxu0
  %271 = vdwg.mxu0
  %v272 = vrsqrt.pop %v267
  %v273 = vmul.f32 %v171, %v272
  %v275 = vlaneseq
  %v276 = vshrl.u32 %v275, 7
  %v277 = vsub.s32 0, %v276
  %v278 = vrot.slane %v96, %v277
  %v280 = vmul.f32 %v273, %v278
  %v281 = vld [vmem:[%s2] sm:$0xff]
  %v282 = vmul.f32 %v280, %v281
  %v283 = vpack.c.bf16 %v280, %v280
  %v300 = vunpack.c.l.b16 %v79
  %v301 = vunpack.c.l.b16 %v80
  %v302 = vunpack.c.l.b16 %v81
  %v303 = vunpack.c.l.b16 %v82
  %v304 = vunpack.c.l.b16 %v83
  %v305 = vunpack.c.l.b16 %v84
  %v306 = vunpack.c.l.b16 %v85
  %v307 = vunpack.c.l.b16 %v86
  %v308 = vunpack.c.l.b16 %v87
  %v309 = vunpack.c.l.b16 %v88
  %v310 = vunpack.c.l.b16 %v89
  %v311 = vunpack.c.l.b16 %v90
  %v312 = vunpack.c.l.b16 %v91
  %v313 = vunpack.c.l.b16 %v92
  %v314 = vunpack.c.l.b16 %v93
  %v315 = vunpack.c.l.b16 %v94
  %v316 = vpack.c.b16 %v301, %v300
  %v317 = vpack.c.b16 %v303, %v302
  %v318 = vpack.c.b16 %v305, %v304
  %v319 = vpack.c.b16 %v307, %v306
  %v320 = vpack.c.b16 %v309, %v308
  %v321 = vpack.c.b16 %v311, %v310
  %v322 = vpack.c.b16 %v313, %v312
  %v323 = vpack.c.b16 %v315, %v314
  %332 = vmatprep.subr.bf16.mxu0 0
  %333 = vmatpush1.bf16.msra.mxu0 %v316
  %334 = vmatprep.subr.bf16.mxu0 0
  %335 = vmatpush1.bf16.msra.mxu0 %v317
  %336 = vmatprep.subr.bf16.mxu0 0
  %337 = vmatpush1.bf16.msra.mxu0 %v318
  %338 = vmatprep.subr.bf16.mxu0 0
  %339 = vmatpush1.bf16.msra.mxu0 %v319
  %340 = vmatprep.subr.bf16.mxu0 0
  %341 = vmatpush1.bf16.msra.mxu0 %v320
  %342 = vmatprep.subr.bf16.mxu0 0
  %343 = vmatpush1.bf16.msra.mxu0 %v321
  %344 = vmatprep.subr.bf16.mxu0 0
  %345 = vmatpush1.bf16.msra.mxu0 %v322
  %346 = vmatprep.subr.bf16.mxu0 0
  %347 = vmatpush1.bf16.msra.mxu0 %v323
  %348 = vmatprep.subr.bf16.mxu0 0
  %349 = vmatpush1.bf16.msra.mxu0 0
  %350 = vmatprep.subr.bf16.mxu0 0
  %351 = vmatpush1.bf16.msra.mxu0 0
  %352 = vmatprep.subr.bf16.mxu0 0
  %353 = vmatpush1.bf16.msra.mxu0 0
  %354 = vmatprep.subr.bf16.mxu0 0
  %355 = vmatpush1.bf16.msra.mxu0 0
  %356 = vmatprep.subr.bf16.mxu0 0
  %357 = vmatpush1.bf16.msra.mxu0 0
  %358 = vmatprep.subr.bf16.mxu0 0
  %359 = vmatpush1.bf16.msra.mxu0 0
  %360 = vmatprep.subr.bf16.mxu0 0
  %361 = vmatpush1.bf16.msra.mxu0 0
  %362 = vmatprep.subr.bf16.mxu0 0
  %363 = vmatpush1.bf16.msra.mxu0 0
  %364 = vmatprep.mubr.bf16.mxu0 0
  %365 = vmatmul.mubr.bf16.gmra.mrb[0].mxu0 %v283
  %v366 = vpop.f32.mrb[0].mxu0
  %v367 = vadd.f32 0.0, %v366
  %v368 = vpop.f32.mrb[0].mxu0
  %v369 = vpop.f32.mrb[0].mxu0
  %v370 = vpop.f32.mrb[0].mxu0
  %371 = vdwg.mxu0
  %v372 = vld [vmem:[%s3] sm:$0xff]
  %v373 = vmul.f32 %v367, %v372
  %v374 = vadd.f32 %v282, %v373
  %379 = vrot.lane.b32.xlu0 %v57, 32
  %v380 = vpop.permute.xlu0 %379
  %381 = vrot.lane.b32.xlu0 %v58, 32
  %v382 = vpop.permute.xlu0 %381
  %383 = vrot.lane.b32.xlu0 %v59, 32
  %v384 = vpop.permute.xlu0 %383
  %385 = vrot.lane.b32.xlu0 %v60, 32
  %v386 = vpop.permute.xlu0 %385
  %v391 = vmul.f32 %v374, %v380
  %v392 = vmul.f32 %v374, %v382
  %v393 = vmul.f32 %v374, %v384
  %v394 = vmul.f32 %v374, %v386
  %v395 = vpack.c.bf16 %v392, %v391
  %v396 = vpack.c.bf16 %v394, %v393
  %v397 = vpack.c.bf16 %v374, %v374
  %400 = vrot.lane.b32.xlu0 %v395, 96
  %v401 = vpop.permute.xlu0 %400
  %402 = vrot.lane.b32.xlu0 %v396, 96
  %v403 = vpop.permute.xlu0 %402
  %v405 = vsel %vm99, %v397, 0
  %v408 = vsel %vm99, %v401, 0
  %v411 = vsel %vm99, %v403, 0
  %413 = vmatprep.subr.bf16.mxu0 0
  %414 = vmatpush1.bf16.xpose.msra.mxu0 %v408
  %415 = vmatprep.subr.bf16.mxu0 0
  %416 = vmatpush1.bf16.xpose.msra.mxu0 %v411
  %417 = vmatprep.subr.bf16.mxu0 0
  %418 = vmatpush1.bf16.xpose.msra.mxu0 0
  %419 = vmatprep.subr.bf16.mxu0 0
  %420 = vmatpush1.bf16.xpose.msra.mxu0 0
  %421 = vmatprep.subr.bf16.mxu0 0
  %422 = vmatpush1.bf16.xpose.msra.mxu0 0
  %423 = vmatprep.subr.bf16.mxu0 0
  %424 = vmatpush1.bf16.xpose.msra.mxu0 0
  %425 = vmatprep.subr.bf16.mxu0 0
  %426 = vmatpush1.bf16.xpose.msra.mxu0 0
  %427 = vmatprep.subr.bf16.mxu0 0
  %428 = vmatpush1.bf16.xpose.msra.mxu0 0
  %429 = vmatprep.subr.bf16.mxu0 0
  %430 = vmatpush1.bf16.xpose.msra.mxu0 0
  %431 = vmatprep.subr.bf16.mxu0 0
  %432 = vmatpush1.bf16.xpose.msra.mxu0 0
  %433 = vmatprep.subr.bf16.mxu0 0
  %434 = vmatpush1.bf16.xpose.msra.mxu0 0
  %435 = vmatprep.subr.bf16.mxu0 0
  %436 = vmatpush1.bf16.xpose.msra.mxu0 0
  %437 = vmatprep.subr.bf16.mxu0 0
  %438 = vmatpush1.bf16.xpose.msra.mxu0 0
  %439 = vmatprep.subr.bf16.mxu0 0
  %440 = vmatpush1.bf16.xpose.msra.mxu0 0
  %441 = vmatprep.subr.bf16.mxu0 0
  %442 = vmatpush1.bf16.xpose.msra.mxu0 0
  %443 = vmatprep.subr.bf16.mxu0 0
  %444 = vmatpush1.bf16.xpose.msra.mxu0 0
  %445 = vmatprep.mubr.bf16.mxu0 0
  %446 = vmatmul.mubr.bf16.gmra.mrb[0].mxu0 %v405
  %v447 = vpop.f32.mrb[0].mxu0
  %v448 = vadd.f32 0.0, %v447
  %v449 = vpop.f32.mrb[0].mxu0
  %v450 = vpop.f32.mrb[0].mxu0
  %v451 = vpop.f32.mrb[0].mxu0
  %452 = vdwg.mxu0
  %v453 = vmul.f32 %v448, 0.35355338
  %v454 = vld [vmem:[%s1] sm:$0x1]
  %v456 = vlaneseq
  %v457 = vshrl.u32 %v456, 7
  %v458 = vsub.s32 0, %v457
  %v459 = vrot.slane %v454, %v458
  %v461 = vadd.f32 %v453, %v459
  %v462 = vsel %vm99, %v461, -inf
  %463 = vmax.xlane.f32.xlu0 %v462
  %v464 = vpop.xlane.xlu0 %463
  %v465 = vsub.f32 %v461, %v464
  %v466 = vmul.f32 %v465, 1.442695
  %v467 = vpow.pop %v466
  %v468 = vpack.c.bf16 %v467, %v467
  %469 = vrot.lane.b32.xlu0 %v57, 64
  %v470 = vpop.permute.xlu0 %469
  %471 = vrot.lane.b32.xlu0 %v58, 64
  %v472 = vpop.permute.xlu0 %471
  %473 = vrot.lane.b32.xlu0 %v59, 64
  %v474 = vpop.permute.xlu0 %473
  %475 = vrot.lane.b32.xlu0 %v60, 64
  %v476 = vpop.permute.xlu0 %475
  %v481 = vmul.f32 %v374, %v470
  %v482 = vmul.f32 %v374, %v472
  %v483 = vmul.f32 %v374, %v474
  %v484 = vmul.f32 %v374, %v476
  %v485 = vpack.c.bf16 %v482, %v481
  %v486 = vpack.c.bf16 %v484, %v483
  %489 = vrot.lane.b32.xlu0 %v485, 64
  %v490 = vpop.permute.xlu0 %489
  %491 = vrot.lane.b32.xlu0 %v486, 64
  %v492 = vpop.permute.xlu0 %491
  %v496 = vsel %vm99, %v468, 0
  %498 = vmatprep.subr.bf16.mxu0 0
  %499 = vmatpush1.bf16.msra.mxu0 %v490
  %500 = vmatprep.subr.bf16.mxu0 0
  %501 = vmatpush1.bf16.msra.mxu0 %v492
  %502 = vmatprep.subr.bf16.mxu0 0
  %503 = vmatpush1.bf16.msra.mxu0 0
  %504 = vmatprep.subr.bf16.mxu0 0
  %505 = vmatpush1.bf16.msra.mxu0 0
  %506 = vmatprep.subr.bf16.mxu0 0
  %507 = vmatpush1.bf16.msra.mxu0 0
  %508 = vmatprep.subr.bf16.mxu0 0
  %509 = vmatpush1.bf16.msra.mxu0 0
  %510 = vmatprep.subr.bf16.mxu0 0
  %511 = vmatpush1.bf16.msra.mxu0 0
  %512 = vmatprep.subr.bf16.mxu0 0
  %513 = vmatpush1.bf16.msra.mxu0 0
  %514 = vmatprep.subr.bf16.mxu0 0
  %515 = vmatpush1.bf16.msra.mxu0 0
  %516 = vmatprep.subr.bf16.mxu0 0
  %517 = vmatpush1.bf16.msra.mxu0 0
  %518 = vmatprep.subr.bf16.mxu0 0
  %519 = vmatpush1.bf16.msra.mxu0 0
  %520 = vmatprep.subr.bf16.mxu0 0
  %521 = vmatpush1.bf16.msra.mxu0 0
  %522 = vmatprep.subr.bf16.mxu0 0
  %523 = vmatpush1.bf16.msra.mxu0 0
  %524 = vmatprep.subr.bf16.mxu0 0
  %525 = vmatpush1.bf16.msra.mxu0 0
  %526 = vmatprep.subr.bf16.mxu0 0
  %527 = vmatpush1.bf16.msra.mxu0 0
  %528 = vmatprep.subr.bf16.mxu0 0
  %529 = vmatpush1.bf16.msra.mxu0 0
  %530 = vmatprep.mubr.bf16.mxu0 0
  %531 = vmatmul.mubr.bf16.gmra.mrb[0].mxu0 %v496
  %v532 = vpop.f32.mrb[0].mxu0
  %v533 = vadd.f32 0.0, %v532
  %v534 = vpop.f32.mrb[0].mxu0
  %v535 = vpop.f32.mrb[0].mxu0
  %v536 = vpop.f32.mrb[0].mxu0
  %537 = vdwg.mxu0
  %538 = vmatprep.subr.bf16.mxu0 0
  %539 = vmatpush1.bf16.msra.mxu0 %v61
  %540 = vmatprep.subr.bf16.mxu0 0
  %541 = vmatpush1.bf16.msra.mxu0 %v62
  %542 = vmatprep.subr.bf16.mxu0 0
  %543 = vmatpush1.bf16.msra.mxu0 0
  %544 = vmatprep.subr.bf16.mxu0 0
  %545 = vmatpush1.bf16.msra.mxu0 0
  %546 = vmatprep.subr.bf16.mxu0 0
  %547 = vmatpush1.bf16.msra.mxu0 0
  %548 = vmatprep.subr.bf16.mxu0 0
  %549 = vmatpush1.bf16.msra.mxu0 0
  %550 = vmatprep.subr.bf16.mxu0 0
  %551 = vmatpush1.bf16.msra.mxu0 0
  %552 = vmatprep.subr.bf16.mxu0 0
  %553 = vmatpush1.bf16.msra.mxu0 0
  %554 = vmatprep.subr.bf16.mxu0 0
  %555 = vmatpush1.bf16.msra.mxu0 0
  %556 = vmatprep.subr.bf16.mxu0 0
  %557 = vmatpush1.bf16.msra.mxu0 0
  %558 = vmatprep.subr.bf16.mxu0 0
  %559 = vmatpush1.bf16.msra.mxu0 0
  %560 = vmatprep.subr.bf16.mxu0 0
  %561 = vmatpush1.bf16.msra.mxu0 0
  %562 = vmatprep.subr.bf16.mxu0 0
  %563 = vmatpush1.bf16.msra.mxu0 0
  %564 = vmatprep.subr.bf16.mxu0 0
  %565 = vmatpush1.bf16.msra.mxu0 0
  %566 = vmatprep.subr.bf16.mxu0 0
  %567 = vmatpush1.bf16.msra.mxu0 0
  %568 = vmatprep.subr.bf16.mxu0 0
  %569 = vmatpush1.bf16.msra.mxu0 0
  %570 = vmatprep.mubr.bf16.mxu0 0
  %571 = vmatmul.mubr.bf16.gmra.mrb[0].mxu0 %v496
  %v572 = vpop.f32.mrb[0].mxu0
  %v573 = vadd.f32 0.0, %v572
  %v574 = vpop.f32.mrb[0].mxu0
  %v575 = vpop.f32.mrb[0].mxu0
  %v576 = vpop.f32.mrb[0].mxu0
  %577 = vdwg.mxu0
  %v578 = vrcp.pop %v573
  %v579 = vmul.f32 %v533, %v578
  %v580 = vld [vmem:[%s11] sm:$0xf]
  %v581 = vld [vmem:[%s11 + $0x4] sm:$0xf]
  %v582 = vld [vmem:[%s11 + $0x8] sm:$0xf]
  %v583 = vld [vmem:[%s11 + $0xc] sm:$0xf]
  %v584 = vpack.c.bf16 %v579, %v579
  %v589 = vunpack.c.l.b16 %v580
  %v590 = vunpack.c.l.b16 %v581
  %v591 = vunpack.c.l.b16 %v582
  %v592 = vunpack.c.l.b16 %v583
  %v593 = vpack.c.b16 %v590, %v589
  %v594 = vpack.c.b16 %v592, %v591
  %v598 = vsel %vm99, %v584, 0
  %600 = vmatprep.subr.bf16.mxu0 0
  %601 = vmatpush1.bf16.msra.mxu0 %v593
  %602 = vmatprep.subr.bf16.mxu0 0
  %603 = vmatpush1.bf16.msra.mxu0 %v594
  %604 = vmatprep.subr.bf16.mxu0 0
  %605 = vmatpush1.bf16.msra.mxu0 0
  %606 = vmatprep.subr.bf16.mxu0 0
  %607 = vmatpush1.bf16.msra.mxu0 0
  %608 = vmatprep.subr.bf16.mxu0 0
  %609 = vmatpush1.bf16.msra.mxu0 0
  %610 = vmatprep.subr.bf16.mxu0 0
  %611 = vmatpush1.bf16.msra.mxu0 0
  %612 = vmatprep.subr.bf16.mxu0 0
  %613 = vmatpush1.bf16.msra.mxu0 0
  %614 = vmatprep.subr.bf16.mxu0 0
  %615 = vmatpush1.bf16.msra.mxu0 0
  %616 = vmatprep.subr.bf16.mxu0 0
  %617 = vmatpush1.bf16.msra.mxu0 0
  %618 = vmatprep.subr.bf16.mxu0 0
  %619 = vmatpush1.bf16.msra.mxu0 0
  %620 = vmatprep.subr.bf16.mxu0 0
  %621 = vmatpush1.bf16.msra.mxu0 0
  %622 = vmatprep.subr.bf16.mxu0 0
  %623 = vmatpush1.bf16.msra.mxu0 0
  %624 = vmatprep.subr.bf16.mxu0 0
  %625 = vmatpush1.bf16.msra.mxu0 0
  %626 = vmatprep.subr.bf16.mxu0 0
  %627 = vmatpush1.bf16.msra.mxu0 0
  %628 = vmatprep.subr.bf16.mxu0 0
  %629 = vmatpush1.bf16.msra.mxu0 0
  %630 = vmatprep.subr.bf16.mxu0 0
  %631 = vmatpush1.bf16.msra.mxu0 0
  %632 = vmatprep.mubr.bf16.mxu0 0
  %633 = vmatmul.mubr.bf16.gmra.mrb[0].mxu0 %v598
  %v634 = vpop.f32.mrb[0].mxu0
  %v635 = vadd.f32 0.0, %v634
  %v636 = vpop.f32.mrb[0].mxu0
  %v637 = vpop.f32.mrb[0].mxu0
  %v638 = vpop.f32.mrb[0].mxu0
  %639 = vdwg.mxu0
  %v640 = vmul.f32 %v635, %v635
  %v641 = vsel %vm99, %v640, 0.0
  %642 = vadd.xlane.f32.xlu0 %v641
  %v643 = vpop.xlane.xlu0 %642
  %v644 = vmul.f32 %v643, %v103
  %v645 = vadd.f32 %v644, 1e-06
  %v646 = vrsqrt.pop %v645
  %v647 = vmul.f32 %v635, %v646
  %v648 = vld [vmem:[%s12] sm:$0x1]
  %v650 = vlaneseq
  %v651 = vshrl.u32 %v650, 7
  %v652 = vsub.s32 0, %v651
  %v653 = vrot.slane %v648, %v652
  %v655 = vmul.f32 %v647, %v653
  %v656 = vadd.f32 %v97, %v655
  %v657 = vmul.f32 %v656, %v656
  %v658 = vsel %vm99, %v657, 0.0
  %659 = vadd.xlane.f32.xlu0 %v658
  %v660 = vpop.xlane.xlu0 %659
  %v661 = vmul.f32 %v660, %v103
  %v662 = vadd.f32 %v661, 1e-06
  %v663 = vrsqrt.pop %v662
  %v664 = vmul.f32 %v656, %v663
  %v665 = vld [vmem:[%s13] sm:$0x1]
  %v667 = vlaneseq
  %v668 = vshrl.u32 %v667, 7
  %v669 = vsub.s32 0, %v668
  %v670 = vrot.slane %v665, %v669
  %v672 = vmul.f32 %v664, %v670
  %v673 = vld [vmem:[%s14] sm:$0xf]
  %v674 = vld [vmem:[%s14 + $0x4] sm:$0xf]
  %v675 = vld [vmem:[%s14 + $0x8] sm:$0xf]
  %v676 = vld [vmem:[%s14 + $0xc] sm:$0xf]
  %v677 = vpack.c.bf16 %v672, %v672
  %v682 = vunpack.c.l.b16 %v673
  %v683 = vunpack.c.l.b16 %v674
  %v684 = vunpack.c.l.b16 %v675
  %v685 = vunpack.c.l.b16 %v676
  %v686 = vpack.c.b16 %v683, %v682
  %v687 = vpack.c.b16 %v685, %v684
  %v691 = vsel %vm99, %v677, 0
  %693 = vmatprep.subr.bf16.mxu0 0
  %694 = vmatpush1.bf16.msra.mxu0 %v686
  %695 = vmatprep.subr.bf16.mxu0 0
  %696 = vmatpush1.bf16.msra.mxu0 %v687
  %697 = vmatprep.subr.bf16.mxu0 0
  %698 = vmatpush1.bf16.msra.mxu0 0
  %699 = vmatprep.subr.bf16.mxu0 0
  %700 = vmatpush1.bf16.msra.mxu0 0
  %701 = vmatprep.subr.bf16.mxu0 0
  %702 = vmatpush1.bf16.msra.mxu0 0
  %703 = vmatprep.subr.bf16.mxu0 0
  %704 = vmatpush1.bf16.msra.mxu0 0
  %705 = vmatprep.subr.bf16.mxu0 0
  %706 = vmatpush1.bf16.msra.mxu0 0
  %707 = vmatprep.subr.bf16.mxu0 0
  %708 = vmatpush1.bf16.msra.mxu0 0
  %709 = vmatprep.subr.bf16.mxu0 0
  %710 = vmatpush1.bf16.msra.mxu0 0
  %711 = vmatprep.subr.bf16.mxu0 0
  %712 = vmatpush1.bf16.msra.mxu0 0
  %713 = vmatprep.subr.bf16.mxu0 0
  %714 = vmatpush1.bf16.msra.mxu0 0
  %715 = vmatprep.subr.bf16.mxu0 0
  %716 = vmatpush1.bf16.msra.mxu0 0
  %717 = vmatprep.subr.bf16.mxu0 0
  %718 = vmatpush1.bf16.msra.mxu0 0
  %719 = vmatprep.subr.bf16.mxu0 0
  %720 = vmatpush1.bf16.msra.mxu0 0
  %721 = vmatprep.subr.bf16.mxu0 0
  %722 = vmatpush1.bf16.msra.mxu0 0
  %723 = vmatprep.subr.bf16.mxu0 0
  %724 = vmatpush1.bf16.msra.mxu0 0
  %725 = vmatprep.mubr.bf16.mxu0 0
  %726 = vmatmul.mubr.bf16.gmra.mrb[0].mxu0 %v691
  %v727 = vpop.f32.mrb[0].mxu0
  %v728 = vadd.f32 0.0, %v727
  %v729 = vpop.f32.mrb[0].mxu0
  %v730 = vpop.f32.mrb[0].mxu0
  %v731 = vpop.f32.mrb[0].mxu0
  %732 = vdwg.mxu0
  %v733 = vsub.f32 0.0, %v728
  %v734 = vmul.f32 %v733, 1.442695
  %v735 = vpow.pop %v734
  %v736 = vadd.f32 %v735, 1.0
  %v737 = vrcp.pop %v736
  %v738 = vmul.f32 %v728, %v737
  %740 = vrot.lane.b32.xlu0 %v728, 64
  %v741 = vpop.permute.xlu0 %740
  %v743 = vmul.f32 %v738, %v741
  %v744 = vld [vmem:[%s15] sm:$0xf]
  %v745 = vld [vmem:[%s15 + $0x4] sm:$0xf]
  %v746 = vld [vmem:[%s15 + $0x8] sm:$0xf]
  %v747 = vld [vmem:[%s15 + $0xc] sm:$0xf]
  %v748 = vld [vmem:[%s15 + $0x10] sm:$0xf]
  %v749 = vld [vmem:[%s15 + $0x14] sm:$0xf]
  %v750 = vld [vmem:[%s15 + $0x18] sm:$0xf]
  %v751 = vld [vmem:[%s15 + $0x1c] sm:$0xf]
  %v752 = vpack.c.bf16 %v743, %v743
  %v761 = vunpack.c.l.b16 %v744
  %v762 = vunpack.c.l.b16 %v745
  %v763 = vunpack.c.l.b16 %v746
  %v764 = vunpack.c.l.b16 %v747
  %v765 = vunpack.c.l.b16 %v748
  %v766 = vunpack.c.l.b16 %v749
  %v767 = vunpack.c.l.b16 %v750
  %v768 = vunpack.c.l.b16 %v751
  %v769 = vpack.c.b16 %v762, %v761
  %v770 = vpack.c.b16 %v764, %v763
  %v771 = vpack.c.b16 %v766, %v765
  %v772 = vpack.c.b16 %v768, %v767
  %vm777 = vcmask 523264
  %v779 = vsel %vm777, %v752, 0
  %781 = vmatprep.subr.bf16.mxu0 0
  %782 = vmatpush1.bf16.msra.mxu0 %v769
  %783 = vmatprep.subr.bf16.mxu0 0
  %784 = vmatpush1.bf16.msra.mxu0 %v770
  %785 = vmatprep.subr.bf16.mxu0 0
  %786 = vmatpush1.bf16.msra.mxu0 %v771
  %787 = vmatprep.subr.bf16.mxu0 0
  %788 = vmatpush1.bf16.msra.mxu0 %v772
  %789 = vmatprep.subr.bf16.mxu0 0
  %790 = vmatpush1.bf16.msra.mxu0 0
  %791 = vmatprep.subr.bf16.mxu0 0
  %792 = vmatpush1.bf16.msra.mxu0 0
  %793 = vmatprep.subr.bf16.mxu0 0
  %794 = vmatpush1.bf16.msra.mxu0 0
  %795 = vmatprep.subr.bf16.mxu0 0
  %796 = vmatpush1.bf16.msra.mxu0 0
  %797 = vmatprep.subr.bf16.mxu0 0
  %798 = vmatpush1.bf16.msra.mxu0 0
  %799 = vmatprep.subr.bf16.mxu0 0
  %800 = vmatpush1.bf16.msra.mxu0 0
  %801 = vmatprep.subr.bf16.mxu0 0
  %802 = vmatpush1.bf16.msra.mxu0 0
  %803 = vmatprep.subr.bf16.mxu0 0
  %804 = vmatpush1.bf16.msra.mxu0 0
  %805 = vmatprep.subr.bf16.mxu0 0
  %806 = vmatpush1.bf16.msra.mxu0 0
  %807 = vmatprep.subr.bf16.mxu0 0
  %808 = vmatpush1.bf16.msra.mxu0 0
  %809 = vmatprep.subr.bf16.mxu0 0
  %810 = vmatpush1.bf16.msra.mxu0 0
  %811 = vmatprep.subr.bf16.mxu0 0
  %812 = vmatpush1.bf16.msra.mxu0 0
  %813 = vmatprep.mubr.bf16.mxu0 0
  %814 = vmatmul.mubr.bf16.gmra.mrb[0].mxu0 %v779
  %v815 = vpop.f32.mrb[0].mxu0
  %v816 = vadd.f32 0.0, %v815
  %v817 = vpop.f32.mrb[0].mxu0
  %v818 = vpop.f32.mrb[0].mxu0
  %v819 = vpop.f32.mrb[0].mxu0
  %820 = vdwg.mxu0
  %v821 = vmul.f32 %v816, %v816
  %v822 = vsel %vm99, %v821, 0.0
  %823 = vadd.xlane.f32.xlu0 %v822
  %v824 = vpop.xlane.xlu0 %823
  %v825 = vmul.f32 %v824, %v103
  %v826 = vadd.f32 %v825, 1e-06
  %v827 = vrsqrt.pop %v826
  %v828 = vmul.f32 %v816, %v827
  %v829 = vld [vmem:[%s16] sm:$0x1]
  %v831 = vlaneseq
  %v832 = vshrl.u32 %v831, 7
  %v833 = vsub.s32 0, %v832
  %v834 = vrot.slane %v829, %v833
  %v836 = vmul.f32 %v828, %v834
  %v837 = vadd.f32 %v656, %v836
  %838 = vst.msk [vmem:[%s17] sm:$0xff] %vm99, %v837
  %s839 = scalar_lea.vmem %s0, 8
  %v840 = vld [vmem:[%s839] sm:$0xff]
  %v841 = vmul.f32 %v840, %v840
  %v842 = vsel %vm99, %v841, 0.0
  %843 = vadd.xlane.f32.xlu0 %v842
  %v844 = vpop.xlane.xlu0 %843
  %v845 = vmul.f32 %v844, %v103
  %v846 = vadd.f32 %v845, 1e-06
  %v847 = vrsqrt.pop %v846
  %v848 = vmul.f32 %v840, %v847
  %v849 = vld [vmem:[%s5] sm:$0x1]
  %v851 = vlaneseq
  %v852 = vshrl.u32 %v851, 7
  %v853 = vsub.s32 0, %v852
  %v854 = vrot.slane %v849, %v853
  %v856 = vmul.f32 %v848, %v854
  %v857 = vld [vmem:[%s6] sm:$0xf]
  %v858 = vld [vmem:[%s6 + $0x4] sm:$0xf]
  %v859 = vld [vmem:[%s6 + $0x8] sm:$0xf]
  %v860 = vld [vmem:[%s6 + $0xc] sm:$0xf]
  %v861 = vpack.c.bf16 %v856, %v856
  %v866 = vunpack.c.l.b16 %v857
  %v867 = vunpack.c.l.b16 %v858
  %v868 = vunpack.c.l.b16 %v859
  %v869 = vunpack.c.l.b16 %v860
  %v870 = vpack.c.b16 %v867, %v866
  %v871 = vpack.c.b16 %v869, %v868
  %v875 = vsel %vm99, %v861, 0
  %877 = vmatprep.subr.bf16.mxu0 0
  %878 = vmatpush1.bf16.msra.mxu0 %v870
  %879 = vmatprep.subr.bf16.mxu0 0
  %880 = vmatpush1.bf16.msra.mxu0 %v871
  %881 = vmatprep.subr.bf16.mxu0 0
  %882 = vmatpush1.bf16.msra.mxu0 0
  %883 = vmatprep.subr.bf16.mxu0 0
  %884 = vmatpush1.bf16.msra.mxu0 0
  %885 = vmatprep.subr.bf16.mxu0 0
  %886 = vmatpush1.bf16.msra.mxu0 0
  %887 = vmatprep.subr.bf16.mxu0 0
  %888 = vmatpush1.bf16.msra.mxu0 0
  %889 = vmatprep.subr.bf16.mxu0 0
  %890 = vmatpush1.bf16.msra.mxu0 0
  %891 = vmatprep.subr.bf16.mxu0 0
  %892 = vmatpush1.bf16.msra.mxu0 0
  %893 = vmatprep.subr.bf16.mxu0 0
  %894 = vmatpush1.bf16.msra.mxu0 0
  %895 = vmatprep.subr.bf16.mxu0 0
  %896 = vmatpush1.bf16.msra.mxu0 0
  %897 = vmatprep.subr.bf16.mxu0 0
  %898 = vmatpush1.bf16.msra.mxu0 0
  %899 = vmatprep.subr.bf16.mxu0 0
  %900 = vmatpush1.bf16.msra.mxu0 0
  %901 = vmatprep.subr.bf16.mxu0 0
  %902 = vmatpush1.bf16.msra.mxu0 0
  %903 = vmatprep.subr.bf16.mxu0 0
  %904 = vmatpush1.bf16.msra.mxu0 0
  %905 = vmatprep.subr.bf16.mxu0 0
  %906 = vmatpush1.bf16.msra.mxu0 0
  %907 = vmatprep.subr.bf16.mxu0 0
  %908 = vmatpush1.bf16.msra.mxu0 0
  %909 = vmatprep.mubr.bf16.mxu0 0
  %910 = vmatmul.mubr.bf16.gmra.mrb[0].mxu0 %v875
  %v911 = vpop.f32.mrb[0].mxu0
  %v912 = vadd.f32 0.0, %v911
  %v913 = vpop.f32.mrb[0].mxu0
  %v914 = vpop.f32.mrb[0].mxu0
  %v915 = vpop.f32.mrb[0].mxu0
  %916 = vdwg.mxu0
  %v917 = vmul.f32 %v912, %v912
  %v918 = vpack.c.bf16 %v917, %v917
  %919 = vmatprep.subr.bf16.mxu0 0
  %920 = vmatpush1.bf16.msra.mxu0 %v216
  %921 = vmatprep.subr.bf16.mxu0 0
  %922 = vmatpush1.bf16.msra.mxu0 %v217
  %923 = vmatprep.subr.bf16.mxu0 0
  %924 = vmatpush1.bf16.msra.mxu0 %v218
  %925 = vmatprep.subr.bf16.mxu0 0
  %926 = vmatpush1.bf16.msra.mxu0 %v219
  %927 = vmatprep.subr.bf16.mxu0 0
  %928 = vmatpush1.bf16.msra.mxu0 %v220
  %929 = vmatprep.subr.bf16.mxu0 0
  %930 = vmatpush1.bf16.msra.mxu0 %v221
  %931 = vmatprep.subr.bf16.mxu0 0
  %932 = vmatpush1.bf16.msra.mxu0 %v222
  %933 = vmatprep.subr.bf16.mxu0 0
  %934 = vmatpush1.bf16.msra.mxu0 %v223
  %935 = vmatprep.subr.bf16.mxu0 0
  %936 = vmatpush1.bf16.msra.mxu0 0
  %937 = vmatprep.subr.bf16.mxu0 0
  %938 = vmatpush1.bf16.msra.mxu0 0
  %939 = vmatprep.subr.bf16.mxu0 0
  %940 = vmatpush1.bf16.msra.mxu0 0
  %941 = vmatprep.subr.bf16.mxu0 0
  %942 = vmatpush1.bf16.msra.mxu0 0
  %943 = vmatprep.subr.bf16.mxu0 0
  %944 = vmatpush1.bf16.msra.mxu0 0
  %945 = vmatprep.subr.bf16.mxu0 0
  %946 = vmatpush1.bf16.msra.mxu0 0
  %947 = vmatprep.subr.bf16.mxu0 0
  %948 = vmatpush1.bf16.msra.mxu0 0
  %949 = vmatprep.subr.bf16.mxu0 0
  %950 = vmatpush1.bf16.msra.mxu0 0
  %951 = vmatprep.mubr.bf16.mxu0 0
  %952 = vmatmul.mubr.bf16.gmra.mrb[0].mxu0 %v918
  %v953 = vpop.f32.mrb[0].mxu0
  %v954 = vadd.f32 %v182, %v953
  %v955 = vpop.f32.mrb[0].mxu0
  %v956 = vpop.f32.mrb[0].mxu0
  %v957 = vpop.f32.mrb[0].mxu0
  %958 = vdwg.mxu0
  %v959 = vrsqrt.pop %v954
  %v960 = vmul.f32 %v912, %v959
  %v961 = vmul.f32 %v960, %v278
  %s962 = scalar_lea.vmem %s2, 8
  %v963 = vld [vmem:[%s962] sm:$0xff]
  %v964 = vmul.f32 %v961, %v963
  %v965 = vpack.c.bf16 %v961, %v961
  %966 = vmatprep.subr.bf16.mxu0 0
  %967 = vmatpush1.bf16.msra.mxu0 %v316
  %968 = vmatprep.subr.bf16.mxu0 0
  %969 = vmatpush1.bf16.msra.mxu0 %v317
  %970 = vmatprep.subr.bf16.mxu0 0
  %971 = vmatpush1.bf16.msra.mxu0 %v318
  %972 = vmatprep.subr.bf16.mxu0 0
  %973 = vmatpush1.bf16.msra.mxu0 %v319
  %974 = vmatprep.subr.bf16.mxu0 0
  %975 = vmatpush1.bf16.msra.mxu0 %v320
  %976 = vmatprep.subr.bf16.mxu0 0
  %977 = vmatpush1.bf16.msra.mxu0 %v321
  %978 = vmatprep.subr.bf16.mxu0 0
  %979 = vmatpush1.bf16.msra.mxu0 %v322
  %980 = vmatprep.subr.bf16.mxu0 0
  %981 = vmatpush1.bf16.msra.mxu0 %v323
  %982 = vmatprep.subr.bf16.mxu0 0
  %983 = vmatpush1.bf16.msra.mxu0 0
  %984 = vmatprep.subr.bf16.mxu0 0
  %985 = vmatpush1.bf16.msra.mxu0 0
  %986 = vmatprep.subr.bf16.mxu0 0
  %987 = vmatpush1.bf16.msra.mxu0 0
  %988 = vmatprep.subr.bf16.mxu0 0
  %989 = vmatpush1.bf16.msra.mxu0 0
  %990 = vmatprep.subr.bf16.mxu0 0
  %991 = vmatpush1.bf16.msra.mxu0 0
  %992 = vmatprep.subr.bf16.mxu0 0
  %993 = vmatpush1.bf16.msra.mxu0 0
  %994 = vmatprep.subr.bf16.mxu0 0
  %995 = vmatpush1.bf16.msra.mxu0 0
  %996 = vmatprep.subr.bf16.mxu0 0
  %997 = vmatpush1.bf16.msra.mxu0 0
  %998 = vmatprep.mubr.bf16.mxu0 0
  %999 = vmatmul.mubr.bf16.gmra.mrb[0].mxu0 %v965
  %v1000 = vpop.f32.mrb[0].mxu0
  %v1001 = vadd.f32 0.0, %v1000
  %v1002 = vpop.f32.mrb[0].mxu0
  %v1003 = vpop.f32.mrb[0].mxu0
  %v1004 = vpop.f32.mrb[0].mxu0
  %1005 = vdwg.mxu0
  %s1006 = scalar_lea.vmem %s3, 8
  %v1007 = vld [vmem:[%s1006] sm:$0xff]
  %v1008 = vmul.f32 %v1001, %v1007
  %v1009 = vadd.f32 %v964, %v1008
  %v1010 = vmul.f32 %v1009, %v380
  %v1011 = vmul.f32 %v1009, %v382
  %v1012 = vmul.f32 %v1009, %v384
  %v1013 = vmul.f32 %v1009, %v386
  %v1014 = vpack.c.bf16 %v1011, %v1010
  %v1015 = vpack.c.bf16 %v1013, %v1012
  %v1016 = vpack.c.bf16 %v1009, %v1009
  %1019 = vrot.lane.b32.xlu0 %v1014, 96
  %v1020 = vpop.permute.xlu0 %1019
  %1021 = vrot.lane.b32.xlu0 %v1015, 96
  %v1022 = vpop.permute.xlu0 %1021
  %v1024 = vsel %vm99, %v1016, 0
  %v1027 = vsel %vm99, %v1020, 0
  %v1030 = vsel %vm99, %v1022, 0
  %1032 = vmatprep.subr.bf16.mxu0 0
  %1033 = vmatpush1.bf16.xpose.msra.mxu0 %v1027
  %1034 = vmatprep.subr.bf16.mxu0 0
  %1035 = vmatpush1.bf16.xpose.msra.mxu0 %v1030
  %1036 = vmatprep.subr.bf16.mxu0 0
  %1037 = vmatpush1.bf16.xpose.msra.mxu0 0
  %1038 = vmatprep.subr.bf16.mxu0 0
  %1039 = vmatpush1.bf16.xpose.msra.mxu0 0
  %1040 = vmatprep.subr.bf16.mxu0 0
  %1041 = vmatpush1.bf16.xpose.msra.mxu0 0
  %1042 = vmatprep.subr.bf16.mxu0 0
  %1043 = vmatpush1.bf16.xpose.msra.mxu0 0
  %1044 = vmatprep.subr.bf16.mxu0 0
  %1045 = vmatpush1.bf16.xpose.msra.mxu0 0
  %1046 = vmatprep.subr.bf16.mxu0 0
  %1047 = vmatpush1.bf16.xpose.msra.mxu0 0
  %1048 = vmatprep.subr.bf16.mxu0 0
  %1049 = vmatpush1.bf16.xpose.msra.mxu0 0
  %1050 = vmatprep.subr.bf16.mxu0 0
  %1051 = vmatpush1.bf16.xpose.msra.mxu0 0
  %1052 = vmatprep.subr.bf16.mxu0 0
  %1053 = vmatpush1.bf16.xpose.msra.mxu0 0
  %1054 = vmatprep.subr.bf16.mxu0 0
  %1055 = vmatpush1.bf16.xpose.msra.mxu0 0
  %1056 = vmatprep.subr.bf16.mxu0 0
  %1057 = vmatpush1.bf16.xpose.msra.mxu0 0
  %1058 = vmatprep.subr.bf16.mxu0 0
  %1059 = vmatpush1.bf16.xpose.msra.mxu0 0
  %1060 = vmatprep.subr.bf16.mxu0 0
  %1061 = vmatpush1.bf16.xpose.msra.mxu0 0
  %1062 = vmatprep.subr.bf16.mxu0 0
  %1063 = vmatpush1.bf16.xpose.msra.mxu0 0
  %1064 = vmatprep.mubr.bf16.mxu0 0
  %1065 = vmatmul.mubr.bf16.gmra.mrb[0].mxu0 %v1024
  %v1066 = vpop.f32.mrb[0].mxu0
  %v1067 = vadd.f32 0.0, %v1066
  %v1068 = vpop.f32.mrb[0].mxu0
  %v1069 = vpop.f32.mrb[0].mxu0
  %v1070 = vpop.f32.mrb[0].mxu0
  %1071 = vdwg.mxu0
  %v1072 = vmul.f32 %v1067, 0.35355338
  %s1073 = scalar_lea.vmem %s1, 1
  %v1074 = vld [vmem:[%s1073] sm:$0x1]
  %v1076 = vlaneseq
  %v1077 = vshrl.u32 %v1076, 7
  %v1078 = vsub.s32 0, %v1077
  %v1079 = vrot.slane %v1074, %v1078
  %v1081 = vadd.f32 %v1072, %v1079
  %v1082 = vsel %vm99, %v1081, -inf
  %1083 = vmax.xlane.f32.xlu0 %v1082
  %v1084 = vpop.xlane.xlu0 %1083
  %v1085 = vsub.f32 %v1081, %v1084
  %v1086 = vmul.f32 %v1085, 1.442695
  %v1087 = vpow.pop %v1086
  %v1088 = vpack.c.bf16 %v1087, %v1087
  %v1089 = vmul.f32 %v1009, %v470
  %v1090 = vmul.f32 %v1009, %v472
  %v1091 = vmul.f32 %v1009, %v474
  %v1092 = vmul.f32 %v1009, %v476
  %v1093 = vpack.c.bf16 %v1090, %v1089
  %v1094 = vpack.c.bf16 %v1092, %v1091
  %1097 = vrot.lane.b32.xlu0 %v1093, 64
  %v1098 = vpop.permute.xlu0 %1097
  %1099 = vrot.lane.b32.xlu0 %v1094, 64
  %v1100 = vpop.permute.xlu0 %1099
  %v1104 = vsel %vm99, %v1088, 0
  %1106 = vmatprep.subr.bf16.mxu0 0
  %1107 = vmatpush1.bf16.msra.mxu0 %v1098
  %1108 = vmatprep.subr.bf16.mxu0 0
  %1109 = vmatpush1.bf16.msra.mxu0 %v1100
  %1110 = vmatprep.subr.bf16.mxu0 0
  %1111 = vmatpush1.bf16.msra.mxu0 0
  %1112 = vmatprep.subr.bf16.mxu0 0
  %1113 = vmatpush1.bf16.msra.mxu0 0
  %1114 = vmatprep.subr.bf16.mxu0 0
  %1115 = vmatpush1.bf16.msra.mxu0 0
  %1116 = vmatprep.subr.bf16.mxu0 0
  %1117 = vmatpush1.bf16.msra.mxu0 0
  %1118 = vmatprep.subr.bf16.mxu0 0
  %1119 = vmatpush1.bf16.msra.mxu0 0
  %1120 = vmatprep.subr.bf16.mxu0 0
  %1121 = vmatpush1.bf16.msra.mxu0 0
  %1122 = vmatprep.subr.bf16.mxu0 0
  %1123 = vmatpush1.bf16.msra.mxu0 0
  %1124 = vmatprep.subr.bf16.mxu0 0
  %1125 = vmatpush1.bf16.msra.mxu0 0
  %1126 = vmatprep.subr.bf16.mxu0 0
  %1127 = vmatpush1.bf16.msra.mxu0 0
  %1128 = vmatprep.subr.bf16.mxu0 0
  %1129 = vmatpush1.bf16.msra.mxu0 0
  %1130 = vmatprep.subr.bf16.mxu0 0
  %1131 = vmatpush1.bf16.msra.mxu0 0
  %1132 = vmatprep.subr.bf16.mxu0 0
  %1133 = vmatpush1.bf16.msra.mxu0 0
  %1134 = vmatprep.subr.bf16.mxu0 0
  %1135 = vmatpush1.bf16.msra.mxu0 0
  %1136 = vmatprep.subr.bf16.mxu0 0
  %1137 = vmatpush1.bf16.msra.mxu0 0
  %1138 = vmatprep.mubr.bf16.mxu0 0
  %1139 = vmatmul.mubr.bf16.gmra.mrb[0].mxu0 %v1104
  %v1140 = vpop.f32.mrb[0].mxu0
  %v1141 = vadd.f32 0.0, %v1140
  %v1142 = vpop.f32.mrb[0].mxu0
  %v1143 = vpop.f32.mrb[0].mxu0
  %v1144 = vpop.f32.mrb[0].mxu0
  %1145 = vdwg.mxu0
  %1146 = vmatprep.subr.bf16.mxu0 0
  %1147 = vmatpush1.bf16.msra.mxu0 %v61
  %1148 = vmatprep.subr.bf16.mxu0 0
  %1149 = vmatpush1.bf16.msra.mxu0 %v62
  %1150 = vmatprep.subr.bf16.mxu0 0
  %1151 = vmatpush1.bf16.msra.mxu0 0
  %1152 = vmatprep.subr.bf16.mxu0 0
  %1153 = vmatpush1.bf16.msra.mxu0 0
  %1154 = vmatprep.subr.bf16.mxu0 0
  %1155 = vmatpush1.bf16.msra.mxu0 0
  %1156 = vmatprep.subr.bf16.mxu0 0
  %1157 = vmatpush1.bf16.msra.mxu0 0
  %1158 = vmatprep.subr.bf16.mxu0 0
  %1159 = vmatpush1.bf16.msra.mxu0 0
  %1160 = vmatprep.subr.bf16.mxu0 0
  %1161 = vmatpush1.bf16.msra.mxu0 0
  %1162 = vmatprep.subr.bf16.mxu0 0
  %1163 = vmatpush1.bf16.msra.mxu0 0
  %1164 = vmatprep.subr.bf16.mxu0 0
  %1165 = vmatpush1.bf16.msra.mxu0 0
  %1166 = vmatprep.subr.bf16.mxu0 0
  %1167 = vmatpush1.bf16.msra.mxu0 0
  %1168 = vmatprep.subr.bf16.mxu0 0
  %1169 = vmatpush1.bf16.msra.mxu0 0
  %1170 = vmatprep.subr.bf16.mxu0 0
  %1171 = vmatpush1.bf16.msra.mxu0 0
  %1172 = vmatprep.subr.bf16.mxu0 0
  %1173 = vmatpush1.bf16.msra.mxu0 0
  %1174 = vmatprep.subr.bf16.mxu0 0
  %1175 = vmatpush1.bf16.msra.mxu0 0
  %1176 = vmatprep.subr.bf16.mxu0 0
  %1177 = vmatpush1.bf16.msra.mxu0 0
  %1178 = vmatprep.mubr.bf16.mxu0 0
  %1179 = vmatmul.mubr.bf16.gmra.mrb[0].mxu0 %v1104
  %v1180 = vpop.f32.mrb[0].mxu0
  %v1181 = vadd.f32 0.0, %v1180
  %v1182 = vpop.f32.mrb[0].mxu0
  %v1183 = vpop.f32.mrb[0].mxu0
  %v1184 = vpop.f32.mrb[0].mxu0
  %1185 = vdwg.mxu0
  %v1186 = vrcp.pop %v1181
  %v1187 = vmul.f32 %v1141, %v1186
  %v1188 = vld [vmem:[%s11] sm:$0xf]
  %v1189 = vld [vmem:[%s11 + $0x4] sm:$0xf]
  %v1190 = vld [vmem:[%s11 + $0x8] sm:$0xf]
  %v1191 = vld [vmem:[%s11 + $0xc] sm:$0xf]
  %v1192 = vpack.c.bf16 %v1187, %v1187
  %v1197 = vunpack.c.l.b16 %v1188
  %v1198 = vunpack.c.l.b16 %v1189
  %v1199 = vunpack.c.l.b16 %v1190
  %v1200 = vunpack.c.l.b16 %v1191
  %v1201 = vpack.c.b16 %v1198, %v1197
  %v1202 = vpack.c.b16 %v1200, %v1199
  %v1206 = vsel %vm99, %v1192, 0
  %1208 = vmatprep.subr.bf16.mxu0 0
  %1209 = vmatpush1.bf16.msra.mxu0 %v1201
  %1210 = vmatprep.subr.bf16.mxu0 0
  %1211 = vmatpush1.bf16.msra.mxu0 %v1202
  %1212 = vmatprep.subr.bf16.mxu0 0
  %1213 = vmatpush1.bf16.msra.mxu0 0
  %1214 = vmatprep.subr.bf16.mxu0 0
  %1215 = vmatpush1.bf16.msra.mxu0 0
  %1216 = vmatprep.subr.bf16.mxu0 0
  %1217 = vmatpush1.bf16.msra.mxu0 0
  %1218 = vmatprep.subr.bf16.mxu0 0
  %1219 = vmatpush1.bf16.msra.mxu0 0
  %1220 = vmatprep.subr.bf16.mxu0 0
  %1221 = vmatpush1.bf16.msra.mxu0 0
  %1222 = vmatprep.subr.bf16.mxu0 0
  %1223 = vmatpush1.bf16.msra.mxu0 0
  %1224 = vmatprep.subr.bf16.mxu0 0
  %1225 = vmatpush1.bf16.msra.mxu0 0
  %1226 = vmatprep.subr.bf16.mxu0 0
  %1227 = vmatpush1.bf16.msra.mxu0 0
  %1228 = vmatprep.subr.bf16.mxu0 0
  %1229 = vmatpush1.bf16.msra.mxu0 0
  %1230 = vmatprep.subr.bf16.mxu0 0
  %1231 = vmatpush1.bf16.msra.mxu0 0
  %1232 = vmatprep.subr.bf16.mxu0 0
  %1233 = vmatpush1.bf16.msra.mxu0 0
  %1234 = vmatprep.subr.bf16.mxu0 0
  %1235 = vmatpush1.bf16.msra.mxu0 0
  %1236 = vmatprep.subr.bf16.mxu0 0
  %1237 = vmatpush1.bf16.msra.mxu0 0
  %1238 = vmatprep.subr.bf16.mxu0 0
  %1239 = vmatpush1.bf16.msra.mxu0 0
  %1240 = vmatprep.mubr.bf16.mxu0 0
  %1241 = vmatmul.mubr.bf16.gmra.mrb[0].mxu0 %v1206
  %v1242 = vpop.f32.mrb[0].mxu0
  %v1243 = vadd.f32 0.0, %v1242
  %v1244 = vpop.f32.mrb[0].mxu0
  %v1245 = vpop.f32.mrb[0].mxu0
  %v1246 = vpop.f32.mrb[0].mxu0
  %1247 = vdwg.mxu0
  %v1248 = vmul.f32 %v1243, %v1243
  %v1249 = vsel %vm99, %v1248, 0.0
  %1250 = vadd.xlane.f32.xlu0 %v1249
  %v1251 = vpop.xlane.xlu0 %1250
  %v1252 = vmul.f32 %v1251, %v103
  %v1253 = vadd.f32 %v1252, 1e-06
  %v1254 = vrsqrt.pop %v1253
  %v1255 = vmul.f32 %v1243, %v1254
  %v1256 = vld [vmem:[%s12] sm:$0x1]
  %v1258 = vlaneseq
  %v1259 = vshrl.u32 %v1258, 7
  %v1260 = vsub.s32 0, %v1259
  %v1261 = vrot.slane %v1256, %v1260
  %v1263 = vmul.f32 %v1255, %v1261
  %v1264 = vadd.f32 %v840, %v1263
  %v1265 = vmul.f32 %v1264, %v1264
  %v1266 = vsel %vm99, %v1265, 0.0
  %1267 = vadd.xlane.f32.xlu0 %v1266
  %v1268 = vpop.xlane.xlu0 %1267
  %v1269 = vmul.f32 %v1268, %v103
  %v1270 = vadd.f32 %v1269, 1e-06
  %v1271 = vrsqrt.pop %v1270
  %v1272 = vmul.f32 %v1264, %v1271
  %v1273 = vld [vmem:[%s13] sm:$0x1]
  %v1275 = vlaneseq
  %v1276 = vshrl.u32 %v1275, 7
  %v1277 = vsub.s32 0, %v1276
  %v1278 = vrot.slane %v1273, %v1277
  %v1280 = vmul.f32 %v1272, %v1278
  %v1281 = vld [vmem:[%s14] sm:$0xf]
  %v1282 = vld [vmem:[%s14 + $0x4] sm:$0xf]
  %v1283 = vld [vmem:[%s14 + $0x8] sm:$0xf]
  %v1284 = vld [vmem:[%s14 + $0xc] sm:$0xf]
  %v1285 = vpack.c.bf16 %v1280, %v1280
  %v1290 = vunpack.c.l.b16 %v1281
  %v1291 = vunpack.c.l.b16 %v1282
  %v1292 = vunpack.c.l.b16 %v1283
  %v1293 = vunpack.c.l.b16 %v1284
  %v1294 = vpack.c.b16 %v1291, %v1290
  %v1295 = vpack.c.b16 %v1293, %v1292
  %v1299 = vsel %vm99, %v1285, 0
  %1301 = vmatprep.subr.bf16.mxu0 0
  %1302 = vmatpush1.bf16.msra.mxu0 %v1294
  %1303 = vmatprep.subr.bf16.mxu0 0
  %1304 = vmatpush1.bf16.msra.mxu0 %v1295
  %1305 = vmatprep.subr.bf16.mxu0 0
  %1306 = vmatpush1.bf16.msra.mxu0 0
  %1307 = vmatprep.subr.bf16.mxu0 0
  %1308 = vmatpush1.bf16.msra.mxu0 0
  %1309 = vmatprep.subr.bf16.mxu0 0
  %1310 = vmatpush1.bf16.msra.mxu0 0
  %1311 = vmatprep.subr.bf16.mxu0 0
  %1312 = vmatpush1.bf16.msra.mxu0 0
  %1313 = vmatprep.subr.bf16.mxu0 0
  %1314 = vmatpush1.bf16.msra.mxu0 0
  %1315 = vmatprep.subr.bf16.mxu0 0
  %1316 = vmatpush1.bf16.msra.mxu0 0
  %1317 = vmatprep.subr.bf16.mxu0 0
  %1318 = vmatpush1.bf16.msra.mxu0 0
  %1319 = vmatprep.subr.bf16.mxu0 0
  %1320 = vmatpush1.bf16.msra.mxu0 0
  %1321 = vmatprep.subr.bf16.mxu0 0
  %1322 = vmatpush1.bf16.msra.mxu0 0
  %1323 = vmatprep.subr.bf16.mxu0 0
  %1324 = vmatpush1.bf16.msra.mxu0 0
  %1325 = vmatprep.subr.bf16.mxu0 0
  %1326 = vmatpush1.bf16.msra.mxu0 0
  %1327 = vmatprep.subr.bf16.mxu0 0
  %1328 = vmatpush1.bf16.msra.mxu0 0
  %1329 = vmatprep.subr.bf16.mxu0 0
  %1330 = vmatpush1.bf16.msra.mxu0 0
  %1331 = vmatprep.subr.bf16.mxu0 0
  %1332 = vmatpush1.bf16.msra.mxu0 0
  %1333 = vmatprep.mubr.bf16.mxu0 0
  %1334 = vmatmul.mubr.bf16.gmra.mrb[0].mxu0 %v1299
  %v1335 = vpop.f32.mrb[0].mxu0
  %v1336 = vadd.f32 0.0, %v1335
  %v1337 = vpop.f32.mrb[0].mxu0
  %v1338 = vpop.f32.mrb[0].mxu0
  %v1339 = vpop.f32.mrb[0].mxu0
  %1340 = vdwg.mxu0
  %v1341 = vsub.f32 0.0, %v1336
  %v1342 = vmul.f32 %v1341, 1.442695
  %v1343 = vpow.pop %v1342
  %v1344 = vadd.f32 %v1343, 1.0
  %v1345 = vrcp.pop %v1344
  %v1346 = vmul.f32 %v1336, %v1345
  %1348 = vrot.lane.b32.xlu0 %v1336, 64
  %v1349 = vpop.permute.xlu0 %1348
  %v1351 = vmul.f32 %v1346, %v1349
  %v1352 = vld [vmem:[%s15] sm:$0xf]
  %v1353 = vld [vmem:[%s15 + $0x4] sm:$0xf]
  %v1354 = vld [vmem:[%s15 + $0x8] sm:$0xf]
  %v1355 = vld [vmem:[%s15 + $0xc] sm:$0xf]
  %v1356 = vld [vmem:[%s15 + $0x10] sm:$0xf]
  %v1357 = vld [vmem:[%s15 + $0x14] sm:$0xf]
  %v1358 = vld [vmem:[%s15 + $0x18] sm:$0xf]
  %v1359 = vld [vmem:[%s15 + $0x1c] sm:$0xf]
  %v1360 = vpack.c.bf16 %v1351, %v1351
  %v1369 = vunpack.c.l.b16 %v1352
  %v1370 = vunpack.c.l.b16 %v1353
  %v1371 = vunpack.c.l.b16 %v1354
  %v1372 = vunpack.c.l.b16 %v1355
  %v1373 = vunpack.c.l.b16 %v1356
  %v1374 = vunpack.c.l.b16 %v1357
  %v1375 = vunpack.c.l.b16 %v1358
  %v1376 = vunpack.c.l.b16 %v1359
  %v1377 = vpack.c.b16 %v1370, %v1369
  %v1378 = vpack.c.b16 %v1372, %v1371
  %v1379 = vpack.c.b16 %v1374, %v1373
  %v1380 = vpack.c.b16 %v1376, %v1375
  %v1386 = vsel %vm777, %v1360, 0
  %1388 = vmatprep.subr.bf16.mxu0 0
  %1389 = vmatpush1.bf16.msra.mxu0 %v1377
  %1390 = vmatprep.subr.bf16.mxu0 0
  %1391 = vmatpush1.bf16.msra.mxu0 %v1378
  %1392 = vmatprep.subr.bf16.mxu0 0
  %1393 = vmatpush1.bf16.msra.mxu0 %v1379
  %1394 = vmatprep.subr.bf16.mxu0 0
  %1395 = vmatpush1.bf16.msra.mxu0 %v1380
  %1396 = vmatprep.subr.bf16.mxu0 0
  %1397 = vmatpush1.bf16.msra.mxu0 0
  %1398 = vmatprep.subr.bf16.mxu0 0
  %1399 = vmatpush1.bf16.msra.mxu0 0
  %1400 = vmatprep.subr.bf16.mxu0 0
  %1401 = vmatpush1.bf16.msra.mxu0 0
  %1402 = vmatprep.subr.bf16.mxu0 0
  %1403 = vmatpush1.bf16.msra.mxu0 0
  %1404 = vmatprep.subr.bf16.mxu0 0
  %1405 = vmatpush1.bf16.msra.mxu0 0
  %1406 = vmatprep.subr.bf16.mxu0 0
  %1407 = vmatpush1.bf16.msra.mxu0 0
  %1408 = vmatprep.subr.bf16.mxu0 0
  %1409 = vmatpush1.bf16.msra.mxu0 0
  %1410 = vmatprep.subr.bf16.mxu0 0
  %1411 = vmatpush1.bf16.msra.mxu0 0
  %1412 = vmatprep.subr.bf16.mxu0 0
  %1413 = vmatpush1.bf16.msra.mxu0 0
  %1414 = vmatprep.subr.bf16.mxu0 0
  %1415 = vmatpush1.bf16.msra.mxu0 0
  %1416 = vmatprep.subr.bf16.mxu0 0
  %1417 = vmatpush1.bf16.msra.mxu0 0
  %1418 = vmatprep.subr.bf16.mxu0 0
  %1419 = vmatpush1.bf16.msra.mxu0 0
  %1420 = vmatprep.mubr.bf16.mxu0 0
  %1421 = vmatmul.mubr.bf16.gmra.mrb[0].mxu0 %v1386
  %v1422 = vpop.f32.mrb[0].mxu0
  %v1423 = vadd.f32 0.0, %v1422
  %v1424 = vpop.f32.mrb[0].mxu0
  %v1425 = vpop.f32.mrb[0].mxu0
  %v1426 = vpop.f32.mrb[0].mxu0
  %1427 = vdwg.mxu0
  %v1428 = vmul.f32 %v1423, %v1423
  %v1429 = vsel %vm99, %v1428, 0.0
  %1430 = vadd.xlane.f32.xlu0 %v1429
  %v1431 = vpop.xlane.xlu0 %1430
  %v1432 = vmul.f32 %v1431, %v103
  %v1433 = vadd.f32 %v1432, 1e-06
  %v1434 = vrsqrt.pop %v1433
  %v1435 = vmul.f32 %v1423, %v1434
  %v1436 = vld [vmem:[%s16] sm:$0x1]
  %v1438 = vlaneseq
  %v1439 = vshrl.u32 %v1438, 7
  %v1440 = vsub.s32 0, %v1439
  %v1441 = vrot.slane %v1436, %v1440
  %v1443 = vmul.f32 %v1435, %v1441
  %v1444 = vadd.f32 %v1264, %v1443
  %s1445 = scalar_lea.vmem %s17, 8
  %1446 = vst.msk [vmem:[%s1445] sm:$0xff] %vm99, %v1444
  // Predicated region
  $region70: #{_forward_device.2} parent=0 // pred_check
    _
  $region71: #{_forward_device.2} parent=0 // pred_check_branch
    %1448 = sbr.rel (0) target = $region73
  $region72: #{_forward_device.2} parent=0 // pred_region
    _
  $region73: #{_forward_device.2} parent=0 // pred_fallthru
    _
  // Predicated region
  $region74: #{_forward_device.2} parent=0 // pred_check
    _
  $region75: #{_forward_device.2} parent=0 // pred_check_branch
    %1450 = sbr.rel (0) target = $region77
  $region76: #{_forward_device.2} parent=0 // pred_region
    _
  $region77: #{_forward_device.2} parent=0 // pred_fallthru
    _

// kernel: _forward_device.3
$region0: #{_forward_device.3}
  #allocation0 [shape = 'u32[]', space=smem, size = 0x4, offset = 0x4, fixed_abs, tag = 'smem constant byte address 0x4 - core index']
  #allocation1 [shape = 'u32[144,128]{1,0:T(1,128)}', space=vmem, size = 0x12000, scoped, tag = 'internal scratch']
  %s0 = inlined_call_operand.vmem [shape: f32[2,64,16], index: 0, kind: input, shape index: {}]
  %s1 = inlined_call_operand.vmem [shape: bf16[16,32], index: 1, kind: input, shape index: {}]
  %s2 = inlined_call_operand.vmem [shape: f32[1,32], index: 2, kind: input, shape index: {}]
  %s3 = inlined_call_operand.vmem [shape: f32[2,1,32], index: 3, kind: input, shape index: {}]
  %s4 = inlined_call_operand.vmem [shape: f32[2,1,32], index: 4, kind: input, shape index: {}]
  %s5 = inlined_call_operand.vmem [shape: f32[2,1,32], index: 5, kind: input, shape index: {}]
  %s6 = inlined_call_operand.vmem [shape: f32[2,1,32], index: 6, kind: input, shape index: {}]
  %s7 = inlined_call_operand.vmem [shape: f32[2,1,256], index: 7, kind: input, shape index: {}]
  %s8 = inlined_call_operand.vmem [shape: f32[2,64,128], index: 8, kind: input, shape index: {}]
  %s9 = inlined_call_operand.vmem [shape: f32[2,64,128], index: 9, kind: input, shape index: {}]
  %s10 = inlined_call_operand.vmem [shape: f32[256,32], index: 10, kind: input, shape index: {}]
  %s11 = inlined_call_operand.vmem [shape: f32[1,32], index: 11, kind: input, shape index: {}]
  %s12 = inlined_call_operand.vmem [shape: bf16[32,128], index: 12, kind: input, shape index: {}]
  %s13 = inlined_call_operand.vmem [shape: f32[1,128], index: 13, kind: input, shape index: {}]
  %s14 = inlined_call_operand.vmem [shape: f32[1,128], index: 14, kind: input, shape index: {}]
  %s15 = inlined_call_operand.vmem [shape: bf16[128,128], index: 15, kind: input, shape index: {}]
  %s16 = inlined_call_operand.vmem [shape: bf16[128,128], index: 16, kind: input, shape index: {}]
  %s17 = inlined_call_operand.vmem [shape: bf16[32,32], index: 17, kind: input, shape index: {}]
  %s18 = inlined_call_operand.vmem [shape: f32[1,32], index: 18, kind: input, shape index: {}]
  %s19 = inlined_call_operand.vmem [shape: f32[1,32], index: 19, kind: input, shape index: {}]
  %s20 = inlined_call_operand.vmem [shape: bf16[32,128], index: 20, kind: input, shape index: {}]
  %s21 = inlined_call_operand.vmem [shape: bf16[64,32], index: 21, kind: input, shape index: {}]
  %s22 = inlined_call_operand.vmem [shape: f32[1,32], index: 22, kind: input, shape index: {}]
  %s23 = inlined_call_operand.vmem [shape: f32[2,64,32], index: 23, kind: output, shape index: {}]
  %s24 = sld [smem:[#allocation0]]
  $region102: #{_forward_device.3} parent=0
    _
  %s26 = ssub.s32 1, %s24
  %s27 = scalar_select 0, %s26, %s24
  // Predicated region
  $region2: #{_forward_device.3} parent=0 // pred_check
    _
  $region3: #{_forward_device.3} parent=0 // pred_check_branch
    %29 = sbr.rel (0) target = $region5
  $region4: #{_forward_device.3} parent=0 // pred_region
    _
  $region5: #{_forward_device.3} parent=0 // pred_fallthru
    _
  // Predicated region
  $region6: #{_forward_device.3} parent=0 // pred_check
    _
  $region7: #{_forward_device.3} parent=0 // pred_check_branch
    %31 = sbr.rel (0) target = $region9
  $region8: #{_forward_device.3} parent=0 // pred_region
    _
  $region9: #{_forward_device.3} parent=0 // pred_fallthru
    _
  // Predicated region
  $region10: #{_forward_device.3} parent=0 // pred_check
    _
  $region11: #{_forward_device.3} parent=0 // pred_check_branch
    %33 = sbr.rel (0) target = $region13
  $region12: #{_forward_device.3} parent=0 // pred_region
    _
  $region13: #{_forward_device.3} parent=0 // pred_fallthru
    _
  // Predicated region
  $region14: #{_forward_device.3} parent=0 // pred_check
    _
  $region15: #{_forward_device.3} parent=0 // pred_check_branch
    %35 = sbr.rel (0) target = $region17
  $region16: #{_forward_device.3} parent=0 // pred_region
    _
  $region17: #{_forward_device.3} parent=0 // pred_fallthru
    _
  // Predicated region
  $region18: #{_forward_device.3} parent=0 // pred_check
    _
  $region19: #{_forward_device.3} parent=0 // pred_check_branch
    %37 = sbr.rel (0) target = $region21
  $region20: #{_forward_device.3} parent=0 // pred_region
    _
  $region21: #{_forward_device.3} parent=0 // pred_fallthru
    _
  // Predicated region
  $region22: #{_forward_device.3} parent=0 // pred_check
    _
  $region23: #{_forward_device.3} parent=0 // pred_check_branch
    %39 = sbr.rel (0) target = $region25
  $region24: #{_forward_device.3} parent=0 // pred_region
    _
  $region25: #{_forward_device.3} parent=0 // pred_fallthru
    _
  // Predicated region
  $region26: #{_forward_device.3} parent=0 // pred_check
    _
  $region27: #{_forward_device.3} parent=0 // pred_check_branch
    %41 = sbr.rel (0) target = $region29
  $region28: #{_forward_device.3} parent=0 // pred_region
    _
  $region29: #{_forward_device.3} parent=0 // pred_fallthru
    _
  // Predicated region
  $region30: #{_forward_device.3} parent=0 // pred_check
    _
  $region31: #{_forward_device.3} parent=0 // pred_check_branch
    %43 = sbr.rel (0) target = $region33
  $region32: #{_forward_device.3} parent=0 // pred_region
    _
  $region33: #{_forward_device.3} parent=0 // pred_fallthru
    _
  // Predicated region
  $region34: #{_forward_device.3} parent=0 // pred_check
    _
  $region35: #{_forward_device.3} parent=0 // pred_check_branch
    %45 = sbr.rel (0) target = $region37
  $region36: #{_forward_device.3} parent=0 // pred_region
    _
  $region37: #{_forward_device.3} parent=0 // pred_fallthru
    _
  // Predicated region
  $region38: #{_forward_device.3} parent=0 // pred_check
    _
  $region39: #{_forward_device.3} parent=0 // pred_check_branch
    %47 = sbr.rel (0) target = $region41
  $region40: #{_forward_device.3} parent=0 // pred_region
    _
  $region41: #{_forward_device.3} parent=0 // pred_fallthru
    _
  // Predicated region
  $region42: #{_forward_device.3} parent=0 // pred_check
    _
  $region43: #{_forward_device.3} parent=0 // pred_check_branch
    %49 = sbr.rel (0) target = $region45
  $region44: #{_forward_device.3} parent=0 // pred_region
    _
  $region45: #{_forward_device.3} parent=0 // pred_fallthru
    _
  // Predicated region
  $region46: #{_forward_device.3} parent=0 // pred_check
    _
  $region47: #{_forward_device.3} parent=0 // pred_check_branch
    %51 = sbr.rel (0) target = $region49
  $region48: #{_forward_device.3} parent=0 // pred_region
    _
  $region49: #{_forward_device.3} parent=0 // pred_fallthru
    _
  // Predicated region
  $region50: #{_forward_device.3} parent=0 // pred_check
    _
  $region51: #{_forward_device.3} parent=0 // pred_check_branch
    %53 = sbr.rel (0) target = $region53
  $region52: #{_forward_device.3} parent=0 // pred_region
    _
  $region53: #{_forward_device.3} parent=0 // pred_fallthru
    _
  // Predicated region
  $region54: #{_forward_device.3} parent=0 // pred_check
    _
  $region55: #{_forward_device.3} parent=0 // pred_check_branch
    %55 = sbr.rel (0) target = $region57
  $region56: #{_forward_device.3} parent=0 // pred_region
    _
  $region57: #{_forward_device.3} parent=0 // pred_fallthru
    _
  // Predicated region
  $region58: #{_forward_device.3} parent=0 // pred_check
    _
  $region59: #{_forward_device.3} parent=0 // pred_check_branch
    %57 = sbr.rel (0) target = $region61
  $region60: #{_forward_device.3} parent=0 // pred_region
    _
  $region61: #{_forward_device.3} parent=0 // pred_fallthru
    _
  // Predicated region
  $region62: #{_forward_device.3} parent=0 // pred_check
    _
  $region63: #{_forward_device.3} parent=0 // pred_check_branch
    %59 = sbr.rel (0) target = $region65
  $region64: #{_forward_device.3} parent=0 // pred_region
    _
  $region65: #{_forward_device.3} parent=0 // pred_fallthru
    _
  // Predicated region
  $region66: #{_forward_device.3} parent=0 // pred_check
    _
  $region67: #{_forward_device.3} parent=0 // pred_check_branch
    %61 = sbr.rel (0) target = $region69
  $region68: #{_forward_device.3} parent=0 // pred_region
    _
  $region69: #{_forward_device.3} parent=0 // pred_fallthru
    _
  // Predicated region
  $region70: #{_forward_device.3} parent=0 // pred_check
    _
  $region71: #{_forward_device.3} parent=0 // pred_check_branch
    %63 = sbr.rel (0) target = $region73
  $region72: #{_forward_device.3} parent=0 // pred_region
    _
  $region73: #{_forward_device.3} parent=0 // pred_fallthru
    _
  // Predicated region
  $region74: #{_forward_device.3} parent=0 // pred_check
    _
  $region75: #{_forward_device.3} parent=0 // pred_check_branch
    %65 = sbr.rel (0) target = $region77
  $region76: #{_forward_device.3} parent=0 // pred_region
    _
  $region77: #{_forward_device.3} parent=0 // pred_fallthru
    _
  // Predicated region
  $region78: #{_forward_device.3} parent=0 // pred_check
    _
  $region79: #{_forward_device.3} parent=0 // pred_check_branch
    %67 = sbr.rel (0) target = $region81
  $region80: #{_forward_device.3} parent=0 // pred_region
    _
  $region81: #{_forward_device.3} parent=0 // pred_fallthru
    _
  // Predicated region
  $region82: #{_forward_device.3} parent=0 // pred_check
    _
  $region83: #{_forward_device.3} parent=0 // pred_check_branch
    %69 = sbr.rel (0) target = $region85
  $region84: #{_forward_device.3} parent=0 // pred_region
    _
  $region85: #{_forward_device.3} parent=0 // pred_fallthru
    _
  // Predicated region
  $region86: #{_forward_device.3} parent=0 // pred_check
    _
  $region87: #{_forward_device.3} parent=0 // pred_check_branch
    %71 = sbr.rel (0) target = $region89
  $region88: #{_forward_device.3} parent=0 // pred_region
    _
  $region89: #{_forward_device.3} parent=0 // pred_fallthru
    _
  // Predicated region
  $region90: #{_forward_device.3} parent=0 // pred_check
    _
  $region91: #{_forward_device.3} parent=0 // pred_check_branch
    %73 = sbr.rel (0) target = $region93
  $region92: #{_forward_device.3} parent=0 // pred_region
    _
  $region93: #{_forward_device.3} parent=0 // pred_fallthru
    _
  %v75 = vld [vmem:[%s10] sm:$0xff]
  %v76 = vld [vmem:[%s10 + $0x8] sm:$0xff]
  %v77 = vld [vmem:[%s10 + $0x10] sm:$0xff]
  %v78 = vld [vmem:[%s10 + $0x18] sm:$0xff]
  %v79 = vld [vmem:[%s10 + $0x20] sm:$0xff]
  %v80 = vld [vmem:[%s10 + $0x28] sm:$0xff]
  %v81 = vld [vmem:[%s10 + $0x30] sm:$0xff]
  %v82 = vld [vmem:[%s10 + $0x38] sm:$0xff]
  %v83 = vld [vmem:[%s10 + $0x40] sm:$0xff]
  %v84 = vld [vmem:[%s10 + $0x48] sm:$0xff]
  %v85 = vld [vmem:[%s10 + $0x50] sm:$0xff]
  %v86 = vld [vmem:[%s10 + $0x58] sm:$0xff]
  %v87 = vld [vmem:[%s10 + $0x60] sm:$0xff]
  %v88 = vld [vmem:[%s10 + $0x68] sm:$0xff]
  %v89 = vld [vmem:[%s10 + $0x70] sm:$0xff]
  %v90 = vld [vmem:[%s10 + $0x78] sm:$0xff]
  %v91 = vld [vmem:[%s10 + $0x80] sm:$0xff]
  %v92 = vld [vmem:[%s10 + $0x88] sm:$0xff]
  %v93 = vld [vmem:[%s10 + $0x90] sm:$0xff]
  %v94 = vld [vmem:[%s10 + $0x98] sm:$0xff]
  %v95 = vld [vmem:[%s10 + $0xa0] sm:$0xff]
  %v96 = vld [vmem:[%s10 + $0xa8] sm:$0xff]
  %v97 = vld [vmem:[%s10 + $0xb0] sm:$0xff]
  %v98 = vld [vmem:[%s10 + $0xb8] sm:$0xff]
  %v99 = vld [vmem:[%s10 + $0xc0] sm:$0xff]
  %v100 = vld [vmem:[%s10 + $0xc8] sm:$0xff]
  %v101 = vld [vmem:[%s10 + $0xd0] sm:$0xff]
  %v102 = vld [vmem:[%s10 + $0xd8] sm:$0xff]
  %v103 = vld [vmem:[%s10 + $0xe0] sm:$0xff]
  %v104 = vld [vmem:[%s10 + $0xe8] sm:$0xff]
  %v105 = vld [vmem:[%s10 + $0xf0] sm:$0xff]
  %v106 = vld [vmem:[%s10 + $0xf8] sm:$0xff]
  %v107 = vpack.c.bf16 %v76, %v75
  %v108 = vpack.c.bf16 %v78, %v77
  %v109 = vpack.c.bf16 %v80, %v79
  %v110 = vpack.c.bf16 %v82, %v81
  %v111 = vpack.c.bf16 %v84, %v83
  %v112 = vpack.c.bf16 %v86, %v85
  %v113 = vpack.c.bf16 %v88, %v87
  %v114 = vpack.c.bf16 %v90, %v89
  %v115 = vpack.c.bf16 %v92, %v91
  %v116 = vpack.c.bf16 %v94, %v93
  %v117 = vpack.c.bf16 %v96, %v95
  %v118 = vpack.c.bf16 %v98, %v97
  %v119 = vpack.c.bf16 %v100, %v99
  %v120 = vpack.c.bf16 %v102, %v101
  %v121 = vpack.c.bf16 %v104, %v103
  %v122 = vpack.c.bf16 %v106, %v105
  %v123 = vld [vmem:[%s15] sm:$0xf]
  %v124 = vld [vmem:[%s15 + $0x4] sm:$0xf]
  %v125 = vld [vmem:[%s15 + $0x8] sm:$0xf]
  %v126 = vld [vmem:[%s15 + $0xc] sm:$0xf]
  %v127 = vld [vmem:[%s15 + $0x10] sm:$0xf]
  %v128 = vld [vmem:[%s15 + $0x14] sm:$0xf]
  %v129 = vld [vmem:[%s15 + $0x18] sm:$0xf]
  %v130 = vld [vmem:[%s15 + $0x1c] sm:$0xf]
  %v131 = vld [vmem:[%s15 + $0x20] sm:$0xf]
  %v132 = vld [vmem:[%s15 + $0x24] sm:$0xf]
  %v133 = vld [vmem:[%s15 + $0x28] sm:$0xf]
  %v134 = vld [vmem:[%s15 + $0x2c] sm:$0xf]
  %v135 = vld [vmem:[%s15 + $0x30] sm:$0xf]
  %v136 = vld [vmem:[%s15 + $0x34] sm:$0xf]
  %v137 = vld [vmem:[%s15 + $0x38] sm:$0xf]
  %v138 = vld [vmem:[%s15 + $0x3c] sm:$0xf]
  %v139 = vld [vmem:[%s16] sm:$0xf]
  %v140 = vld [vmem:[%s16 + $0x4] sm:$0xf]
  %v141 = vld [vmem:[%s16 + $0x8] sm:$0xf]
  %v142 = vld [vmem:[%s16 + $0xc] sm:$0xf]
  %v143 = vld [vmem:[%s16 + $0x10] sm:$0xf]
  %v144 = vld [vmem:[%s16 + $0x14] sm:$0xf]
  %v145 = vld [vmem:[%s16 + $0x18] sm:$0xf]
  %v146 = vld [vmem:[%s16 + $0x1c] sm:$0xf]
  %v147 = vld [vmem:[%s16 + $0x20] sm:$0xf]
  %v148 = vld [vmem:[%s16 + $0x24] sm:$0xf]
  %v149 = vld [vmem:[%s16 + $0x28] sm:$0xf]
  %v150 = vld [vmem:[%s16 + $0x2c] sm:$0xf]
  %v151 = vld [vmem:[%s16 + $0x30] sm:$0xf]
  %v152 = vld [vmem:[%s16 + $0x34] sm:$0xf]
  %v153 = vld [vmem:[%s16 + $0x38] sm:$0xf]
  %v154 = vld [vmem:[%s16 + $0x3c] sm:$0xf]
  %v155 = vld [vmem:[%s13] sm:$0x1]
  %v156 = vld [vmem:[%s14] sm:$0x1]
  %v157 = vld [vmem:[%s0] sm:$0xff]
  %v158 = vld [vmem:[%s0 + $0x8] sm:$0xff]
  %v159 = vld [vmem:[%s0 + $0x10] sm:$0xff]
  %v160 = vld [vmem:[%s0 + $0x18] sm:$0xff]
  %v161 = vld [vmem:[%s0 + $0x20] sm:$0xff]
  %v162 = vld [vmem:[%s0 + $0x28] sm:$0xff]
  %v163 = vld [vmem:[%s0 + $0x30] sm:$0xff]
  %v164 = vld [vmem:[%s0 + $0x38] sm:$0xff]
  %v165 = vld [vmem:[%s1] sm:$0xf]
  %v166 = vld [vmem:[%s1 + $0x4] sm:$0xf]
  %v167 = vpack.c.bf16 %v158, %v157
  %v168 = vpack.c.bf16 %v160, %v159
  %v169 = vpack.c.bf16 %v162, %v161
  %v170 = vpack.c.bf16 %v164, %v163
  %v171 = vld [vmem:[%s2] sm:$0x1]
  %v173 = vlaneseq
  %v174 = vshrl.u32 %v173, 7
  %v175 = vsub.s32 0, %v174
  %v176 = vrot.slane %v171, %v175
  %v180 = vunpack.c.l.b16 %v165
  %v181 = vunpack.c.l.b16 %v166
  %v182 = vpack.c.b16 %v181, %v180
  %vm184 = vcmask 130048
  %v186 = vsel %vm184, %v167, 0
  %v189 = vsel %vm184, %v168, 0
  %v192 = vsel %vm184, %v169, 0
  %v195 = vsel %vm184, %v170, 0
  %197 = vmatprep.subr.bf16.mxu0 0
  %198 = vmatpush1.bf16.msra.mxu0 %v182
  %199 = vmatprep.subr.bf16.mxu0 0
  %200 = vmatpush1.bf16.msra.mxu0 0
  %201 = vmatprep.subr.bf16.mxu0 0
  %202 = vmatpush1.bf16.msra.mxu0 0
  %203 = vmatprep.subr.bf16.mxu0 0
  %204 = vmatpush1.bf16.msra.mxu0 0
  %205 = vmatprep.subr.bf16.mxu0 0
  %206 = vmatpush1.bf16.msra.mxu0 0
  %207 = vmatprep.subr.bf16.mxu0 0
  %208 = vmatpush1.bf16.msra.mxu0 0
  %209 = vmatprep.subr.bf16.mxu0 0
  %210 = vmatpush1.bf16.msra.mxu0 0
  %211 = vmatprep.subr.bf16.mxu0 0
  %212 = vmatpush1.bf16.msra.mxu0 0
  %213 = vmatprep.subr.bf16.mxu0 0
  %214 = vmatpush1.bf16.msra.mxu0 0
  %215 = vmatprep.subr.bf16.mxu0 0
  %216 = vmatpush1.bf16.msra.mxu0 0
  %217 = vmatprep.subr.bf16.mxu0 0
  %218 = vmatpush1.bf16.msra.mxu0 0
  %219 = vmatprep.subr.bf16.mxu0 0
  %220 = vmatpush1.bf16.msra.mxu0 0
  %221 = vmatprep.subr.bf16.mxu0 0
  %222 = vmatpush1.bf16.msra.mxu0 0
  %223 = vmatprep.subr.bf16.mxu0 0
  %224 = vmatpush1.bf16.msra.mxu0 0
  %225 = vmatprep.subr.bf16.mxu0 0
  %226 = vmatpush1.bf16.msra.mxu0 0
  %227 = vmatprep.subr.bf16.mxu0 0
  %228 = vmatpush1.bf16.msra.mxu0 0
  %229 = vmatprep.mubr.bf16.mxu0 0
  %230 = vmatmul.mubr.bf16.gmra.mrb[0].mxu0 %v186
  %v231 = vpop.f32.mrb[0].mxu0
  %v232 = vadd.f32 %v176, %v231
  %v233 = vpop.f32.mrb[0].mxu0
  %v234 = vpop.f32.mrb[0].mxu0
  %v235 = vadd.f32 %v176, %v234
  %v236 = vpop.f32.mrb[0].mxu0
  %237 = vmatprep.mubr.bf16.mxu0 0
  %238 = vmatmul.mubr.bf16.gmra.mrb[0].mxu0 %v189
  %v239 = vpop.f32.mrb[0].mxu0
  %v240 = vadd.f32 %v176, %v239
  %v241 = vpop.f32.mrb[0].mxu0
  %v242 = vpop.f32.mrb[0].mxu0
  %v243 = vadd.f32 %v176, %v242
  %v244 = vpop.f32.mrb[0].mxu0
  %245 = vmatprep.mubr.bf16.mxu0 0
  %246 = vmatmul.mubr.bf16.gmra.mrb[0].mxu0 %v192
  %v247 = vpop.f32.mrb[0].mxu0
  %v248 = vadd.f32 %v176, %v247
  %v249 = vpop.f32.mrb[0].mxu0
  %v250 = vpop.f32.mrb[0].mxu0
  %v251 = vadd.f32 %v176, %v250
  %v252 = vpop.f32.mrb[0].mxu0
  %253 = vmatprep.mubr.bf16.mxu0 0
  %254 = vmatmul.mubr.bf16.gmra.mrb[0].mxu0 %v195
  %v255 = vpop.f32.mrb[0].mxu0
  %v256 = vadd.f32 %v176, %v255
  %v257 = vpop.f32.mrb[0].mxu0
  %v258 = vpop.f32.mrb[0].mxu0
  %v259 = vadd.f32 %v176, %v258
  %v260 = vpop.f32.mrb[0].mxu0
  %261 = vdwg.mxu0
  %v262 = vld [vmem:[%s3] sm:$0x1]
  %v263 = vld [vmem:[%s4] sm:$0x1]
  %v264 = vld [vmem:[%s5] sm:$0x1]
  %v265 = vld [vmem:[%s6] sm:$0x1]
  %v266 = vmul.f32 %v232, %v232
  %v267 = vmul.f32 %v235, %v235
  %v268 = vmul.f32 %v240, %v240
  %v269 = vmul.f32 %v243, %v243
  %v270 = vmul.f32 %v248, %v248
  %v271 = vmul.f32 %v251, %v251
  %v272 = vmul.f32 %v256, %v256
  %v273 = vmul.f32 %v259, %v259
  %vm274 = vcmask 261120
  %v275 = vsel %vm274, %v266, 0.0
  %276 = vadd.xlane.f32.xlu0 %v275
  %v277 = vpop.xlane.xlu0 %276
  %v278 = vsel %vm274, %v267, 0.0
  %279 = vadd.xlane.f32.xlu0 %v278
  %v280 = vpop.xlane.xlu0 %279
  %v281 = vsel %vm274, %v268, 0.0
  %282 = vadd.xlane.f32.xlu0 %v281
  %v283 = vpop.xlane.xlu0 %282
  %v284 = vsel %vm274, %v269, 0.0
  %285 = vadd.xlane.f32.xlu0 %v284
  %v286 = vpop.xlane.xlu0 %285
  %v287 = vsel %vm274, %v270, 0.0
  %288 = vadd.xlane.f32.xlu0 %v287
  %v289 = vpop.xlane.xlu0 %288
  %v290 = vsel %vm274, %v271, 0.0
  %291 = vadd.xlane.f32.xlu0 %v290
  %v292 = vpop.xlane.xlu0 %291
  %v293 = vsel %vm274, %v272, 0.0
  %294 = vadd.xlane.f32.xlu0 %v293
  %v295 = vpop.xlane.xlu0 %294
  %v296 = vsel %vm274, %v273, 0.0
  %297 = vadd.xlane.f32.xlu0 %v296
  %v298 = vpop.xlane.xlu0 %297
  %v299 = vrcp.pop 32.0
  %v300 = vmul.f32 %v277, %v299
  %v301 = vmul.f32 %v280, %v299
  %v302 = vmul.f32 %v283, %v299
  %v303 = vmul.f32 %v286, %v299
  %v304 = vmul.f32 %v289, %v299
  %v305 = vmul.f32 %v292, %v299
  %v306 = vmul.f32 %v295, %v299
  %v307 = vmul.f32 %v298, %v299
  %v308 = vadd.f32 %v300, 1e-06
  %v309 = vadd.f32 %v301, 1e-06
  %v310 = vadd.f32 %v302, 1e-06
  %v311 = vadd.f32 %v303, 1e-06
  %v312 = vadd.f32 %v304, 1e-06
  %v313 = vadd.f32 %v305, 1e-06
  %v314 = vadd.f32 %v306, 1e-06
  %v315 = vadd.f32 %v307, 1e-06
  %v316 = vrsqrt.pop %v308
  %v317 = vrsqrt.pop %v309
  %v318 = vrsqrt.pop %v310
  %v319 = vrsqrt.pop %v311
  %v320 = vrsqrt.pop %v312
  %v321 = vrsqrt.pop %v313
  %v322 = vrsqrt.pop %v314
  %v323 = vrsqrt.pop %v315
  %v324 = vmul.f32 %v232, %v316
  %v325 = vmul.f32 %v235, %v317
  %v326 = vmul.f32 %v240, %v318
  %v327 = vmul.f32 %v243, %v319
  %v328 = vmul.f32 %v248, %v320
  %v329 = vmul.f32 %v251, %v321
  %v330 = vmul.f32 %v256, %v322
  %v331 = vmul.f32 %v259, %v323
  %v332 = vld [vmem:[%s11] sm:$0x1]
  %v334 = vlaneseq
  %v335 = vshrl.u32 %v334, 7
  %v336 = vsub.s32 0, %v335
  %v337 = vrot.slane %v332, %v336
  %v339 = vmul.f32 %v324, %v337
  %v340 = vmul.f32 %v325, %v337
  %v341 = vmul.f32 %v326, %v337
  %v342 = vmul.f32 %v327, %v337
  %v343 = vmul.f32 %v328, %v337
  %v344 = vmul.f32 %v329, %v337
  %v345 = vmul.f32 %v330, %v337
  %v346 = vmul.f32 %v331, %v337
  %v347 = vadd.f32 %v262, 1.0
  %v349 = vlaneseq
  %v350 = vshrl.u32 %v349, 7
  %v351 = vsub.s32 0, %v350
  %v352 = vrot.slane %v347, %v351
  %v354 = vmul.f32 %v339, %v352
  %v355 = vmul.f32 %v340, %v352
  %v356 = vmul.f32 %v341, %v352
  %v357 = vmul.f32 %v342, %v352
  %v358 = vmul.f32 %v343, %v352
  %v359 = vmul.f32 %v344, %v352
  %v360 = vmul.f32 %v345, %v352
  %v361 = vmul.f32 %v346, %v352
  %v362 = vld [vmem:[%s12] sm:$0xf]
  %v363 = vld [vmem:[%s12 + $0x4] sm:$0xf]
  %v364 = vld [vmem:[%s12 + $0x8] sm:$0xf]
  %v365 = vld [vmem:[%s12 + $0xc] sm:$0xf]
  %v366 = vpack.c.bf16 %v355, %v354
  %v367 = vpack.c.bf16 %v357, %v356
  %v368 = vpack.c.bf16 %v359, %v358
  %v369 = vpack.c.bf16 %v361, %v360
  %v374 = vunpack.c.l.b16 %v362
  %v375 = vunpack.c.l.b16 %v363
  %v376 = vunpack.c.l.b16 %v364
  %v377 = vunpack.c.l.b16 %v365
  %v378 = vpack.c.b16 %v375, %v374
  %v379 = vpack.c.b16 %v377, %v376
  %v383 = vsel %vm274, %v366, 0
  %v386 = vsel %vm274, %v367, 0
  %v389 = vsel %vm274, %v368, 0
  %v392 = vsel %vm274, %v369, 0
  %394 = vmatprep.subr.bf16.mxu0 0
  %395 = vmatpush1.bf16.msra.mxu0 %v378
  %396 = vmatprep.subr.bf16.mxu0 0
  %397 = vmatpush1.bf16.msra.mxu0 %v379
  %398 = vmatprep.subr.bf16.mxu0 0
  %399 = vmatpush1.bf16.msra.mxu0 0
  %400 = vmatprep.subr.bf16.mxu0 0
  %401 = vmatpush1.bf16.msra.mxu0 0
  %402 = vmatprep.subr.bf16.mxu0 0
  %403 = vmatpush1.bf16.msra.mxu0 0
  %404 = vmatprep.subr.bf16.mxu0 0
  %405 = vmatpush1.bf16.msra.mxu0 0
  %406 = vmatprep.subr.bf16.mxu0 0
  %407 = vmatpush1.bf16.msra.mxu0 0
  %408 = vmatprep.subr.bf16.mxu0 0
  %409 = vmatpush1.bf16.msra.mxu0 0
  %410 = vmatprep.subr.bf16.mxu0 0
  %411 = vmatpush1.bf16.msra.mxu0 0
  %412 = vmatprep.subr.bf16.mxu0 0
  %413 = vmatpush1.bf16.msra.mxu0 0
  %414 = vmatprep.subr.bf16.mxu0 0
  %415 = vmatpush1.bf16.msra.mxu0 0
  %416 = vmatprep.subr.bf16.mxu0 0
  %417 = vmatpush1.bf16.msra.mxu0 0
  %418 = vmatprep.subr.bf16.mxu0 0
  %419 = vmatpush1.bf16.msra.mxu0 0
  %420 = vmatprep.subr.bf16.mxu0 0
  %421 = vmatpush1.bf16.msra.mxu0 0
  %422 = vmatprep.subr.bf16.mxu0 0
  %423 = vmatpush1.bf16.msra.mxu0 0
  %424 = vmatprep.subr.bf16.mxu0 0
  %425 = vmatpush1.bf16.msra.mxu0 0
  %426 = vmatprep.mubr.bf16.mxu0 0
  %427 = vmatmul.mubr.bf16.gmra.mrb[0].mxu0 %v383
  %v428 = vpop.f32.mrb[0].mxu0
  %v429 = vadd.f32 0.0, %v428
  %v430 = vpop.f32.mrb[0].mxu0
  %v431 = vpop.f32.mrb[0].mxu0
  %v432 = vadd.f32 0.0, %v431
  %v433 = vpop.f32.mrb[0].mxu0
  %434 = vmatprep.mubr.bf16.mxu0 0
  %435 = vmatmul.mubr.bf16.gmra.mrb[0].mxu0 %v386
  %v436 = vpop.f32.mrb[0].mxu0
  %v437 = vadd.f32 0.0, %v436
  %v438 = vpop.f32.mrb[0].mxu0
  %v439 = vpop.f32.mrb[0].mxu0
  %v440 = vadd.f32 0.0, %v439
  %v441 = vpop.f32.mrb[0].mxu0
  %442 = vmatprep.mubr.bf16.mxu0 0
  %443 = vmatmul.mubr.bf16.gmra.mrb[0].mxu0 %v389
  %v444 = vpop.f32.mrb[0].mxu0
  %v445 = vadd.f32 0.0, %v444
  %v446 = vpop.f32.mrb[0].mxu0
  %v447 = vpop.f32.mrb[0].mxu0
  %v448 = vadd.f32 0.0, %v447
  %v449 = vpop.f32.mrb[0].mxu0
  %450 = vmatprep.mubr.bf16.mxu0 0
  %451 = vmatmul.mubr.bf16.gmra.mrb[0].mxu0 %v392
  %v452 = vpop.f32.mrb[0].mxu0
  %v453 = vadd.f32 0.0, %v452
  %v454 = vpop.f32.mrb[0].mxu0
  %v455 = vpop.f32.mrb[0].mxu0
  %v456 = vadd.f32 0.0, %v455
  %v457 = vpop.f32.mrb[0].mxu0
  %458 = vdwg.mxu0
  %v459 = vmul.f32 %v429, %v429
  %v460 = vmul.f32 %v432, %v432
  %v461 = vmul.f32 %v437, %v437
  %v462 = vmul.f32 %v440, %v440
  %v463 = vmul.f32 %v445, %v445
  %v464 = vmul.f32 %v448, %v448
  %v465 = vmul.f32 %v453, %v453
  %v466 = vmul.f32 %v456, %v456
  %v467 = vpack.c.bf16 %v460, %v459
  %v468 = vpack.c.bf16 %v462, %v461
  %v469 = vpack.c.bf16 %v464, %v463
  %v470 = vpack.c.bf16 %v466, %v465
  %v472 = vlaneseq
  %v473 = vshrl.u32 %v472, 7
  %v474 = vsub.s32 0, %v473
  %v475 = vrot.slane %v155, %v474
  %v493 = vunpack.c.l.b16 %v123
  %v494 = vunpack.c.l.b16 %v124
  %v495 = vunpack.c.l.b16 %v125
  %v496 = vunpack.c.l.b16 %v126
  %v497 = vunpack.c.l.b16 %v127
  %v498 = vunpack.c.l.b16 %v128
  %v499 = vunpack.c.l.b16 %v129
  %v500 = vunpack.c.l.b16 %v130
  %v501 = vunpack.c.l.b16 %v131
  %v502 = vunpack.c.l.b16 %v132
  %v503 = vunpack.c.l.b16 %v133
  %v504 = vunpack.c.l.b16 %v134
  %v505 = vunpack.c.l.b16 %v135
  %v506 = vunpack.c.l.b16 %v136
  %v507 = vunpack.c.l.b16 %v137
  %v508 = vunpack.c.l.b16 %v138
  %v509 = vpack.c.b16 %v494, %v493
  %v510 = vpack.c.b16 %v496, %v495
  %v511 = vpack.c.b16 %v498, %v497
  %v512 = vpack.c.b16 %v500, %v499
  %v513 = vpack.c.b16 %v502, %v501
  %v514 = vpack.c.b16 %v504, %v503
  %v515 = vpack.c.b16 %v506, %v505
  %v516 = vpack.c.b16 %v508, %v507
  %525 = vmatprep.subr.bf16.mxu0 0
  %526 = vmatpush1.bf16.msra.mxu0 %v509
  %527 = vmatprep.subr.bf16.mxu0 0
  %528 = vmatpush1.bf16.msra.mxu0 %v510
  %529 = vmatprep.subr.bf16.mxu0 0
  %530 = vmatpush1.bf16.msra.mxu0 %v511
  %531 = vmatprep.subr.bf16.mxu0 0
  %532 = vmatpush1.bf16.msra.mxu0 %v512
  %533 = vmatprep.subr.bf16.mxu0 0
  %534 = vmatpush1.bf16.msra.mxu0 %v513
  %535 = vmatprep.subr.bf16.mxu0 0
  %536 = vmatpush1.bf16.msra.mxu0 %v514
  %537 = vmatprep.subr.bf16.mxu0 0
  %538 = vmatpush1.bf16.msra.mxu0 %v515
  %539 = vmatprep.subr.bf16.mxu0 0
  %540 = vmatpush1.bf16.msra.mxu0 %v516
  %541 = vmatprep.subr.bf16.mxu0 0
  %542 = vmatpush1.bf16.msra.mxu0 0
  %543 = vmatprep.subr.bf16.mxu0 0
  %544 = vmatpush1.bf16.msra.mxu0 0
  %545 = vmatprep.subr.bf16.mxu0 0
  %546 = vmatpush1.bf16.msra.mxu0 0
  %547 = vmatprep.subr.bf16.mxu0 0
  %548 = vmatpush1.bf16.msra.mxu0 0
  %549 = vmatprep.subr.bf16.mxu0 0
  %550 = vmatpush1.bf16.msra.mxu0 0
  %551 = vmatprep.subr.bf16.mxu0 0
  %552 = vmatpush1.bf16.msra.mxu0 0
  %553 = vmatprep.subr.bf16.mxu0 0
  %554 = vmatpush1.bf16.msra.mxu0 0
  %555 = vmatprep.subr.bf16.mxu0 0
  %556 = vmatpush1.bf16.msra.mxu0 0
  %557 = vmatprep.mubr.bf16.mxu0 0
  %558 = vmatmul.mubr.bf16.gmra.mrb[0].mxu0 %v467
  %v559 = vpop.f32.mrb[0].mxu0
  %v560 = vadd.f32 %v475, %v559
  %v561 = vpop.f32.mrb[0].mxu0
  %v562 = vpop.f32.mrb[0].mxu0
  %v563 = vadd.f32 %v475, %v562
  %v564 = vpop.f32.mrb[0].mxu0
  %565 = vmatprep.mubr.bf16.mxu0 0
  %566 = vmatmul.mubr.bf16.gmra.mrb[0].mxu0 %v468
  %v567 = vpop.f32.mrb[0].mxu0
  %v568 = vadd.f32 %v475, %v567
  %v569 = vpop.f32.mrb[0].mxu0
  %v570 = vpop.f32.mrb[0].mxu0
  %v571 = vadd.f32 %v475, %v570
  %v572 = vpop.f32.mrb[0].mxu0
  %573 = vmatprep.mubr.bf16.mxu0 0
  %574 = vmatmul.mubr.bf16.gmra.mrb[0].mxu0 %v469
  %v575 = vpop.f32.mrb[0].mxu0
  %v576 = vadd.f32 %v475, %v575
  %v577 = vpop.f32.mrb[0].mxu0
  %v578 = vpop.f32.mrb[0].mxu0
  %v579 = vadd.f32 %v475, %v578
  %v580 = vpop.f32.mrb[0].mxu0
  %581 = vmatprep.mubr.bf16.mxu0 0
  %582 = vmatmul.mubr.bf16.gmra.mrb[0].mxu0 %v470
  %v583 = vpop.f32.mrb[0].mxu0
  %v584 = vadd.f32 %v475, %v583
  %v585 = vpop.f32.mrb[0].mxu0
  %v586 = vpop.f32.mrb[0].mxu0
  %v587 = vadd.f32 %v475, %v586
  %v588 = vpop.f32.mrb[0].mxu0
  %589 = vdwg.mxu0
  %v590 = vrsqrt.pop %v560
  %v591 = vrsqrt.pop %v563
  %v592 = vrsqrt.pop %v568
  %v593 = vrsqrt.pop %v571
  %v594 = vrsqrt.pop %v576
  %v595 = vrsqrt.pop %v579
  %v596 = vrsqrt.pop %v584
  %v597 = vrsqrt.pop %v587
  %v598 = vmul.f32 %v429, %v590
  %v599 = vmul.f32 %v432, %v591
  %v600 = vmul.f32 %v437, %v592
  %v601 = vmul.f32 %v440, %v593
  %v602 = vmul.f32 %v445, %v594
  %v603 = vmul.f32 %v448, %v595
  %v604 = vmul.f32 %v453, %v596
  %v605 = vmul.f32 %v456, %v597
  %v607 = vlaneseq
  %v608 = vshrl.u32 %v607, 7
  %v609 = vsub.s32 0, %v608
  %v610 = vrot.slane %v156, %v609
  %v612 = vmul.f32 %v598, %v610
  %v613 = vmul.f32 %v599, %v610
  %v614 = vmul.f32 %v600, %v610
  %v615 = vmul.f32 %v601, %v610
  %v616 = vmul.f32 %v602, %v610
  %v617 = vmul.f32 %v603, %v610
  %v618 = vmul.f32 %v604, %v610
  %v619 = vmul.f32 %v605, %v610
  %v620 = vld [vmem:[%s8] sm:$0xff]
  %v621 = vld [vmem:[%s8 + $0x8] sm:$0xff]
  %v622 = vld [vmem:[%s8 + $0x10] sm:$0xff]
  %v623 = vld [vmem:[%s8 + $0x18] sm:$0xff]
  %v624 = vld [vmem:[%s8 + $0x20] sm:$0xff]
  %v625 = vld [vmem:[%s8 + $0x28] sm:$0xff]
  %v626 = vld [vmem:[%s8 + $0x30] sm:$0xff]
  %v627 = vld [vmem:[%s8 + $0x38] sm:$0xff]
  %v628 = vmul.f32 %v612, %v620
  %v629 = vmul.f32 %v613, %v621
  %v630 = vmul.f32 %v614, %v622
  %v631 = vmul.f32 %v615, %v623
  %v632 = vmul.f32 %v616, %v624
  %v633 = vmul.f32 %v617, %v625
  %v634 = vmul.f32 %v618, %v626
  %v635 = vmul.f32 %v619, %v627
  %v636 = vpack.c.bf16 %v613, %v612
  %v637 = vpack.c.bf16 %v615, %v614
  %v638 = vpack.c.bf16 %v617, %v616
  %v639 = vpack.c.bf16 %v619, %v618
  %v656 = vunpack.c.l.b16 %v139
  %v657 = vunpack.c.l.b16 %v140
  %v658 = vunpack.c.l.b16 %v141
  %v659 = vunpack.c.l.b16 %v142
  %v660 = vunpack.c.l.b16 %v143
  %v661 = vunpack.c.l.b16 %v144
  %v662 = vunpack.c.l.b16 %v145
  %v663 = vunpack.c.l.b16 %v146
  %v664 = vunpack.c.l.b16 %v147
  %v665 = vunpack.c.l.b16 %v148
  %v666 = vunpack.c.l.b16 %v149
  %v667 = vunpack.c.l.b16 %v150
  %v668 = vunpack.c.l.b16 %v151
  %v669 = vunpack.c.l.b16 %v152
  %v670 = vunpack.c.l.b16 %v153
  %v671 = vunpack.c.l.b16 %v154
  %v672 = vpack.c.b16 %v657, %v656
  %v673 = vpack.c.b16 %v659, %v658
  %v674 = vpack.c.b16 %v661, %v660
  %v675 = vpack.c.b16 %v663, %v662
  %v676 = vpack.c.b16 %v665, %v664
  %v677 = vpack.c.b16 %v667, %v666
  %v678 = vpack.c.b16 %v669, %v668
  %v679 = vpack.c.b16 %v671, %v670
  %688 = vmatprep.subr.bf16.mxu0 0
  %689 = vmatpush1.bf16.msra.mxu0 %v672
  %690 = vmatprep.subr.bf16.mxu0 0
  %691 = vmatpush1.bf16.msra.mxu0 %v673
  %692 = vmatprep.subr.bf16.mxu0 0
  %693 = vmatpush1.bf16.msra.mxu0 %v674
  %694 = vmatprep.subr.bf16.mxu0 0
  %695 = vmatpush1.bf16.msra.mxu0 %v675
  %696 = vmatprep.subr.bf16.mxu0 0
  %697 = vmatpush1.bf16.msra.mxu0 %v676
  %698 = vmatprep.subr.bf16.mxu0 0
  %699 = vmatpush1.bf16.msra.mxu0 %v677
  %700 = vmatprep.subr.bf16.mxu0 0
  %701 = vmatpush1.bf16.msra.mxu0 %v678
  %702 = vmatprep.subr.bf16.mxu0 0
  %703 = vmatpush1.bf16.msra.mxu0 %v679
  %704 = vmatprep.subr.bf16.mxu0 0
  %705 = vmatpush1.bf16.msra.mxu0 0
  %706 = vmatprep.subr.bf16.mxu0 0
  %707 = vmatpush1.bf16.msra.mxu0 0
  %708 = vmatprep.subr.bf16.mxu0 0
  %709 = vmatpush1.bf16.msra.mxu0 0
  %710 = vmatprep.subr.bf16.mxu0 0
  %711 = vmatpush1.bf16.msra.mxu0 0
  %712 = vmatprep.subr.bf16.mxu0 0
  %713 = vmatpush1.bf16.msra.mxu0 0
  %714 = vmatprep.subr.bf16.mxu0 0
  %715 = vmatpush1.bf16.msra.mxu0 0
  %716 = vmatprep.subr.bf16.mxu0 0
  %717 = vmatpush1.bf16.msra.mxu0 0
  %718 = vmatprep.subr.bf16.mxu0 0
  %719 = vmatpush1.bf16.msra.mxu0 0
  %720 = vmatprep.mubr.bf16.mxu0 0
  %721 = vmatmul.mubr.bf16.gmra.mrb[0].mxu0 %v636
  %v722 = vpop.f32.mrb[0].mxu0
  %v723 = vadd.f32 0.0, %v722
  %v724 = vpop.f32.mrb[0].mxu0
  %v725 = vpop.f32.mrb[0].mxu0
  %v726 = vadd.f32 0.0, %v725
  %v727 = vpop.f32.mrb[0].mxu0
  %728 = vmatprep.mubr.bf16.mxu0 0
  %729 = vmatmul.mubr.bf16.gmra.mrb[0].mxu0 %v637
  %v730 = vpop.f32.mrb[0].mxu0
  %v731 = vadd.f32 0.0, %v730
  %v732 = vpop.f32.mrb[0].mxu0
  %v733 = vpop.f32.mrb[0].mxu0
  %v734 = vadd.f32 0.0, %v733
  %v735 = vpop.f32.mrb[0].mxu0
  %736 = vmatprep.mubr.bf16.mxu0 0
  %737 = vmatmul.mubr.bf16.gmra.mrb[0].mxu0 %v638
  %v738 = vpop.f32.mrb[0].mxu0
  %v739 = vadd.f32 0.0, %v738
  %v740 = vpop.f32.mrb[0].mxu0
  %v741 = vpop.f32.mrb[0].mxu0
  %v742 = vadd.f32 0.0, %v741
  %v743 = vpop.f32.mrb[0].mxu0
  %744 = vmatprep.mubr.bf16.mxu0 0
  %745 = vmatmul.mubr.bf16.gmra.mrb[0].mxu0 %v639
  %v746 = vpop.f32.mrb[0].mxu0
  %v747 = vadd.f32 0.0, %v746
  %v748 = vpop.f32.mrb[0].mxu0
  %v749 = vpop.f32.mrb[0].mxu0
  %v750 = vadd.f32 0.0, %v749
  %v751 = vpop.f32.mrb[0].mxu0
  %752 = vdwg.mxu0
  %v753 = vld [vmem:[%s9] sm:$0xff]
  %v754 = vld [vmem:[%s9 + $0x8] sm:$0xff]
  %v755 = vld [vmem:[%s9 + $0x10] sm:$0xff]
  %v756 = vld [vmem:[%s9 + $0x18] sm:$0xff]
  %v757 = vld [vmem:[%s9 + $0x20] sm:$0xff]
  %v758 = vld [vmem:[%s9 + $0x28] sm:$0xff]
  %v759 = vld [vmem:[%s9 + $0x30] sm:$0xff]
  %v760 = vld [vmem:[%s9 + $0x38] sm:$0xff]
  %v761 = vmul.f32 %v723, %v753
  %v762 = vmul.f32 %v726, %v754
  %v763 = vmul.f32 %v731, %v755
  %v764 = vmul.f32 %v734, %v756
  %v765 = vmul.f32 %v739, %v757
  %v766 = vmul.f32 %v742, %v758
  %v767 = vmul.f32 %v747, %v759
  %v768 = vmul.f32 %v750, %v760
  %v769 = vadd.f32 %v628, %v761
  %v770 = vadd.f32 %v629, %v762
  %v771 = vadd.f32 %v630, %v763
  %v772 = vadd.f32 %v631, %v764
  %v773 = vadd.f32 %v632, %v765
  %v774 = vadd.f32 %v633, %v766
  %v775 = vadd.f32 %v634, %v767
  %v776 = vadd.f32 %v635, %v768
  %809 = vrot.lane.b32.xlu0 %v75, 32
  %v810 = vpop.permute.xlu0 %809
  %811 = vrot.lane.b32.xlu0 %v76, 32
  %v812 = vpop.permute.xlu0 %811
  %813 = vrot.lane.b32.xlu0 %v77, 32
  %v814 = vpop.permute.xlu0 %813
  %815 = vrot.lane.b32.xlu0 %v78, 32
  %v816 = vpop.permute.xlu0 %815
  %817 = vrot.lane.b32.xlu0 %v79, 32
  %v818 = vpop.permute.xlu0 %817
  %819 = vrot.lane.b32.xlu0 %v80, 32
  %v820 = vpop.permute.xlu0 %819
  %821 = vrot.lane.b32.xlu0 %v81, 32
  %v822 = vpop.permute.xlu0 %821
  %823 = vrot.lane.b32.xlu0 %v82, 32
  %v824 = vpop.permute.xlu0 %823
  %825 = vrot.lane.b32.xlu0 %v83, 32
  %v826 = vpop.permute.xlu0 %825
  %827 = vrot.lane.b32.xlu0 %v84, 32
  %v828 = vpop.permute.xlu0 %827
  %829 = vrot.lane.b32.xlu0 %v85, 32
  %v830 = vpop.permute.xlu0 %829
  %831 = vrot.lane.b32.xlu0 %v86, 32
  %v832 = vpop.permute.xlu0 %831
  %833 = vrot.lane.b32.xlu0 %v87, 32
  %v834 = vpop.permute.xlu0 %833
  %835 = vrot.lane.b32.xlu0 %v88, 32
  %v836 = vpop.permute.xlu0 %835
  %837 = vrot.lane.b32.xlu0 %v89, 32
  %v838 = vpop.permute.xlu0 %837
  %839 = vrot.lane.b32.xlu0 %v90, 32
  %v840 = vpop.permute.xlu0 %839
  %841 = vrot.lane.b32.xlu0 %v91, 32
  %v842 = vpop.permute.xlu0 %841
  %843 = vrot.lane.b32.xlu0 %v92, 32
  %v844 = vpop.permute.xlu0 %843
  %845 = vrot.lane.b32.xlu0 %v93, 32
  %v846 = vpop.permute.xlu0 %845
  %847 = vrot.lane.b32.xlu0 %v94, 32
  %v848 = vpop.permute.xlu0 %847
  %849 = vrot.lane.b32.xlu0 %v95, 32
  %v850 = vpop.permute.xlu0 %849
  %851 = vrot.lane.b32.xlu0 %v96, 32
  %v852 = vpop.permute.xlu0 %851
  %853 = vrot.lane.b32.xlu0 %v97, 32
  %v854 = vpop.permute.xlu0 %853
  %855 = vrot.lane.b32.xlu0 %v98, 32
  %v856 = vpop.permute.xlu0 %855
  %857 = vrot.lane.b32.xlu0 %v99, 32
  %v858 = vpop.permute.xlu0 %857
  %859 = vrot.lane.b32.xlu0 %v100, 32
  %v860 = vpop.permute.xlu0 %859
  %861 = vrot.lane.b32.xlu0 %v101, 32
  %v862 = vpop.permute.xlu0 %861
  %863 = vrot.lane.b32.xlu0 %v102, 32
  %v864 = vpop.permute.xlu0 %863
  %865 = vrot.lane.b32.xlu0 %v103, 32
  %v866 = vpop.permute.xlu0 %865
  %867 = vrot.lane.b32.xlu0 %v104, 32
  %v868 = vpop.permute.xlu0 %867
  %869 = vrot.lane.b32.xlu0 %v105, 32
  %v870 = vpop.permute.xlu0 %869
  %871 = vrot.lane.b32.xlu0 %v106, 32
  %v872 = vpop.permute.xlu0 %871
  %v905 = vmul.f32 %v769, %v810
  %v906 = vmul.f32 %v770, %v812
  %v907 = vmul.f32 %v771, %v814
  %v908 = vmul.f32 %v772, %v816
  %v909 = vmul.f32 %v773, %v818
  %v910 = vmul.f32 %v774, %v820
  %v911 = vmul.f32 %v775, %v822
  %v912 = vmul.f32 %v776, %v824
  %v913 = vmul.f32 %v769, %v826
  %v914 = vmul.f32 %v770, %v828
  %v915 = vmul.f32 %v771, %v830
  %v916 = vmul.f32 %v772, %v832
  %v917 = vmul.f32 %v773, %v834
  %v918 = vmul.f32 %v774, %v836
  %v919 = vmul.f32 %v775, %v838
  %v920 = vmul.f32 %v776, %v840
  %v921 = vmul.f32 %v769, %v842
  %v922 = vmul.f32 %v770, %v844
  %v923 = vmul.f32 %v771, %v846
  %v924 = vmul.f32 %v772, %v848
  %v925 = vmul.f32 %v773, %v850
  %v926 = vmul.f32 %v774, %v852
  %v927 = vmul.f32 %v775, %v854
  %v928 = vmul.f32 %v776, %v856
  %v929 = vmul.f32 %v769, %v858
  %v930 = vmul.f32 %v770, %v860
  %v931 = vmul.f32 %v771, %v862
  %v932 = vmul.f32 %v772, %v864
  %v933 = vmul.f32 %v773, %v866
  %v934 = vmul.f32 %v774, %v868
  %v935 = vmul.f32 %v775, %v870
  %v936 = vmul.f32 %v776, %v872
  %v937 = vpack.c.bf16 %v906, %v905
  %v938 = vpack.c.bf16 %v908, %v907
  %v939 = vpack.c.bf16 %v910, %v909
  %v940 = vpack.c.bf16 %v912, %v911
  %v941 = vpack.c.bf16 %v914, %v913
  %v942 = vpack.c.bf16 %v916, %v915
  %v943 = vpack.c.bf16 %v918, %v917
  %v944 = vpack.c.bf16 %v920, %v919
  %v945 = vpack.c.bf16 %v922, %v921
  %v946 = vpack.c.bf16 %v924, %v923
  %v947 = vpack.c.bf16 %v926, %v925
  %v948 = vpack.c.bf16 %v928, %v927
  %v949 = vpack.c.bf16 %v930, %v929
  %v950 = vpack.c.bf16 %v932, %v931
  %v951 = vpack.c.bf16 %v934, %v933
  %v952 = vpack.c.bf16 %v936, %v935
  %v953 = vpack.c.bf16 %v770, %v769
  %v954 = vpack.c.bf16 %v772, %v771
  %v955 = vpack.c.bf16 %v774, %v773
  %v956 = vpack.c.bf16 %v776, %v775
  %973 = vrot.lane.b32.xlu0 %v937, 96
  %v974 = vpop.permute.xlu0 %973
  %975 = vrot.lane.b32.xlu0 %v938, 96
  %v976 = vpop.permute.xlu0 %975
  %977 = vrot.lane.b32.xlu0 %v939, 96
  %v978 = vpop.permute.xlu0 %977
  %979 = vrot.lane.b32.xlu0 %v940, 96
  %v980 = vpop.permute.xlu0 %979
  %981 = vrot.lane.b32.xlu0 %v941, 96
  %v982 = vpop.permute.xlu0 %981
  %983 = vrot.lane.b32.xlu0 %v942, 96
  %v984 = vpop.permute.xlu0 %983
  %985 = vrot.lane.b32.xlu0 %v943, 96
  %v986 = vpop.permute.xlu0 %985
  %987 = vrot.lane.b32.xlu0 %v944, 96
  %v988 = vpop.permute.xlu0 %987
  %989 = vrot.lane.b32.xlu0 %v945, 96
  %v990 = vpop.permute.xlu0 %989
  %991 = vrot.lane.b32.xlu0 %v946, 96
  %v992 = vpop.permute.xlu0 %991
  %993 = vrot.lane.b32.xlu0 %v947, 96
  %v994 = vpop.permute.xlu0 %993
  %995 = vrot.lane.b32.xlu0 %v948, 96
  %v996 = vpop.permute.xlu0 %995
  %997 = vrot.lane.b32.xlu0 %v949, 96
  %v998 = vpop.permute.xlu0 %997
  %999 = vrot.lane.b32.xlu0 %v950, 96
  %v1000 = vpop.permute.xlu0 %999
  %1001 = vrot.lane.b32.xlu0 %v951, 96
  %v1002 = vpop.permute.xlu0 %1001
  %1003 = vrot.lane.b32.xlu0 %v952, 96
  %v1004 = vpop.permute.xlu0 %1003
  %v1006 = vsel %vm274, %v953, 0
  %v1009 = vsel %vm274, %v954, 0
  %v1012 = vsel %vm274, %v955, 0
  %v1015 = vsel %vm274, %v956, 0
  %v1018 = vsel %vm274, %v974, 0
  %v1021 = vsel %vm274, %v976, 0
  %v1024 = vsel %vm274, %v978, 0
  %v1027 = vsel %vm274, %v980, 0
  %v1030 = vsel %vm274, %v982, 0
  %v1033 = vsel %vm274, %v984, 0
  %v1036 = vsel %vm274, %v986, 0
  %v1039 = vsel %vm274, %v988, 0
  %v1042 = vsel %vm274, %v990, 0
  %v1045 = vsel %vm274, %v992, 0
  %v1048 = vsel %vm274, %v994, 0
  %v1051 = vsel %vm274, %v996, 0
  %v1054 = vsel %vm274, %v998, 0
  %v1057 = vsel %vm274, %v1000, 0
  %v1060 = vsel %vm274, %v1002, 0
  %v1063 = vsel %vm274, %v1004, 0
  %1065 = vmatprep.subr.bf16.mxu0 0
  %1066 = vmatpush1.bf16.xpose.msra.mxu0 %v1018
  %1067 = vmatprep.subr.bf16.mxu0 0
  %1068 = vmatpush1.bf16.xpose.msra.mxu0 %v1021
  %1069 = vmatprep.subr.bf16.mxu0 0
  %1070 = vmatpush1.bf16.xpose.msra.mxu0 %v1024
  %1071 = vmatprep.subr.bf16.mxu0 0
  %1072 = vmatpush1.bf16.xpose.msra.mxu0 %v1027
  %1073 = vmatprep.subr.bf16.mxu0 0
  %1074 = vmatpush1.bf16.xpose.msra.mxu0 %v1030
  %1075 = vmatprep.subr.bf16.mxu0 0
  %1076 = vmatpush1.bf16.xpose.msra.mxu0 %v1033
  %1077 = vmatprep.subr.bf16.mxu0 0
  %1078 = vmatpush1.bf16.xpose.msra.mxu0 %v1036
  %1079 = vmatprep.subr.bf16.mxu0 0
  %1080 = vmatpush1.bf16.xpose.msra.mxu0 %v1039
  %1081 = vmatprep.subr.bf16.mxu0 0
  %1082 = vmatpush1.bf16.xpose.msra.mxu0 %v1042
  %1083 = vmatprep.subr.bf16.mxu0 0
  %1084 = vmatpush1.bf16.xpose.msra.mxu0 %v1045
  %1085 = vmatprep.subr.bf16.mxu0 0
  %1086 = vmatpush1.bf16.xpose.msra.mxu0 %v1048
  %1087 = vmatprep.subr.bf16.mxu0 0
  %1088 = vmatpush1.bf16.xpose.msra.mxu0 %v1051
  %1089 = vmatprep.subr.bf16.mxu0 0
  %1090 = vmatpush1.bf16.xpose.msra.mxu0 %v1054
  %1091 = vmatprep.subr.bf16.mxu0 0
  %1092 = vmatpush1.bf16.xpose.msra.mxu0 %v1057
  %1093 = vmatprep.subr.bf16.mxu0 0
  %1094 = vmatpush1.bf16.xpose.msra.mxu0 %v1060
  %1095 = vmatprep.subr.bf16.mxu0 0
  %1096 = vmatpush1.bf16.xpose.msra.mxu0 %v1063
  %1097 = vmatprep.mubr.bf16.mxu0 0
  %1098 = vmatmul.mubr.bf16.gmra.mrb[0].mxu0 %v1006
  %v1099 = vpop.f32.mrb[0].mxu0
  %v1100 = vadd.f32 0.0, %v1099
  %v1101 = vpop.f32.mrb[0].mxu0
  %v1102 = vadd.f32 0.0, %v1101
  %v1103 = vpop.f32.mrb[0].mxu0
  %v1104 = vadd.f32 0.0, %v1103
  %v1105 = vpop.f32.mrb[0].mxu0
  %v1106 = vadd.f32 0.0, %v1105
  %1107 = vmatprep.mubr.bf16.mxu0 0
  %1108 = vmatmul.mubr.bf16.gmra.mrb[0].mxu0 %v1009
  %v1109 = vpop.f32.mrb[0].mxu0
  %v1110 = vadd.f32 0.0, %v1109
  %v1111 = vpop.f32.mrb[0].mxu0
  %v1112 = vadd.f32 0.0, %v1111
  %v1113 = vpop.f32.mrb[0].mxu0
  %v1114 = vadd.f32 0.0, %v1113
  %v1115 = vpop.f32.mrb[0].mxu0
  %v1116 = vadd.f32 0.0, %v1115
  %1117 = vmatprep.mubr.bf16.mxu0 0
  %1118 = vmatmul.mubr.bf16.gmra.mrb[0].mxu0 %v1012
  %v1119 = vpop.f32.mrb[0].mxu0
  %v1120 = vadd.f32 0.0, %v1119
  %v1121 = vpop.f32.mrb[0].mxu0
  %v1122 = vadd.f32 0.0, %v1121
  %v1123 = vpop.f32.mrb[0].mxu0
  %v1124 = vadd.f32 0.0, %v1123
  %v1125 = vpop.f32.mrb[0].mxu0
  %v1126 = vadd.f32 0.0, %v1125
  %1127 = vmatprep.mubr.bf16.mxu0 0
  %1128 = vmatmul.mubr.bf16.gmra.mrb[0].mxu0 %v1015
  %v1129 = vpop.f32.mrb[0].mxu0
  %v1130 = vadd.f32 0.0, %v1129
  %v1131 = vpop.f32.mrb[0].mxu0
  %v1132 = vadd.f32 0.0, %v1131
  %v1133 = vpop.f32.mrb[0].mxu0
  %v1134 = vadd.f32 0.0, %v1133
  %v1135 = vpop.f32.mrb[0].mxu0
  %v1136 = vadd.f32 0.0, %v1135
  %1137 = vdwg.mxu0
  %v1138 = vmul.f32 %v1100, 0.35355338
  %v1139 = vmul.f32 %v1102, 0.35355338
  %v1140 = vmul.f32 %v1104, 0.35355338
  %v1141 = vmul.f32 %v1106, 0.35355338
  %v1142 = vmul.f32 %v1110, 0.35355338
  %v1143 = vmul.f32 %v1112, 0.35355338
  %v1144 = vmul.f32 %v1114, 0.35355338
  %v1145 = vmul.f32 %v1116, 0.35355338
  %v1146 = vmul.f32 %v1120, 0.35355338
  %v1147 = vmul.f32 %v1122, 0.35355338
  %v1148 = vmul.f32 %v1124, 0.35355338
  %v1149 = vmul.f32 %v1126, 0.35355338
  %v1150 = vmul.f32 %v1130, 0.35355338
  %v1151 = vmul.f32 %v1132, 0.35355338
  %v1152 = vmul.f32 %v1134, 0.35355338
  %v1153 = vmul.f32 %v1136, 0.35355338
  %v1154 = vld [vmem:[%s7] sm:$0x3]
  %v1156 = vlaneseq
  %v1157 = vshrl.u32 %v1156, 7
  %v1158 = vsub.s32 0, %v1157
  %v1159 = vrot.slane %v1154, %v1158
  %v1160 = vlaneseq
  %v1161 = vshrl.u32 %v1160, 7
  %v1162 = vsub.s32 1, %v1161
  %v1163 = vrot.slane %v1154, %v1162
  %v1166 = vadd.f32 %v1138, %v1159
  %v1167 = vadd.f32 %v1139, %v1163
  %v1168 = vadd.f32 %v1140, %v1159
  %v1169 = vadd.f32 %v1141, %v1163
  %v1170 = vadd.f32 %v1142, %v1159
  %v1171 = vadd.f32 %v1143, %v1163
  %v1172 = vadd.f32 %v1144, %v1159
  %v1173 = vadd.f32 %v1145, %v1163
  %v1174 = vadd.f32 %v1146, %v1159
  %v1175 = vadd.f32 %v1147, %v1163
  %v1176 = vadd.f32 %v1148, %v1159
  %v1177 = vadd.f32 %v1149, %v1163
  %v1178 = vadd.f32 %v1150, %v1159
  %v1179 = vadd.f32 %v1151, %v1163
  %v1180 = vadd.f32 %v1152, %v1159
  %v1181 = vadd.f32 %v1153, %v1163
  %v1182 = vmax.f32 %v1166, %v1167
  %1183 = vmax.xlane.f32.xlu0 %v1182
  %v1184 = vpop.xlane.xlu0 %1183
  %v1185 = vmax.f32 %v1168, %v1169
  %1186 = vmax.xlane.f32.xlu0 %v1185
  %v1187 = vpop.xlane.xlu0 %1186
  %v1188 = vmax.f32 %v1170, %v1171
  %1189 = vmax.xlane.f32.xlu0 %v1188
  %v1190 = vpop.xlane.xlu0 %1189
  %v1191 = vmax.f32 %v1172, %v1173
  %1192 = vmax.xlane.f32.xlu0 %v1191
  %v1193 = vpop.xlane.xlu0 %1192
  %v1194 = vmax.f32 %v1174, %v1175
  %1195 = vmax.xlane.f32.xlu0 %v1194
  %v1196 = vpop.xlane.xlu0 %1195
  %v1197 = vmax.f32 %v1176, %v1177
  %1198 = vmax.xlane.f32.xlu0 %v1197
  %v1199 = vpop.xlane.xlu0 %1198
  %v1200 = vmax.f32 %v1178, %v1179
  %1201 = vmax.xlane.f32.xlu0 %v1200
  %v1202 = vpop.xlane.xlu0 %1201
  %v1203 = vmax.f32 %v1180, %v1181
  %1204 = vmax.xlane.f32.xlu0 %v1203
  %v1205 = vpop.xlane.xlu0 %1204
  %v1206 = vsub.f32 %v1166, %v1184
  %v1207 = vsub.f32 %v1167, %v1184
  %v1208 = vsub.f32 %v1168, %v1187
  %v1209 = vsub.f32 %v1169, %v1187
  %v1210 = vsub.f32 %v1170, %v1190
  %v1211 = vsub.f32 %v1171, %v1190
  %v1212 = vsub.f32 %v1172, %v1193
  %v1213 = vsub.f32 %v1173, %v1193
  %v1214 = vsub.f32 %v1174, %v1196
  %v1215 = vsub.f32 %v1175, %v1196
  %v1216 = vsub.f32 %v1176, %v1199
  %v1217 = vsub.f32 %v1177, %v1199
  %v1218 = vsub.f32 %v1178, %v1202
  %v1219 = vsub.f32 %v1179, %v1202
  %v1220 = vsub.f32 %v1180, %v1205
  %v1221 = vsub.f32 %v1181, %v1205
  %v1222 = vmul.f32 %v1206, 1.442695
  %v1223 = vpow.pop %v1222
  %v1224 = vmul.f32 %v1207, 1.442695
  %v1225 = vpow.pop %v1224
  %v1226 = vmul.f32 %v1208, 1.442695
  %v1227 = vpow.pop %v1226
  %v1228 = vmul.f32 %v1209, 1.442695
  %v1229 = vpow.pop %v1228
  %v1230 = vmul.f32 %v1210, 1.442695
  %v1231 = vpow.pop %v1230
  %v1232 = vmul.f32 %v1211, 1.442695
  %v1233 = vpow.pop %v1232
  %v1234 = vmul.f32 %v1212, 1.442695
  %v1235 = vpow.pop %v1234
  %v1236 = vmul.f32 %v1213, 1.442695
  %v1237 = vpow.pop %v1236
  %v1238 = vmul.f32 %v1214, 1.442695
  %v1239 = vpow.pop %v1238
  %v1240 = vmul.f32 %v1215, 1.442695
  %v1241 = vpow.pop %v1240
  %v1242 = vmul.f32 %v1216, 1.442695
  %v1243 = vpow.pop %v1242
  %v1244 = vmul.f32 %v1217, 1.442695
  %v1245 = vpow.pop %v1244
  %v1246 = vmul.f32 %v1218, 1.442695
  %v1247 = vpow.pop %v1246
  %v1248 = vmul.f32 %v1219, 1.442695
  %v1249 = vpow.pop %v1248
  %v1250 = vmul.f32 %v1220, 1.442695
  %v1251 = vpow.pop %v1250
  %v1252 = vmul.f32 %v1221, 1.442695
  %v1253 = vpow.pop %v1252
  %v1254 = vpack.c.bf16 %v1227, %v1223
  %v1255 = vpack.c.bf16 %v1229, %v1225
  %v1256 = vpack.c.bf16 %v1235, %v1231
  %v1257 = vpack.c.bf16 %v1237, %v1233
  %v1258 = vpack.c.bf16 %v1243, %v1239
  %v1259 = vpack.c.bf16 %v1245, %v1241
  %v1260 = vpack.c.bf16 %v1251, %v1247
  %v1261 = vpack.c.bf16 %v1253, %v1249
  %1262 = vrot.lane.b32.xlu0 %v75, 64
  %v1263 = vpop.permute.xlu0 %1262
  %1264 = vrot.lane.b32.xlu0 %v76, 64
  %v1265 = vpop.permute.xlu0 %1264
  %1266 = vrot.lane.b32.xlu0 %v77, 64
  %v1267 = vpop.permute.xlu0 %1266
  %1268 = vrot.lane.b32.xlu0 %v78, 64
  %v1269 = vpop.permute.xlu0 %1268
  %1270 = vrot.lane.b32.xlu0 %v79, 64
  %v1271 = vpop.permute.xlu0 %1270
  %1272 = vrot.lane.b32.xlu0 %v80, 64
  %v1273 = vpop.permute.xlu0 %1272
  %1274 = vrot.lane.b32.xlu0 %v81, 64
  %v1275 = vpop.permute.xlu0 %1274
  %1276 = vrot.lane.b32.xlu0 %v82, 64
  %v1277 = vpop.permute.xlu0 %1276
  %1278 = vrot.lane.b32.xlu0 %v83, 64
  %v1279 = vpop.permute.xlu0 %1278
  %1280 = vrot.lane.b32.xlu0 %v84, 64
  %v1281 = vpop.permute.xlu0 %1280
  %1282 = vrot.lane.b32.xlu0 %v85, 64
  %v1283 = vpop.permute.xlu0 %1282
  %1284 = vrot.lane.b32.xlu0 %v86, 64
  %v1285 = vpop.permute.xlu0 %1284
  %1286 = vrot.lane.b32.xlu0 %v87, 64
  %v1287 = vpop.permute.xlu0 %1286
  %1288 = vrot.lane.b32.xlu0 %v88, 64
  %v1289 = vpop.permute.xlu0 %1288
  %1290 = vrot.lane.b32.xlu0 %v89, 64
  %v1291 = vpop.permute.xlu0 %1290
  %1292 = vrot.lane.b32.xlu0 %v90, 64
  %v1293 = vpop.permute.xlu0 %1292
  %1294 = vrot.lane.b32.xlu0 %v91, 64
  %v1295 = vpop.permute.xlu0 %1294
  %1296 = vrot.lane.b32.xlu0 %v92, 64
  %v1297 = vpop.permute.xlu0 %1296
  %1298 = vrot.lane.b32.xlu0 %v93, 64
  %v1299 = vpop.permute.xlu0 %1298
  %1300 = vrot.lane.b32.xlu0 %v94, 64
  %v1301 = vpop.permute.xlu0 %1300
  %1302 = vrot.lane.b32.xlu0 %v95, 64
  %v1303 = vpop.permute.xlu0 %1302
  %1304 = vrot.lane.b32.xlu0 %v96, 64
  %v1305 = vpop.permute.xlu0 %1304
  %1306 = vrot.lane.b32.xlu0 %v97, 64
  %v1307 = vpop.permute.xlu0 %1306
  %1308 = vrot.lane.b32.xlu0 %v98, 64
  %v1309 = vpop.permute.xlu0 %1308
  %1310 = vrot.lane.b32.xlu0 %v99, 64
  %v1311 = vpop.permute.xlu0 %1310
  %1312 = vrot.lane.b32.xlu0 %v100, 64
  %v1313 = vpop.permute.xlu0 %1312
  %1314 = vrot.lane.b32.xlu0 %v101, 64
  %v1315 = vpop.permute.xlu0 %1314
  %1316 = vrot.lane.b32.xlu0 %v102, 64
  %v1317 = vpop.permute.xlu0 %1316
  %1318 = vrot.lane.b32.xlu0 %v103, 64
  %v1319 = vpop.permute.xlu0 %1318
  %1320 = vrot.lane.b32.xlu0 %v104, 64
  %v1321 = vpop.permute.xlu0 %1320
  %1322 = vrot.lane.b32.xlu0 %v105, 64
  %v1323 = vpop.permute.xlu0 %1322
  %1324 = vrot.lane.b32.xlu0 %v106, 64
  %v1325 = vpop.permute.xlu0 %1324
  %v1358 = vmul.f32 %v769, %v1263
  %v1359 = vmul.f32 %v770, %v1265
  %v1360 = vmul.f32 %v771, %v1267
  %v1361 = vmul.f32 %v772, %v1269
  %v1362 = vmul.f32 %v773, %v1271
  %v1363 = vmul.f32 %v774, %v1273
  %v1364 = vmul.f32 %v775, %v1275
  %v1365 = vmul.f32 %v776, %v1277
  %v1366 = vmul.f32 %v769, %v1279
  %v1367 = vmul.f32 %v770, %v1281
  %v1368 = vmul.f32 %v771, %v1283
  %v1369 = vmul.f32 %v772, %v1285
  %v1370 = vmul.f32 %v773, %v1287
  %v1371 = vmul.f32 %v774, %v1289
  %v1372 = vmul.f32 %v775, %v1291
  %v1373 = vmul.f32 %v776, %v1293
  %v1374 = vmul.f32 %v769, %v1295
  %v1375 = vmul.f32 %v770, %v1297
  %v1376 = vmul.f32 %v771, %v1299
  %v1377 = vmul.f32 %v772, %v1301
  %v1378 = vmul.f32 %v773, %v1303
  %v1379 = vmul.f32 %v774, %v1305
  %v1380 = vmul.f32 %v775, %v1307
  %v1381 = vmul.f32 %v776, %v1309
  %v1382 = vmul.f32 %v769, %v1311
  %v1383 = vmul.f32 %v770, %v1313
  %v1384 = vmul.f32 %v771, %v1315
  %v1385 = vmul.f32 %v772, %v1317
  %v1386 = vmul.f32 %v773, %v1319
  %v1387 = vmul.f32 %v774, %v1321
  %v1388 = vmul.f32 %v775, %v1323
  %v1389 = vmul.f32 %v776, %v1325
  %v1390 = vpack.c.bf16 %v1359, %v1358
  %v1391 = vpack.c.bf16 %v1361, %v1360
  %v1392 = vpack.c.bf16 %v1363, %v1362
  %v1393 = vpack.c.bf16 %v1365, %v1364
  %v1394 = vpack.c.bf16 %v1367, %v1366
  %v1395 = vpack.c.bf16 %v1369, %v1368
  %v1396 = vpack.c.bf16 %v1371, %v1370
  %v1397 = vpack.c.bf16 %v1373, %v1372
  %v1398 = vpack.c.bf16 %v1375, %v1374
  %v1399 = vpack.c.bf16 %v1377, %v1376
  %v1400 = vpack.c.bf16 %v1379, %v1378
  %v1401 = vpack.c.bf16 %v1381, %v1380
  %v1402 = vpack.c.bf16 %v1383, %v1382
  %v1403 = vpack.c.bf16 %v1385, %v1384
  %v1404 = vpack.c.bf16 %v1387, %v1386
  %v1405 = vpack.c.bf16 %v1389, %v1388
  %1422 = vrot.lane.b32.xlu0 %v1390, 64
  %v1423 = vpop.permute.xlu0 %1422
  %1424 = vrot.lane.b32.xlu0 %v1391, 64
  %v1425 = vpop.permute.xlu0 %1424
  %1426 = vrot.lane.b32.xlu0 %v1392, 64
  %v1427 = vpop.permute.xlu0 %1426
  %1428 = vrot.lane.b32.xlu0 %v1393, 64
  %v1429 = vpop.permute.xlu0 %1428
  %1430 = vrot.lane.b32.xlu0 %v1394, 64
  %v1431 = vpop.permute.xlu0 %1430
  %1432 = vrot.lane.b32.xlu0 %v1395, 64
  %v1433 = vpop.permute.xlu0 %1432
  %1434 = vrot.lane.b32.xlu0 %v1396, 64
  %v1435 = vpop.permute.xlu0 %1434
  %1436 = vrot.lane.b32.xlu0 %v1397, 64
  %v1437 = vpop.permute.xlu0 %1436
  %1438 = vrot.lane.b32.xlu0 %v1398, 64
  %v1439 = vpop.permute.xlu0 %1438
  %1440 = vrot.lane.b32.xlu0 %v1399, 64
  %v1441 = vpop.permute.xlu0 %1440
  %1442 = vrot.lane.b32.xlu0 %v1400, 64
  %v1443 = vpop.permute.xlu0 %1442
  %1444 = vrot.lane.b32.xlu0 %v1401, 64
  %v1445 = vpop.permute.xlu0 %1444
  %1446 = vrot.lane.b32.xlu0 %v1402, 64
  %v1447 = vpop.permute.xlu0 %1446
  %1448 = vrot.lane.b32.xlu0 %v1403, 64
  %v1449 = vpop.permute.xlu0 %1448
  %1450 = vrot.lane.b32.xlu0 %v1404, 64
  %v1451 = vpop.permute.xlu0 %1450
  %1452 = vrot.lane.b32.xlu0 %v1405, 64
  %v1453 = vpop.permute.xlu0 %1452
  %1470 = vmatprep.subr.bf16.mxu0 0
  %1471 = vmatpush1.bf16.msra.mxu0 %v1423
  %1472 = vmatprep.subr.bf16.mxu0 0
  %1473 = vmatpush1.bf16.msra.mxu0 %v1425
  %1474 = vmatprep.subr.bf16.mxu0 0
  %1475 = vmatpush1.bf16.msra.mxu0 %v1427
  %1476 = vmatprep.subr.bf16.mxu0 0
  %1477 = vmatpush1.bf16.msra.mxu0 %v1429
  %1478 = vmatprep.subr.bf16.mxu0 0
  %1479 = vmatpush1.bf16.msra.mxu0 %v1431
  %1480 = vmatprep.subr.bf16.mxu0 0
  %1481 = vmatpush1.bf16.msra.mxu0 %v1433
  %1482 = vmatprep.subr.bf16.mxu0 0
  %1483 = vmatpush1.bf16.msra.mxu0 %v1435
  %1484 = vmatprep.subr.bf16.mxu0 0
  %1485 = vmatpush1.bf16.msra.mxu0 %v1437
  %1486 = vmatprep.subr.bf16.mxu0 0
  %1487 = vmatpush1.bf16.msra.mxu0 %v1439
  %1488 = vmatprep.subr.bf16.mxu0 0
  %1489 = vmatpush1.bf16.msra.mxu0 %v1441
  %1490 = vmatprep.subr.bf16.mxu0 0
  %1491 = vmatpush1.bf16.msra.mxu0 %v1443
  %1492 = vmatprep.subr.bf16.mxu0 0
  %1493 = vmatpush1.bf16.msra.mxu0 %v1445
  %1494 = vmatprep.subr.bf16.mxu0 0
  %1495 = vmatpush1.bf16.msra.mxu0 %v1447
  %1496 = vmatprep.subr.bf16.mxu0 0
  %1497 = vmatpush1.bf16.msra.mxu0 %v1449
  %1498 = vmatprep.subr.bf16.mxu0 0
  %1499 = vmatpush1.bf16.msra.mxu0 %v1451
  %1500 = vmatprep.subr.bf16.mxu0 0
  %1501 = vmatpush1.bf16.msra.mxu0 %v1453
  %1502 = vmatprep.mubr.bf16.mxu0 %v1255
  %1503 = vmatmul.mubr.bf16.gmra.mrb[0].mxu0 %v1254
  %v1504 = vpop.f32.mrb[0].mxu0
  %v1505 = vadd.f32 0.0, %v1504
  %v1506 = vpop.f32.mrb[0].mxu0
  %v1507 = vpop.f32.mrb[0].mxu0
  %v1508 = vadd.f32 0.0, %v1507
  %v1509 = vpop.f32.mrb[0].mxu0
  %1510 = vmatprep.mubr.bf16.mxu0 %v1257
  %1511 = vmatmul.mubr.bf16.gmra.mrb[0].mxu0 %v1256
  %v1512 = vpop.f32.mrb[0].mxu0
  %v1513 = vadd.f32 0.0, %v1512
  %v1514 = vpop.f32.mrb[0].mxu0
  %v1515 = vpop.f32.mrb[0].mxu0
  %v1516 = vadd.f32 0.0, %v1515
  %v1517 = vpop.f32.mrb[0].mxu0
  %1518 = vmatprep.mubr.bf16.mxu0 %v1259
  %1519 = vmatmul.mubr.bf16.gmra.mrb[0].mxu0 %v1258
  %v1520 = vpop.f32.mrb[0].mxu0
  %v1521 = vadd.f32 0.0, %v1520
  %v1522 = vpop.f32.mrb[0].mxu0
  %v1523 = vpop.f32.mrb[0].mxu0
  %v1524 = vadd.f32 0.0, %v1523
  %v1525 = vpop.f32.mrb[0].mxu0
  %1526 = vmatprep.mubr.bf16.mxu0 %v1261
  %1527 = vmatmul.mubr.bf16.gmra.mrb[0].mxu0 %v1260
  %v1528 = vpop.f32.mrb[0].mxu0
  %v1529 = vadd.f32 0.0, %v1528
  %v1530 = vpop.f32.mrb[0].mxu0
  %v1531 = vpop.f32.mrb[0].mxu0
  %v1532 = vadd.f32 0.0, %v1531
  %v1533 = vpop.f32.mrb[0].mxu0
  %1534 = vdwg.mxu0
  %1535 = vmatprep.subr.bf16.mxu0 0
  %1536 = vmatpush1.bf16.msra.mxu0 %v107
  %1537 = vmatprep.subr.bf16.mxu0 0
  %1538 = vmatpush1.bf16.msra.mxu0 %v108
  %1539 = vmatprep.subr.bf16.mxu0 0
  %1540 = vmatpush1.bf16.msra.mxu0 %v109
  %1541 = vmatprep.subr.bf16.mxu0 0
  %1542 = vmatpush1.bf16.msra.mxu0 %v110
  %1543 = vmatprep.subr.bf16.mxu0 0
  %1544 = vmatpush1.bf16.msra.mxu0 %v111
  %1545 = vmatprep.subr.bf16.mxu0 0
  %1546 = vmatpush1.bf16.msra.mxu0 %v112
  %1547 = vmatprep.subr.bf16.mxu0 0
  %1548 = vmatpush1.bf16.msra.mxu0 %v113
  %1549 = vmatprep.subr.bf16.mxu0 0
  %1550 = vmatpush1.bf16.msra.mxu0 %v114
  %1551 = vmatprep.subr.bf16.mxu0 0
  %1552 = vmatpush1.bf16.msra.mxu0 %v115
  %1553 = vmatprep.subr.bf16.mxu0 0
  %1554 = vmatpush1.bf16.msra.mxu0 %v116
  %1555 = vmatprep.subr.bf16.mxu0 0
  %1556 = vmatpush1.bf16.msra.mxu0 %v117
  %1557 = vmatprep.subr.bf16.mxu0 0
  %1558 = vmatpush1.bf16.msra.mxu0 %v118
  %1559 = vmatprep.subr.bf16.mxu0 0
  %1560 = vmatpush1.bf16.msra.mxu0 %v119
  %1561 = vmatprep.subr.bf16.mxu0 0
  %1562 = vmatpush1.bf16.msra.mxu0 %v120
  %1563 = vmatprep.subr.bf16.mxu0 0
  %1564 = vmatpush1.bf16.msra.mxu0 %v121
  %1565 = vmatprep.subr.bf16.mxu0 0
  %1566 = vmatpush1.bf16.msra.mxu0 %v122
  %1567 = vmatprep.mubr.bf16.mxu0 %v1255
  %1568 = vmatmul.mubr.bf16.gmra.mrb[0].mxu0 %v1254
  %v1569 = vpop.f32.mrb[0].mxu0
  %v1570 = vadd.f32 0.0, %v1569
  %v1571 = vpop.f32.mrb[0].mxu0
  %v1572 = vpop.f32.mrb[0].mxu0
  %v1573 = vadd.f32 0.0, %v1572
  %v1574 = vpop.f32.mrb[0].mxu0
  %1575 = vmatprep.mubr.bf16.mxu0 %v1257
  %1576 = vmatmul.mubr.bf16.gmra.mrb[0].mxu0 %v1256
  %v1577 = vpop.f32.mrb[0].mxu0
  %v1578 = vadd.f32 0.0, %v1577
  %v1579 = vpop.f32.mrb[0].mxu0
  %v1580 = vpop.f32.mrb[0].mxu0
  %v1581 = vadd.f32 0.0, %v1580
  %v1582 = vpop.f32.mrb[0].mxu0
  %1583 = vmatprep.mubr.bf16.mxu0 %v1259
  %1584 = vmatmul.mubr.bf16.gmra.mrb[0].mxu0 %v1258
  %v1585 = vpop.f32.mrb[0].mxu0
  %v1586 = vadd.f32 0.0, %v1585
  %v1587 = vpop.f32.mrb[0].mxu0
  %v1588 = vpop.f32.mrb[0].mxu0
  %v1589 = vadd.f32 0.0, %v1588
  %v1590 = vpop.f32.mrb[0].mxu0
  %1591 = vmatprep.mubr.bf16.mxu0 %v1261
  %1592 = vmatmul.mubr.bf16.gmra.mrb[0].mxu0 %v1260
  %v1593 = vpop.f32.mrb[0].mxu0
  %v1594 = vadd.f32 0.0, %v1593
  %v1595 = vpop.f32.mrb[0].mxu0
  %v1596 = vpop.f32.mrb[0].mxu0
  %v1597 = vadd.f32 0.0, %v1596
  %v1598 = vpop.f32.mrb[0].mxu0
  %1599 = vdwg.mxu0
  %v1600 = vrcp.pop %v1570
  %v1601 = vrcp.pop %v1573
  %v1602 = vrcp.pop %v1578
  %v1603 = vrcp.pop %v1581
  %v1604 = vrcp.pop %v1586
  %v1605 = vrcp.pop %v1589
  %v1606 = vrcp.pop %v1594
  %v1607 = vrcp.pop %v1597
  %v1608 = vmul.f32 %v1505, %v1600
  %v1609 = vmul.f32 %v1508, %v1601
  %v1610 = vmul.f32 %v1513, %v1602
  %v1611 = vmul.f32 %v1516, %v1603
  %v1612 = vmul.f32 %v1521, %v1604
  %v1613 = vmul.f32 %v1524, %v1605
  %v1614 = vmul.f32 %v1529, %v1606
  %v1615 = vmul.f32 %v1532, %v1607
  %v1616 = vld [vmem:[%s17] sm:$0xf]
  %v1617 = vld [vmem:[%s17 + $0x4] sm:$0xf]
  %v1618 = vld [vmem:[%s17 + $0x8] sm:$0xf]
  %v1619 = vld [vmem:[%s17 + $0xc] sm:$0xf]
  %v1620 = vpack.c.bf16 %v1609, %v1608
  %v1621 = vpack.c.bf16 %v1611, %v1610
  %v1622 = vpack.c.bf16 %v1613, %v1612
  %v1623 = vpack.c.bf16 %v1615, %v1614
  %v1628 = vunpack.c.l.b16 %v1616
  %v1629 = vunpack.c.l.b16 %v1617
  %v1630 = vunpack.c.l.b16 %v1618
  %v1631 = vunpack.c.l.b16 %v1619
  %v1632 = vpack.c.b16 %v1629, %v1628
  %v1633 = vpack.c.b16 %v1631, %v1630
  %v1637 = vsel %vm274, %v1620, 0
  %v1640 = vsel %vm274, %v1621, 0
  %v1643 = vsel %vm274, %v1622, 0
  %v1646 = vsel %vm274, %v1623, 0
  %1648 = vmatprep.subr.bf16.mxu0 0
  %1649 = vmatpush1.bf16.msra.mxu0 %v1632
  %1650 = vmatprep.subr.bf16.mxu0 0
  %1651 = vmatpush1.bf16.msra.mxu0 %v1633
  %1652 = vmatprep.subr.bf16.mxu0 0
  %1653 = vmatpush1.bf16.msra.mxu0 0
  %1654 = vmatprep.subr.bf16.mxu0 0
  %1655 = vmatpush1.bf16.msra.mxu0 0
  %1656 = vmatprep.subr.bf16.mxu0 0
  %1657 = vmatpush1.bf16.msra.mxu0 0
  %1658 = vmatprep.subr.bf16.mxu0 0
  %1659 = vmatpush1.bf16.msra.mxu0 0
  %1660 = vmatprep.subr.bf16.mxu0 0
  %1661 = vmatpush1.bf16.msra.mxu0 0
  %1662 = vmatprep.subr.bf16.mxu0 0
  %1663 = vmatpush1.bf16.msra.mxu0 0
  %1664 = vmatprep.subr.bf16.mxu0 0
  %1665 = vmatpush1.bf16.msra.mxu0 0
  %1666 = vmatprep.subr.bf16.mxu0 0
  %1667 = vmatpush1.bf16.msra.mxu0 0
  %1668 = vmatprep.subr.bf16.mxu0 0
  %1669 = vmatpush1.bf16.msra.mxu0 0
  %1670 = vmatprep.subr.bf16.mxu0 0
  %1671 = vmatpush1.bf16.msra.mxu0 0
  %1672 = vmatprep.subr.bf16.mxu0 0
  %1673 = vmatpush1.bf16.msra.mxu0 0
  %1674 = vmatprep.subr.bf16.mxu0 0
  %1675 = vmatpush1.bf16.msra.mxu0 0
  %1676 = vmatprep.subr.bf16.mxu0 0
  %1677 = vmatpush1.bf16.msra.mxu0 0
  %1678 = vmatprep.subr.bf16.mxu0 0
  %1679 = vmatpush1.bf16.msra.mxu0 0
  %1680 = vmatprep.mubr.bf16.mxu0 0
  %1681 = vmatmul.mubr.bf16.gmra.mrb[0].mxu0 %v1637
  %v1682 = vpop.f32.mrb[0].mxu0
  %v1683 = vadd.f32 0.0, %v1682
  %v1684 = vpop.f32.mrb[0].mxu0
  %v1685 = vpop.f32.mrb[0].mxu0
  %v1686 = vadd.f32 0.0, %v1685
  %v1687 = vpop.f32.mrb[0].mxu0
  %1688 = vmatprep.mubr.bf16.mxu0 0
  %1689 = vmatmul.mubr.bf16.gmra.mrb[0].mxu0 %v1640
  %v1690 = vpop.f32.mrb[0].mxu0
  %v1691 = vadd.f32 0.0, %v1690
  %v1692 = vpop.f32.mrb[0].mxu0
  %v1693 = vpop.f32.mrb[0].mxu0
  %v1694 = vadd.f32 0.0, %v1693
  %v1695 = vpop.f32.mrb[0].mxu0
  %1696 = vmatprep.mubr.bf16.mxu0 0
  %1697 = vmatmul.mubr.bf16.gmra.mrb[0].mxu0 %v1643
  %v1698 = vpop.f32.mrb[0].mxu0
  %v1699 = vadd.f32 0.0, %v1698
  %v1700 = vpop.f32.mrb[0].mxu0
  %v1701 = vpop.f32.mrb[0].mxu0
  %v1702 = vadd.f32 0.0, %v1701
  %v1703 = vpop.f32.mrb[0].mxu0
  %1704 = vmatprep.mubr.bf16.mxu0 0
  %1705 = vmatmul.mubr.bf16.gmra.mrb[0].mxu0 %v1646
  %v1706 = vpop.f32.mrb[0].mxu0
  %v1707 = vadd.f32 0.0, %v1706
  %v1708 = vpop.f32.mrb[0].mxu0
  %v1709 = vpop.f32.mrb[0].mxu0
  %v1710 = vadd.f32 0.0, %v1709
  %v1711 = vpop.f32.mrb[0].mxu0
  %1712 = vdwg.mxu0
  %v1713 = vtanh.pop %v263
  %v1714 = vmul.f32 %v1683, %v1683
  %v1715 = vmul.f32 %v1686, %v1686
  %v1716 = vmul.f32 %v1691, %v1691
  %v1717 = vmul.f32 %v1694, %v1694
  %v1718 = vmul.f32 %v1699, %v1699
  %v1719 = vmul.f32 %v1702, %v1702
  %v1720 = vmul.f32 %v1707, %v1707
  %v1721 = vmul.f32 %v1710, %v1710
  %v1722 = vsel %vm274, %v1714, 0.0
  %1723 = vadd.xlane.f32.xlu0 %v1722
  %v1724 = vpop.xlane.xlu0 %1723
  %v1725 = vsel %vm274, %v1715, 0.0
  %1726 = vadd.xlane.f32.xlu0 %v1725
  %v1727 = vpop.xlane.xlu0 %1726
  %v1728 = vsel %vm274, %v1716, 0.0
  %1729 = vadd.xlane.f32.xlu0 %v1728
  %v1730 = vpop.xlane.xlu0 %1729
  %v1731 = vsel %vm274, %v1717, 0.0
  %1732 = vadd.xlane.f32.xlu0 %v1731
  %v1733 = vpop.xlane.xlu0 %1732
  %v1734 = vsel %vm274, %v1718, 0.0
  %1735 = vadd.xlane.f32.xlu0 %v1734
  %v1736 = vpop.xlane.xlu0 %1735
  %v1737 = vsel %vm274, %v1719, 0.0
  %1738 = vadd.xlane.f32.xlu0 %v1737
  %v1739 = vpop.xlane.xlu0 %1738
  %v1740 = vsel %vm274, %v1720, 0.0
  %1741 = vadd.xlane.f32.xlu0 %v1740
  %v1742 = vpop.xlane.xlu0 %1741
  %v1743 = vsel %vm274, %v1721, 0.0
  %1744 = vadd.xlane.f32.xlu0 %v1743
  %v1745 = vpop.xlane.xlu0 %1744
  %v1746 = vmul.f32 %v1724, %v299
  %v1747 = vmul.f32 %v1727, %v299
  %v1748 = vmul.f32 %v1730, %v299
  %v1749 = vmul.f32 %v1733, %v299
  %v1750 = vmul.f32 %v1736, %v299
  %v1751 = vmul.f32 %v1739, %v299
  %v1752 = vmul.f32 %v1742, %v299
  %v1753 = vmul.f32 %v1745, %v299
  %v1754 = vadd.f32 %v1746, 1e-06
  %v1755 = vadd.f32 %v1747, 1e-06
  %v1756 = vadd.f32 %v1748, 1e-06
  %v1757 = vadd.f32 %v1749, 1e-06
  %v1758 = vadd.f32 %v1750, 1e-06
  %v1759 = vadd.f32 %v1751, 1e-06
  %v1760 = vadd.f32 %v1752, 1e-06
  %v1761 = vadd.f32 %v1753, 1e-06
  %v1762 = vrsqrt.pop %v1754
  %v1763 = vrsqrt.pop %v1755
  %v1764 = vrsqrt.pop %v1756
  %v1765 = vrsqrt.pop %v1757
  %v1766 = vrsqrt.pop %v1758
  %v1767 = vrsqrt.pop %v1759
  %v1768 = vrsqrt.pop %v1760
  %v1769 = vrsqrt.pop %v1761
  %v1770 = vmul.f32 %v1683, %v1762
  %v1771 = vmul.f32 %v1686, %v1763
  %v1772 = vmul.f32 %v1691, %v1764
  %v1773 = vmul.f32 %v1694, %v1765
  %v1774 = vmul.f32 %v1699, %v1766
  %v1775 = vmul.f32 %v1702, %v1767
  %v1776 = vmul.f32 %v1707, %v1768
  %v1777 = vmul.f32 %v1710, %v1769
  %v1778 = vld [vmem:[%s18] sm:$0x1]
  %v1780 = vlaneseq
  %v1781 = vshrl.u32 %v1780, 7
  %v1782 = vsub.s32 0, %v1781
  %v1783 = vrot.slane %v1778, %v1782
  %v1785 = vmul.f32 %v1770, %v1783
  %v1786 = vmul.f32 %v1771, %v1783
  %v1787 = vmul.f32 %v1772, %v1783
  %v1788 = vmul.f32 %v1773, %v1783
  %v1789 = vmul.f32 %v1774, %v1783
  %v1790 = vmul.f32 %v1775, %v1783
  %v1791 = vmul.f32 %v1776, %v1783
  %v1792 = vmul.f32 %v1777, %v1783
  %v1794 = vlaneseq
  %v1795 = vshrl.u32 %v1794, 7
  %v1796 = vsub.s32 0, %v1795
  %v1797 = vrot.slane %v1713, %v1796
  %v1799 = vmul.f32 %v1797, %v1785
  %v1800 = vmul.f32 %v1797, %v1786
  %v1801 = vmul.f32 %v1797, %v1787
  %v1802 = vmul.f32 %v1797, %v1788
  %v1803 = vmul.f32 %v1797, %v1789
  %v1804 = vmul.f32 %v1797, %v1790
  %v1805 = vmul.f32 %v1797, %v1791
  %v1806 = vmul.f32 %v1797, %v1792
  %v1807 = vadd.f32 %v232, %v1799
  %v1808 = vadd.f32 %v235, %v1800
  %v1809 = vadd.f32 %v240, %v1801
  %v1810 = vadd.f32 %v243, %v1802
  %v1811 = vadd.f32 %v248, %v1803
  %v1812 = vadd.f32 %v251, %v1804
  %v1813 = vadd.f32 %v256, %v1805
  %v1814 = vadd.f32 %v259, %v1806
  %v1815 = vmul.f32 %v1807, %v1807
  %v1816 = vmul.f32 %v1808, %v1808
  %v1817 = vmul.f32 %v1809, %v1809
  %v1818 = vmul.f32 %v1810, %v1810
  %v1819 = vmul.f32 %v1811, %v1811
  %v1820 = vmul.f32 %v1812, %v1812
  %v1821 = vmul.f32 %v1813, %v1813
  %v1822 = vmul.f32 %v1814, %v1814
  %v1823 = vsel %vm274, %v1815, 0.0
  %1824 = vadd.xlane.f32.xlu0 %v1823
  %v1825 = vpop.xlane.xlu0 %1824
  %v1826 = vsel %vm274, %v1816, 0.0
  %1827 = vadd.xlane.f32.xlu0 %v1826
  %v1828 = vpop.xlane.xlu0 %1827
  %v1829 = vsel %vm274, %v1817, 0.0
  %1830 = vadd.xlane.f32.xlu0 %v1829
  %v1831 = vpop.xlane.xlu0 %1830
  %v1832 = vsel %vm274, %v1818, 0.0
  %1833 = vadd.xlane.f32.xlu0 %v1832
  %v1834 = vpop.xlane.xlu0 %1833
  %v1835 = vsel %vm274, %v1819, 0.0
  %1836 = vadd.xlane.f32.xlu0 %v1835
  %v1837 = vpop.xlane.xlu0 %1836
  %v1838 = vsel %vm274, %v1820, 0.0
  %1839 = vadd.xlane.f32.xlu0 %v1838
  %v1840 = vpop.xlane.xlu0 %1839
  %v1841 = vsel %vm274, %v1821, 0.0
  %1842 = vadd.xlane.f32.xlu0 %v1841
  %v1843 = vpop.xlane.xlu0 %1842
  %v1844 = vsel %vm274, %v1822, 0.0
  %1845 = vadd.xlane.f32.xlu0 %v1844
  %v1846 = vpop.xlane.xlu0 %1845
  %v1847 = vmul.f32 %v1825, %v299
  %v1848 = vmul.f32 %v1828, %v299
  %v1849 = vmul.f32 %v1831, %v299
  %v1850 = vmul.f32 %v1834, %v299
  %v1851 = vmul.f32 %v1837, %v299
  %v1852 = vmul.f32 %v1840, %v299
  %v1853 = vmul.f32 %v1843, %v299
  %v1854 = vmul.f32 %v1846, %v299
  %v1855 = vadd.f32 %v1847, 1e-06
  %v1856 = vadd.f32 %v1848, 1e-06
  %v1857 = vadd.f32 %v1849, 1e-06
  %v1858 = vadd.f32 %v1850, 1e-06
  %v1859 = vadd.f32 %v1851, 1e-06
  %v1860 = vadd.f32 %v1852, 1e-06
  %v1861 = vadd.f32 %v1853, 1e-06
  %v1862 = vadd.f32 %v1854, 1e-06
  %v1863 = vrsqrt.pop %v1855
  %v1864 = vrsqrt.pop %v1856
  %v1865 = vrsqrt.pop %v1857
  %v1866 = vrsqrt.pop %v1858
  %v1867 = vrsqrt.pop %v1859
  %v1868 = vrsqrt.pop %v1860
  %v1869 = vrsqrt.pop %v1861
  %v1870 = vrsqrt.pop %v1862
  %v1871 = vmul.f32 %v1807, %v1863
  %v1872 = vmul.f32 %v1808, %v1864
  %v1873 = vmul.f32 %v1809, %v1865
  %v1874 = vmul.f32 %v1810, %v1866
  %v1875 = vmul.f32 %v1811, %v1867
  %v1876 = vmul.f32 %v1812, %v1868
  %v1877 = vmul.f32 %v1813, %v1869
  %v1878 = vmul.f32 %v1814, %v1870
  %v1879 = vld [vmem:[%s19] sm:$0x1]
  %v1881 = vlaneseq
  %v1882 = vshrl.u32 %v1881, 7
  %v1883 = vsub.s32 0, %v1882
  %v1884 = vrot.slane %v1879, %v1883
  %v1886 = vmul.f32 %v1871, %v1884
  %v1887 = vmul.f32 %v1872, %v1884
  %v1888 = vmul.f32 %v1873, %v1884
  %v1889 = vmul.f32 %v1874, %v1884
  %v1890 = vmul.f32 %v1875, %v1884
  %v1891 = vmul.f32 %v1876, %v1884
  %v1892 = vmul.f32 %v1877, %v1884
  %v1893 = vmul.f32 %v1878, %v1884
  %v1894 = vadd.f32 %v264, 1.0
  %v1896 = vlaneseq
  %v1897 = vshrl.u32 %v1896, 7
  %v1898 = vsub.s32 0, %v1897
  %v1899 = vrot.slane %v1894, %v1898
  %v1901 = vmul.f32 %v1886, %v1899
  %v1902 = vmul.f32 %v1887, %v1899
  %v1903 = vmul.f32 %v1888, %v1899
  %v1904 = vmul.f32 %v1889, %v1899
  %v1905 = vmul.f32 %v1890, %v1899
  %v1906 = vmul.f32 %v1891, %v1899
  %v1907 = vmul.f32 %v1892, %v1899
  %v1908 = vmul.f32 %v1893, %v1899
  %v1909 = vld [vmem:[%s20] sm:$0xf]
  %v1910 = vld [vmem:[%s20 + $0x4] sm:$0xf]
  %v1911 = vld [vmem:[%s20 + $0x8] sm:$0xf]
  %v1912 = vld [vmem:[%s20 + $0xc] sm:$0xf]
  %v1913 = vpack.c.bf16 %v1902, %v1901
  %v1914 = vpack.c.bf16 %v1904, %v1903
  %v1915 = vpack.c.bf16 %v1906, %v1905
  %v1916 = vpack.c.bf16 %v1908, %v1907
  %v1921 = vunpack.c.l.b16 %v1909
  %v1922 = vunpack.c.l.b16 %v1910
  %v1923 = vunpack.c.l.b16 %v1911
  %v1924 = vunpack.c.l.b16 %v1912
  %v1925 = vpack.c.b16 %v1922, %v1921
  %v1926 = vpack.c.b16 %v1924, %v1923
  %v1930 = vsel %vm274, %v1913, 0
  %v1933 = vsel %vm274, %v1914, 0
  %v1936 = vsel %vm274, %v1915, 0
  %v1939 = vsel %vm274, %v1916, 0
  %1941 = vmatprep.subr.bf16.mxu0 0
  %1942 = vmatpush1.bf16.msra.mxu0 %v1925
  %1943 = vmatprep.subr.bf16.mxu0 0
  %1944 = vmatpush1.bf16.msra.mxu0 %v1926
  %1945 = vmatprep.subr.bf16.mxu0 0
  %1946 = vmatpush1.bf16.msra.mxu0 0
  %1947 = vmatprep.subr.bf16.mxu0 0
  %1948 = vmatpush1.bf16.msra.mxu0 0
  %1949 = vmatprep.subr.bf16.mxu0 0
  %1950 = vmatpush1.bf16.msra.mxu0 0
  %1951 = vmatprep.subr.bf16.mxu0 0
  %1952 = vmatpush1.bf16.msra.mxu0 0
  %1953 = vmatprep.subr.bf16.mxu0 0
  %1954 = vmatpush1.bf16.msra.mxu0 0
  %1955 = vmatprep.subr.bf16.mxu0 0
  %1956 = vmatpush1.bf16.msra.mxu0 0
  %1957 = vmatprep.subr.bf16.mxu0 0
  %1958 = vmatpush1.bf16.msra.mxu0 0
  %1959 = vmatprep.subr.bf16.mxu0 0
  %1960 = vmatpush1.bf16.msra.mxu0 0
  %1961 = vmatprep.subr.bf16.mxu0 0
  %1962 = vmatpush1.bf16.msra.mxu0 0
  %1963 = vmatprep.subr.bf16.mxu0 0
  %1964 = vmatpush1.bf16.msra.mxu0 0
  %1965 = vmatprep.subr.bf16.mxu0 0
  %1966 = vmatpush1.bf16.msra.mxu0 0
  %1967 = vmatprep.subr.bf16.mxu0 0
  %1968 = vmatpush1.bf16.msra.mxu0 0
  %1969 = vmatprep.subr.bf16.mxu0 0
  %1970 = vmatpush1.bf16.msra.mxu0 0
  %1971 = vmatprep.subr.bf16.mxu0 0
  %1972 = vmatpush1.bf16.msra.mxu0 0
  %1973 = vmatprep.mubr.bf16.mxu0 0
  %1974 = vmatmul.mubr.bf16.gmra.mrb[0].mxu0 %v1930
  %v1975 = vpop.f32.mrb[0].mxu0
  %v1976 = vadd.f32 0.0, %v1975
  %v1977 = vpop.f32.mrb[0].mxu0
  %v1978 = vpop.f32.mrb[0].mxu0
  %v1979 = vadd.f32 0.0, %v1978
  %v1980 = vpop.f32.mrb[0].mxu0
  %1981 = vmatprep.mubr.bf16.mxu0 0
  %1982 = vmatmul.mubr.bf16.gmra.mrb[0].mxu0 %v1933
  %v1983 = vpop.f32.mrb[0].mxu0
  %v1984 = vadd.f32 0.0, %v1983
  %v1985 = vpop.f32.mrb[0].mxu0
  %v1986 = vpop.f32.mrb[0].mxu0
  %v1987 = vadd.f32 0.0, %v1986
  %v1988 = vpop.f32.mrb[0].mxu0
  %1989 = vmatprep.mubr.bf16.mxu0 0
  %1990 = vmatmul.mubr.bf16.gmra.mrb[0].mxu0 %v1936
  %v1991 = vpop.f32.mrb[0].mxu0
  %v1992 = vadd.f32 0.0, %v1991
  %v1993 = vpop.f32.mrb[0].mxu0
  %v1994 = vpop.f32.mrb[0].mxu0
  %v1995 = vadd.f32 0.0, %v1994
  %v1996 = vpop.f32.mrb[0].mxu0
  %1997 = vmatprep.mubr.bf16.mxu0 0
  %1998 = vmatmul.mubr.bf16.gmra.mrb[0].mxu0 %v1939
  %v1999 = vpop.f32.mrb[0].mxu0
  %v2000 = vadd.f32 0.0, %v1999
  %v2001 = vpop.f32.mrb[0].mxu0
  %v2002 = vpop.f32.mrb[0].mxu0
  %v2003 = vadd.f32 0.0, %v2002
  %v2004 = vpop.f32.mrb[0].mxu0
  %2005 = vdwg.mxu0
  %v2006 = vsub.f32 0.0, %v1976
  %v2007 = vsub.f32 0.0, %v1979
  %v2008 = vsub.f32 0.0, %v1984
  %v2009 = vsub.f32 0.0, %v1987
  %v2010 = vsub.f32 0.0, %v1992
  %v2011 = vsub.f32 0.0, %v1995
  %v2012 = vsub.f32 0.0, %v2000
  %v2013 = vsub.f32 0.0, %v2003
  %v2014 = vmul.f32 %v2006, 1.442695
  %v2015 = vpow.pop %v2014
  %v2016 = vmul.f32 %v2007, 1.442695
  %v2017 = vpow.pop %v2016
  %v2018 = vmul.f32 %v2008, 1.442695
  %v2019 = vpow.pop %v2018
  %v2020 = vmul.f32 %v2009, 1.442695
  %v2021 = vpow.pop %v2020
  %v2022 = vmul.f32 %v2010, 1.442695
  %v2023 = vpow.pop %v2022
  %v2024 = vmul.f32 %v2011, 1.442695
  %v2025 = vpow.pop %v2024
  %v2026 = vmul.f32 %v2012, 1.442695
  %v2027 = vpow.pop %v2026
  %v2028 = vmul.f32 %v2013, 1.442695
  %v2029 = vpow.pop %v2028
  %v2030 = vadd.f32 %v2015, 1.0
  %v2031 = vadd.f32 %v2017, 1.0
  %v2032 = vadd.f32 %v2019, 1.0
  %v2033 = vadd.f32 %v2021, 1.0
  %v2034 = vadd.f32 %v2023, 1.0
  %v2035 = vadd.f32 %v2025, 1.0
  %v2036 = vadd.f32 %v2027, 1.0
  %v2037 = vadd.f32 %v2029, 1.0
  %v2038 = vrcp.pop %v2030
  %v2039 = vrcp.pop %v2031
  %v2040 = vrcp.pop %v2032
  %v2041 = vrcp.pop %v2033
  %v2042 = vrcp.pop %v2034
  %v2043 = vrcp.pop %v2035
  %v2044 = vrcp.pop %v2036
  %v2045 = vrcp.pop %v2037
  %v2046 = vmul.f32 %v1976, %v2038
  %v2047 = vmul.f32 %v1979, %v2039
  %v2048 = vmul.f32 %v1984, %v2040
  %v2049 = vmul.f32 %v1987, %v2041
  %v2050 = vmul.f32 %v1992, %v2042
  %v2051 = vmul.f32 %v1995, %v2043
  %v2052 = vmul.f32 %v2000, %v2044
  %v2053 = vmul.f32 %v2003, %v2045
  %2062 = vrot.lane.b32.xlu0 %v1976, 64
  %v2063 = vpop.permute.xlu0 %2062
  %2064 = vrot.lane.b32.xlu0 %v1979, 64
  %v2065 = vpop.permute.xlu0 %2064
  %2066 = vrot.lane.b32.xlu0 %v1984, 64
  %v2067 = vpop.permute.xlu0 %2066
  %2068 = vrot.lane.b32.xlu0 %v1987, 64
  %v2069 = vpop.permute.xlu0 %2068
  %2070 = vrot.lane.b32.xlu0 %v1992, 64
  %v2071 = vpop.permute.xlu0 %2070
  %2072 = vrot.lane.b32.xlu0 %v1995, 64
  %v2073 = vpop.permute.xlu0 %2072
  %2074 = vrot.lane.b32.xlu0 %v2000, 64
  %v2075 = vpop.permute.xlu0 %2074
  %2076 = vrot.lane.b32.xlu0 %v2003, 64
  %v2077 = vpop.permute.xlu0 %2076
  %v2086 = vmul.f32 %v2046, %v2063
  %v2087 = vmul.f32 %v2047, %v2065
  %v2088 = vmul.f32 %v2048, %v2067
  %v2089 = vmul.f32 %v2049, %v2069
  %v2090 = vmul.f32 %v2050, %v2071
  %v2091 = vmul.f32 %v2051, %v2073
  %v2092 = vmul.f32 %v2052, %v2075
  %v2093 = vmul.f32 %v2053, %v2077
  %v2094 = vld [vmem:[%s21] sm:$0xf]
  %v2095 = vld [vmem:[%s21 + $0x4] sm:$0xf]
  %v2096 = vld [vmem:[%s21 + $0x8] sm:$0xf]
  %v2097 = vld [vmem:[%s21 + $0xc] sm:$0xf]
  %v2098 = vld [vmem:[%s21 + $0x10] sm:$0xf]
  %v2099 = vld [vmem:[%s21 + $0x14] sm:$0xf]
  %v2100 = vld [vmem:[%s21 + $0x18] sm:$0xf]
  %v2101 = vld [vmem:[%s21 + $0x1c] sm:$0xf]
  %v2102 = vpack.c.bf16 %v2087, %v2086
  %v2103 = vpack.c.bf16 %v2089, %v2088
  %v2104 = vpack.c.bf16 %v2091, %v2090
  %v2105 = vpack.c.bf16 %v2093, %v2092
  %v2114 = vunpack.c.l.b16 %v2094
  %v2115 = vunpack.c.l.b16 %v2095
  %v2116 = vunpack.c.l.b16 %v2096
  %v2117 = vunpack.c.l.b16 %v2097
  %v2118 = vunpack.c.l.b16 %v2098
  %v2119 = vunpack.c.l.b16 %v2099
  %v2120 = vunpack.c.l.b16 %v2100
  %v2121 = vunpack.c.l.b16 %v2101
  %v2122 = vpack.c.b16 %v2115, %v2114
  %v2123 = vpack.c.b16 %v2117, %v2116
  %v2124 = vpack.c.b16 %v2119, %v2118
  %v2125 = vpack.c.b16 %v2121, %v2120
  %vm2130 = vcmask 523264
  %v2132 = vsel %vm2130, %v2102, 0
  %v2135 = vsel %vm2130, %v2103, 0
  %v2138 = vsel %vm2130, %v2104, 0
  %v2141 = vsel %vm2130, %v2105, 0
  %2143 = vmatprep.subr.bf16.mxu0 0
  %2144 = vmatpush1.bf16.msra.mxu0 %v2122
  %2145 = vmatprep.subr.bf16.mxu0 0
  %2146 = vmatpush1.bf16.msra.mxu0 %v2123
  %2147 = vmatprep.subr.bf16.mxu0 0
  %2148 = vmatpush1.bf16.msra.mxu0 %v2124
  %2149 = vmatprep.subr.bf16.mxu0 0
  %2150 = vmatpush1.bf16.msra.mxu0 %v2125
  %2151 = vmatprep.subr.bf16.mxu0 0
  %2152 = vmatpush1.bf16.msra.mxu0 0
  %2153 = vmatprep.subr.bf16.mxu0 0
  %2154 = vmatpush1.bf16.msra.mxu0 0
  %2155 = vmatprep.subr.bf16.mxu0 0
  %2156 = vmatpush1.bf16.msra.mxu0 0
  %2157 = vmatprep.subr.bf16.mxu0 0
  %2158 = vmatpush1.bf16.msra.mxu0 0
  %2159 = vmatprep.subr.bf16.mxu0 0
  %2160 = vmatpush1.bf16.msra.mxu0 0
  %2161 = vmatprep.subr.bf16.mxu0 0
  %2162 = vmatpush1.bf16.msra.mxu0 0
  %2163 = vmatprep.subr.bf16.mxu0 0
  %2164 = vmatpush1.bf16.msra.mxu0 0
  %2165 = vmatprep.subr.bf16.mxu0 0
  %2166 = vmatpush1.bf16.msra.mxu0 0
  %2167 = vmatprep.subr.bf16.mxu0 0
  %2168 = vmatpush1.bf16.msra.mxu0 0
  %2169 = vmatprep.subr.bf16.mxu0 0
  %2170 = vmatpush1.bf16.msra.mxu0 0
  %2171 = vmatprep.subr.bf16.mxu0 0
  %2172 = vmatpush1.bf16.msra.mxu0 0
  %2173 = vmatprep.subr.bf16.mxu0 0
  %2174 = vmatpush1.bf16.msra.mxu0 0
  %2175 = vmatprep.mubr.bf16.mxu0 0
  %2176 = vmatmul.mubr.bf16.gmra.mrb[0].mxu0 %v2132
  %v2177 = vpop.f32.mrb[0].mxu0
  %v2178 = vadd.f32 0.0, %v2177
  %v2179 = vpop.f32.mrb[0].mxu0
  %v2180 = vpop.f32.mrb[0].mxu0
  %v2181 = vadd.f32 0.0, %v2180
  %v2182 = vpop.f32.mrb[0].mxu0
  %2183 = vmatprep.mubr.bf16.mxu0 0
  %2184 = vmatmul.mubr.bf16.gmra.mrb[0].mxu0 %v2135
  %v2185 = vpop.f32.mrb[0].mxu0
  %v2186 = vadd.f32 0.0, %v2185
  %v2187 = vpop.f32.mrb[0].mxu0
  %v2188 = vpop.f32.mrb[0].mxu0
  %v2189 = vadd.f32 0.0, %v2188
  %v2190 = vpop.f32.mrb[0].mxu0
  %2191 = vmatprep.mubr.bf16.mxu0 0
  %2192 = vmatmul.mubr.bf16.gmra.mrb[0].mxu0 %v2138
  %v2193 = vpop.f32.mrb[0].mxu0
  %v2194 = vadd.f32 0.0, %v2193
  %v2195 = vpop.f32.mrb[0].mxu0
  %v2196 = vpop.f32.mrb[0].mxu0
  %v2197 = vadd.f32 0.0, %v2196
  %v2198 = vpop.f32.mrb[0].mxu0
  %2199 = vmatprep.mubr.bf16.mxu0 0
  %2200 = vmatmul.mubr.bf16.gmra.mrb[0].mxu0 %v2141
  %v2201 = vpop.f32.mrb[0].mxu0
  %v2202 = vadd.f32 0.0, %v2201
  %v2203 = vpop.f32.mrb[0].mxu0
  %v2204 = vpop.f32.mrb[0].mxu0
  %v2205 = vadd.f32 0.0, %v2204
  %v2206 = vpop.f32.mrb[0].mxu0
  %2207 = vdwg.mxu0
  %v2208 = vtanh.pop %v265
  %v2209 = vmul.f32 %v2178, %v2178
  %v2210 = vmul.f32 %v2181, %v2181
  %v2211 = vmul.f32 %v2186, %v2186
  %v2212 = vmul.f32 %v2189, %v2189
  %v2213 = vmul.f32 %v2194, %v2194
  %v2214 = vmul.f32 %v2197, %v2197
  %v2215 = vmul.f32 %v2202, %v2202
  %v2216 = vmul.f32 %v2205, %v2205
  %v2217 = vsel %vm274, %v2209, 0.0
  %2218 = vadd.xlane.f32.xlu0 %v2217
  %v2219 = vpop.xlane.xlu0 %2218
  %v2220 = vsel %vm274, %v2210, 0.0
  %2221 = vadd.xlane.f32.xlu0 %v2220
  %v2222 = vpop.xlane.xlu0 %2221
  %v2223 = vsel %vm274, %v2211, 0.0
  %2224 = vadd.xlane.f32.xlu0 %v2223
  %v2225 = vpop.xlane.xlu0 %2224
  %v2226 = vsel %vm274, %v2212, 0.0
  %2227 = vadd.xlane.f32.xlu0 %v2226
  %v2228 = vpop.xlane.xlu0 %2227
  %v2229 = vsel %vm274, %v2213, 0.0
  %2230 = vadd.xlane.f32.xlu0 %v2229
  %v2231 = vpop.xlane.xlu0 %2230
  %v2232 = vsel %vm274, %v2214, 0.0
  %2233 = vadd.xlane.f32.xlu0 %v2232
  %v2234 = vpop.xlane.xlu0 %2233
  %v2235 = vsel %vm274, %v2215, 0.0
  %2236 = vadd.xlane.f32.xlu0 %v2235
  %v2237 = vpop.xlane.xlu0 %2236
  %v2238 = vsel %vm274, %v2216, 0.0
  %2239 = vadd.xlane.f32.xlu0 %v2238
  %v2240 = vpop.xlane.xlu0 %2239
  %v2241 = vmul.f32 %v2219, %v299
  %v2242 = vmul.f32 %v2222, %v299
  %v2243 = vmul.f32 %v2225, %v299
  %v2244 = vmul.f32 %v2228, %v299
  %v2245 = vmul.f32 %v2231, %v299
  %v2246 = vmul.f32 %v2234, %v299
  %v2247 = vmul.f32 %v2237, %v299
  %v2248 = vmul.f32 %v2240, %v299
  %v2249 = vadd.f32 %v2241, 1e-06
  %v2250 = vadd.f32 %v2242, 1e-06
  %v2251 = vadd.f32 %v2243, 1e-06
  %v2252 = vadd.f32 %v2244, 1e-06
  %v2253 = vadd.f32 %v2245, 1e-06
  %v2254 = vadd.f32 %v2246, 1e-06
  %v2255 = vadd.f32 %v2247, 1e-06
  %v2256 = vadd.f32 %v2248, 1e-06
  %v2257 = vrsqrt.pop %v2249
  %v2258 = vrsqrt.pop %v2250
  %v2259 = vrsqrt.pop %v2251
  %v2260 = vrsqrt.pop %v2252
  %v2261 = vrsqrt.pop %v2253
  %v2262 = vrsqrt.pop %v2254
  %v2263 = vrsqrt.pop %v2255
  %v2264 = vrsqrt.pop %v2256
  %v2265 = vmul.f32 %v2178, %v2257
  %v2266 = vmul.f32 %v2181, %v2258
  %v2267 = vmul.f32 %v2186, %v2259
  %v2268 = vmul.f32 %v2189, %v2260
  %v2269 = vmul.f32 %v2194, %v2261
  %v2270 = vmul.f32 %v2197, %v2262
  %v2271 = vmul.f32 %v2202, %v2263
  %v2272 = vmul.f32 %v2205, %v2264
  %v2273 = vld [vmem:[%s22] sm:$0x1]
  %v2275 = vlaneseq
  %v2276 = vshrl.u32 %v2275, 7
  %v2277 = vsub.s32 0, %v2276
  %v2278 = vrot.slane %v2273, %v2277
  %v2280 = vmul.f32 %v2265, %v2278
  %v2281 = vmul.f32 %v2266, %v2278
  %v2282 = vmul.f32 %v2267, %v2278
  %v2283 = vmul.f32 %v2268, %v2278
  %v2284 = vmul.f32 %v2269, %v2278
  %v2285 = vmul.f32 %v2270, %v2278
  %v2286 = vmul.f32 %v2271, %v2278
  %v2287 = vmul.f32 %v2272, %v2278
  %v2289 = vlaneseq
  %v2290 = vshrl.u32 %v2289, 7
  %v2291 = vsub.s32 0, %v2290
  %v2292 = vrot.slane %v2208, %v2291
  %v2294 = vmul.f32 %v2292, %v2280
  %v2295 = vmul.f32 %v2292, %v2281
  %v2296 = vmul.f32 %v2292, %v2282
  %v2297 = vmul.f32 %v2292, %v2283
  %v2298 = vmul.f32 %v2292, %v2284
  %v2299 = vmul.f32 %v2292, %v2285
  %v2300 = vmul.f32 %v2292, %v2286
  %v2301 = vmul.f32 %v2292, %v2287
  %v2302 = vadd.f32 %v1807, %v2294
  %v2303 = vadd.f32 %v1808, %v2295
  %v2304 = vadd.f32 %v1809, %v2296
  %v2305 = vadd.f32 %v1810, %v2297
  %v2306 = vadd.f32 %v1811, %v2298
  %v2307 = vadd.f32 %v1812, %v2299
  %v2308 = vadd.f32 %v1813, %v2300
  %v2309 = vadd.f32 %v1814, %v2301
  %2310 = vst.msk [vmem:[%s23] sm:$0xff] %vm274, %v2302
  %2311 = vst.msk [vmem:[%s23 + $0x8] sm:$0xff] %vm274, %v2303
  %2312 = vst.msk [vmem:[%s23 + $0x10] sm:$0xff] %vm274, %v2304
  %2313 = vst.msk [vmem:[%s23 + $0x18] sm:$0xff] %vm274, %v2305
  %2314 = vst.msk [vmem:[%s23 + $0x20] sm:$0xff] %vm274, %v2306
  %2315 = vst.msk [vmem:[%s23 + $0x28] sm:$0xff] %vm274, %v2307
  %2316 = vst.msk [vmem:[%s23 + $0x30] sm:$0xff] %vm274, %v2308
  %2317 = vst.msk [vmem:[%s23 + $0x38] sm:$0xff] %vm274, %v2309
  %s2318 = scalar_lea.vmem %s0, 64
  %v2319 = vld [vmem:[%s2318] sm:$0xff]
  %v2320 = vld [vmem:[%s2318 + $0x8] sm:$0xff]
  %v2321 = vld [vmem:[%s2318 + $0x10] sm:$0xff]
  %v2322 = vld [vmem:[%s2318 + $0x18] sm:$0xff]
  %v2323 = vld [vmem:[%s2318 + $0x20] sm:$0xff]
  %v2324 = vld [vmem:[%s2318 + $0x28] sm:$0xff]
  %v2325 = vld [vmem:[%s2318 + $0x30] sm:$0xff]
  %v2326 = vld [vmem:[%s2318 + $0x38] sm:$0xff]
  %v2327 = vld [vmem:[%s1] sm:$0xf]
  %v2328 = vld [vmem:[%s1 + $0x4] sm:$0xf]
  %v2329 = vpack.c.bf16 %v2320, %v2319
  %v2330 = vpack.c.bf16 %v2322, %v2321
  %v2331 = vpack.c.bf16 %v2324, %v2323
  %v2332 = vpack.c.bf16 %v2326, %v2325
  %v2333 = vld [vmem:[%s2] sm:$0x1]
  %v2335 = vlaneseq
  %v2336 = vshrl.u32 %v2335, 7
  %v2337 = vsub.s32 0, %v2336
  %v2338 = vrot.slane %v2333, %v2337
  %v2342 = vunpack.c.l.b16 %v2327
  %v2343 = vunpack.c.l.b16 %v2328
  %v2344 = vpack.c.b16 %v2343, %v2342
  %v2347 = vsel %vm184, %v2329, 0
  %v2350 = vsel %vm184, %v2330, 0
  %v2353 = vsel %vm184, %v2331, 0
  %v2356 = vsel %vm184, %v2332, 0
  %2358 = vmatprep.subr.bf16.mxu0 0
  %2359 = vmatpush1.bf16.msra.mxu0 %v2344
  %2360 = vmatprep.subr.bf16.mxu0 0
  %2361 = vmatpush1.bf16.msra.mxu0 0
  %2362 = vmatprep.subr.bf16.mxu0 0
  %2363 = vmatpush1.bf16.msra.mxu0 0
  %2364 = vmatprep.subr.bf16.mxu0 0
  %2365 = vmatpush1.bf16.msra.mxu0 0
  %2366 = vmatprep.subr.bf16.mxu0 0
  %2367 = vmatpush1.bf16.msra.mxu0 0
  %2368 = vmatprep.subr.bf16.mxu0 0
  %2369 = vmatpush1.bf16.msra.mxu0 0
  %2370 = vmatprep.subr.bf16.mxu0 0
  %2371 = vmatpush1.bf16.msra.mxu0 0
  %2372 = vmatprep.subr.bf16.mxu0 0
  %2373 = vmatpush1.bf16.msra.mxu0 0
  %2374 = vmatprep.subr.bf16.mxu0 0
  %2375 = vmatpush1.bf16.msra.mxu0 0
  %2376 = vmatprep.subr.bf16.mxu0 0
  %2377 = vmatpush1.bf16.msra.mxu0 0
  %2378 = vmatprep.subr.bf16.mxu0 0
  %2379 = vmatpush1.bf16.msra.mxu0 0
  %2380 = vmatprep.subr.bf16.mxu0 0
  %2381 = vmatpush1.bf16.msra.mxu0 0
  %2382 = vmatprep.subr.bf16.mxu0 0
  %2383 = vmatpush1.bf16.msra.mxu0 0
  %2384 = vmatprep.subr.bf16.mxu0 0
  %2385 = vmatpush1.bf16.msra.mxu0 0
  %2386 = vmatprep.subr.bf16.mxu0 0
  %2387 = vmatpush1.bf16.msra.mxu0 0
  %2388 = vmatprep.subr.bf16.mxu0 0
  %2389 = vmatpush1.bf16.msra.mxu0 0
  %2390 = vmatprep.mubr.bf16.mxu0 0
  %2391 = vmatmul.mubr.bf16.gmra.mrb[0].mxu0 %v2347
  %v2392 = vpop.f32.mrb[0].mxu0
  %v2393 = vadd.f32 %v2338, %v2392
  %v2394 = vpop.f32.mrb[0].mxu0
  %v2395 = vpop.f32.mrb[0].mxu0
  %v2396 = vadd.f32 %v2338, %v2395
  %v2397 = vpop.f32.mrb[0].mxu0
  %2398 = vmatprep.mubr.bf16.mxu0 0
  %2399 = vmatmul.mubr.bf16.gmra.mrb[0].mxu0 %v2350
  %v2400 = vpop.f32.mrb[0].mxu0
  %v2401 = vadd.f32 %v2338, %v2400
  %v2402 = vpop.f32.mrb[0].mxu0
  %v2403 = vpop.f32.mrb[0].mxu0
  %v2404 = vadd.f32 %v2338, %v2403
  %v2405 = vpop.f32.mrb[0].mxu0
  %2406 = vmatprep.mubr.bf16.mxu0 0
  %2407 = vmatmul.mubr.bf16.gmra.mrb[0].mxu0 %v2353
  %v2408 = vpop.f32.mrb[0].mxu0
  %v2409 = vadd.f32 %v2338, %v2408
  %v2410 = vpop.f32.mrb[0].mxu0
  %v2411 = vpop.f32.mrb[0].mxu0
  %v2412 = vadd.f32 %v2338, %v2411
  %v2413 = vpop.f32.mrb[0].mxu0
  %2414 = vmatprep.mubr.bf16.mxu0 0
  %2415 = vmatmul.mubr.bf16.gmra.mrb[0].mxu0 %v2356
  %v2416 = vpop.f32.mrb[0].mxu0
  %v2417 = vadd.f32 %v2338, %v2416
  %v2418 = vpop.f32.mrb[0].mxu0
  %v2419 = vpop.f32.mrb[0].mxu0
  %v2420 = vadd.f32 %v2338, %v2419
  %v2421 = vpop.f32.mrb[0].mxu0
  %2422 = vdwg.mxu0
  %s2423 = scalar_lea.vmem %s3, 1
  %v2424 = vld [vmem:[%s2423] sm:$0x1]
  %s2425 = scalar_lea.vmem %s4, 1
  %v2426 = vld [vmem:[%s2425] sm:$0x1]
  %s2427 = scalar_lea.vmem %s5, 1
  %v2428 = vld [vmem:[%s2427] sm:$0x1]
  %s2429 = scalar_lea.vmem %s6, 1
  %v2430 = vld [vmem:[%s2429] sm:$0x1]
  %v2431 = vmul.f32 %v2393, %v2393
  %v2432 = vmul.f32 %v2396, %v2396
  %v2433 = vmul.f32 %v2401, %v2401
  %v2434 = vmul.f32 %v2404, %v2404
  %v2435 = vmul.f32 %v2409, %v2409
  %v2436 = vmul.f32 %v2412, %v2412
  %v2437 = vmul.f32 %v2417, %v2417
  %v2438 = vmul.f32 %v2420, %v2420
  %v2439 = vsel %vm274, %v2431, 0.0
  %2440 = vadd.xlane.f32.xlu0 %v2439
  %v2441 = vpop.xlane.xlu0 %2440
  %v2442 = vsel %vm274, %v2432, 0.0
  %2443 = vadd.xlane.f32.xlu0 %v2442
  %v2444 = vpop.xlane.xlu0 %2443
  %v2445 = vsel %vm274, %v2433, 0.0
  %2446 = vadd.xlane.f32.xlu0 %v2445
  %v2447 = vpop.xlane.xlu0 %2446
  %v2448 = vsel %vm274, %v2434, 0.0
  %2449 = vadd.xlane.f32.xlu0 %v2448
  %v2450 = vpop.xlane.xlu0 %2449
  %v2451 = vsel %vm274, %v2435, 0.0
  %2452 = vadd.xlane.f32.xlu0 %v2451
  %v2453 = vpop.xlane.xlu0 %2452
  %v2454 = vsel %vm274, %v2436, 0.0
  %2455 = vadd.xlane.f32.xlu0 %v2454
  %v2456 = vpop.xlane.xlu0 %2455
  %v2457 = vsel %vm274, %v2437, 0.0
  %2458 = vadd.xlane.f32.xlu0 %v2457
  %v2459 = vpop.xlane.xlu0 %2458
  %v2460 = vsel %vm274, %v2438, 0.0
  %2461 = vadd.xlane.f32.xlu0 %v2460
  %v2462 = vpop.xlane.xlu0 %2461
  %v2463 = vmul.f32 %v2441, %v299
  %v2464 = vmul.f32 %v2444, %v299
  %v2465 = vmul.f32 %v2447, %v299
  %v2466 = vmul.f32 %v2450, %v299
  %v2467 = vmul.f32 %v2453, %v299
  %v2468 = vmul.f32 %v2456, %v299
  %v2469 = vmul.f32 %v2459, %v299
  %v2470 = vmul.f32 %v2462, %v299
  %v2471 = vadd.f32 %v2463, 1e-06
  %v2472 = vadd.f32 %v2464, 1e-06
  %v2473 = vadd.f32 %v2465, 1e-06
  %v2474 = vadd.f32 %v2466, 1e-06
  %v2475 = vadd.f32 %v2467, 1e-06
  %v2476 = vadd.f32 %v2468, 1e-06
  %v2477 = vadd.f32 %v2469, 1e-06
  %v2478 = vadd.f32 %v2470, 1e-06
  %v2479 = vrsqrt.pop %v2471
  %v2480 = vrsqrt.pop %v2472
  %v2481 = vrsqrt.pop %v2473
  %v2482 = vrsqrt.pop %v2474
  %v2483 = vrsqrt.pop %v2475
  %v2484 = vrsqrt.pop %v2476
  %v2485 = vrsqrt.pop %v2477
  %v2486 = vrsqrt.pop %v2478
  %v2487 = vmul.f32 %v2393, %v2479
  %v2488 = vmul.f32 %v2396, %v2480
  %v2489 = vmul.f32 %v2401, %v2481
  %v2490 = vmul.f32 %v2404, %v2482
  %v2491 = vmul.f32 %v2409, %v2483
  %v2492 = vmul.f32 %v2412, %v2484
  %v2493 = vmul.f32 %v2417, %v2485
  %v2494 = vmul.f32 %v2420, %v2486
  %v2495 = vld [vmem:[%s11] sm:$0x1]
  %v2497 = vlaneseq
  %v2498 = vshrl.u32 %v2497, 7
  %v2499 = vsub.s32 0, %v2498
  %v2500 = vrot.slane %v2495, %v2499
  %v2502 = vmul.f32 %v2487, %v2500
  %v2503 = vmul.f32 %v2488, %v2500
  %v2504 = vmul.f32 %v2489, %v2500
  %v2505 = vmul.f32 %v2490, %v2500
  %v2506 = vmul.f32 %v2491, %v2500
  %v2507 = vmul.f32 %v2492, %v2500
  %v2508 = vmul.f32 %v2493, %v2500
  %v2509 = vmul.f32 %v2494, %v2500
  %v2510 = vadd.f32 %v2424, 1.0
  %v2512 = vlaneseq
  %v2513 = vshrl.u32 %v2512, 7
  %v2514 = vsub.s32 0, %v2513
  %v2515 = vrot.slane %v2510, %v2514
  %v2517 = vmul.f32 %v2502, %v2515
  %v2518 = vmul.f32 %v2503, %v2515
  %v2519 = vmul.f32 %v2504, %v2515
  %v2520 = vmul.f32 %v2505, %v2515
  %v2521 = vmul.f32 %v2506, %v2515
  %v2522 = vmul.f32 %v2507, %v2515
  %v2523 = vmul.f32 %v2508, %v2515
  %v2524 = vmul.f32 %v2509, %v2515
  %v2525 = vld [vmem:[%s12] sm:$0xf]
  %v2526 = vld [vmem:[%s12 + $0x4] sm:$0xf]
  %v2527 = vld [vmem:[%s12 + $0x8] sm:$0xf]
  %v2528 = vld [vmem:[%s12 + $0xc] sm:$0xf]
  %v2529 = vpack.c.bf16 %v2518, %v2517
  %v2530 = vpack.c.bf16 %v2520, %v2519
  %v2531 = vpack.c.bf16 %v2522, %v2521
  %v2532 = vpack.c.bf16 %v2524, %v2523
  %v2537 = vunpack.c.l.b16 %v2525
  %v2538 = vunpack.c.l.b16 %v2526
  %v2539 = vunpack.c.l.b16 %v2527
  %v2540 = vunpack.c.l.b16 %v2528
  %v2541 = vpack.c.b16 %v2538, %v2537
  %v2542 = vpack.c.b16 %v2540, %v2539
  %v2546 = vsel %vm274, %v2529, 0
  %v2549 = vsel %vm274, %v2530, 0
  %v2552 = vsel %vm274, %v2531, 0
  %v2555 = vsel %vm274, %v2532, 0
  %2557 = vmatprep.subr.bf16.mxu0 0
  %2558 = vmatpush1.bf16.msra.mxu0 %v2541
  %2559 = vmatprep.subr.bf16.mxu0 0
  %2560 = vmatpush1.bf16.msra.mxu0 %v2542
  %2561 = vmatprep.subr.bf16.mxu0 0
  %2562 = vmatpush1.bf16.msra.mxu0 0
  %2563 = vmatprep.subr.bf16.mxu0 0
  %2564 = vmatpush1.bf16.msra.mxu0 0
  %2565 = vmatprep.subr.bf16.mxu0 0
  %2566 = vmatpush1.bf16.msra.mxu0 0
  %2567 = vmatprep.subr.bf16.mxu0 0
  %2568 = vmatpush1.bf16.msra.mxu0 0
  %2569 = vmatprep.subr.bf16.mxu0 0
  %2570 = vmatpush1.bf16.msra.mxu0 0
  %2571 = vmatprep.subr.bf16.mxu0 0
  %2572 = vmatpush1.bf16.msra.mxu0 0
  %2573 = vmatprep.subr.bf16.mxu0 0
  %2574 = vmatpush1.bf16.msra.mxu0 0
  %2575 = vmatprep.subr.bf16.mxu0 0
  %2576 = vmatpush1.bf16.msra.mxu0 0
  %2577 = vmatprep.subr.bf16.mxu0 0
  %2578 = vmatpush1.bf16.msra.mxu0 0
  %2579 = vmatprep.subr.bf16.mxu0 0
  %2580 = vmatpush1.bf16.msra.mxu0 0
  %2581 = vmatprep.subr.bf16.mxu0 0
  %2582 = vmatpush1.bf16.msra.mxu0 0
  %2583 = vmatprep.subr.bf16.mxu0 0
  %2584 = vmatpush1.bf16.msra.mxu0 0
  %2585 = vmatprep.subr.bf16.mxu0 0
  %2586 = vmatpush1.bf16.msra.mxu0 0
  %2587 = vmatprep.subr.bf16.mxu0 0
  %2588 = vmatpush1.bf16.msra.mxu0 0
  %2589 = vmatprep.mubr.bf16.mxu0 0
  %2590 = vmatmul.mubr.bf16.gmra.mrb[0].mxu0 %v2546
  %v2591 = vpop.f32.mrb[0].mxu0
  %v2592 = vadd.f32 0.0, %v2591
  %v2593 = vpop.f32.mrb[0].mxu0
  %v2594 = vpop.f32.mrb[0].mxu0
  %v2595 = vadd.f32 0.0, %v2594
  %v2596 = vpop.f32.mrb[0].mxu0
  %2597 = vmatprep.mubr.bf16.mxu0 0
  %2598 = vmatmul.mubr.bf16.gmra.mrb[0].mxu0 %v2549
  %v2599 = vpop.f32.mrb[0].mxu0
  %v2600 = vadd.f32 0.0, %v2599
  %v2601 = vpop.f32.mrb[0].mxu0
  %v2602 = vpop.f32.mrb[0].mxu0
  %v2603 = vadd.f32 0.0, %v2602
  %v2604 = vpop.f32.mrb[0].mxu0
  %2605 = vmatprep.mubr.bf16.mxu0 0
  %2606 = vmatmul.mubr.bf16.gmra.mrb[0].mxu0 %v2552
  %v2607 = vpop.f32.mrb[0].mxu0
  %v2608 = vadd.f32 0.0, %v2607
  %v2609 = vpop.f32.mrb[0].mxu0
  %v2610 = vpop.f32.mrb[0].mxu0
  %v2611 = vadd.f32 0.0, %v2610
  %v2612 = vpop.f32.mrb[0].mxu0
  %2613 = vmatprep.mubr.bf16.mxu0 0
  %2614 = vmatmul.mubr.bf16.gmra.mrb[0].mxu0 %v2555
  %v2615 = vpop.f32.mrb[0].mxu0
  %v2616 = vadd.f32 0.0, %v2615
  %v2617 = vpop.f32.mrb[0].mxu0
  %v2618 = vpop.f32.mrb[0].mxu0
  %v2619 = vadd.f32 0.0, %v2618
  %v2620 = vpop.f32.mrb[0].mxu0
  %2621 = vdwg.mxu0
  %v2622 = vmul.f32 %v2592, %v2592
  %v2623 = vmul.f32 %v2595, %v2595
  %v2624 = vmul.f32 %v2600, %v2600
  %v2625 = vmul.f32 %v2603, %v2603
  %v2626 = vmul.f32 %v2608, %v2608
  %v2627 = vmul.f32 %v2611, %v2611
  %v2628 = vmul.f32 %v2616, %v2616
  %v2629 = vmul.f32 %v2619, %v2619
  %v2630 = vpack.c.bf16 %v2623, %v2622
  %v2631 = vpack.c.bf16 %v2625, %v2624
  %v2632 = vpack.c.bf16 %v2627, %v2626
  %v2633 = vpack.c.bf16 %v2629, %v2628
  %2634 = vmatprep.subr.bf16.mxu0 0
  %2635 = vmatpush1.bf16.msra.mxu0 %v509
  %2636 = vmatprep.subr.bf16.mxu0 0
  %2637 = vmatpush1.bf16.msra.mxu0 %v510
  %2638 = vmatprep.subr.bf16.mxu0 0
  %2639 = vmatpush1.bf16.msra.mxu0 %v511
  %2640 = vmatprep.subr.bf16.mxu0 0
  %2641 = vmatpush1.bf16.msra.mxu0 %v512
  %2642 = vmatprep.subr.bf16.mxu0 0
  %2643 = vmatpush1.bf16.msra.mxu0 %v513
  %2644 = vmatprep.subr.bf16.mxu0 0
  %2645 = vmatpush1.bf16.msra.mxu0 %v514
  %2646 = vmatprep.subr.bf16.mxu0 0
  %2647 = vmatpush1.bf16.msra.mxu0 %v515
  %2648 = vmatprep.subr.bf16.mxu0 0
  %2649 = vmatpush1.bf16.msra.mxu0 %v516
  %2650 = vmatprep.subr.bf16.mxu0 0
  %2651 = vmatpush1.bf16.msra.mxu0 0
  %2652 = vmatprep.subr.bf16.mxu0 0
  %2653 = vmatpush1.bf16.msra.mxu0 0
  %2654 = vmatprep.subr.bf16.mxu0 0
  %2655 = vmatpush1.bf16.msra.mxu0 0
  %2656 = vmatprep.subr.bf16.mxu0 0
  %2657 = vmatpush1.bf16.msra.mxu0 0
  %2658 = vmatprep.subr.bf16.mxu0 0
  %2659 = vmatpush1.bf16.msra.mxu0 0
  %2660 = vmatprep.subr.bf16.mxu0 0
  %2661 = vmatpush1.bf16.msra.mxu0 0
  %2662 = vmatprep.subr.bf16.mxu0 0
  %2663 = vmatpush1.bf16.msra.mxu0 0
  %2664 = vmatprep.subr.bf16.mxu0 0
  %2665 = vmatpush1.bf16.msra.mxu0 0
  %2666 = vmatprep.mubr.bf16.mxu0 0
  %2667 = vmatmul.mubr.bf16.gmra.mrb[0].mxu0 %v2630
  %v2668 = vpop.f32.mrb[0].mxu0
  %v2669 = vadd.f32 %v475, %v2668
  %v2670 = vpop.f32.mrb[0].mxu0
  %v2671 = vpop.f32.mrb[0].mxu0
  %v2672 = vadd.f32 %v475, %v2671
  %v2673 = vpop.f32.mrb[0].mxu0
  %2674 = vmatprep.mubr.bf16.mxu0 0
  %2675 = vmatmul.mubr.bf16.gmra.mrb[0].mxu0 %v2631
  %v2676 = vpop.f32.mrb[0].mxu0
  %v2677 = vadd.f32 %v475, %v2676
  %v2678 = vpop.f32.mrb[0].mxu0
  %v2679 = vpop.f32.mrb[0].mxu0
  %v2680 = vadd.f32 %v475, %v2679
  %v2681 = vpop.f32.mrb[0].mxu0
  %2682 = vmatprep.mubr.bf16.mxu0 0
  %2683 = vmatmul.mubr.bf16.gmra.mrb[0].mxu0 %v2632
  %v2684 = vpop.f32.mrb[0].mxu0
  %v2685 = vadd.f32 %v475, %v2684
  %v2686 = vpop.f32.mrb[0].mxu0
  %v2687 = vpop.f32.mrb[0].mxu0
  %v2688 = vadd.f32 %v475, %v2687
  %v2689 = vpop.f32.mrb[0].mxu0
  %2690 = vmatprep.mubr.bf16.mxu0 0
  %2691 = vmatmul.mubr.bf16.gmra.mrb[0].mxu0 %v2633
  %v2692 = vpop.f32.mrb[0].mxu0
  %v2693 = vadd.f32 %v475, %v2692
  %v2694 = vpop.f32.mrb[0].mxu0
  %v2695 = vpop.f32.mrb[0].mxu0
  %v2696 = vadd.f32 %v475, %v2695
  %v2697 = vpop.f32.mrb[0].mxu0
  %2698 = vdwg.mxu0
  %v2699 = vrsqrt.pop %v2669
  %v2700 = vrsqrt.pop %v2672
  %v2701 = vrsqrt.pop %v2677
  %v2702 = vrsqrt.pop %v2680
  %v2703 = vrsqrt.pop %v2685
  %v2704 = vrsqrt.pop %v2688
  %v2705 = vrsqrt.pop %v2693
  %v2706 = vrsqrt.pop %v2696
  %v2707 = vmul.f32 %v2592, %v2699
  %v2708 = vmul.f32 %v2595, %v2700
  %v2709 = vmul.f32 %v2600, %v2701
  %v2710 = vmul.f32 %v2603, %v2702
  %v2711 = vmul.f32 %v2608, %v2703
  %v2712 = vmul.f32 %v2611, %v2704
  %v2713 = vmul.f32 %v2616, %v2705
  %v2714 = vmul.f32 %v2619, %v2706
  %v2715 = vmul.f32 %v2707, %v610
  %v2716 = vmul.f32 %v2708, %v610
  %v2717 = vmul.f32 %v2709, %v610
  %v2718 = vmul.f32 %v2710, %v610
  %v2719 = vmul.f32 %v2711, %v610
  %v2720 = vmul.f32 %v2712, %v610
  %v2721 = vmul.f32 %v2713, %v610
  %v2722 = vmul.f32 %v2714, %v610
  %s2723 = scalar_lea.vmem %s8, 64
  %v2724 = vld [vmem:[%s2723] sm:$0xff]
  %v2725 = vld [vmem:[%s2723 + $0x8] sm:$0xff]
  %v2726 = vld [vmem:[%s2723 + $0x10] sm:$0xff]
  %v2727 = vld [vmem:[%s2723 + $0x18] sm:$0xff]
  %v2728 = vld [vmem:[%s2723 + $0x20] sm:$0xff]
  %v2729 = vld [vmem:[%s2723 + $0x28] sm:$0xff]
  %v2730 = vld [vmem:[%s2723 + $0x30] sm:$0xff]
  %v2731 = vld [vmem:[%s2723 + $0x38] sm:$0xff]
  %v2732 = vmul.f32 %v2715, %v2724
  %v2733 = vmul.f32 %v2716, %v2725
  %v2734 = vmul.f32 %v2717, %v2726
  %v2735 = vmul.f32 %v2718, %v2727
  %v2736 = vmul.f32 %v2719, %v2728
  %v2737 = vmul.f32 %v2720, %v2729
  %v2738 = vmul.f32 %v2721, %v2730
  %v2739 = vmul.f32 %v2722, %v2731
  %v2740 = vpack.c.bf16 %v2716, %v2715
  %v2741 = vpack.c.bf16 %v2718, %v2717
  %v2742 = vpack.c.bf16 %v2720, %v2719
  %v2743 = vpack.c.bf16 %v2722, %v2721
  %2744 = vmatprep.subr.bf16.mxu0 0
  %2745 = vmatpush1.bf16.msra.mxu0 %v672
  %2746 = vmatprep.subr.bf16.mxu0 0
  %2747 = vmatpush1.bf16.msra.mxu0 %v673
  %2748 = vmatprep.subr.bf16.mxu0 0
  %2749 = vmatpush1.bf16.msra.mxu0 %v674
  %2750 = vmatprep.subr.bf16.mxu0 0
  %2751 = vmatpush1.bf16.msra.mxu0 %v675
  %2752 = vmatprep.subr.bf16.mxu0 0
  %2753 = vmatpush1.bf16.msra.mxu0 %v676
  %2754 = vmatprep.subr.bf16.mxu0 0
  %2755 = vmatpush1.bf16.msra.mxu0 %v677
  %2756 = vmatprep.subr.bf16.mxu0 0
  %2757 = vmatpush1.bf16.msra.mxu0 %v678
  %2758 = vmatprep.subr.bf16.mxu0 0
  %2759 = vmatpush1.bf16.msra.mxu0 %v679
  %2760 = vmatprep.subr.bf16.mxu0 0
  %2761 = vmatpush1.bf16.msra.mxu0 0
  %2762 = vmatprep.subr.bf16.mxu0 0
  %2763 = vmatpush1.bf16.msra.mxu0 0
  %2764 = vmatprep.subr.bf16.mxu0 0
  %2765 = vmatpush1.bf16.msra.mxu0 0
  %2766 = vmatprep.subr.bf16.mxu0 0
  %2767 = vmatpush1.bf16.msra.mxu0 0
  %2768 = vmatprep.subr.bf16.mxu0 0
  %2769 = vmatpush1.bf16.msra.mxu0 0
  %2770 = vmatprep.subr.bf16.mxu0 0
  %2771 = vmatpush1.bf16.msra.mxu0 0
  %2772 = vmatprep.subr.bf16.mxu0 0
  %2773 = vmatpush1.bf16.msra.mxu0 0
  %2774 = vmatprep.subr.bf16.mxu0 0
  %2775 = vmatpush1.bf16.msra.mxu0 0
  %2776 = vmatprep.mubr.bf16.mxu0 0
  %2777 = vmatmul.mubr.bf16.gmra.mrb[0].mxu0 %v2740
  %v2778 = vpop.f32.mrb[0].mxu0
  %v2779 = vadd.f32 0.0, %v2778
  %v2780 = vpop.f32.mrb[0].mxu0
  %v2781 = vpop.f32.mrb[0].mxu0
  %v2782 = vadd.f32 0.0, %v2781
  %v2783 = vpop.f32.mrb[0].mxu0
  %2784 = vmatprep.mubr.bf16.mxu0 0
  %2785 = vmatmul.mubr.bf16.gmra.mrb[0].mxu0 %v2741
  %v2786 = vpop.f32.mrb[0].mxu0
  %v2787 = vadd.f32 0.0, %v2786
  %v2788 = vpop.f32.mrb[0].mxu0
  %v2789 = vpop.f32.mrb[0].mxu0
  %v2790 = vadd.f32 0.0, %v2789
  %v2791 = vpop.f32.mrb[0].mxu0
  %2792 = vmatprep.mubr.bf16.mxu0 0
  %2793 = vmatmul.mubr.bf16.gmra.mrb[0].mxu0 %v2742
  %v2794 = vpop.f32.mrb[0].mxu0
  %v2795 = vadd.f32 0.0, %v2794
  %v2796 = vpop.f32.mrb[0].mxu0
  %v2797 = vpop.f32.mrb[0].mxu0
  %v2798 = vadd.f32 0.0, %v2797
  %v2799 = vpop.f32.mrb[0].mxu0
  %2800 = vmatprep.mubr.bf16.mxu0 0
  %2801 = vmatmul.mubr.bf16.gmra.mrb[0].mxu0 %v2743
  %v2802 = vpop.f32.mrb[0].mxu0
  %v2803 = vadd.f32 0.0, %v2802
  %v2804 = vpop.f32.mrb[0].mxu0
  %v2805 = vpop.f32.mrb[0].mxu0
  %v2806 = vadd.f32 0.0, %v2805
  %v2807 = vpop.f32.mrb[0].mxu0
  %2808 = vdwg.mxu0
  %s2809 = scalar_lea.vmem %s9, 64
  %v2810 = vld [vmem:[%s2809] sm:$0xff]
  %v2811 = vld [vmem:[%s2809 + $0x8] sm:$0xff]
  %v2812 = vld [vmem:[%s2809 + $0x10] sm:$0xff]
  %v2813 = vld [vmem:[%s2809 + $0x18] sm:$0xff]
  %v2814 = vld [vmem:[%s2809 + $0x20] sm:$0xff]
  %v2815 = vld [vmem:[%s2809 + $0x28] sm:$0xff]
  %v2816 = vld [vmem:[%s2809 + $0x30] sm:$0xff]
  %v2817 = vld [vmem:[%s2809 + $0x38] sm:$0xff]
  %v2818 = vmul.f32 %v2779, %v2810
  %v2819 = vmul.f32 %v2782, %v2811
  %v2820 = vmul.f32 %v2787, %v2812
  %v2821 = vmul.f32 %v2790, %v2813
  %v2822 = vmul.f32 %v2795, %v2814
  %v2823 = vmul.f32 %v2798, %v2815
  %v2824 = vmul.f32 %v2803, %v2816
  %v2825 = vmul.f32 %v2806, %v2817
  %v2826 = vadd.f32 %v2732, %v2818
  %v2827 = vadd.f32 %v2733, %v2819
  %v2828 = vadd.f32 %v2734, %v2820
  %v2829 = vadd.f32 %v2735, %v2821
  %v2830 = vadd.f32 %v2736, %v2822
  %v2831 = vadd.f32 %v2737, %v2823
  %v2832 = vadd.f32 %v2738, %v2824
  %v2833 = vadd.f32 %v2739, %v2825
  %v2834 = vmul.f32 %v2826, %v810
  %v2835 = vmul.f32 %v2827, %v812
  %v2836 = vmul.f32 %v2828, %v814
  %v2837 = vmul.f32 %v2829, %v816
  %v2838 = vmul.f32 %v2830, %v818
  %v2839 = vmul.f32 %v2831, %v820
  %v2840 = vmul.f32 %v2832, %v822
  %v2841 = vmul.f32 %v2833, %v824
  %v2842 = vmul.f32 %v2826, %v826
  %v2843 = vmul.f32 %v2827, %v828
  %v2844 = vmul.f32 %v2828, %v830
  %v2845 = vmul.f32 %v2829, %v832
  %v2846 = vmul.f32 %v2830, %v834
  %v2847 = vmul.f32 %v2831, %v836
  %v2848 = vmul.f32 %v2832, %v838
  %v2849 = vmul.f32 %v2833, %v840
  %v2850 = vmul.f32 %v2826, %v842
  %v2851 = vmul.f32 %v2827, %v844
  %v2852 = vmul.f32 %v2828, %v846
  %v2853 = vmul.f32 %v2829, %v848
  %v2854 = vmul.f32 %v2830, %v850
  %v2855 = vmul.f32 %v2831, %v852
  %v2856 = vmul.f32 %v2832, %v854
  %v2857 = vmul.f32 %v2833, %v856
  %v2858 = vmul.f32 %v2826, %v858
  %v2859 = vmul.f32 %v2827, %v860
  %v2860 = vmul.f32 %v2828, %v862
  %v2861 = vmul.f32 %v2829, %v864
  %v2862 = vmul.f32 %v2830, %v866
  %v2863 = vmul.f32 %v2831, %v868
  %v2864 = vmul.f32 %v2832, %v870
  %v2865 = vmul.f32 %v2833, %v872
  %v2866 = vpack.c.bf16 %v2835, %v2834
  %v2867 = vpack.c.bf16 %v2837, %v2836
  %v2868 = vpack.c.bf16 %v2839, %v2838
  %v2869 = vpack.c.bf16 %v2841, %v2840
  %v2870 = vpack.c.bf16 %v2843, %v2842
  %v2871 = vpack.c.bf16 %v2845, %v2844
  %v2872 = vpack.c.bf16 %v2847, %v2846
  %v2873 = vpack.c.bf16 %v2849, %v2848
  %v2874 = vpack.c.bf16 %v2851, %v2850
  %v2875 = vpack.c.bf16 %v2853, %v2852
  %v2876 = vpack.c.bf16 %v2855, %v2854
  %v2877 = vpack.c.bf16 %v2857, %v2856
  %v2878 = vpack.c.bf16 %v2859, %v2858
  %v2879 = vpack.c.bf16 %v2861, %v2860
  %v2880 = vpack.c.bf16 %v2863, %v2862
  %v2881 = vpack.c.bf16 %v2865, %v2864
  %v2882 = vpack.c.bf16 %v2827, %v2826
  %v2883 = vpack.c.bf16 %v2829, %v2828
  %v2884 = vpack.c.bf16 %v2831, %v2830
  %v2885 = vpack.c.bf16 %v2833, %v2832
  %2902 = vrot.lane.b32.xlu0 %v2866, 96
  %v2903 = vpop.permute.xlu0 %2902
  %2904 = vrot.lane.b32.xlu0 %v2867, 96
  %v2905 = vpop.permute.xlu0 %2904
  %2906 = vrot.lane.b32.xlu0 %v2868, 96
  %v2907 = vpop.permute.xlu0 %2906
  %2908 = vrot.lane.b32.xlu0 %v2869, 96
  %v2909 = vpop.permute.xlu0 %2908
  %2910 = vrot.lane.b32.xlu0 %v2870, 96
  %v2911 = vpop.permute.xlu0 %2910
  %2912 = vrot.lane.b32.xlu0 %v2871, 96
  %v2913 = vpop.permute.xlu0 %2912
  %2914 = vrot.lane.b32.xlu0 %v2872, 96
  %v2915 = vpop.permute.xlu0 %2914
  %2916 = vrot.lane.b32.xlu0 %v2873, 96
  %v2917 = vpop.permute.xlu0 %2916
  %2918 = vrot.lane.b32.xlu0 %v2874, 96
  %v2919 = vpop.permute.xlu0 %2918
  %2920 = vrot.lane.b32.xlu0 %v2875, 96
  %v2921 = vpop.permute.xlu0 %2920
  %2922 = vrot.lane.b32.xlu0 %v2876, 96
  %v2923 = vpop.permute.xlu0 %2922
  %2924 = vrot.lane.b32.xlu0 %v2877, 96
  %v2925 = vpop.permute.xlu0 %2924
  %2926 = vrot.lane.b32.xlu0 %v2878, 96
  %v2927 = vpop.permute.xlu0 %2926
  %2928 = vrot.lane.b32.xlu0 %v2879, 96
  %v2929 = vpop.permute.xlu0 %2928
  %2930 = vrot.lane.b32.xlu0 %v2880, 96
  %v2931 = vpop.permute.xlu0 %2930
  %2932 = vrot.lane.b32.xlu0 %v2881, 96
  %v2933 = vpop.permute.xlu0 %2932
  %v2935 = vsel %vm274, %v2882, 0
  %v2938 = vsel %vm274, %v2883, 0
  %v2941 = vsel %vm274, %v2884, 0
  %v2944 = vsel %vm274, %v2885, 0
  %v2947 = vsel %vm274, %v2903, 0
  %v2950 = vsel %vm274, %v2905, 0
  %v2953 = vsel %vm274, %v2907, 0
  %v2956 = vsel %vm274, %v2909, 0
  %v2959 = vsel %vm274, %v2911, 0
  %v2962 = vsel %vm274, %v2913, 0
  %v2965 = vsel %vm274, %v2915, 0
  %v2968 = vsel %vm274, %v2917, 0
  %v2971 = vsel %vm274, %v2919, 0
  %v2974 = vsel %vm274, %v2921, 0
  %v2977 = vsel %vm274, %v2923, 0
  %v2980 = vsel %vm274, %v2925, 0
  %v2983 = vsel %vm274, %v2927, 0
  %v2986 = vsel %vm274, %v2929, 0
  %v2989 = vsel %vm274, %v2931, 0
  %v2992 = vsel %vm274, %v2933, 0
  %2994 = vmatprep.subr.bf16.mxu0 0
  %2995 = vmatpush1.bf16.xpose.msra.mxu0 %v2947
  %2996 = vmatprep.subr.bf16.mxu0 0
  %2997 = vmatpush1.bf16.xpose.msra.mxu0 %v2950
  %2998 = vmatprep.subr.bf16.mxu0 0
  %2999 = vmatpush1.bf16.xpose.msra.mxu0 %v2953
  %3000 = vmatprep.subr.bf16.mxu0 0
  %3001 = vmatpush1.bf16.xpose.msra.mxu0 %v2956
  %3002 = vmatprep.subr.bf16.mxu0 0
  %3003 = vmatpush1.bf16.xpose.msra.mxu0 %v2959
  %3004 = vmatprep.subr.bf16.mxu0 0
  %3005 = vmatpush1.bf16.xpose.msra.mxu0 %v2962
  %3006 = vmatprep.subr.bf16.mxu0 0
  %3007 = vmatpush1.bf16.xpose.msra.mxu0 %v2965
  %3008 = vmatprep.subr.bf16.mxu0 0
  %3009 = vmatpush1.bf16.xpose.msra.mxu0 %v2968
  %3010 = vmatprep.subr.bf16.mxu0 0
  %3011 = vmatpush1.bf16.xpose.msra.mxu0 %v2971
  %3012 = vmatprep.subr.bf16.mxu0 0
  %3013 = vmatpush1.bf16.xpose.msra.mxu0 %v2974
  %3014 = vmatprep.subr.bf16.mxu0 0
  %3015 = vmatpush1.bf16.xpose.msra.mxu0 %v2977
  %3016 = vmatprep.subr.bf16.mxu0 0
  %3017 = vmatpush1.bf16.xpose.msra.mxu0 %v2980
  %3018 = vmatprep.subr.bf16.mxu0 0
  %3019 = vmatpush1.bf16.xpose.msra.mxu0 %v2983
  %3020 = vmatprep.subr.bf16.mxu0 0
  %3021 = vmatpush1.bf16.xpose.msra.mxu0 %v2986
  %3022 = vmatprep.subr.bf16.mxu0 0
  %3023 = vmatpush1.bf16.xpose.msra.mxu0 %v2989
  %3024 = vmatprep.subr.bf16.mxu0 0
  %3025 = vmatpush1.bf16.xpose.msra.mxu0 %v2992
  %3026 = vmatprep.mubr.bf16.mxu0 0
  %3027 = vmatmul.mubr.bf16.gmra.mrb[0].mxu0 %v2935
  %v3028 = vpop.f32.mrb[0].mxu0
  %v3029 = vadd.f32 0.0, %v3028
  %v3030 = vpop.f32.mrb[0].mxu0
  %v3031 = vadd.f32 0.0, %v3030
  %v3032 = vpop.f32.mrb[0].mxu0
  %v3033 = vadd.f32 0.0, %v3032
  %v3034 = vpop.f32.mrb[0].mxu0
  %v3035 = vadd.f32 0.0, %v3034
  %3036 = vmatprep.mubr.bf16.mxu0 0
  %3037 = vmatmul.mubr.bf16.gmra.mrb[0].mxu0 %v2938
  %v3038 = vpop.f32.mrb[0].mxu0
  %v3039 = vadd.f32 0.0, %v3038
  %v3040 = vpop.f32.mrb[0].mxu0
  %v3041 = vadd.f32 0.0, %v3040
  %v3042 = vpop.f32.mrb[0].mxu0
  %v3043 = vadd.f32 0.0, %v3042
  %v3044 = vpop.f32.mrb[0].mxu0
  %v3045 = vadd.f32 0.0, %v3044
  %3046 = vmatprep.mubr.bf16.mxu0 0
  %3047 = vmatmul.mubr.bf16.gmra.mrb[0].mxu0 %v2941
  %v3048 = vpop.f32.mrb[0].mxu0
  %v3049 = vadd.f32 0.0, %v3048
  %v3050 = vpop.f32.mrb[0].mxu0
  %v3051 = vadd.f32 0.0, %v3050
  %v3052 = vpop.f32.mrb[0].mxu0
  %v3053 = vadd.f32 0.0, %v3052
  %v3054 = vpop.f32.mrb[0].mxu0
  %v3055 = vadd.f32 0.0, %v3054
  %3056 = vmatprep.mubr.bf16.mxu0 0
  %3057 = vmatmul.mubr.bf16.gmra.mrb[0].mxu0 %v2944
  %v3058 = vpop.f32.mrb[0].mxu0
  %v3059 = vadd.f32 0.0, %v3058
  %v3060 = vpop.f32.mrb[0].mxu0
  %v3061 = vadd.f32 0.0, %v3060
  %v3062 = vpop.f32.mrb[0].mxu0
  %v3063 = vadd.f32 0.0, %v3062
  %v3064 = vpop.f32.mrb[0].mxu0
  %v3065 = vadd.f32 0.0, %v3064
  %3066 = vdwg.mxu0
  %v3067 = vmul.f32 %v3029, 0.35355338
  %v3068 = vmul.f32 %v3031, 0.35355338
  %v3069 = vmul.f32 %v3033, 0.35355338
  %v3070 = vmul.f32 %v3035, 0.35355338
  %v3071 = vmul.f32 %v3039, 0.35355338
  %v3072 = vmul.f32 %v3041, 0.35355338
  %v3073 = vmul.f32 %v3043, 0.35355338
  %v3074 = vmul.f32 %v3045, 0.35355338
  %v3075 = vmul.f32 %v3049, 0.35355338
  %v3076 = vmul.f32 %v3051, 0.35355338
  %v3077 = vmul.f32 %v3053, 0.35355338
  %v3078 = vmul.f32 %v3055, 0.35355338
  %v3079 = vmul.f32 %v3059, 0.35355338
  %v3080 = vmul.f32 %v3061, 0.35355338
  %v3081 = vmul.f32 %v3063, 0.35355338
  %v3082 = vmul.f32 %v3065, 0.35355338
  %s3083 = scalar_lea.vmem %s7, 2
  %v3084 = vld [vmem:[%s3083] sm:$0x3]
  %v3086 = vlaneseq
  %v3087 = vshrl.u32 %v3086, 7
  %v3088 = vsub.s32 0, %v3087
  %v3089 = vrot.slane %v3084, %v3088
  %v3090 = vlaneseq
  %v3091 = vshrl.u32 %v3090, 7
  %v3092 = vsub.s32 1, %v3091
  %v3093 = vrot.slane %v3084, %v3092
  %v3096 = vadd.f32 %v3067, %v3089
  %v3097 = vadd.f32 %v3068, %v3093
  %v3098 = vadd.f32 %v3069, %v3089
  %v3099 = vadd.f32 %v3070, %v3093
  %v3100 = vadd.f32 %v3071, %v3089
  %v3101 = vadd.f32 %v3072, %v3093
  %v3102 = vadd.f32 %v3073, %v3089
  %v3103 = vadd.f32 %v3074, %v3093
  %v3104 = vadd.f32 %v3075, %v3089
  %v3105 = vadd.f32 %v3076, %v3093
  %v3106 = vadd.f32 %v3077, %v3089
  %v3107 = vadd.f32 %v3078, %v3093
  %v3108 = vadd.f32 %v3079, %v3089
  %v3109 = vadd.f32 %v3080, %v3093
  %v3110 = vadd.f32 %v3081, %v3089
  %v3111 = vadd.f32 %v3082, %v3093
  %v3112 = vmax.f32 %v3096, %v3097
  %3113 = vmax.xlane.f32.xlu0 %v3112
  %v3114 = vpop.xlane.xlu0 %3113
  %v3115 = vmax.f32 %v3098, %v3099
  %3116 = vmax.xlane.f32.xlu0 %v3115
  %v3117 = vpop.xlane.xlu0 %3116
  %v3118 = vmax.f32 %v3100, %v3101
  %3119 = vmax.xlane.f32.xlu0 %v3118
  %v3120 = vpop.xlane.xlu0 %3119
  %v3121 = vmax.f32 %v3102, %v3103
  %3122 = vmax.xlane.f32.xlu0 %v3121
  %v3123 = vpop.xlane.xlu0 %3122
  %v3124 = vmax.f32 %v3104, %v3105
  %3125 = vmax.xlane.f32.xlu0 %v3124
  %v3126 = vpop.xlane.xlu0 %3125
  %v3127 = vmax.f32 %v3106, %v3107
  %3128 = vmax.xlane.f32.xlu0 %v3127
  %v3129 = vpop.xlane.xlu0 %3128
  %v3130 = vmax.f32 %v3108, %v3109
  %3131 = vmax.xlane.f32.xlu0 %v3130
  %v3132 = vpop.xlane.xlu0 %3131
  %v3133 = vmax.f32 %v3110, %v3111
  %3134 = vmax.xlane.f32.xlu0 %v3133
  %v3135 = vpop.xlane.xlu0 %3134
  %v3136 = vsub.f32 %v3096, %v3114
  %v3137 = vsub.f32 %v3097, %v3114
  %v3138 = vsub.f32 %v3098, %v3117
  %v3139 = vsub.f32 %v3099, %v3117
  %v3140 = vsub.f32 %v3100, %v3120
  %v3141 = vsub.f32 %v3101, %v3120
  %v3142 = vsub.f32 %v3102, %v3123
  %v3143 = vsub.f32 %v3103, %v3123
  %v3144 = vsub.f32 %v3104, %v3126
  %v3145 = vsub.f32 %v3105, %v3126
  %v3146 = vsub.f32 %v3106, %v3129
  %v3147 = vsub.f32 %v3107, %v3129
  %v3148 = vsub.f32 %v3108, %v3132
  %v3149 = vsub.f32 %v3109, %v3132
  %v3150 = vsub.f32 %v3110, %v3135
  %v3151 = vsub.f32 %v3111, %v3135
  %v3152 = vmul.f32 %v3136, 1.442695
  %v3153 = vpow.pop %v3152
  %v3154 = vmul.f32 %v3137, 1.442695
  %v3155 = vpow.pop %v3154
  %v3156 = vmul.f32 %v3138, 1.442695
  %v3157 = vpow.pop %v3156
  %v3158 = vmul.f32 %v3139, 1.442695
  %v3159 = vpow.pop %v3158
  %v3160 = vmul.f32 %v3140, 1.442695
  %v3161 = vpow.pop %v3160
  %v3162 = vmul.f32 %v3141, 1.442695
  %v3163 = vpow.pop %v3162
  %v3164 = vmul.f32 %v3142, 1.442695
  %v3165 = vpow.pop %v3164
  %v3166 = vmul.f32 %v3143, 1.442695
  %v3167 = vpow.pop %v3166
  %v3168 = vmul.f32 %v3144, 1.442695
  %v3169 = vpow.pop %v3168
  %v3170 = vmul.f32 %v3145, 1.442695
  %v3171 = vpow.pop %v3170
  %v3172 = vmul.f32 %v3146, 1.442695
  %v3173 = vpow.pop %v3172
  %v3174 = vmul.f32 %v3147, 1.442695
  %v3175 = vpow.pop %v3174
  %v3176 = vmul.f32 %v3148, 1.442695
  %v3177 = vpow.pop %v3176
  %v3178 = vmul.f32 %v3149, 1.442695
  %v3179 = vpow.pop %v3178
  %v3180 = vmul.f32 %v3150, 1.442695
  %v3181 = vpow.pop %v3180
  %v3182 = vmul.f32 %v3151, 1.442695
  %v3183 = vpow.pop %v3182
  %v3184 = vpack.c.bf16 %v3157, %v3153
  %v3185 = vpack.c.bf16 %v3159, %v3155
  %v3186 = vpack.c.bf16 %v3165, %v3161
  %v3187 = vpack.c.bf16 %v3167, %v3163
  %v3188 = vpack.c.bf16 %v3173, %v3169
  %v3189 = vpack.c.bf16 %v3175, %v3171
  %v3190 = vpack.c.bf16 %v3181, %v3177
  %v3191 = vpack.c.bf16 %v3183, %v3179
  %v3192 = vmul.f32 %v2826, %v1263
  %v3193 = vmul.f32 %v2827, %v1265
  %v3194 = vmul.f32 %v2828, %v1267
  %v3195 = vmul.f32 %v2829, %v1269
  %v3196 = vmul.f32 %v2830, %v1271
  %v3197 = vmul.f32 %v2831, %v1273
  %v3198 = vmul.f32 %v2832, %v1275
  %v3199 = vmul.f32 %v2833, %v1277
  %v3200 = vmul.f32 %v2826, %v1279
  %v3201 = vmul.f32 %v2827, %v1281
  %v3202 = vmul.f32 %v2828, %v1283
  %v3203 = vmul.f32 %v2829, %v1285
  %v3204 = vmul.f32 %v2830, %v1287
  %v3205 = vmul.f32 %v2831, %v1289
  %v3206 = vmul.f32 %v2832, %v1291
  %v3207 = vmul.f32 %v2833, %v1293
  %v3208 = vmul.f32 %v2826, %v1295
  %v3209 = vmul.f32 %v2827, %v1297
  %v3210 = vmul.f32 %v2828, %v1299
  %v3211 = vmul.f32 %v2829, %v1301
  %v3212 = vmul.f32 %v2830, %v1303
  %v3213 = vmul.f32 %v2831, %v1305
  %v3214 = vmul.f32 %v2832, %v1307
  %v3215 = vmul.f32 %v2833, %v1309
  %v3216 = vmul.f32 %v2826, %v1311
  %v3217 = vmul.f32 %v2827, %v1313
  %v3218 = vmul.f32 %v2828, %v1315
  %v3219 = vmul.f32 %v2829, %v1317
  %v3220 = vmul.f32 %v2830, %v1319
  %v3221 = vmul.f32 %v2831, %v1321
  %v3222 = vmul.f32 %v2832, %v1323
  %v3223 = vmul.f32 %v2833, %v1325
  %v3224 = vpack.c.bf16 %v3193, %v3192
  %v3225 = vpack.c.bf16 %v3195, %v3194
  %v3226 = vpack.c.bf16 %v3197, %v3196
  %v3227 = vpack.c.bf16 %v3199, %v3198
  %v3228 = vpack.c.bf16 %v3201, %v3200
  %v3229 = vpack.c.bf16 %v3203, %v3202
  %v3230 = vpack.c.bf16 %v3205, %v3204
  %v3231 = vpack.c.bf16 %v3207, %v3206
  %v3232 = vpack.c.bf16 %v3209, %v3208
  %v3233 = vpack.c.bf16 %v3211, %v3210
  %v3234 = vpack.c.bf16 %v3213, %v3212
  %v3235 = vpack.c.bf16 %v3215, %v3214
  %v3236 = vpack.c.bf16 %v3217, %v3216
  %v3237 = vpack.c.bf16 %v3219, %v3218
  %v3238 = vpack.c.bf16 %v3221, %v3220
  %v3239 = vpack.c.bf16 %v3223, %v3222
  %3256 = vrot.lane.b32.xlu0 %v3224, 64
  %v3257 = vpop.permute.xlu0 %3256
  %3258 = vrot.lane.b32.xlu0 %v3225, 64
  %v3259 = vpop.permute.xlu0 %3258
  %3260 = vrot.lane.b32.xlu0 %v3226, 64
  %v3261 = vpop.permute.xlu0 %3260
  %3262 = vrot.lane.b32.xlu0 %v3227, 64
  %v3263 = vpop.permute.xlu0 %3262
  %3264 = vrot.lane.b32.xlu0 %v3228, 64
  %v3265 = vpop.permute.xlu0 %3264
  %3266 = vrot.lane.b32.xlu0 %v3229, 64
  %v3267 = vpop.permute.xlu0 %3266
  %3268 = vrot.lane.b32.xlu0 %v3230, 64
  %v3269 = vpop.permute.xlu0 %3268
  %3270 = vrot.lane.b32.xlu0 %v3231, 64
  %v3271 = vpop.permute.xlu0 %3270
  %3272 = vrot.lane.b32.xlu0 %v3232, 64
  %v3273 = vpop.permute.xlu0 %3272
  %3274 = vrot.lane.b32.xlu0 %v3233, 64
  %v3275 = vpop.permute.xlu0 %3274
  %3276 = vrot.lane.b32.xlu0 %v3234, 64
  %v3277 = vpop.permute.xlu0 %3276
  %3278 = vrot.lane.b32.xlu0 %v3235, 64
  %v3279 = vpop.permute.xlu0 %3278
  %3280 = vrot.lane.b32.xlu0 %v3236, 64
  %v3281 = vpop.permute.xlu0 %3280
  %3282 = vrot.lane.b32.xlu0 %v3237, 64
  %v3283 = vpop.permute.xlu0 %3282
  %3284 = vrot.lane.b32.xlu0 %v3238, 64
  %v3285 = vpop.permute.xlu0 %3284
  %3286 = vrot.lane.b32.xlu0 %v3239, 64
  %v3287 = vpop.permute.xlu0 %3286
  %3304 = vmatprep.subr.bf16.mxu0 0
  %3305 = vmatpush1.bf16.msra.mxu0 %v3257
  %3306 = vmatprep.subr.bf16.mxu0 0
  %3307 = vmatpush1.bf16.msra.mxu0 %v3259
  %3308 = vmatprep.subr.bf16.mxu0 0
  %3309 = vmatpush1.bf16.msra.mxu0 %v3261
  %3310 = vmatprep.subr.bf16.mxu0 0
  %3311 = vmatpush1.bf16.msra.mxu0 %v3263
  %3312 = vmatprep.subr.bf16.mxu0 0
  %3313 = vmatpush1.bf16.msra.mxu0 %v3265
  %3314 = vmatprep.subr.bf16.mxu0 0
  %3315 = vmatpush1.bf16.msra.mxu0 %v3267
  %3316 = vmatprep.subr.bf16.mxu0 0
  %3317 = vmatpush1.bf16.msra.mxu0 %v3269
  %3318 = vmatprep.subr.bf16.mxu0 0
  %3319 = vmatpush1.bf16.msra.mxu0 %v3271
  %3320 = vmatprep.subr.bf16.mxu0 0
  %3321 = vmatpush1.bf16.msra.mxu0 %v3273
  %3322 = vmatprep.subr.bf16.mxu0 0
  %3323 = vmatpush1.bf16.msra.mxu0 %v3275
  %3324 = vmatprep.subr.bf16.mxu0 0
  %3325 = vmatpush1.bf16.msra.mxu0 %v3277
  %3326 = vmatprep.subr.bf16.mxu0 0
  %3327 = vmatpush1.bf16.msra.mxu0 %v3279
  %3328 = vmatprep.subr.bf16.mxu0 0
  %3329 = vmatpush1.bf16.msra.mxu0 %v3281
  %3330 = vmatprep.subr.bf16.mxu0 0
  %3331 = vmatpush1.bf16.msra.mxu0 %v3283
  %3332 = vmatprep.subr.bf16.mxu0 0
  %3333 = vmatpush1.bf16.msra.mxu0 %v3285
  %3334 = vmatprep.subr.bf16.mxu0 0
  %3335 = vmatpush1.bf16.msra.mxu0 %v3287
  %3336 = vmatprep.mubr.bf16.mxu0 %v3185
  %3337 = vmatmul.mubr.bf16.gmra.mrb[0].mxu0 %v3184
  %v3338 = vpop.f32.mrb[0].mxu0
  %v3339 = vadd.f32 0.0, %v3338
  %v3340 = vpop.f32.mrb[0].mxu0
  %v3341 = vpop.f32.mrb[0].mxu0
  %v3342 = vadd.f32 0.0, %v3341
  %v3343 = vpop.f32.mrb[0].mxu0
  %3344 = vmatprep.mubr.bf16.mxu0 %v3187
  %3345 = vmatmul.mubr.bf16.gmra.mrb[0].mxu0 %v3186
  %v3346 = vpop.f32.mrb[0].mxu0
  %v3347 = vadd.f32 0.0, %v3346
  %v3348 = vpop.f32.mrb[0].mxu0
  %v3349 = vpop.f32.mrb[0].mxu0
  %v3350 = vadd.f32 0.0, %v3349
  %v3351 = vpop.f32.mrb[0].mxu0
  %3352 = vmatprep.mubr.bf16.mxu0 %v3189
  %3353 = vmatmul.mubr.bf16.gmra.mrb[0].mxu0 %v3188
  %v3354 = vpop.f32.mrb[0].mxu0
  %v3355 = vadd.f32 0.0, %v3354
  %v3356 = vpop.f32.mrb[0].mxu0
  %v3357 = vpop.f32.mrb[0].mxu0
  %v3358 = vadd.f32 0.0, %v3357
  %v3359 = vpop.f32.mrb[0].mxu0
  %3360 = vmatprep.mubr.bf16.mxu0 %v3191
  %3361 = vmatmul.mubr.bf16.gmra.mrb[0].mxu0 %v3190
  %v3362 = vpop.f32.mrb[0].mxu0
  %v3363 = vadd.f32 0.0, %v3362
  %v3364 = vpop.f32.mrb[0].mxu0
  %v3365 = vpop.f32.mrb[0].mxu0
  %v3366 = vadd.f32 0.0, %v3365
  %v3367 = vpop.f32.mrb[0].mxu0
  %3368 = vdwg.mxu0
  %3369 = vmatprep.subr.bf16.mxu0 0
  %3370 = vmatpush1.bf16.msra.mxu0 %v107
  %3371 = vmatprep.subr.bf16.mxu0 0
  %3372 = vmatpush1.bf16.msra.mxu0 %v108
  %3373 = vmatprep.subr.bf16.mxu0 0
  %3374 = vmatpush1.bf16.msra.mxu0 %v109
  %3375 = vmatprep.subr.bf16.mxu0 0
  %3376 = vmatpush1.bf16.msra.mxu0 %v110
  %3377 = vmatprep.subr.bf16.mxu0 0
  %3378 = vmatpush1.bf16.msra.mxu0 %v111
  %3379 = vmatprep.subr.bf16.mxu0 0
  %3380 = vmatpush1.bf16.msra.mxu0 %v112
  %3381 = vmatprep.subr.bf16.mxu0 0
  %3382 = vmatpush1.bf16.msra.mxu0 %v113
  %3383 = vmatprep.subr.bf16.mxu0 0
  %3384 = vmatpush1.bf16.msra.mxu0 %v114
  %3385 = vmatprep.subr.bf16.mxu0 0
  %3386 = vmatpush1.bf16.msra.mxu0 %v115
  %3387 = vmatprep.subr.bf16.mxu0 0
  %3388 = vmatpush1.bf16.msra.mxu0 %v116
  %3389 = vmatprep.subr.bf16.mxu0 0
  %3390 = vmatpush1.bf16.msra.mxu0 %v117
  %3391 = vmatprep.subr.bf16.mxu0 0
  %3392 = vmatpush1.bf16.msra.mxu0 %v118
  %3393 = vmatprep.subr.bf16.mxu0 0
  %3394 = vmatpush1.bf16.msra.mxu0 %v119
  %3395 = vmatprep.subr.bf16.mxu0 0
  %3396 = vmatpush1.bf16.msra.mxu0 %v120
  %3397 = vmatprep.subr.bf16.mxu0 0
  %3398 = vmatpush1.bf16.msra.mxu0 %v121
  %3399 = vmatprep.subr.bf16.mxu0 0
  %3400 = vmatpush1.bf16.msra.mxu0 %v122
  %3401 = vmatprep.mubr.bf16.mxu0 %v3185
  %3402 = vmatmul.mubr.bf16.gmra.mrb[0].mxu0 %v3184
  %v3403 = vpop.f32.mrb[0].mxu0
  %v3404 = vadd.f32 0.0, %v3403
  %v3405 = vpop.f32.mrb[0].mxu0
  %v3406 = vpop.f32.mrb[0].mxu0
  %v3407 = vadd.f32 0.0, %v3406
  %v3408 = vpop.f32.mrb[0].mxu0
  %3409 = vmatprep.mubr.bf16.mxu0 %v3187
  %3410 = vmatmul.mubr.bf16.gmra.mrb[0].mxu0 %v3186
  %v3411 = vpop.f32.mrb[0].mxu0
  %v3412 = vadd.f32 0.0, %v3411
  %v3413 = vpop.f32.mrb[0].mxu0
  %v3414 = vpop.f32.mrb[0].mxu0
  %v3415 = vadd.f32 0.0, %v3414
  %v3416 = vpop.f32.mrb[0].mxu0
  %3417 = vmatprep.mubr.bf16.mxu0 %v3189
  %3418 = vmatmul.mubr.bf16.gmra.mrb[0].mxu0 %v3188
  %v3419 = vpop.f32.mrb[0].mxu0
  %v3420 = vadd.f32 0.0, %v3419
  %v3421 = vpop.f32.mrb[0].mxu0
  %v3422 = vpop.f32.mrb[0].mxu0
  %v3423 = vadd.f32 0.0, %v3422
  %v3424 = vpop.f32.mrb[0].mxu0
  %3425 = vmatprep.mubr.bf16.mxu0 %v3191
  %3426 = vmatmul.mubr.bf16.gmra.mrb[0].mxu0 %v3190
  %v3427 = vpop.f32.mrb[0].mxu0
  %v3428 = vadd.f32 0.0, %v3427
  %v3429 = vpop.f32.mrb[0].mxu0
  %v3430 = vpop.f32.mrb[0].mxu0
  %v3431 = vadd.f32 0.0, %v3430
  %v3432 = vpop.f32.mrb[0].mxu0
  %3433 = vdwg.mxu0
  %v3434 = vrcp.pop %v3404
  %v3435 = vrcp.pop %v3407
  %v3436 = vrcp.pop %v3412
  %v3437 = vrcp.pop %v3415
  %v3438 = vrcp.pop %v3420
  %v3439 = vrcp.pop %v3423
  %v3440 = vrcp.pop %v3428
  %v3441 = vrcp.pop %v3431
  %v3442 = vmul.f32 %v3339, %v3434
  %v3443 = vmul.f32 %v3342, %v3435
  %v3444 = vmul.f32 %v3347, %v3436
  %v3445 = vmul.f32 %v3350, %v3437
  %v3446 = vmul.f32 %v3355, %v3438
  %v3447 = vmul.f32 %v3358, %v3439
  %v3448 = vmul.f32 %v3363, %v3440
  %v3449 = vmul.f32 %v3366, %v3441
  %v3450 = vld [vmem:[%s17] sm:$0xf]
  %v3451 = vld [vmem:[%s17 + $0x4] sm:$0xf]
  %v3452 = vld [vmem:[%s17 + $0x8] sm:$0xf]
  %v3453 = vld [vmem:[%s17 + $0xc] sm:$0xf]
  %v3454 = vpack.c.bf16 %v3443, %v3442
  %v3455 = vpack.c.bf16 %v3445, %v3444
  %v3456 = vpack.c.bf16 %v3447, %v3446
  %v3457 = vpack.c.bf16 %v3449, %v3448
  %v3462 = vunpack.c.l.b16 %v3450
  %v3463 = vunpack.c.l.b16 %v3451
  %v3464 = vunpack.c.l.b16 %v3452
  %v3465 = vunpack.c.l.b16 %v3453
  %v3466 = vpack.c.b16 %v3463, %v3462
  %v3467 = vpack.c.b16 %v3465, %v3464
  %v3471 = vsel %vm274, %v3454, 0
  %v3474 = vsel %vm274, %v3455, 0
  %v3477 = vsel %vm274, %v3456, 0
  %v3480 = vsel %vm274, %v3457, 0
  %3482 = vmatprep.subr.bf16.mxu0 0
  %3483 = vmatpush1.bf16.msra.mxu0 %v3466
  %3484 = vmatprep.subr.bf16.mxu0 0
  %3485 = vmatpush1.bf16.msra.mxu0 %v3467
  %3486 = vmatprep.subr.bf16.mxu0 0
  %3487 = vmatpush1.bf16.msra.mxu0 0
  %3488 = vmatprep.subr.bf16.mxu0 0
  %3489 = vmatpush1.bf16.msra.mxu0 0
  %3490 = vmatprep.subr.bf16.mxu0 0
  %3491 = vmatpush1.bf16.msra.mxu0 0
  %3492 = vmatprep.subr.bf16.mxu0 0
  %3493 = vmatpush1.bf16.msra.mxu0 0
  %3494 = vmatprep.subr.bf16.mxu0 0
  %3495 = vmatpush1.bf16.msra.mxu0 0
  %3496 = vmatprep.subr.bf16.mxu0 0
  %3497 = vmatpush1.bf16.msra.mxu0 0
  %3498 = vmatprep.subr.bf16.mxu0 0
  %3499 = vmatpush1.bf16.msra.mxu0 0
  %3500 = vmatprep.subr.bf16.mxu0 0
  %3501 = vmatpush1.bf16.msra.mxu0 0
  %3502 = vmatprep.subr.bf16.mxu0 0
  %3503 = vmatpush1.bf16.msra.mxu0 0
  %3504 = vmatprep.subr.bf16.mxu0 0
  %3505 = vmatpush1.bf16.msra.mxu0 0
  %3506 = vmatprep.subr.bf16.mxu0 0
  %3507 = vmatpush1.bf16.msra.mxu0 0
  %3508 = vmatprep.subr.bf16.mxu0 0
  %3509 = vmatpush1.bf16.msra.mxu0 0
  %3510 = vmatprep.subr.bf16.mxu0 0
  %3511 = vmatpush1.bf16.msra.mxu0 0
  %3512 = vmatprep.subr.bf16.mxu0 0
  %3513 = vmatpush1.bf16.msra.mxu0 0
  %3514 = vmatprep.mubr.bf16.mxu0 0
  %3515 = vmatmul.mubr.bf16.gmra.mrb[0].mxu0 %v3471
  %v3516 = vpop.f32.mrb[0].mxu0
  %v3517 = vadd.f32 0.0, %v3516
  %v3518 = vpop.f32.mrb[0].mxu0
  %v3519 = vpop.f32.mrb[0].mxu0
  %v3520 = vadd.f32 0.0, %v3519
  %v3521 = vpop.f32.mrb[0].mxu0
  %3522 = vmatprep.mubr.bf16.mxu0 0
  %3523 = vmatmul.mubr.bf16.gmra.mrb[0].mxu0 %v3474
  %v3524 = vpop.f32.mrb[0].mxu0
  %v3525 = vadd.f32 0.0, %v3524
  %v3526 = vpop.f32.mrb[0].mxu0
  %v3527 = vpop.f32.mrb[0].mxu0
  %v3528 = vadd.f32 0.0, %v3527
  %v3529 = vpop.f32.mrb[0].mxu0
  %3530 = vmatprep.mubr.bf16.mxu0 0
  %3531 = vmatmul.mubr.bf16.gmra.mrb[0].mxu0 %v3477
  %v3532 = vpop.f32.mrb[0].mxu0
  %v3533 = vadd.f32 0.0, %v3532
  %v3534 = vpop.f32.mrb[0].mxu0
  %v3535 = vpop.f32.mrb[0].mxu0
  %v3536 = vadd.f32 0.0, %v3535
  %v3537 = vpop.f32.mrb[0].mxu0
  %3538 = vmatprep.mubr.bf16.mxu0 0
  %3539 = vmatmul.mubr.bf16.gmra.mrb[0].mxu0 %v3480
  %v3540 = vpop.f32.mrb[0].mxu0
  %v3541 = vadd.f32 0.0, %v3540
  %v3542 = vpop.f32.mrb[0].mxu0
  %v3543 = vpop.f32.mrb[0].mxu0
  %v3544 = vadd.f32 0.0, %v3543
  %v3545 = vpop.f32.mrb[0].mxu0
  %3546 = vdwg.mxu0
  %v3547 = vtanh.pop %v2426
  %v3548 = vmul.f32 %v3517, %v3517
  %v3549 = vmul.f32 %v3520, %v3520
  %v3550 = vmul.f32 %v3525, %v3525
  %v3551 = vmul.f32 %v3528, %v3528
  %v3552 = vmul.f32 %v3533, %v3533
  %v3553 = vmul.f32 %v3536, %v3536
  %v3554 = vmul.f32 %v3541, %v3541
  %v3555 = vmul.f32 %v3544, %v3544
  %v3556 = vsel %vm274, %v3548, 0.0
  %3557 = vadd.xlane.f32.xlu0 %v3556
  %v3558 = vpop.xlane.xlu0 %3557
  %v3559 = vsel %vm274, %v3549, 0.0
  %3560 = vadd.xlane.f32.xlu0 %v3559
  %v3561 = vpop.xlane.xlu0 %3560
  %v3562 = vsel %vm274, %v3550, 0.0
  %3563 = vadd.xlane.f32.xlu0 %v3562
  %v3564 = vpop.xlane.xlu0 %3563
  %v3565 = vsel %vm274, %v3551, 0.0
  %3566 = vadd.xlane.f32.xlu0 %v3565
  %v3567 = vpop.xlane.xlu0 %3566
  %v3568 = vsel %vm274, %v3552, 0.0
  %3569 = vadd.xlane.f32.xlu0 %v3568
  %v3570 = vpop.xlane.xlu0 %3569
  %v3571 = vsel %vm274, %v3553, 0.0
  %3572 = vadd.xlane.f32.xlu0 %v3571
  %v3573 = vpop.xlane.xlu0 %3572
  %v3574 = vsel %vm274, %v3554, 0.0
  %3575 = vadd.xlane.f32.xlu0 %v3574
  %v3576 = vpop.xlane.xlu0 %3575
  %v3577 = vsel %vm274, %v3555, 0.0
  %3578 = vadd.xlane.f32.xlu0 %v3577
  %v3579 = vpop.xlane.xlu0 %3578
  %v3580 = vmul.f32 %v3558, %v299
  %v3581 = vmul.f32 %v3561, %v299
  %v3582 = vmul.f32 %v3564, %v299
  %v3583 = vmul.f32 %v3567, %v299
  %v3584 = vmul.f32 %v3570, %v299
  %v3585 = vmul.f32 %v3573, %v299
  %v3586 = vmul.f32 %v3576, %v299
  %v3587 = vmul.f32 %v3579, %v299
  %v3588 = vadd.f32 %v3580, 1e-06
  %v3589 = vadd.f32 %v3581, 1e-06
  %v3590 = vadd.f32 %v3582, 1e-06
  %v3591 = vadd.f32 %v3583, 1e-06
  %v3592 = vadd.f32 %v3584, 1e-06
  %v3593 = vadd.f32 %v3585, 1e-06
  %v3594 = vadd.f32 %v3586, 1e-06
  %v3595 = vadd.f32 %v3587, 1e-06
  %v3596 = vrsqrt.pop %v3588
  %v3597 = vrsqrt.pop %v3589
  %v3598 = vrsqrt.pop %v3590
  %v3599 = vrsqrt.pop %v3591
  %v3600 = vrsqrt.pop %v3592
  %v3601 = vrsqrt.pop %v3593
  %v3602 = vrsqrt.pop %v3594
  %v3603 = vrsqrt.pop %v3595
  %v3604 = vmul.f32 %v3517, %v3596
  %v3605 = vmul.f32 %v3520, %v3597
  %v3606 = vmul.f32 %v3525, %v3598
  %v3607 = vmul.f32 %v3528, %v3599
  %v3608 = vmul.f32 %v3533, %v3600
  %v3609 = vmul.f32 %v3536, %v3601
  %v3610 = vmul.f32 %v3541, %v3602
  %v3611 = vmul.f32 %v3544, %v3603
  %v3612 = vld [vmem:[%s18] sm:$0x1]
  %v3614 = vlaneseq
  %v3615 = vshrl.u32 %v3614, 7
  %v3616 = vsub.s32 0, %v3615
  %v3617 = vrot.slane %v3612, %v3616
  %v3619 = vmul.f32 %v3604, %v3617
  %v3620 = vmul.f32 %v3605, %v3617
  %v3621 = vmul.f32 %v3606, %v3617
  %v3622 = vmul.f32 %v3607, %v3617
  %v3623 = vmul.f32 %v3608, %v3617
  %v3624 = vmul.f32 %v3609, %v3617
  %v3625 = vmul.f32 %v3610, %v3617
  %v3626 = vmul.f32 %v3611, %v3617
  %v3628 = vlaneseq
  %v3629 = vshrl.u32 %v3628, 7
  %v3630 = vsub.s32 0, %v3629
  %v3631 = vrot.slane %v3547, %v3630
  %v3633 = vmul.f32 %v3631, %v3619
  %v3634 = vmul.f32 %v3631, %v3620
  %v3635 = vmul.f32 %v3631, %v3621
  %v3636 = vmul.f32 %v3631, %v3622
  %v3637 = vmul.f32 %v3631, %v3623
  %v3638 = vmul.f32 %v3631, %v3624
  %v3639 = vmul.f32 %v3631, %v3625
  %v3640 = vmul.f32 %v3631, %v3626
  %v3641 = vadd.f32 %v2393, %v3633
  %v3642 = vadd.f32 %v2396, %v3634
  %v3643 = vadd.f32 %v2401, %v3635
  %v3644 = vadd.f32 %v2404, %v3636
  %v3645 = vadd.f32 %v2409, %v3637
  %v3646 = vadd.f32 %v2412, %v3638
  %v3647 = vadd.f32 %v2417, %v3639
  %v3648 = vadd.f32 %v2420, %v3640
  %v3649 = vmul.f32 %v3641, %v3641
  %v3650 = vmul.f32 %v3642, %v3642
  %v3651 = vmul.f32 %v3643, %v3643
  %v3652 = vmul.f32 %v3644, %v3644
  %v3653 = vmul.f32 %v3645, %v3645
  %v3654 = vmul.f32 %v3646, %v3646
  %v3655 = vmul.f32 %v3647, %v3647
  %v3656 = vmul.f32 %v3648, %v3648
  %v3657 = vsel %vm274, %v3649, 0.0
  %3658 = vadd.xlane.f32.xlu0 %v3657
  %v3659 = vpop.xlane.xlu0 %3658
  %v3660 = vsel %vm274, %v3650, 0.0
  %3661 = vadd.xlane.f32.xlu0 %v3660
  %v3662 = vpop.xlane.xlu0 %3661
  %v3663 = vsel %vm274, %v3651, 0.0
  %3664 = vadd.xlane.f32.xlu0 %v3663
  %v3665 = vpop.xlane.xlu0 %3664
  %v3666 = vsel %vm274, %v3652, 0.0
  %3667 = vadd.xlane.f32.xlu0 %v3666
  %v3668 = vpop.xlane.xlu0 %3667
  %v3669 = vsel %vm274, %v3653, 0.0
  %3670 = vadd.xlane.f32.xlu0 %v3669
  %v3671 = vpop.xlane.xlu0 %3670
  %v3672 = vsel %vm274, %v3654, 0.0
  %3673 = vadd.xlane.f32.xlu0 %v3672
  %v3674 = vpop.xlane.xlu0 %3673
  %v3675 = vsel %vm274, %v3655, 0.0
  %3676 = vadd.xlane.f32.xlu0 %v3675
  %v3677 = vpop.xlane.xlu0 %3676
  %v3678 = vsel %vm274, %v3656, 0.0
  %3679 = vadd.xlane.f32.xlu0 %v3678
  %v3680 = vpop.xlane.xlu0 %3679
  %v3681 = vmul.f32 %v3659, %v299
  %v3682 = vmul.f32 %v3662, %v299
  %v3683 = vmul.f32 %v3665, %v299
  %v3684 = vmul.f32 %v3668, %v299
  %v3685 = vmul.f32 %v3671, %v299
  %v3686 = vmul.f32 %v3674, %v299
  %v3687 = vmul.f32 %v3677, %v299
  %v3688 = vmul.f32 %v3680, %v299
  %v3689 = vadd.f32 %v3681, 1e-06
  %v3690 = vadd.f32 %v3682, 1e-06
  %v3691 = vadd.f32 %v3683, 1e-06
  %v3692 = vadd.f32 %v3684, 1e-06
  %v3693 = vadd.f32 %v3685, 1e-06
  %v3694 = vadd.f32 %v3686, 1e-06
  %v3695 = vadd.f32 %v3687, 1e-06
  %v3696 = vadd.f32 %v3688, 1e-06
  %v3697 = vrsqrt.pop %v3689
  %v3698 = vrsqrt.pop %v3690
  %v3699 = vrsqrt.pop %v3691
  %v3700 = vrsqrt.pop %v3692
  %v3701 = vrsqrt.pop %v3693
  %v3702 = vrsqrt.pop %v3694
  %v3703 = vrsqrt.pop %v3695
  %v3704 = vrsqrt.pop %v3696
  %v3705 = vmul.f32 %v3641, %v3697
  %v3706 = vmul.f32 %v3642, %v3698
  %v3707 = vmul.f32 %v3643, %v3699
  %v3708 = vmul.f32 %v3644, %v3700
  %v3709 = vmul.f32 %v3645, %v3701
  %v3710 = vmul.f32 %v3646, %v3702
  %v3711 = vmul.f32 %v3647, %v3703
  %v3712 = vmul.f32 %v3648, %v3704
  %v3713 = vld [vmem:[%s19] sm:$0x1]
  %v3715 = vlaneseq
  %v3716 = vshrl.u32 %v3715, 7
  %v3717 = vsub.s32 0, %v3716
  %v3718 = vrot.slane %v3713, %v3717
  %v3720 = vmul.f32 %v3705, %v3718
  %v3721 = vmul.f32 %v3706, %v3718
  %v3722 = vmul.f32 %v3707, %v3718
  %v3723 = vmul.f32 %v3708, %v3718
  %v3724 = vmul.f32 %v3709, %v3718
  %v3725 = vmul.f32 %v3710, %v3718
  %v3726 = vmul.f32 %v3711, %v3718
  %v3727 = vmul.f32 %v3712, %v3718
  %v3728 = vadd.f32 %v2428, 1.0
  %v3730 = vlaneseq
  %v3731 = vshrl.u32 %v3730, 7
  %v3732 = vsub.s32 0, %v3731
  %v3733 = vrot.slane %v3728, %v3732
  %v3735 = vmul.f32 %v3720, %v3733
  %v3736 = vmul.f32 %v3721, %v3733
  %v3737 = vmul.f32 %v3722, %v3733
  %v3738 = vmul.f32 %v3723, %v3733
  %v3739 = vmul.f32 %v3724, %v3733
  %v3740 = vmul.f32 %v3725, %v3733
  %v3741 = vmul.f32 %v3726, %v3733
  %v3742 = vmul.f32 %v3727, %v3733
  %v3743 = vld [vmem:[%s20] sm:$0xf]
  %v3744 = vld [vmem:[%s20 + $0x4] sm:$0xf]
  %v3745 = vld [vmem:[%s20 + $0x8] sm:$0xf]
  %v3746 = vld [vmem:[%s20 + $0xc] sm:$0xf]
  %v3747 = vpack.c.bf16 %v3736, %v3735
  %v3748 = vpack.c.bf16 %v3738, %v3737
  %v3749 = vpack.c.bf16 %v3740, %v3739
  %v3750 = vpack.c.bf16 %v3742, %v3741
  %v3755 = vunpack.c.l.b16 %v3743
  %v3756 = vunpack.c.l.b16 %v3744
  %v3757 = vunpack.c.l.b16 %v3745
  %v3758 = vunpack.c.l.b16 %v3746
  %v3759 = vpack.c.b16 %v3756, %v3755
  %v3760 = vpack.c.b16 %v3758, %v3757
  %v3764 = vsel %vm274, %v3747, 0
  %v3767 = vsel %vm274, %v3748, 0
  %v3770 = vsel %vm274, %v3749, 0
  %v3773 = vsel %vm274, %v3750, 0
  %3775 = vmatprep.subr.bf16.mxu0 0
  %3776 = vmatpush1.bf16.msra.mxu0 %v3759
  %3777 = vmatprep.subr.bf16.mxu0 0
  %3778 = vmatpush1.bf16.msra.mxu0 %v3760
  %3779 = vmatprep.subr.bf16.mxu0 0
  %3780 = vmatpush1.bf16.msra.mxu0 0
  %3781 = vmatprep.subr.bf16.mxu0 0
  %3782 = vmatpush1.bf16.msra.mxu0 0
  %3783 = vmatprep.subr.bf16.mxu0 0
  %3784 = vmatpush1.bf16.msra.mxu0 0
  %3785 = vmatprep.subr.bf16.mxu0 0
  %3786 = vmatpush1.bf16.msra.mxu0 0
  %3787 = vmatprep.subr.bf16.mxu0 0
  %3788 = vmatpush1.bf16.msra.mxu0 0
  %3789 = vmatprep.subr.bf16.mxu0 0
  %3790 = vmatpush1.bf16.msra.mxu0 0
  %3791 = vmatprep.subr.bf16.mxu0 0
  %3792 = vmatpush1.bf16.msra.mxu0 0
  %3793 = vmatprep.subr.bf16.mxu0 0
  %3794 = vmatpush1.bf16.msra.mxu0 0
  %3795 = vmatprep.subr.bf16.mxu0 0
  %3796 = vmatpush1.bf16.msra.mxu0 0
  %3797 = vmatprep.subr.bf16.mxu0 0
  %3798 = vmatpush1.bf16.msra.mxu0 0
  %3799 = vmatprep.subr.bf16.mxu0 0
  %3800 = vmatpush1.bf16.msra.mxu0 0
  %3801 = vmatprep.subr.bf16.mxu0 0
  %3802 = vmatpush1.bf16.msra.mxu0 0
  %3803 = vmatprep.subr.bf16.mxu0 0
  %3804 = vmatpush1.bf16.msra.mxu0 0
  %3805 = vmatprep.subr.bf16.mxu0 0
  %3806 = vmatpush1.bf16.msra.mxu0 0
  %3807 = vmatprep.mubr.bf16.mxu0 0
  %3808 = vmatmul.mubr.bf16.gmra.mrb[0].mxu0 %v3764
  %v3809 = vpop.f32.mrb[0].mxu0
  %v3810 = vadd.f32 0.0, %v3809
  %v3811 = vpop.f32.mrb[0].mxu0
  %v3812 = vpop.f32.mrb[0].mxu0
  %v3813 = vadd.f32 0.0, %v3812
  %v3814 = vpop.f32.mrb[0].mxu0
  %3815 = vmatprep.mubr.bf16.mxu0 0
  %3816 = vmatmul.mubr.bf16.gmra.mrb[0].mxu0 %v3767
  %v3817 = vpop.f32.mrb[0].mxu0
  %v3818 = vadd.f32 0.0, %v3817
  %v3819 = vpop.f32.mrb[0].mxu0
  %v3820 = vpop.f32.mrb[0].mxu0
  %v3821 = vadd.f32 0.0, %v3820
  %v3822 = vpop.f32.mrb[0].mxu0
  %3823 = vmatprep.mubr.bf16.mxu0 0
  %3824 = vmatmul.mubr.bf16.gmra.mrb[0].mxu0 %v3770
  %v3825 = vpop.f32.mrb[0].mxu0
  %v3826 = vadd.f32 0.0, %v3825
  %v3827 = vpop.f32.mrb[0].mxu0
  %v3828 = vpop.f32.mrb[0].mxu0
  %v3829 = vadd.f32 0.0, %v3828
  %v3830 = vpop.f32.mrb[0].mxu0
  %3831 = vmatprep.mubr.bf16.mxu0 0
  %3832 = vmatmul.mubr.bf16.gmra.mrb[0].mxu0 %v3773
  %v3833 = vpop.f32.mrb[0].mxu0
  %v3834 = vadd.f32 0.0, %v3833
  %v3835 = vpop.f32.mrb[0].mxu0
  %v3836 = vpop.f32.mrb[0].mxu0
  %v3837 = vadd.f32 0.0, %v3836
  %v3838 = vpop.f32.mrb[0].mxu0
  %3839 = vdwg.mxu0
  %v3840 = vsub.f32 0.0, %v3810
  %v3841 = vsub.f32 0.0, %v3813
  %v3842 = vsub.f32 0.0, %v3818
  %v3843 = vsub.f32 0.0, %v3821
  %v3844 = vsub.f32 0.0, %v3826
  %v3845 = vsub.f32 0.0, %v3829
  %v3846 = vsub.f32 0.0, %v3834
  %v3847 = vsub.f32 0.0, %v3837
  %v3848 = vmul.f32 %v3840, 1.442695
  %v3849 = vpow.pop %v3848
  %v3850 = vmul.f32 %v3841, 1.442695
  %v3851 = vpow.pop %v3850
  %v3852 = vmul.f32 %v3842, 1.442695
  %v3853 = vpow.pop %v3852
  %v3854 = vmul.f32 %v3843, 1.442695
  %v3855 = vpow.pop %v3854
  %v3856 = vmul.f32 %v3844, 1.442695
  %v3857 = vpow.pop %v3856
  %v3858 = vmul.f32 %v3845, 1.442695
  %v3859 = vpow.pop %v3858
  %v3860 = vmul.f32 %v3846, 1.442695
  %v3861 = vpow.pop %v3860
  %v3862 = vmul.f32 %v3847, 1.442695
  %v3863 = vpow.pop %v3862
  %v3864 = vadd.f32 %v3849, 1.0
  %v3865 = vadd.f32 %v3851, 1.0
  %v3866 = vadd.f32 %v3853, 1.0
  %v3867 = vadd.f32 %v3855, 1.0
  %v3868 = vadd.f32 %v3857, 1.0
  %v3869 = vadd.f32 %v3859, 1.0
  %v3870 = vadd.f32 %v3861, 1.0
  %v3871 = vadd.f32 %v3863, 1.0
  %v3872 = vrcp.pop %v3864
  %v3873 = vrcp.pop %v3865
  %v3874 = vrcp.pop %v3866
  %v3875 = vrcp.pop %v3867
  %v3876 = vrcp.pop %v3868
  %v3877 = vrcp.pop %v3869
  %v3878 = vrcp.pop %v3870
  %v3879 = vrcp.pop %v3871
  %v3880 = vmul.f32 %v3810, %v3872
  %v3881 = vmul.f32 %v3813, %v3873
  %v3882 = vmul.f32 %v3818, %v3874
  %v3883 = vmul.f32 %v3821, %v3875
  %v3884 = vmul.f32 %v3826, %v3876
  %v3885 = vmul.f32 %v3829, %v3877
  %v3886 = vmul.f32 %v3834, %v3878
  %v3887 = vmul.f32 %v3837, %v3879
  %3896 = vrot.lane.b32.xlu0 %v3810, 64
  %v3897 = vpop.permute.xlu0 %3896
  %3898 = vrot.lane.b32.xlu0 %v3813, 64
  %v3899 = vpop.permute.xlu0 %3898
  %3900 = vrot.lane.b32.xlu0 %v3818, 64
  %v3901 = vpop.permute.xlu0 %3900
  %3902 = vrot.lane.b32.xlu0 %v3821, 64
  %v3903 = vpop.permute.xlu0 %3902
  %3904 = vrot.lane.b32.xlu0 %v3826, 64
  %v3905 = vpop.permute.xlu0 %3904
  %3906 = vrot.lane.b32.xlu0 %v3829, 64
  %v3907 = vpop.permute.xlu0 %3906
  %3908 = vrot.lane.b32.xlu0 %v3834, 64
  %v3909 = vpop.permute.xlu0 %3908
  %3910 = vrot.lane.b32.xlu0 %v3837, 64
  %v3911 = vpop.permute.xlu0 %3910
  %v3920 = vmul.f32 %v3880, %v3897
  %v3921 = vmul.f32 %v3881, %v3899
  %v3922 = vmul.f32 %v3882, %v3901
  %v3923 = vmul.f32 %v3883, %v3903
  %v3924 = vmul.f32 %v3884, %v3905
  %v3925 = vmul.f32 %v3885, %v3907
  %v3926 = vmul.f32 %v3886, %v3909
  %v3927 = vmul.f32 %v3887, %v3911
  %v3928 = vld [vmem:[%s21] sm:$0xf]
  %v3929 = vld [vmem:[%s21 + $0x4] sm:$0xf]
  %v3930 = vld [vmem:[%s21 + $0x8] sm:$0xf]
  %v3931 = vld [vmem:[%s21 + $0xc] sm:$0xf]
  %v3932 = vld [vmem:[%s21 + $0x10] sm:$0xf]
  %v3933 = vld [vmem:[%s21 + $0x14] sm:$0xf]
  %v3934 = vld [vmem:[%s21 + $0x18] sm:$0xf]
  %v3935 = vld [vmem:[%s21 + $0x1c] sm:$0xf]
  %v3936 = vpack.c.bf16 %v3921, %v3920
  %v3937 = vpack.c.bf16 %v3923, %v3922
  %v3938 = vpack.c.bf16 %v3925, %v3924
  %v3939 = vpack.c.bf16 %v3927, %v3926
  %v3948 = vunpack.c.l.b16 %v3928
  %v3949 = vunpack.c.l.b16 %v3929
  %v3950 = vunpack.c.l.b16 %v3930
  %v3951 = vunpack.c.l.b16 %v3931
  %v3952 = vunpack.c.l.b16 %v3932
  %v3953 = vunpack.c.l.b16 %v3933
  %v3954 = vunpack.c.l.b16 %v3934
  %v3955 = vunpack.c.l.b16 %v3935
  %v3956 = vpack.c.b16 %v3949, %v3948
  %v3957 = vpack.c.b16 %v3951, %v3950
  %v3958 = vpack.c.b16 %v3953, %v3952
  %v3959 = vpack.c.b16 %v3955, %v3954
  %v3965 = vsel %vm2130, %v3936, 0
  %v3968 = vsel %vm2130, %v3937, 0
  %v3971 = vsel %vm2130, %v3938, 0
  %v3974 = vsel %vm2130, %v3939, 0
  %3976 = vmatprep.subr.bf16.mxu0 0
  %3977 = vmatpush1.bf16.msra.mxu0 %v3956
  %3978 = vmatprep.subr.bf16.mxu0 0
  %3979 = vmatpush1.bf16.msra.mxu0 %v3957
  %3980 = vmatprep.subr.bf16.mxu0 0
  %3981 = vmatpush1.bf16.msra.mxu0 %v3958
  %3982 = vmatprep.subr.bf16.mxu0 0
  %3983 = vmatpush1.bf16.msra.mxu0 %v3959
  %3984 = vmatprep.subr.bf16.mxu0 0
  %3985 = vmatpush1.bf16.msra.mxu0 0
  %3986 = vmatprep.subr.bf16.mxu0 0
  %3987 = vmatpush1.bf16.msra.mxu0 0
  %3988 = vmatprep.subr.bf16.mxu0 0
  %3989 = vmatpush1.bf16.msra.mxu0 0
  %3990 = vmatprep.subr.bf16.mxu0 0
  %3991 = vmatpush1.bf16.msra.mxu0 0
  %3992 = vmatprep.subr.bf16.mxu0 0
  %3993 = vmatpush1.bf16.msra.mxu0 0
  %3994 = vmatprep.subr.bf16.mxu0 0
  %3995 = vmatpush1.bf16.msra.mxu0 0
  %3996 = vmatprep.subr.bf16.mxu0 0
  %3997 = vmatpush1.bf16.msra.mxu0 0
  %3998 = vmatprep.subr.bf16.mxu0 0
  %3999 = vmatpush1.bf16.msra.mxu0 0
  %4000 = vmatprep.subr.bf16.mxu0 0
  %4001 = vmatpush1.bf16.msra.mxu0 0
  %4002 = vmatprep.subr.bf16.mxu0 0
  %4003 = vmatpush1.bf16.msra.mxu0 0
  %4004 = vmatprep.subr.bf16.mxu0 0
  %4005 = vmatpush1.bf16.msra.mxu0 0
  %4006 = vmatprep.subr.bf16.mxu0 0
  %4007 = vmatpush1.bf16.msra.mxu0 0
  %4008 = vmatprep.mubr.bf16.mxu0 0
  %4009 = vmatmul.mubr.bf16.gmra.mrb[0].mxu0 %v3965
  %v4010 = vpop.f32.mrb[0].mxu0
  %v4011 = vadd.f32 0.0, %v4010
  %v4012 = vpop.f32.mrb[0].mxu0
  %v4013 = vpop.f32.mrb[0].mxu0
  %v4014 = vadd.f32 0.0, %v4013
  %v4015 = vpop.f32.mrb[0].mxu0
  %4016 = vmatprep.mubr.bf16.mxu0 0
  %4017 = vmatmul.mubr.bf16.gmra.mrb[0].mxu0 %v3968
  %v4018 = vpop.f32.mrb[0].mxu0
  %v4019 = vadd.f32 0.0, %v4018
  %v4020 = vpop.f32.mrb[0].mxu0
  %v4021 = vpop.f32.mrb[0].mxu0
  %v4022 = vadd.f32 0.0, %v4021
  %v4023 = vpop.f32.mrb[0].mxu0
  %4024 = vmatprep.mubr.bf16.mxu0 0
  %4025 = vmatmul.mubr.bf16.gmra.mrb[0].mxu0 %v3971
  %v4026 = vpop.f32.mrb[0].mxu0
  %v4027 = vadd.f32 0.0, %v4026
  %v4028 = vpop.f32.mrb[0].mxu0
  %v4029 = vpop.f32.mrb[0].mxu0
  %v4030 = vadd.f32 0.0, %v4029
  %v4031 = vpop.f32.mrb[0].mxu0
  %4032 = vmatprep.mubr.bf16.mxu0 0
  %4033 = vmatmul.mubr.bf16.gmra.mrb[0].mxu0 %v3974
  %v4034 = vpop.f32.mrb[0].mxu0
  %v4035 = vadd.f32 0.0, %v4034
  %v4036 = vpop.f32.mrb[0].mxu0
  %v4037 = vpop.f32.mrb[0].mxu0
  %v4038 = vadd.f32 0.0, %v4037
  %v4039 = vpop.f32.mrb[0].mxu0
  %4040 = vdwg.mxu0
  %v4041 = vtanh.pop %v2430
  %v4042 = vmul.f32 %v4011, %v4011
  %v4043 = vmul.f32 %v4014, %v4014
  %v4044 = vmul.f32 %v4019, %v4019
  %v4045 = vmul.f32 %v4022, %v4022
  %v4046 = vmul.f32 %v4027, %v4027
  %v4047 = vmul.f32 %v4030, %v4030
  %v4048 = vmul.f32 %v4035, %v4035
  %v4049 = vmul.f32 %v4038, %v4038
  %v4050 = vsel %vm274, %v4042, 0.0
  %4051 = vadd.xlane.f32.xlu0 %v4050
  %v4052 = vpop.xlane.xlu0 %4051
  %v4053 = vsel %vm274, %v4043, 0.0
  %4054 = vadd.xlane.f32.xlu0 %v4053
  %v4055 = vpop.xlane.xlu0 %4054
  %v4056 = vsel %vm274, %v4044, 0.0
  %4057 = vadd.xlane.f32.xlu0 %v4056
  %v4058 = vpop.xlane.xlu0 %4057
  %v4059 = vsel %vm274, %v4045, 0.0
  %4060 = vadd.xlane.f32.xlu0 %v4059
  %v4061 = vpop.xlane.xlu0 %4060
  %v4062 = vsel %vm274, %v4046, 0.0
  %4063 = vadd.xlane.f32.xlu0 %v4062
  %v4064 = vpop.xlane.xlu0 %4063
  %v4065 = vsel %vm274, %v4047, 0.0
  %4066 = vadd.xlane.f32.xlu0 %v4065
  %v4067 = vpop.xlane.xlu0 %4066
  %v4068 = vsel %vm274, %v4048, 0.0
  %4069 = vadd.xlane.f32.xlu0 %v4068
  %v4070 = vpop.xlane.xlu0 %4069
  %v4071 = vsel %vm274, %v4049, 0.0
  %4072 = vadd.xlane.f32.xlu0 %v4071
  %v4073 = vpop.xlane.xlu0 %4072
  %v4074 = vmul.f32 %v4052, %v299
  %v4075 = vmul.f32 %v4055, %v299
  %v4076 = vmul.f32 %v4058, %v299
  %v4077 = vmul.f32 %v4061, %v299
  %v4078 = vmul.f32 %v4064, %v299
  %v4079 = vmul.f32 %v4067, %v299
  %v4080 = vmul.f32 %v4070, %v299
  %v4081 = vmul.f32 %v4073, %v299
  %v4082 = vadd.f32 %v4074, 1e-06
  %v4083 = vadd.f32 %v4075, 1e-06
  %v4084 = vadd.f32 %v4076, 1e-06
  %v4085 = vadd.f32 %v4077, 1e-06
  %v4086 = vadd.f32 %v4078, 1e-06
  %v4087 = vadd.f32 %v4079, 1e-06
  %v4088 = vadd.f32 %v4080, 1e-06
  %v4089 = vadd.f32 %v4081, 1e-06
  %v4090 = vrsqrt.pop %v4082
  %v4091 = vrsqrt.pop %v4083
  %v4092 = vrsqrt.pop %v4084
  %v4093 = vrsqrt.pop %v4085
  %v4094 = vrsqrt.pop %v4086
  %v4095 = vrsqrt.pop %v4087
  %v4096 = vrsqrt.pop %v4088
  %v4097 = vrsqrt.pop %v4089
  %v4098 = vmul.f32 %v4011, %v4090
  %v4099 = vmul.f32 %v4014, %v4091
  %v4100 = vmul.f32 %v4019, %v4092
  %v4101 = vmul.f32 %v4022, %v4093
  %v4102 = vmul.f32 %v4027, %v4094
  %v4103 = vmul.f32 %v4030, %v4095
  %v4104 = vmul.f32 %v4035, %v4096
  %v4105 = vmul.f32 %v4038, %v4097
  %v4106 = vld [vmem:[%s22] sm:$0x1]
  %v4108 = vlaneseq
  %v4109 = vshrl.u32 %v4108, 7
  %v4110 = vsub.s32 0, %v4109
  %v4111 = vrot.slane %v4106, %v4110
  %v4113 = vmul.f32 %v4098, %v4111
  %v4114 = vmul.f32 %v4099, %v4111
  %v4115 = vmul.f32 %v4100, %v4111
  %v4116 = vmul.f32 %v4101, %v4111
  %v4117 = vmul.f32 %v4102, %v4111
  %v4118 = vmul.f32 %v4103, %v4111
  %v4119 = vmul.f32 %v4104, %v4111
  %v4120 = vmul.f32 %v4105, %v4111
  %v4122 = vlaneseq
  %v4123 = vshrl.u32 %v4122, 7
  %v4124 = vsub.s32 0, %v4123
  %v4125 = vrot.slane %v4041, %v4124
  %v4127 = vmul.f32 %v4125, %v4113
  %v4128 = vmul.f32 %v4125, %v4114
  %v4129 = vmul.f32 %v4125, %v4115
  %v4130 = vmul.f32 %v4125, %v4116
  %v4131 = vmul.f32 %v4125, %v4117
  %v4132 = vmul.f32 %v4125, %v4118
  %v4133 = vmul.f32 %v4125, %v4119
  %v4134 = vmul.f32 %v4125, %v4120
  %v4135 = vadd.f32 %v3641, %v4127
  %v4136 = vadd.f32 %v3642, %v4128
  %v4137 = vadd.f32 %v3643, %v4129
  %v4138 = vadd.f32 %v3644, %v4130
  %v4139 = vadd.f32 %v3645, %v4131
  %v4140 = vadd.f32 %v3646, %v4132
  %v4141 = vadd.f32 %v3647, %v4133
  %v4142 = vadd.f32 %v3648, %v4134
  %s4143 = scalar_lea.vmem %s23, 64
  %4144 = vst.msk [vmem:[%s4143] sm:$0xff] %vm274, %v4135
  %4145 = vst.msk [vmem:[%s4143 + $0x8] sm:$0xff] %vm274, %v4136
  %4146 = vst.msk [vmem:[%s4143 + $0x10] sm:$0xff] %vm274, %v4137
  %4147 = vst.msk [vmem:[%s4143 + $0x18] sm:$0xff] %vm274, %v4138
  %4148 = vst.msk [vmem:[%s4143 + $0x20] sm:$0xff] %vm274, %v4139
  %4149 = vst.msk [vmem:[%s4143 + $0x28] sm:$0xff] %vm274, %v4140
  %4150 = vst.msk [vmem:[%s4143 + $0x30] sm:$0xff] %vm274, %v4141
  %4151 = vst.msk [vmem:[%s4143 + $0x38] sm:$0xff] %vm274, %v4142
  // Predicated region
  $region94: #{_forward_device.3} parent=0 // pred_check
    _
  $region95: #{_forward_device.3} parent=0 // pred_check_branch
    %4153 = sbr.rel (0) target = $region97
  $region96: #{_forward_device.3} parent=0 // pred_region
    _
  $region97: #{_forward_device.3} parent=0 // pred_fallthru
    _
  // Predicated region
  $region98: #{_forward_device.3} parent=0 // pred_check
    _
  $region99: #{_forward_device.3} parent=0 // pred_check_branch
    %4155 = sbr.rel (0) target = $region101
  $region100: #{_forward_device.3} parent=0 // pred_region
    _
  $region101: #{_forward_device.3} parent=0 // pred_fallthru
    _

</llo_original>
